<compile_context>
chip_gen: v6e
topology: v6e:2x2x1
jax: 0.10.0
libtpu: 0.0.40
codegen_flags: <defaults>
</compile_context>

<pallas_src>
import functools

import numpy as np
import jax
import jax.numpy as jnp
from jax import lax
from jax.experimental import pallas as pl
from jax.experimental.pallas import tpu as pltpu


# ----------------------------- Pallas kernel ------------------------------ #

def _actor_fused_kernel(cols1_ref, w1m_ref, b1_ref, s_ref, w2k_ref, b2_ref,
                        fw1_ref, fb1_ref, fw2_ref, fb2_ref,
                        o_ref, y1_ref, y2_ref,
                        *, n_pos, np_rows, c2, hidden):
    f32 = jnp.float32

    # conv1 (matmul on im2col'd input) + ReLU                 y1: (N*H1*W1, C1)
    y1_ref[...] = jnp.maximum(
        jnp.dot(cols1_ref[...], w1m_ref[...], preferred_element_type=f32)
        + b1_ref[...], 0.0)

    # conv2 + ReLU.  For each kernel tap (kh, kw) a 0/1 selection matrix gathers
    # (with zero padding) the required y1 rows into position-major, batch-padded
    # order; the tap's (Ci, Co) weight slice is applied by matmul.
    #                                                          y2: (P*NP, C2)
    y2_ref[...] = jnp.zeros_like(y2_ref)
    for i in range(4):
        t = jnp.dot(y1_ref[...], w2k_ref[i], preferred_element_type=f32)
        y2_ref[...] += jnp.dot(s_ref[i], t, preferred_element_type=f32)
    y2_ref[...] = jnp.maximum(y2_ref[...] + b2_ref[...], 0.0)

    # flatten (NCHW order) + fc1 + ReLU, expressed as a sum over spatial
    # positions of tile-aligned (NP, C2) x (C2, hidden) matmuls.  The NCHW
    # flatten order is baked into fw1's row permutation (done in the wrapper).
    h = jnp.zeros((np_rows, hidden), f32)
    for p in range(n_pos):
        h = h + jnp.dot(y2_ref[np_rows * p:np_rows * (p + 1), :],
                        fw1_ref[c2 * p:c2 * (p + 1), :],
                        preferred_element_type=f32)
    h = jnp.maximum(h + fb1_ref[...], 0.0)

    # fc2 + Tanh
    out = jnp.tanh(jnp.dot(h, fw2_ref[...], preferred_element_type=f32)
                   + fb2_ref[...])
    o_ref[...] = out.astype(o_ref.dtype)


# ------------------------------ JAX glue ---------------------------------- #

def _im2col_k2s2p2(x):
    """Conv2d(kernel=2, stride=2, padding=2) patch extraction for the INPUT.

    stride == kernel => the padded input splits into non-overlapping 2x2 tiles,
    so im2col is a pad + reshape + transpose (done in XLA, under jit).
    x: (N, C, H, W) -> (N*Ho*Wo, C*4) with rows ordered (n, ho, wo) and
    columns ordered (c, kh, kw).
    """
    N, C, H, W = x.shape
    xp = jnp.pad(x, ((0, 0), (0, 0), (2, 2), (2, 2)))
    Ho, Wo = (H + 4) // 2, (W + 4) // 2
    xt = xp.reshape(N, C, Ho, 2, Wo, 2).transpose(0, 2, 4, 1, 3, 5)
    return xt.reshape(N * Ho * Wo, C * 4), Ho, Wo


def _build_conv2_selection(N, H1, W1, np_rows):
    """0/1 matrices (one per kernel tap) mapping conv1 rows (n*H1*W1 + r*W1 + s)
    to conv2 im2col rows (p*np_rows + n), with zeros for the padding=2 border.
    Shape-only -> built with numpy at trace time (constant-folded under jit)."""
    H2 = (H1 + 2) // 2 + 1
    W2 = (W1 + 2) // 2 + 1
    P = H2 * W2
    S = np.zeros((4, P * np_rows, N * H1 * W1), np.float32)
    for kh in range(2):
        for kw in range(2):
            i = kh * 2 + kw
            for ho in range(H2):
                r = 2 * ho + kh - 2
                if not 0 <= r < H1:
                    continue
                for wo in range(W2):
                    s = 2 * wo + kw - 2
                    if not 0 <= s < W1:
                        continue
                    p = ho * W2 + wo
                    for n in range(N):
                        S[i, p * np_rows + n, (n * H1 + r) * W1 + s] = 1.0
    return S, H2, W2


@jax.jit
def actor_forward(x, params):
    """Fused Pallas implementation of Actor.forward (NCHW input)."""
    w1, b1, w2, b2, fw1, fb1, fw2, fb2 = params
    N, C, H, W = x.shape
    C1 = w1.shape[0]
    C2 = w2.shape[0]
    hidden = fw1.shape[1]
    A = fw2.shape[1]
    f32 = jnp.float32

    # conv1 im2col (depends on x; fuses under jit)
    cols1, H1, W1 = _im2col_k2s2p2(x.astype(f32))              # (N*H1*W1, C*4)
    M1 = N * H1 * W1

    # shape-only constants (trace-time numpy)
    np_rows = max(8, -(-N // 8) * 8)                            # batch padded to sublane tile
    S_np, H2, W2 = _build_conv2_selection(N, H1, W1, np_rows)
    n_pos = H2 * W2
    M2 = n_pos * np_rows

    # one-time weight re-layouts (tiny; fused under jit)
    w1m = w1.reshape(C1, -1).T.astype(f32)                      # (C*4, C1)
    w2k = w2.transpose(2, 3, 1, 0).reshape(4, w2.shape[1], C2).astype(f32)  # per-tap (Ci, Co)
    fw1_perm = (fw1.reshape(C2, n_pos, hidden)                  # rows (c, p) -> (p, c)
                .transpose(1, 0, 2).reshape(n_pos * C2, hidden).astype(f32))

    kernel = functools.partial(_actor_fused_kernel, n_pos=n_pos,
                               np_rows=np_rows, c2=C2, hidden=hidden)

    def whole(shape):
        return pl.BlockSpec(shape, lambda: (0,) * len(shape))

    out = pl.pallas_call(
        kernel,
        out_shape=jax.ShapeDtypeStruct((np_rows, A), f32),
        in_specs=[
            whole((M1, C * 4)),            # cols1
            whole((C * 4, C1)),            # conv1 weight (matmul form)
            whole((1, C1)),                # conv1 bias
            whole((4, M2, M1)),            # conv2 selection matrices
            whole((4, w2.shape[1], C2)),   # conv2 per-tap weights
            whole((1, C2)),                # conv2 bias
            whole((n_pos * C2, hidden)),   # fc1 weight (rows permuted for NHWC)
            whole((1, hidden)),            # fc1 bias
            whole((hidden, A)),            # fc2 weight
            whole((1, A)),                 # fc2 bias
        ],
        out_specs=whole((np_rows, A)),
        scratch_shapes=[
            pltpu.VMEM((M1, C1), f32),     # conv1 activation (VMEM-resident)
            pltpu.VMEM((M2, C2), f32),     # conv2 activation (position-major)
        ],
    )(cols1, w1m, b1.reshape(1, C1).astype(f32), jnp.asarray(S_np),
      w2k, b2.reshape(1, C2).astype(f32), fw1_perm,
      fb1.reshape(1, hidden).astype(f32), fw2.astype(f32),
      fb2.reshape(1, A).astype(f32))

    return out[:N]


# --------------------------- pure-JAX reference ---------------------------- #

def ref_forward(x, params):
    w1, b1, w2, b2, fw1, fb1, fw2, fb2 = params
    dn = ("NCHW", "OIHW", "NCHW")
    y = lax.conv_general_dilated(x, w1, (2, 2), [(2, 2), (2, 2)],
                                 dimension_numbers=dn)
    y = jax.nn.relu(y + b1.reshape(1, -1, 1, 1))
    y = lax.conv_general_dilated(y, w2, (2, 2), [(2, 2), (2, 2)],
                                 dimension_numbers=dn)
    y = jax.nn.relu(y + b2.reshape(1, -1, 1, 1))
    flat = y.reshape(y.shape[0], -1)
    h = jax.nn.relu(flat @ fw1 + fb1)
    return jnp.tanh(h @ fw2 + fb2)


# --------------------------------- main ------------------------------------ #

if __name__ == "__main__":
    batch, in_channel, H, W, num_action = 2, 4, 16, 16, 4

    # Derived sizes (matches the PyTorch conv2d_size_out math): 16 -> 10 -> 7
    convh = convw = ((H + 4 - 2) // 2 + 1 + 4 - 2) // 2 + 1  # = 7
    linear_input_size = convw * convh * 16                   # = 784
    hidden = 16

    key = jax.random.PRNGKey(0)
    ks = jax.random.split(key, 9)
    scale = 0.1
    params = (
        scale * jax.random.normal(ks[0], (16, in_channel, 2, 2), jnp.float32),      # conv1 w
        scale * jax.random.normal(ks[1], (16,), jnp.float32),                        # conv1 b
        scale * jax.random.normal(ks[2], (16, 16, 2, 2), jnp.float32),               # conv2 w
        scale * jax.random.normal(ks[3], (16,), jnp.float32),                        # conv2 b
        scale * jax.random.normal(ks[4], (linear_input_size, hidden), jnp.float32),  # fc1 w
        scale * jax.random.normal(ks[5], (hidden,), jnp.float32),                    # fc1 b
        scale * jax.random.normal(ks[6], (hidden, num_action), jnp.float32),         # fc2 w
        scale * jax.random.normal(ks[7], (num_action,), jnp.float32),                # fc2 b
    )

    x = jax.random.normal(ks[8], (batch, in_channel, H, W), jnp.float32)

    out = jax.block_until_ready(actor_forward(x, params))
    assert out.shape == (batch, num_action), out.shape

    ref = jax.block_until_ready(ref_forward(x, params))
    assert jnp.allclose(out, ref, atol=5e-5, rtol=5e-5), (
        f"max abs diff {jnp.max(jnp.abs(out - ref))}"
    )

    print("KERNEL_OK")
</pallas_src>

<mosaic_0001>
module attributes {stable_mosaic.version = 11 : i64} {
  func.func @_actor_fused_kernel(%arg0: memref<200x16xf32, #tpu.memory_space<vmem>>, %arg1: memref<16x16xf32, #tpu.memory_space<vmem>>, %arg2: memref<1x16xf32, #tpu.memory_space<vmem>>, %arg3: memref<4x392x200xf32, #tpu.memory_space<vmem>>, %arg4: memref<4x16x16xf32, #tpu.memory_space<vmem>>, %arg5: memref<1x16xf32, #tpu.memory_space<vmem>>, %arg6: memref<784x16xf32, #tpu.memory_space<vmem>>, %arg7: memref<1x16xf32, #tpu.memory_space<vmem>>, %arg8: memref<16x4xf32, #tpu.memory_space<vmem>>, %arg9: memref<1x4xf32, #tpu.memory_space<vmem>>, %arg10: memref<8x4xf32, #tpu.memory_space<vmem>>, %arg11: memref<200x16xf32, #tpu.memory_space<vmem>>, %arg12: memref<392x16xf32, #tpu.memory_space<vmem>>) attributes {dimension_semantics = [], scalar_prefetch = 0 : i64, scratch_operands = 2 : i64, tpu.core_type = #tpu.core_type<tc>} {
    %c0 = arith.constant 0 : index
    %c0_0 = arith.constant 0 : index
    %0 = vector.load %arg0[%c0, %c0_0] : memref<200x16xf32, #tpu.memory_space<vmem>>, vector<200x16xf32>
    %c0_1 = arith.constant 0 : index
    %c0_2 = arith.constant 0 : index
    %1 = vector.load %arg1[%c0_1, %c0_2] : memref<16x16xf32, #tpu.memory_space<vmem>>, vector<16x16xf32>
    %cst = arith.constant dense<0.000000e+00> : vector<200x16xf32>
    %2 = tpu.matmul %0, %1, %cst {dimension_numbers = #tpu.dot_dimension_numbers<[1], [0], [0], [1], [0, 0, 1, 1], [], []>} : vector<200x16xf32>, vector<16x16xf32>, vector<200x16xf32> -> vector<200x16xf32>
    %c0_3 = arith.constant 0 : index
    %c0_4 = arith.constant 0 : index
    %3 = vector.load %arg2[%c0_3, %c0_4] : memref<1x16xf32, #tpu.memory_space<vmem>>, vector<1x16xf32>
    %4 = vector.broadcast %3 : vector<1x16xf32> to vector<200x16xf32>
    %5 = arith.addf %2, %4 : vector<200x16xf32>
    %cst_5 = arith.constant 0.000000e+00 : f32
    %6 = vector.broadcast %cst_5 : f32 to vector<200x16xf32>
    %7 = arith.maximumf %5, %6 : vector<200x16xf32>
    %c0_6 = arith.constant 0 : index
    %c0_7 = arith.constant 0 : index
    %8 = vector.load %arg11[%c0_6, %c0_7] : memref<200x16xf32, #tpu.memory_space<vmem>>, vector<200x16xf32>
    tpu.vector_store %arg11[%c0_6, %c0_7], %7 {strides = array<i32>} : memref<200x16xf32, #tpu.memory_space<vmem>>, vector<200x16xf32>,
    %cst_8 = arith.constant 0.000000e+00 : f32
    %9 = vector.broadcast %cst_8 : f32 to vector<392x16xf32>
    %c0_9 = arith.constant 0 : index
    %c0_10 = arith.constant 0 : index
    %10 = vector.load %arg12[%c0_9, %c0_10] : memref<392x16xf32, #tpu.memory_space<vmem>>, vector<392x16xf32>
    tpu.vector_store %arg12[%c0_9, %c0_10], %9 {strides = array<i32>} : memref<392x16xf32, #tpu.memory_space<vmem>>, vector<392x16xf32>,
    %c0_11 = arith.constant 0 : index
    %c0_12 = arith.constant 0 : index
    %11 = vector.load %arg11[%c0_11, %c0_12] : memref<200x16xf32, #tpu.memory_space<vmem>>, vector<200x16xf32>
    %c0_13 = arith.constant 0 : index
    %c0_14 = arith.constant 0 : index
    %c0_15 = arith.constant 0 : index
    %12 = vector.load %arg4[%c0_13, %c0_14, %c0_15] : memref<4x16x16xf32, #tpu.memory_space<vmem>>, vector<1x16x16xf32>
    %13 = vector.shape_cast %12 : vector<1x16x16xf32> to vector<16x16xf32>
    %cst_16 = arith.constant dense<0.000000e+00> : vector<200x16xf32>
    %14 = tpu.matmul %11, %13, %cst_16 {dimension_numbers = #tpu.dot_dimension_numbers<[1], [0], [0], [1], [0, 0, 1, 1], [], []>} : vector<200x16xf32>, vector<16x16xf32>, vector<200x16xf32> -> vector<200x16xf32>
    %c0_17 = arith.constant 0 : index
    %c0_18 = arith.constant 0 : index
    %15 = vector.load %arg12[%c0_17, %c0_18] : memref<392x16xf32, #tpu.memory_space<vmem>>, vector<392x16xf32>
    %c0_19 = arith.constant 0 : index
    %c0_20 = arith.constant 0 : index
    %c0_21 = arith.constant 0 : index
    %16 = vector.load %arg3[%c0_19, %c0_20, %c0_21] : memref<4x392x200xf32, #tpu.memory_space<vmem>>, vector<1x392x200xf32>
    %17 = vector.shape_cast %16 : vector<1x392x200xf32> to vector<392x200xf32>
    %cst_22 = arith.constant dense<0.000000e+00> : vector<392x16xf32>
    %18 = tpu.matmul %17, %14, %cst_22 {dimension_numbers = #tpu.dot_dimension_numbers<[1], [0], [0], [1], [0, 0, 1, 1], [], []>} : vector<392x200xf32>, vector<200x16xf32>, vector<392x16xf32> -> vector<392x16xf32>
    %19 = arith.addf %15, %18 : vector<392x16xf32>
    %c0_23 = arith.constant 0 : index
    %c0_24 = arith.constant 0 : index
    %20 = vector.load %arg12[%c0_23, %c0_24] : memref<392x16xf32, #tpu.memory_space<vmem>>, vector<392x16xf32>
    tpu.vector_store %arg12[%c0_23, %c0_24], %19 {strides = array<i32>} : memref<392x16xf32, #tpu.memory_space<vmem>>, vector<392x16xf32>,
    %c0_25 = arith.constant 0 : index
    %c0_26 = arith.constant 0 : index
    %21 = vector.load %arg11[%c0_25, %c0_26] : memref<200x16xf32, #tpu.memory_space<vmem>>, vector<200x16xf32>
    %c1 = arith.constant 1 : index
    %c0_27 = arith.constant 0 : index
    %c0_28 = arith.constant 0 : index
    %22 = vector.load %arg4[%c1, %c0_27, %c0_28] : memref<4x16x16xf32, #tpu.memory_space<vmem>>, vector<1x16x16xf32>
    %23 = vector.shape_cast %22 : vector<1x16x16xf32> to vector<16x16xf32>
    %cst_29 = arith.constant dense<0.000000e+00> : vector<200x16xf32>
    %24 = tpu.matmul %21, %23, %cst_29 {dimension_numbers = #tpu.dot_dimension_numbers<[1], [0], [0], [1], [0, 0, 1, 1], [], []>} : vector<200x16xf32>, vector<16x16xf32>, vector<200x16xf32> -> vector<200x16xf32>
    %c0_30 = arith.constant 0 : index
    %c0_31 = arith.constant 0 : index
    %25 = vector.load %arg12[%c0_30, %c0_31] : memref<392x16xf32, #tpu.memory_space<vmem>>, vector<392x16xf32>
    %c1_32 = arith.constant 1 : index
    %c0_33 = arith.constant 0 : index
    %c0_34 = arith.constant 0 : index
    %26 = vector.load %arg3[%c1_32, %c0_33, %c0_34] : memref<4x392x200xf32, #tpu.memory_space<vmem>>, vector<1x392x200xf32>
    %27 = vector.shape_cast %26 : vector<1x392x200xf32> to vector<392x200xf32>
    %cst_35 = arith.constant dense<0.000000e+00> : vector<392x16xf32>
    %28 = tpu.matmul %27, %24, %cst_35 {dimension_numbers = #tpu.dot_dimension_numbers<[1], [0], [0], [1], [0, 0, 1, 1], [], []>} : vector<392x200xf32>, vector<200x16xf32>, vector<392x16xf32> -> vector<392x16xf32>
    %29 = arith.addf %25, %28 : vector<392x16xf32>
    %c0_36 = arith.constant 0 : index
    %c0_37 = arith.constant 0 : index
    %30 = vector.load %arg12[%c0_36, %c0_37] : memref<392x16xf32, #tpu.memory_space<vmem>>, vector<392x16xf32>
    tpu.vector_store %arg12[%c0_36, %c0_37], %29 {strides = array<i32>} : memref<392x16xf32, #tpu.memory_space<vmem>>, vector<392x16xf32>,
    %c0_38 = arith.constant 0 : index
    %c0_39 = arith.constant 0 : index
    %31 = vector.load %arg11[%c0_38, %c0_39] : memref<200x16xf32, #tpu.memory_space<vmem>>, vector<200x16xf32>
    %c2 = arith.constant 2 : index
    %c0_40 = arith.constant 0 : index
    %c0_41 = arith.constant 0 : index
    %32 = vector.load %arg4[%c2, %c0_40, %c0_41] : memref<4x16x16xf32, #tpu.memory_space<vmem>>, vector<1x16x16xf32>
    %33 = vector.shape_cast %32 : vector<1x16x16xf32> to vector<16x16xf32>
    %cst_42 = arith.constant dense<0.000000e+00> : vector<200x16xf32>
    %34 = tpu.matmul %31, %33, %cst_42 {dimension_numbers = #tpu.dot_dimension_numbers<[1], [0], [0], [1], [0, 0, 1, 1], [], []>} : vector<200x16xf32>, vector<16x16xf32>, vector<200x16xf32> -> vector<200x16xf32>
    %c0_43 = arith.constant 0 : index
    %c0_44 = arith.constant 0 : index
    %35 = vector.load %arg12[%c0_43, %c0_44] : memref<392x16xf32, #tpu.memory_space<vmem>>, vector<392x16xf32>
    %c2_45 = arith.constant 2 : index
    %c0_46 = arith.constant 0 : index
    %c0_47 = arith.constant 0 : index
    %36 = vector.load %arg3[%c2_45, %c0_46, %c0_47] : memref<4x392x200xf32, #tpu.memory_space<vmem>>, vector<1x392x200xf32>
    %37 = vector.shape_cast %36 : vector<1x392x200xf32> to vector<392x200xf32>
    %cst_48 = arith.constant dense<0.000000e+00> : vector<392x16xf32>
    %38 = tpu.matmul %37, %34, %cst_48 {dimension_numbers = #tpu.dot_dimension_numbers<[1], [0], [0], [1], [0, 0, 1, 1], [], []>} : vector<392x200xf32>, vector<200x16xf32>, vector<392x16xf32> -> vector<392x16xf32>
    %39 = arith.addf %35, %38 : vector<392x16xf32>
    %c0_49 = arith.constant 0 : index
    %c0_50 = arith.constant 0 : index
    %40 = vector.load %arg12[%c0_49, %c0_50] : memref<392x16xf32, #tpu.memory_space<vmem>>, vector<392x16xf32>
    tpu.vector_store %arg12[%c0_49, %c0_50], %39 {strides = array<i32>} : memref<392x16xf32, #tpu.memory_space<vmem>>, vector<392x16xf32>,
    %c0_51 = arith.constant 0 : index
    %c0_52 = arith.constant 0 : index
    %41 = vector.load %arg11[%c0_51, %c0_52] : memref<200x16xf32, #tpu.memory_space<vmem>>, vector<200x16xf32>
    %c3 = arith.constant 3 : index
    %c0_53 = arith.constant 0 : index
    %c0_54 = arith.constant 0 : index
    %42 = vector.load %arg4[%c3, %c0_53, %c0_54] : memref<4x16x16xf32, #tpu.memory_space<vmem>>, vector<1x16x16xf32>
    %43 = vector.shape_cast %42 : vector<1x16x16xf32> to vector<16x16xf32>
    %cst_55 = arith.constant dense<0.000000e+00> : vector<200x16xf32>
    %44 = tpu.matmul %41, %43, %cst_55 {dimension_numbers = #tpu.dot_dimension_numbers<[1], [0], [0], [1], [0, 0, 1, 1], [], []>} : vector<200x16xf32>, vector<16x16xf32>, vector<200x16xf32> -> vector<200x16xf32>
    %c0_56 = arith.constant 0 : index
    %c0_57 = arith.constant 0 : index
    %45 = vector.load %arg12[%c0_56, %c0_57] : memref<392x16xf32, #tpu.memory_space<vmem>>, vector<392x16xf32>
    %c3_58 = arith.constant 3 : index
    %c0_59 = arith.constant 0 : index
    %c0_60 = arith.constant 0 : index
    %46 = vector.load %arg3[%c3_58, %c0_59, %c0_60] : memref<4x392x200xf32, #tpu.memory_space<vmem>>, vector<1x392x200xf32>
    %47 = vector.shape_cast %46 : vector<1x392x200xf32> to vector<392x200xf32>
    %cst_61 = arith.constant dense<0.000000e+00> : vector<392x16xf32>
    %48 = tpu.matmul %47, %44, %cst_61 {dimension_numbers = #tpu.dot_dimension_numbers<[1], [0], [0], [1], [0, 0, 1, 1], [], []>} : vector<392x200xf32>, vector<200x16xf32>, vector<392x16xf32> -> vector<392x16xf32>
    %49 = arith.addf %45, %48 : vector<392x16xf32>
    %c0_62 = arith.constant 0 : index
    %c0_63 = arith.constant 0 : index
    %50 = vector.load %arg12[%c0_62, %c0_63] : memref<392x16xf32, #tpu.memory_space<vmem>>, vector<392x16xf32>
    tpu.vector_store %arg12[%c0_62, %c0_63], %49 {strides = array<i32>} : memref<392x16xf32, #tpu.memory_space<vmem>>, vector<392x16xf32>,
    %c0_64 = arith.constant 0 : index
    %c0_65 = arith.constant 0 : index
    %51 = vector.load %arg12[%c0_64, %c0_65] : memref<392x16xf32, #tpu.memory_space<vmem>>, vector<392x16xf32>
    %c0_66 = arith.constant 0 : index
    %c0_67 = arith.constant 0 : index
    %52 = vector.load %arg5[%c0_66, %c0_67] : memref<1x16xf32, #tpu.memory_space<vmem>>, vector<1x16xf32>
    %53 = vector.broadcast %52 : vector<1x16xf32> to vector<392x16xf32>
    %54 = arith.addf %51, %53 : vector<392x16xf32>
    %cst_68 = arith.constant 0.000000e+00 : f32
    %55 = vector.broadcast %cst_68 : f32 to vector<392x16xf32>
    %56 = arith.maximumf %54, %55 : vector<392x16xf32>
    %c0_69 = arith.constant 0 : index
    %c0_70 = arith.constant 0 : index
    %57 = vector.load %arg12[%c0_69, %c0_70] : memref<392x16xf32, #tpu.memory_space<vmem>>, vector<392x16xf32>
    tpu.vector_store %arg12[%c0_69, %c0_70], %56 {strides = array<i32>} : memref<392x16xf32, #tpu.memory_space<vmem>>, vector<392x16xf32>,
    %cst_71 = arith.constant 0.000000e+00 : f32
    %58 = vector.broadcast %cst_71 : f32 to vector<8x16xf32>
    %c0_72 = arith.constant 0 : index
    %c0_73 = arith.constant 0 : index
    %59 = vector.load %arg12[%c0_72, %c0_73] : memref<392x16xf32, #tpu.memory_space<vmem>>, vector<8x16xf32>
    %c0_74 = arith.constant 0 : index
    %c0_75 = arith.constant 0 : index
    %60 = vector.load %arg6[%c0_74, %c0_75] : memref<784x16xf32, #tpu.memory_space<vmem>>, vector<16x16xf32>
    %cst_76 = arith.constant dense<0.000000e+00> : vector<8x16xf32>
    %61 = tpu.matmul %59, %60, %cst_76 {dimension_numbers = #tpu.dot_dimension_numbers<[1], [0], [0], [1], [0, 0, 1, 1], [], []>} : vector<8x16xf32>, vector<16x16xf32>, vector<8x16xf32> -> vector<8x16xf32>
    %62 = arith.addf %58, %61 : vector<8x16xf32>
    %c8 = arith.constant 8 : index
    %c0_77 = arith.constant 0 : index
    %63 = vector.load %arg12[%c8, %c0_77] : memref<392x16xf32, #tpu.memory_space<vmem>>, vector<8x16xf32>
    %c16 = arith.constant 16 : index
    %c0_78 = arith.constant 0 : index
    %64 = vector.load %arg6[%c16, %c0_78] : memref<784x16xf32, #tpu.memory_space<vmem>>, vector<16x16xf32>
    %cst_79 = arith.constant dense<0.000000e+00> : vector<8x16xf32>
    %65 = tpu.matmul %63, %64, %cst_79 {dimension_numbers = #tpu.dot_dimension_numbers<[1], [0], [0], [1], [0, 0, 1, 1], [], []>} : vector<8x16xf32>, vector<16x16xf32>, vector<8x16xf32> -> vector<8x16xf32>
    %66 = arith.addf %62, %65 : vector<8x16xf32>
    %c16_80 = arith.constant 16 : index
    %c0_81 = arith.constant 0 : index
    %67 = vector.load %arg12[%c16_80, %c0_81] : memref<392x16xf32, #tpu.memory_space<vmem>>, vector<8x16xf32>
    %c32 = arith.constant 32 : index
    %c0_82 = arith.constant 0 : index
    %68 = vector.load %arg6[%c32, %c0_82] : memref<784x16xf32, #tpu.memory_space<vmem>>, vector<16x16xf32>
    %cst_83 = arith.constant dense<0.000000e+00> : vector<8x16xf32>
    %69 = tpu.matmul %67, %68, %cst_83 {dimension_numbers = #tpu.dot_dimension_numbers<[1], [0], [0], [1], [0, 0, 1, 1], [], []>} : vector<8x16xf32>, vector<16x16xf32>, vector<8x16xf32> -> vector<8x16xf32>
    %70 = arith.addf %66, %69 : vector<8x16xf32>
    %c24 = arith.constant 24 : index
    %c0_84 = arith.constant 0 : index
    %71 = vector.load %arg12[%c24, %c0_84] : memref<392x16xf32, #tpu.memory_space<vmem>>, vector<8x16xf32>
    %c48 = arith.constant 48 : index
    %c0_85 = arith.constant 0 : index
    %72 = vector.load %arg6[%c48, %c0_85] : memref<784x16xf32, #tpu.memory_space<vmem>>, vector<16x16xf32>
    %cst_86 = arith.constant dense<0.000000e+00> : vector<8x16xf32>
    %73 = tpu.matmul %71, %72, %cst_86 {dimension_numbers = #tpu.dot_dimension_numbers<[1], [0], [0], [1], [0, 0, 1, 1], [], []>} : vector<8x16xf32>, vector<16x16xf32>, vector<8x16xf32> -> vector<8x16xf32>
    %74 = arith.addf %70, %73 : vector<8x16xf32>
    %c32_87 = arith.constant 32 : index
    %c0_88 = arith.constant 0 : index
    %75 = vector.load %arg12[%c32_87, %c0_88] : memref<392x16xf32, #tpu.memory_space<vmem>>, vector<8x16xf32>
    %c64 = arith.constant 64 : index
    %c0_89 = arith.constant 0 : index
    %76 = vector.load %arg6[%c64, %c0_89] : memref<784x16xf32, #tpu.memory_space<vmem>>, vector<16x16xf32>
    %cst_90 = arith.constant dense<0.000000e+00> : vector<8x16xf32>
    %77 = tpu.matmul %75, %76, %cst_90 {dimension_numbers = #tpu.dot_dimension_numbers<[1], [0], [0], [1], [0, 0, 1, 1], [], []>} : vector<8x16xf32>, vector<16x16xf32>, vector<8x16xf32> -> vector<8x16xf32>
    %78 = arith.addf %74, %77 : vector<8x16xf32>
    %c40 = arith.constant 40 : index
    %c0_91 = arith.constant 0 : index
    %79 = vector.load %arg12[%c40, %c0_91] : memref<392x16xf32, #tpu.memory_space<vmem>>, vector<8x16xf32>
    %c80 = arith.constant 80 : index
    %c0_92 = arith.constant 0 : index
    %80 = vector.load %arg6[%c80, %c0_92] : memref<784x16xf32, #tpu.memory_space<vmem>>, vector<16x16xf32>
    %cst_93 = arith.constant dense<0.000000e+00> : vector<8x16xf32>
    %81 = tpu.matmul %79, %80, %cst_93 {dimension_numbers = #tpu.dot_dimension_numbers<[1], [0], [0], [1], [0, 0, 1, 1], [], []>} : vector<8x16xf32>, vector<16x16xf32>, vector<8x16xf32> -> vector<8x16xf32>
    %82 = arith.addf %78, %81 : vector<8x16xf32>
    %c48_94 = arith.constant 48 : index
    %c0_95 = arith.constant 0 : index
    %83 = vector.load %arg12[%c48_94, %c0_95] : memref<392x16xf32, #tpu.memory_space<vmem>>, vector<8x16xf32>
    %c96 = arith.constant 96 : index
    %c0_96 = arith.constant 0 : index
    %84 = vector.load %arg6[%c96, %c0_96] : memref<784x16xf32, #tpu.memory_space<vmem>>, vector<16x16xf32>
    %cst_97 = arith.constant dense<0.000000e+00> : vector<8x16xf32>
    %85 = tpu.matmul %83, %84, %cst_97 {dimension_numbers = #tpu.dot_dimension_numbers<[1], [0], [0], [1], [0, 0, 1, 1], [], []>} : vector<8x16xf32>, vector<16x16xf32>, vector<8x16xf32> -> vector<8x16xf32>
    %86 = arith.addf %82, %85 : vector<8x16xf32>
    %c56 = arith.constant 56 : index
    %c0_98 = arith.constant 0 : index
    %87 = vector.load %arg12[%c56, %c0_98] : memref<392x16xf32, #tpu.memory_space<vmem>>, vector<8x16xf32>
    %c112 = arith.constant 112 : index
    %c0_99 = arith.constant 0 : index
    %88 = vector.load %arg6[%c112, %c0_99] : memref<784x16xf32, #tpu.memory_space<vmem>>, vector<16x16xf32>
    %cst_100 = arith.constant dense<0.000000e+00> : vector<8x16xf32>
    %89 = tpu.matmul %87, %88, %cst_100 {dimension_numbers = #tpu.dot_dimension_numbers<[1], [0], [0], [1], [0, 0, 1, 1], [], []>} : vector<8x16xf32>, vector<16x16xf32>, vector<8x16xf32> -> vector<8x16xf32>
    %90 = arith.addf %86, %89 : vector<8x16xf32>
    %c64_101 = arith.constant 64 : index
    %c0_102 = arith.constant 0 : index
    %91 = vector.load %arg12[%c64_101, %c0_102] : memref<392x16xf32, #tpu.memory_space<vmem>>, vector<8x16xf32>
    %c128 = arith.constant 128 : index
    %c0_103 = arith.constant 0 : index
    %92 = vector.load %arg6[%c128, %c0_103] : memref<784x16xf32, #tpu.memory_space<vmem>>, vector<16x16xf32>
    %cst_104 = arith.constant dense<0.000000e+00> : vector<8x16xf32>
    %93 = tpu.matmul %91, %92, %cst_104 {dimension_numbers = #tpu.dot_dimension_numbers<[1], [0], [0], [1], [0, 0, 1, 1], [], []>} : vector<8x16xf32>, vector<16x16xf32>, vector<8x16xf32> -> vector<8x16xf32>
    %94 = arith.addf %90, %93 : vector<8x16xf32>
    %c72 = arith.constant 72 : index
    %c0_105 = arith.constant 0 : index
    %95 = vector.load %arg12[%c72, %c0_105] : memref<392x16xf32, #tpu.memory_space<vmem>>, vector<8x16xf32>
    %c144 = arith.constant 144 : index
    %c0_106 = arith.constant 0 : index
    %96 = vector.load %arg6[%c144, %c0_106] : memref<784x16xf32, #tpu.memory_space<vmem>>, vector<16x16xf32>
    %cst_107 = arith.constant dense<0.000000e+00> : vector<8x16xf32>
    %97 = tpu.matmul %95, %96, %cst_107 {dimension_numbers = #tpu.dot_dimension_numbers<[1], [0], [0], [1], [0, 0, 1, 1], [], []>} : vector<8x16xf32>, vector<16x16xf32>, vector<8x16xf32> -> vector<8x16xf32>
    %98 = arith.addf %94, %97 : vector<8x16xf32>
    %c80_108 = arith.constant 80 : index
    %c0_109 = arith.constant 0 : index
    %99 = vector.load %arg12[%c80_108, %c0_109] : memref<392x16xf32, #tpu.memory_space<vmem>>, vector<8x16xf32>
    %c160 = arith.constant 160 : index
    %c0_110 = arith.constant 0 : index
    %100 = vector.load %arg6[%c160, %c0_110] : memref<784x16xf32, #tpu.memory_space<vmem>>, vector<16x16xf32>
    %cst_111 = arith.constant dense<0.000000e+00> : vector<8x16xf32>
    %101 = tpu.matmul %99, %100, %cst_111 {dimension_numbers = #tpu.dot_dimension_numbers<[1], [0], [0], [1], [0, 0, 1, 1], [], []>} : vector<8x16xf32>, vector<16x16xf32>, vector<8x16xf32> -> vector<8x16xf32>
    %102 = arith.addf %98, %101 : vector<8x16xf32>
    %c88 = arith.constant 88 : index
    %c0_112 = arith.constant 0 : index
    %103 = vector.load %arg12[%c88, %c0_112] : memref<392x16xf32, #tpu.memory_space<vmem>>, vector<8x16xf32>
    %c176 = arith.constant 176 : index
    %c0_113 = arith.constant 0 : index
    %104 = vector.load %arg6[%c176, %c0_113] : memref<784x16xf32, #tpu.memory_space<vmem>>, vector<16x16xf32>
    %cst_114 = arith.constant dense<0.000000e+00> : vector<8x16xf32>
    %105 = tpu.matmul %103, %104, %cst_114 {dimension_numbers = #tpu.dot_dimension_numbers<[1], [0], [0], [1], [0, 0, 1, 1], [], []>} : vector<8x16xf32>, vector<16x16xf32>, vector<8x16xf32> -> vector<8x16xf32>
    %106 = arith.addf %102, %105 : vector<8x16xf32>
    %c96_115 = arith.constant 96 : index
    %c0_116 = arith.constant 0 : index
    %107 = vector.load %arg12[%c96_115, %c0_116] : memref<392x16xf32, #tpu.memory_space<vmem>>, vector<8x16xf32>
    %c192 = arith.constant 192 : index
    %c0_117 = arith.constant 0 : index
    %108 = vector.load %arg6[%c192, %c0_117] : memref<784x16xf32, #tpu.memory_space<vmem>>, vector<16x16xf32>
    %cst_118 = arith.constant dense<0.000000e+00> : vector<8x16xf32>
    %109 = tpu.matmul %107, %108, %cst_118 {dimension_numbers = #tpu.dot_dimension_numbers<[1], [0], [0], [1], [0, 0, 1, 1], [], []>} : vector<8x16xf32>, vector<16x16xf32>, vector<8x16xf32> -> vector<8x16xf32>
    %110 = arith.addf %106, %109 : vector<8x16xf32>
    %c104 = arith.constant 104 : index
    %c0_119 = arith.constant 0 : index
    %111 = vector.load %arg12[%c104, %c0_119] : memref<392x16xf32, #tpu.memory_space<vmem>>, vector<8x16xf32>
    %c208 = arith.constant 208 : index
    %c0_120 = arith.constant 0 : index
    %112 = vector.load %arg6[%c208, %c0_120] : memref<784x16xf32, #tpu.memory_space<vmem>>, vector<16x16xf32>
    %cst_121 = arith.constant dense<0.000000e+00> : vector<8x16xf32>
    %113 = tpu.matmul %111, %112, %cst_121 {dimension_numbers = #tpu.dot_dimension_numbers<[1], [0], [0], [1], [0, 0, 1, 1], [], []>} : vector<8x16xf32>, vector<16x16xf32>, vector<8x16xf32> -> vector<8x16xf32>
    %114 = arith.addf %110, %113 : vector<8x16xf32>
    %c112_122 = arith.constant 112 : index
    %c0_123 = arith.constant 0 : index
    %115 = vector.load %arg12[%c112_122, %c0_123] : memref<392x16xf32, #tpu.memory_space<vmem>>, vector<8x16xf32>
    %c224 = arith.constant 224 : index
    %c0_124 = arith.constant 0 : index
    %116 = vector.load %arg6[%c224, %c0_124] : memref<784x16xf32, #tpu.memory_space<vmem>>, vector<16x16xf32>
    %cst_125 = arith.constant dense<0.000000e+00> : vector<8x16xf32>
    %117 = tpu.matmul %115, %116, %cst_125 {dimension_numbers = #tpu.dot_dimension_numbers<[1], [0], [0], [1], [0, 0, 1, 1], [], []>} : vector<8x16xf32>, vector<16x16xf32>, vector<8x16xf32> -> vector<8x16xf32>
    %118 = arith.addf %114, %117 : vector<8x16xf32>
    %c120 = arith.constant 120 : index
    %c0_126 = arith.constant 0 : index
    %119 = vector.load %arg12[%c120, %c0_126] : memref<392x16xf32, #tpu.memory_space<vmem>>, vector<8x16xf32>
    %c240 = arith.constant 240 : index
    %c0_127 = arith.constant 0 : index
    %120 = vector.load %arg6[%c240, %c0_127] : memref<784x16xf32, #tpu.memory_space<vmem>>, vector<16x16xf32>
    %cst_128 = arith.constant dense<0.000000e+00> : vector<8x16xf32>
    %121 = tpu.matmul %119, %120, %cst_128 {dimension_numbers = #tpu.dot_dimension_numbers<[1], [0], [0], [1], [0, 0, 1, 1], [], []>} : vector<8x16xf32>, vector<16x16xf32>, vector<8x16xf32> -> vector<8x16xf32>
    %122 = arith.addf %118, %121 : vector<8x16xf32>
    %c128_129 = arith.constant 128 : index
    %c0_130 = arith.constant 0 : index
    %123 = vector.load %arg12[%c128_129, %c0_130] : memref<392x16xf32, #tpu.memory_space<vmem>>, vector<8x16xf32>
    %c256 = arith.constant 256 : index
    %c0_131 = arith.constant 0 : index
    %124 = vector.load %arg6[%c256, %c0_131] : memref<784x16xf32, #tpu.memory_space<vmem>>, vector<16x16xf32>
    %cst_132 = arith.constant dense<0.000000e+00> : vector<8x16xf32>
    %125 = tpu.matmul %123, %124, %cst_132 {dimension_numbers = #tpu.dot_dimension_numbers<[1], [0], [0], [1], [0, 0, 1, 1], [], []>} : vector<8x16xf32>, vector<16x16xf32>, vector<8x16xf32> -> vector<8x16xf32>
    %126 = arith.addf %122, %125 : vector<8x16xf32>
    %c136 = arith.constant 136 : index
    %c0_133 = arith.constant 0 : index
    %127 = vector.load %arg12[%c136, %c0_133] : memref<392x16xf32, #tpu.memory_space<vmem>>, vector<8x16xf32>
    %c272 = arith.constant 272 : index
    %c0_134 = arith.constant 0 : index
    %128 = vector.load %arg6[%c272, %c0_134] : memref<784x16xf32, #tpu.memory_space<vmem>>, vector<16x16xf32>
    %cst_135 = arith.constant dense<0.000000e+00> : vector<8x16xf32>
    %129 = tpu.matmul %127, %128, %cst_135 {dimension_numbers = #tpu.dot_dimension_numbers<[1], [0], [0], [1], [0, 0, 1, 1], [], []>} : vector<8x16xf32>, vector<16x16xf32>, vector<8x16xf32> -> vector<8x16xf32>
    %130 = arith.addf %126, %129 : vector<8x16xf32>
    %c144_136 = arith.constant 144 : index
    %c0_137 = arith.constant 0 : index
    %131 = vector.load %arg12[%c144_136, %c0_137] : memref<392x16xf32, #tpu.memory_space<vmem>>, vector<8x16xf32>
    %c288 = arith.constant 288 : index
    %c0_138 = arith.constant 0 : index
    %132 = vector.load %arg6[%c288, %c0_138] : memref<784x16xf32, #tpu.memory_space<vmem>>, vector<16x16xf32>
    %cst_139 = arith.constant dense<0.000000e+00> : vector<8x16xf32>
    %133 = tpu.matmul %131, %132, %cst_139 {dimension_numbers = #tpu.dot_dimension_numbers<[1], [0], [0], [1], [0, 0, 1, 1], [], []>} : vector<8x16xf32>, vector<16x16xf32>, vector<8x16xf32> -> vector<8x16xf32>
    %134 = arith.addf %130, %133 : vector<8x16xf32>
    %c152 = arith.constant 152 : index
    %c0_140 = arith.constant 0 : index
    %135 = vector.load %arg12[%c152, %c0_140] : memref<392x16xf32, #tpu.memory_space<vmem>>, vector<8x16xf32>
    %c304 = arith.constant 304 : index
    %c0_141 = arith.constant 0 : index
    %136 = vector.load %arg6[%c304, %c0_141] : memref<784x16xf32, #tpu.memory_space<vmem>>, vector<16x16xf32>
    %cst_142 = arith.constant dense<0.000000e+00> : vector<8x16xf32>
    %137 = tpu.matmul %135, %136, %cst_142 {dimension_numbers = #tpu.dot_dimension_numbers<[1], [0], [0], [1], [0, 0, 1, 1], [], []>} : vector<8x16xf32>, vector<16x16xf32>, vector<8x16xf32> -> vector<8x16xf32>
    %138 = arith.addf %134, %137 : vector<8x16xf32>
    %c160_143 = arith.constant 160 : index
    %c0_144 = arith.constant 0 : index
    %139 = vector.load %arg12[%c160_143, %c0_144] : memref<392x16xf32, #tpu.memory_space<vmem>>, vector<8x16xf32>
    %c320 = arith.constant 320 : index
    %c0_145 = arith.constant 0 : index
    %140 = vector.load %arg6[%c320, %c0_145] : memref<784x16xf32, #tpu.memory_space<vmem>>, vector<16x16xf32>
    %cst_146 = arith.constant dense<0.000000e+00> : vector<8x16xf32>
    %141 = tpu.matmul %139, %140, %cst_146 {dimension_numbers = #tpu.dot_dimension_numbers<[1], [0], [0], [1], [0, 0, 1, 1], [], []>} : vector<8x16xf32>, vector<16x16xf32>, vector<8x16xf32> -> vector<8x16xf32>
    %142 = arith.addf %138, %141 : vector<8x16xf32>
    %c168 = arith.constant 168 : index
    %c0_147 = arith.constant 0 : index
    %143 = vector.load %arg12[%c168, %c0_147] : memref<392x16xf32, #tpu.memory_space<vmem>>, vector<8x16xf32>
    %c336 = arith.constant 336 : index
    %c0_148 = arith.constant 0 : index
    %144 = vector.load %arg6[%c336, %c0_148] : memref<784x16xf32, #tpu.memory_space<vmem>>, vector<16x16xf32>
    %cst_149 = arith.constant dense<0.000000e+00> : vector<8x16xf32>
    %145 = tpu.matmul %143, %144, %cst_149 {dimension_numbers = #tpu.dot_dimension_numbers<[1], [0], [0], [1], [0, 0, 1, 1], [], []>} : vector<8x16xf32>, vector<16x16xf32>, vector<8x16xf32> -> vector<8x16xf32>
    %146 = arith.addf %142, %145 : vector<8x16xf32>
    %c176_150 = arith.constant 176 : index
    %c0_151 = arith.constant 0 : index
    %147 = vector.load %arg12[%c176_150, %c0_151] : memref<392x16xf32, #tpu.memory_space<vmem>>, vector<8x16xf32>
    %c352 = arith.constant 352 : index
    %c0_152 = arith.constant 0 : index
    %148 = vector.load %arg6[%c352, %c0_152] : memref<784x16xf32, #tpu.memory_space<vmem>>, vector<16x16xf32>
    %cst_153 = arith.constant dense<0.000000e+00> : vector<8x16xf32>
    %149 = tpu.matmul %147, %148, %cst_153 {dimension_numbers = #tpu.dot_dimension_numbers<[1], [0], [0], [1], [0, 0, 1, 1], [], []>} : vector<8x16xf32>, vector<16x16xf32>, vector<8x16xf32> -> vector<8x16xf32>
    %150 = arith.addf %146, %149 : vector<8x16xf32>
    %c184 = arith.constant 184 : index
    %c0_154 = arith.constant 0 : index
    %151 = vector.load %arg12[%c184, %c0_154] : memref<392x16xf32, #tpu.memory_space<vmem>>, vector<8x16xf32>
    %c368 = arith.constant 368 : index
    %c0_155 = arith.constant 0 : index
    %152 = vector.load %arg6[%c368, %c0_155] : memref<784x16xf32, #tpu.memory_space<vmem>>, vector<16x16xf32>
    %cst_156 = arith.constant dense<0.000000e+00> : vector<8x16xf32>
    %153 = tpu.matmul %151, %152, %cst_156 {dimension_numbers = #tpu.dot_dimension_numbers<[1], [0], [0], [1], [0, 0, 1, 1], [], []>} : vector<8x16xf32>, vector<16x16xf32>, vector<8x16xf32> -> vector<8x16xf32>
    %154 = arith.addf %150, %153 : vector<8x16xf32>
    %c192_157 = arith.constant 192 : index
    %c0_158 = arith.constant 0 : index
    %155 = vector.load %arg12[%c192_157, %c0_158] : memref<392x16xf32, #tpu.memory_space<vmem>>, vector<8x16xf32>
    %c384 = arith.constant 384 : index
    %c0_159 = arith.constant 0 : index
    %156 = vector.load %arg6[%c384, %c0_159] : memref<784x16xf32, #tpu.memory_space<vmem>>, vector<16x16xf32>
    %cst_160 = arith.constant dense<0.000000e+00> : vector<8x16xf32>
    %157 = tpu.matmul %155, %156, %cst_160 {dimension_numbers = #tpu.dot_dimension_numbers<[1], [0], [0], [1], [0, 0, 1, 1], [], []>} : vector<8x16xf32>, vector<16x16xf32>, vector<8x16xf32> -> vector<8x16xf32>
    %158 = arith.addf %154, %157 : vector<8x16xf32>
    %c200 = arith.constant 200 : index
    %c0_161 = arith.constant 0 : index
    %159 = vector.load %arg12[%c200, %c0_161] : memref<392x16xf32, #tpu.memory_space<vmem>>, vector<8x16xf32>
    %c400 = arith.constant 400 : index
    %c0_162 = arith.constant 0 : index
    %160 = vector.load %arg6[%c400, %c0_162] : memref<784x16xf32, #tpu.memory_space<vmem>>, vector<16x16xf32>
    %cst_163 = arith.constant dense<0.000000e+00> : vector<8x16xf32>
    %161 = tpu.matmul %159, %160, %cst_163 {dimension_numbers = #tpu.dot_dimension_numbers<[1], [0], [0], [1], [0, 0, 1, 1], [], []>} : vector<8x16xf32>, vector<16x16xf32>, vector<8x16xf32> -> vector<8x16xf32>
    %162 = arith.addf %158, %161 : vector<8x16xf32>
    %c208_164 = arith.constant 208 : index
    %c0_165 = arith.constant 0 : index
    %163 = vector.load %arg12[%c208_164, %c0_165] : memref<392x16xf32, #tpu.memory_space<vmem>>, vector<8x16xf32>
    %c416 = arith.constant 416 : index
    %c0_166 = arith.constant 0 : index
    %164 = vector.load %arg6[%c416, %c0_166] : memref<784x16xf32, #tpu.memory_space<vmem>>, vector<16x16xf32>
    %cst_167 = arith.constant dense<0.000000e+00> : vector<8x16xf32>
    %165 = tpu.matmul %163, %164, %cst_167 {dimension_numbers = #tpu.dot_dimension_numbers<[1], [0], [0], [1], [0, 0, 1, 1], [], []>} : vector<8x16xf32>, vector<16x16xf32>, vector<8x16xf32> -> vector<8x16xf32>
    %166 = arith.addf %162, %165 : vector<8x16xf32>
    %c216 = arith.constant 216 : index
    %c0_168 = arith.constant 0 : index
    %167 = vector.load %arg12[%c216, %c0_168] : memref<392x16xf32, #tpu.memory_space<vmem>>, vector<8x16xf32>
    %c432 = arith.constant 432 : index
    %c0_169 = arith.constant 0 : index
    %168 = vector.load %arg6[%c432, %c0_169] : memref<784x16xf32, #tpu.memory_space<vmem>>, vector<16x16xf32>
    %cst_170 = arith.constant dense<0.000000e+00> : vector<8x16xf32>
    %169 = tpu.matmul %167, %168, %cst_170 {dimension_numbers = #tpu.dot_dimension_numbers<[1], [0], [0], [1], [0, 0, 1, 1], [], []>} : vector<8x16xf32>, vector<16x16xf32>, vector<8x16xf32> -> vector<8x16xf32>
    %170 = arith.addf %166, %169 : vector<8x16xf32>
    %c224_171 = arith.constant 224 : index
    %c0_172 = arith.constant 0 : index
    %171 = vector.load %arg12[%c224_171, %c0_172] : memref<392x16xf32, #tpu.memory_space<vmem>>, vector<8x16xf32>
    %c448 = arith.constant 448 : index
    %c0_173 = arith.constant 0 : index
    %172 = vector.load %arg6[%c448, %c0_173] : memref<784x16xf32, #tpu.memory_space<vmem>>, vector<16x16xf32>
    %cst_174 = arith.constant dense<0.000000e+00> : vector<8x16xf32>
    %173 = tpu.matmul %171, %172, %cst_174 {dimension_numbers = #tpu.dot_dimension_numbers<[1], [0], [0], [1], [0, 0, 1, 1], [], []>} : vector<8x16xf32>, vector<16x16xf32>, vector<8x16xf32> -> vector<8x16xf32>
    %174 = arith.addf %170, %173 : vector<8x16xf32>
    %c232 = arith.constant 232 : index
    %c0_175 = arith.constant 0 : index
    %175 = vector.load %arg12[%c232, %c0_175] : memref<392x16xf32, #tpu.memory_space<vmem>>, vector<8x16xf32>
    %c464 = arith.constant 464 : index
    %c0_176 = arith.constant 0 : index
    %176 = vector.load %arg6[%c464, %c0_176] : memref<784x16xf32, #tpu.memory_space<vmem>>, vector<16x16xf32>
    %cst_177 = arith.constant dense<0.000000e+00> : vector<8x16xf32>
    %177 = tpu.matmul %175, %176, %cst_177 {dimension_numbers = #tpu.dot_dimension_numbers<[1], [0], [0], [1], [0, 0, 1, 1], [], []>} : vector<8x16xf32>, vector<16x16xf32>, vector<8x16xf32> -> vector<8x16xf32>
    %178 = arith.addf %174, %177 : vector<8x16xf32>
    %c240_178 = arith.constant 240 : index
    %c0_179 = arith.constant 0 : index
    %179 = vector.load %arg12[%c240_178, %c0_179] : memref<392x16xf32, #tpu.memory_space<vmem>>, vector<8x16xf32>
    %c480 = arith.constant 480 : index
    %c0_180 = arith.constant 0 : index
    %180 = vector.load %arg6[%c480, %c0_180] : memref<784x16xf32, #tpu.memory_space<vmem>>, vector<16x16xf32>
    %cst_181 = arith.constant dense<0.000000e+00> : vector<8x16xf32>
    %181 = tpu.matmul %179, %180, %cst_181 {dimension_numbers = #tpu.dot_dimension_numbers<[1], [0], [0], [1], [0, 0, 1, 1], [], []>} : vector<8x16xf32>, vector<16x16xf32>, vector<8x16xf32> -> vector<8x16xf32>
    %182 = arith.addf %178, %181 : vector<8x16xf32>
    %c248 = arith.constant 248 : index
    %c0_182 = arith.constant 0 : index
    %183 = vector.load %arg12[%c248, %c0_182] : memref<392x16xf32, #tpu.memory_space<vmem>>, vector<8x16xf32>
    %c496 = arith.constant 496 : index
    %c0_183 = arith.constant 0 : index
    %184 = vector.load %arg6[%c496, %c0_183] : memref<784x16xf32, #tpu.memory_space<vmem>>, vector<16x16xf32>
    %cst_184 = arith.constant dense<0.000000e+00> : vector<8x16xf32>
    %185 = tpu.matmul %183, %184, %cst_184 {dimension_numbers = #tpu.dot_dimension_numbers<[1], [0], [0], [1], [0, 0, 1, 1], [], []>} : vector<8x16xf32>, vector<16x16xf32>, vector<8x16xf32> -> vector<8x16xf32>
    %186 = arith.addf %182, %185 : vector<8x16xf32>
    %c256_185 = arith.constant 256 : index
    %c0_186 = arith.constant 0 : index
    %187 = vector.load %arg12[%c256_185, %c0_186] : memref<392x16xf32, #tpu.memory_space<vmem>>, vector<8x16xf32>
    %c512 = arith.constant 512 : index
    %c0_187 = arith.constant 0 : index
    %188 = vector.load %arg6[%c512, %c0_187] : memref<784x16xf32, #tpu.memory_space<vmem>>, vector<16x16xf32>
    %cst_188 = arith.constant dense<0.000000e+00> : vector<8x16xf32>
    %189 = tpu.matmul %187, %188, %cst_188 {dimension_numbers = #tpu.dot_dimension_numbers<[1], [0], [0], [1], [0, 0, 1, 1], [], []>} : vector<8x16xf32>, vector<16x16xf32>, vector<8x16xf32> -> vector<8x16xf32>
    %190 = arith.addf %186, %189 : vector<8x16xf32>
    %c264 = arith.constant 264 : index
    %c0_189 = arith.constant 0 : index
    %191 = vector.load %arg12[%c264, %c0_189] : memref<392x16xf32, #tpu.memory_space<vmem>>, vector<8x16xf32>
    %c528 = arith.constant 528 : index
    %c0_190 = arith.constant 0 : index
    %192 = vector.load %arg6[%c528, %c0_190] : memref<784x16xf32, #tpu.memory_space<vmem>>, vector<16x16xf32>
    %cst_191 = arith.constant dense<0.000000e+00> : vector<8x16xf32>
    %193 = tpu.matmul %191, %192, %cst_191 {dimension_numbers = #tpu.dot_dimension_numbers<[1], [0], [0], [1], [0, 0, 1, 1], [], []>} : vector<8x16xf32>, vector<16x16xf32>, vector<8x16xf32> -> vector<8x16xf32>
    %194 = arith.addf %190, %193 : vector<8x16xf32>
    %c272_192 = arith.constant 272 : index
    %c0_193 = arith.constant 0 : index
    %195 = vector.load %arg12[%c272_192, %c0_193] : memref<392x16xf32, #tpu.memory_space<vmem>>, vector<8x16xf32>
    %c544 = arith.constant 544 : index
    %c0_194 = arith.constant 0 : index
    %196 = vector.load %arg6[%c544, %c0_194] : memref<784x16xf32, #tpu.memory_space<vmem>>, vector<16x16xf32>
    %cst_195 = arith.constant dense<0.000000e+00> : vector<8x16xf32>
    %197 = tpu.matmul %195, %196, %cst_195 {dimension_numbers = #tpu.dot_dimension_numbers<[1], [0], [0], [1], [0, 0, 1, 1], [], []>} : vector<8x16xf32>, vector<16x16xf32>, vector<8x16xf32> -> vector<8x16xf32>
    %198 = arith.addf %194, %197 : vector<8x16xf32>
    %c280 = arith.constant 280 : index
    %c0_196 = arith.constant 0 : index
    %199 = vector.load %arg12[%c280, %c0_196] : memref<392x16xf32, #tpu.memory_space<vmem>>, vector<8x16xf32>
    %c560 = arith.constant 560 : index
    %c0_197 = arith.constant 0 : index
    %200 = vector.load %arg6[%c560, %c0_197] : memref<784x16xf32, #tpu.memory_space<vmem>>, vector<16x16xf32>
    %cst_198 = arith.constant dense<0.000000e+00> : vector<8x16xf32>
    %201 = tpu.matmul %199, %200, %cst_198 {dimension_numbers = #tpu.dot_dimension_numbers<[1], [0], [0], [1], [0, 0, 1, 1], [], []>} : vector<8x16xf32>, vector<16x16xf32>, vector<8x16xf32> -> vector<8x16xf32>
    %202 = arith.addf %198, %201 : vector<8x16xf32>
    %c288_199 = arith.constant 288 : index
    %c0_200 = arith.constant 0 : index
    %203 = vector.load %arg12[%c288_199, %c0_200] : memref<392x16xf32, #tpu.memory_space<vmem>>, vector<8x16xf32>
    %c576 = arith.constant 576 : index
    %c0_201 = arith.constant 0 : index
    %204 = vector.load %arg6[%c576, %c0_201] : memref<784x16xf32, #tpu.memory_space<vmem>>, vector<16x16xf32>
    %cst_202 = arith.constant dense<0.000000e+00> : vector<8x16xf32>
    %205 = tpu.matmul %203, %204, %cst_202 {dimension_numbers = #tpu.dot_dimension_numbers<[1], [0], [0], [1], [0, 0, 1, 1], [], []>} : vector<8x16xf32>, vector<16x16xf32>, vector<8x16xf32> -> vector<8x16xf32>
    %206 = arith.addf %202, %205 : vector<8x16xf32>
    %c296 = arith.constant 296 : index
    %c0_203 = arith.constant 0 : index
    %207 = vector.load %arg12[%c296, %c0_203] : memref<392x16xf32, #tpu.memory_space<vmem>>, vector<8x16xf32>
    %c592 = arith.constant 592 : index
    %c0_204 = arith.constant 0 : index
    %208 = vector.load %arg6[%c592, %c0_204] : memref<784x16xf32, #tpu.memory_space<vmem>>, vector<16x16xf32>
    %cst_205 = arith.constant dense<0.000000e+00> : vector<8x16xf32>
    %209 = tpu.matmul %207, %208, %cst_205 {dimension_numbers = #tpu.dot_dimension_numbers<[1], [0], [0], [1], [0, 0, 1, 1], [], []>} : vector<8x16xf32>, vector<16x16xf32>, vector<8x16xf32> -> vector<8x16xf32>
    %210 = arith.addf %206, %209 : vector<8x16xf32>
    %c304_206 = arith.constant 304 : index
    %c0_207 = arith.constant 0 : index
    %211 = vector.load %arg12[%c304_206, %c0_207] : memref<392x16xf32, #tpu.memory_space<vmem>>, vector<8x16xf32>
    %c608 = arith.constant 608 : index
    %c0_208 = arith.constant 0 : index
    %212 = vector.load %arg6[%c608, %c0_208] : memref<784x16xf32, #tpu.memory_space<vmem>>, vector<16x16xf32>
    %cst_209 = arith.constant dense<0.000000e+00> : vector<8x16xf32>
    %213 = tpu.matmul %211, %212, %cst_209 {dimension_numbers = #tpu.dot_dimension_numbers<[1], [0], [0], [1], [0, 0, 1, 1], [], []>} : vector<8x16xf32>, vector<16x16xf32>, vector<8x16xf32> -> vector<8x16xf32>
    %214 = arith.addf %210, %213 : vector<8x16xf32>
    %c312 = arith.constant 312 : index
    %c0_210 = arith.constant 0 : index
    %215 = vector.load %arg12[%c312, %c0_210] : memref<392x16xf32, #tpu.memory_space<vmem>>, vector<8x16xf32>
    %c624 = arith.constant 624 : index
    %c0_211 = arith.constant 0 : index
    %216 = vector.load %arg6[%c624, %c0_211] : memref<784x16xf32, #tpu.memory_space<vmem>>, vector<16x16xf32>
    %cst_212 = arith.constant dense<0.000000e+00> : vector<8x16xf32>
    %217 = tpu.matmul %215, %216, %cst_212 {dimension_numbers = #tpu.dot_dimension_numbers<[1], [0], [0], [1], [0, 0, 1, 1], [], []>} : vector<8x16xf32>, vector<16x16xf32>, vector<8x16xf32> -> vector<8x16xf32>
    %218 = arith.addf %214, %217 : vector<8x16xf32>
    %c320_213 = arith.constant 320 : index
    %c0_214 = arith.constant 0 : index
    %219 = vector.load %arg12[%c320_213, %c0_214] : memref<392x16xf32, #tpu.memory_space<vmem>>, vector<8x16xf32>
    %c640 = arith.constant 640 : index
    %c0_215 = arith.constant 0 : index
    %220 = vector.load %arg6[%c640, %c0_215] : memref<784x16xf32, #tpu.memory_space<vmem>>, vector<16x16xf32>
    %cst_216 = arith.constant dense<0.000000e+00> : vector<8x16xf32>
    %221 = tpu.matmul %219, %220, %cst_216 {dimension_numbers = #tpu.dot_dimension_numbers<[1], [0], [0], [1], [0, 0, 1, 1], [], []>} : vector<8x16xf32>, vector<16x16xf32>, vector<8x16xf32> -> vector<8x16xf32>
    %222 = arith.addf %218, %221 : vector<8x16xf32>
    %c328 = arith.constant 328 : index
    %c0_217 = arith.constant 0 : index
    %223 = vector.load %arg12[%c328, %c0_217] : memref<392x16xf32, #tpu.memory_space<vmem>>, vector<8x16xf32>
    %c656 = arith.constant 656 : index
    %c0_218 = arith.constant 0 : index
    %224 = vector.load %arg6[%c656, %c0_218] : memref<784x16xf32, #tpu.memory_space<vmem>>, vector<16x16xf32>
    %cst_219 = arith.constant dense<0.000000e+00> : vector<8x16xf32>
    %225 = tpu.matmul %223, %224, %cst_219 {dimension_numbers = #tpu.dot_dimension_numbers<[1], [0], [0], [1], [0, 0, 1, 1], [], []>} : vector<8x16xf32>, vector<16x16xf32>, vector<8x16xf32> -> vector<8x16xf32>
    %226 = arith.addf %222, %225 : vector<8x16xf32>
    %c336_220 = arith.constant 336 : index
    %c0_221 = arith.constant 0 : index
    %227 = vector.load %arg12[%c336_220, %c0_221] : memref<392x16xf32, #tpu.memory_space<vmem>>, vector<8x16xf32>
    %c672 = arith.constant 672 : index
    %c0_222 = arith.constant 0 : index
    %228 = vector.load %arg6[%c672, %c0_222] : memref<784x16xf32, #tpu.memory_space<vmem>>, vector<16x16xf32>
    %cst_223 = arith.constant dense<0.000000e+00> : vector<8x16xf32>
    %229 = tpu.matmul %227, %228, %cst_223 {dimension_numbers = #tpu.dot_dimension_numbers<[1], [0], [0], [1], [0, 0, 1, 1], [], []>} : vector<8x16xf32>, vector<16x16xf32>, vector<8x16xf32> -> vector<8x16xf32>
    %230 = arith.addf %226, %229 : vector<8x16xf32>
    %c344 = arith.constant 344 : index
    %c0_224 = arith.constant 0 : index
    %231 = vector.load %arg12[%c344, %c0_224] : memref<392x16xf32, #tpu.memory_space<vmem>>, vector<8x16xf32>
    %c688 = arith.constant 688 : index
    %c0_225 = arith.constant 0 : index
    %232 = vector.load %arg6[%c688, %c0_225] : memref<784x16xf32, #tpu.memory_space<vmem>>, vector<16x16xf32>
    %cst_226 = arith.constant dense<0.000000e+00> : vector<8x16xf32>
    %233 = tpu.matmul %231, %232, %cst_226 {dimension_numbers = #tpu.dot_dimension_numbers<[1], [0], [0], [1], [0, 0, 1, 1], [], []>} : vector<8x16xf32>, vector<16x16xf32>, vector<8x16xf32> -> vector<8x16xf32>
    %234 = arith.addf %230, %233 : vector<8x16xf32>
    %c352_227 = arith.constant 352 : index
    %c0_228 = arith.constant 0 : index
    %235 = vector.load %arg12[%c352_227, %c0_228] : memref<392x16xf32, #tpu.memory_space<vmem>>, vector<8x16xf32>
    %c704 = arith.constant 704 : index
    %c0_229 = arith.constant 0 : index
    %236 = vector.load %arg6[%c704, %c0_229] : memref<784x16xf32, #tpu.memory_space<vmem>>, vector<16x16xf32>
    %cst_230 = arith.constant dense<0.000000e+00> : vector<8x16xf32>
    %237 = tpu.matmul %235, %236, %cst_230 {dimension_numbers = #tpu.dot_dimension_numbers<[1], [0], [0], [1], [0, 0, 1, 1], [], []>} : vector<8x16xf32>, vector<16x16xf32>, vector<8x16xf32> -> vector<8x16xf32>
    %238 = arith.addf %234, %237 : vector<8x16xf32>
    %c360 = arith.constant 360 : index
    %c0_231 = arith.constant 0 : index
    %239 = vector.load %arg12[%c360, %c0_231] : memref<392x16xf32, #tpu.memory_space<vmem>>, vector<8x16xf32>
    %c720 = arith.constant 720 : index
    %c0_232 = arith.constant 0 : index
    %240 = vector.load %arg6[%c720, %c0_232] : memref<784x16xf32, #tpu.memory_space<vmem>>, vector<16x16xf32>
    %cst_233 = arith.constant dense<0.000000e+00> : vector<8x16xf32>
    %241 = tpu.matmul %239, %240, %cst_233 {dimension_numbers = #tpu.dot_dimension_numbers<[1], [0], [0], [1], [0, 0, 1, 1], [], []>} : vector<8x16xf32>, vector<16x16xf32>, vector<8x16xf32> -> vector<8x16xf32>
    %242 = arith.addf %238, %241 : vector<8x16xf32>
    %c368_234 = arith.constant 368 : index
    %c0_235 = arith.constant 0 : index
    %243 = vector.load %arg12[%c368_234, %c0_235] : memref<392x16xf32, #tpu.memory_space<vmem>>, vector<8x16xf32>
    %c736 = arith.constant 736 : index
    %c0_236 = arith.constant 0 : index
    %244 = vector.load %arg6[%c736, %c0_236] : memref<784x16xf32, #tpu.memory_space<vmem>>, vector<16x16xf32>
    %cst_237 = arith.constant dense<0.000000e+00> : vector<8x16xf32>
    %245 = tpu.matmul %243, %244, %cst_237 {dimension_numbers = #tpu.dot_dimension_numbers<[1], [0], [0], [1], [0, 0, 1, 1], [], []>} : vector<8x16xf32>, vector<16x16xf32>, vector<8x16xf32> -> vector<8x16xf32>
    %246 = arith.addf %242, %245 : vector<8x16xf32>
    %c376 = arith.constant 376 : index
    %c0_238 = arith.constant 0 : index
    %247 = vector.load %arg12[%c376, %c0_238] : memref<392x16xf32, #tpu.memory_space<vmem>>, vector<8x16xf32>
    %c752 = arith.constant 752 : index
    %c0_239 = arith.constant 0 : index
    %248 = vector.load %arg6[%c752, %c0_239] : memref<784x16xf32, #tpu.memory_space<vmem>>, vector<16x16xf32>
    %cst_240 = arith.constant dense<0.000000e+00> : vector<8x16xf32>
    %249 = tpu.matmul %247, %248, %cst_240 {dimension_numbers = #tpu.dot_dimension_numbers<[1], [0], [0], [1], [0, 0, 1, 1], [], []>} : vector<8x16xf32>, vector<16x16xf32>, vector<8x16xf32> -> vector<8x16xf32>
    %250 = arith.addf %246, %249 : vector<8x16xf32>
    %c384_241 = arith.constant 384 : index
    %c0_242 = arith.constant 0 : index
    %251 = vector.load %arg12[%c384_241, %c0_242] : memref<392x16xf32, #tpu.memory_space<vmem>>, vector<8x16xf32>
    %c768 = arith.constant 768 : index
    %c0_243 = arith.constant 0 : index
    %252 = vector.load %arg6[%c768, %c0_243] : memref<784x16xf32, #tpu.memory_space<vmem>>, vector<16x16xf32>
    %cst_244 = arith.constant dense<0.000000e+00> : vector<8x16xf32>
    %253 = tpu.matmul %251, %252, %cst_244 {dimension_numbers = #tpu.dot_dimension_numbers<[1], [0], [0], [1], [0, 0, 1, 1], [], []>} : vector<8x16xf32>, vector<16x16xf32>, vector<8x16xf32> -> vector<8x16xf32>
    %254 = arith.addf %250, %253 : vector<8x16xf32>
    %c0_245 = arith.constant 0 : index
    %c0_246 = arith.constant 0 : index
    %255 = vector.load %arg7[%c0_245, %c0_246] : memref<1x16xf32, #tpu.memory_space<vmem>>, vector<1x16xf32>
    %256 = vector.broadcast %255 : vector<1x16xf32> to vector<8x16xf32>
    %257 = arith.addf %254, %256 : vector<8x16xf32>
    %cst_247 = arith.constant 0.000000e+00 : f32
    %258 = vector.broadcast %cst_247 : f32 to vector<8x16xf32>
    %259 = arith.maximumf %257, %258 : vector<8x16xf32>
    %c0_248 = arith.constant 0 : index
    %c0_249 = arith.constant 0 : index
    %260 = vector.load %arg8[%c0_248, %c0_249] : memref<16x4xf32, #tpu.memory_space<vmem>>, vector<16x4xf32>
    %cst_250 = arith.constant dense<0.000000e+00> : vector<8x4xf32>
    %261 = tpu.matmul %259, %260, %cst_250 {dimension_numbers = #tpu.dot_dimension_numbers<[1], [0], [0], [1], [0, 0, 1, 1], [], []>} : vector<8x16xf32>, vector<16x4xf32>, vector<8x4xf32> -> vector<8x4xf32>
    %c0_251 = arith.constant 0 : index
    %c0_252 = arith.constant 0 : index
    %262 = vector.load %arg9[%c0_251, %c0_252] : memref<1x4xf32, #tpu.memory_space<vmem>>, vector<1x4xf32>
    %263 = vector.broadcast %262 : vector<1x4xf32> to vector<8x4xf32>
    %264 = arith.addf %261, %263 : vector<8x4xf32>
    %265 = math.tanh %264 : vector<8x4xf32>
    %c0_253 = arith.constant 0 : index
    %c0_254 = arith.constant 0 : index
    %266 = vector.load %arg10[%c0_253, %c0_254] : memref<8x4xf32, #tpu.memory_space<vmem>>, vector<8x4xf32>
    tpu.vector_store %arg10[%c0_253, %c0_254], %265 {strides = array<i32>} : memref<8x4xf32, #tpu.memory_space<vmem>>, vector<8x4xf32>,
    return
  }
}

</mosaic_0001>

<llo_original>
// kernel: actor_forward.1
$region0: #{actor_forward.1}
  #allocation0 [shape = 'u32[]', space=smem, size = 0x4, offset = 0x4, fixed_abs, tag = 'smem constant byte address 0x4 - core index']
  #allocation1 [shape = 'u32[144,128]{1,0:T(1,128)}', space=vmem, size = 0x12000, scoped, tag = 'internal scratch']
  #allocation2 [shape = 'f32[200,16]{1,0:T(8,128)}', space=vmem, size = 0x19000, scoped, tag = 'scratch operand']
  #allocation3 [shape = 'f32[392,16]{1,0:T(8,128)}', space=vmem, size = 0x31000, scoped, tag = 'scratch operand']
  %s0 = inlined_call_operand.vmem [shape: f32[200,16], index: 0, kind: input, shape index: {}]
  %s1 = inlined_call_operand.vmem [shape: f32[16,16], index: 1, kind: input, shape index: {}]
  %s2 = inlined_call_operand.vmem [shape: f32[1,16], index: 2, kind: input, shape index: {}]
  %s3 = inlined_call_operand.vmem [shape: f32[4,392,200], index: 3, kind: input, shape index: {}]
  %s4 = inlined_call_operand.vmem [shape: f32[4,16,16], index: 4, kind: input, shape index: {}]
  %s5 = inlined_call_operand.vmem [shape: f32[1,16], index: 5, kind: input, shape index: {}]
  %s6 = inlined_call_operand.vmem [shape: f32[784,16], index: 6, kind: input, shape index: {}]
  %s7 = inlined_call_operand.vmem [shape: f32[1,16], index: 7, kind: input, shape index: {}]
  %s8 = inlined_call_operand.vmem [shape: f32[16,4], index: 8, kind: input, shape index: {}]
  %s9 = inlined_call_operand.vmem [shape: f32[1,4], index: 9, kind: input, shape index: {}]
  %s10 = inlined_call_operand.vmem [shape: f32[8,4], index: 10, kind: output, shape index: {}]
  %s11 = sld [smem:[#allocation0]]
  $region50: #{actor_forward.1} parent=0
    _
  %s13 = ssub.s32 1, %s11
  %s14 = scalar_select 0, %s13, %s11
  // Predicated region
  $region2: #{actor_forward.1} parent=0 // pred_check
    _
  $region3: #{actor_forward.1} parent=0 // pred_check_branch
    %16 = sbr.rel (0) target = $region5
  $region4: #{actor_forward.1} parent=0 // pred_region
    _
  $region5: #{actor_forward.1} parent=0 // pred_fallthru
    _
  // Predicated region
  $region6: #{actor_forward.1} parent=0 // pred_check
    _
  $region7: #{actor_forward.1} parent=0 // pred_check_branch
    %18 = sbr.rel (0) target = $region9
  $region8: #{actor_forward.1} parent=0 // pred_region
    _
  $region9: #{actor_forward.1} parent=0 // pred_fallthru
    _
  // Predicated region
  $region10: #{actor_forward.1} parent=0 // pred_check
    _
  $region11: #{actor_forward.1} parent=0 // pred_check_branch
    %20 = sbr.rel (0) target = $region13
  $region12: #{actor_forward.1} parent=0 // pred_region
    _
  $region13: #{actor_forward.1} parent=0 // pred_fallthru
    _
  // Predicated region
  $region14: #{actor_forward.1} parent=0 // pred_check
    _
  $region15: #{actor_forward.1} parent=0 // pred_check_branch
    %22 = sbr.rel (0) target = $region17
  $region16: #{actor_forward.1} parent=0 // pred_region
    _
  $region17: #{actor_forward.1} parent=0 // pred_fallthru
    _
  // Predicated region
  $region18: #{actor_forward.1} parent=0 // pred_check
    _
  $region19: #{actor_forward.1} parent=0 // pred_check_branch
    %24 = sbr.rel (0) target = $region21
  $region20: #{actor_forward.1} parent=0 // pred_region
    _
  $region21: #{actor_forward.1} parent=0 // pred_fallthru
    _
  // Predicated region
  $region22: #{actor_forward.1} parent=0 // pred_check
    _
  $region23: #{actor_forward.1} parent=0 // pred_check_branch
    %26 = sbr.rel (0) target = $region25
  $region24: #{actor_forward.1} parent=0 // pred_region
    _
  $region25: #{actor_forward.1} parent=0 // pred_fallthru
    _
  // Predicated region
  $region26: #{actor_forward.1} parent=0 // pred_check
    _
  $region27: #{actor_forward.1} parent=0 // pred_check_branch
    %28 = sbr.rel (0) target = $region29
  $region28: #{actor_forward.1} parent=0 // pred_region
    _
  $region29: #{actor_forward.1} parent=0 // pred_fallthru
    _
  // Predicated region
  $region30: #{actor_forward.1} parent=0 // pred_check
    _
  $region31: #{actor_forward.1} parent=0 // pred_check_branch
    %30 = sbr.rel (0) target = $region33
  $region32: #{actor_forward.1} parent=0 // pred_region
    _
  $region33: #{actor_forward.1} parent=0 // pred_fallthru
    _
  // Predicated region
  $region34: #{actor_forward.1} parent=0 // pred_check
    _
  $region35: #{actor_forward.1} parent=0 // pred_check_branch
    %32 = sbr.rel (0) target = $region37
  $region36: #{actor_forward.1} parent=0 // pred_region
    _
  $region37: #{actor_forward.1} parent=0 // pred_fallthru
    _
  // Predicated region
  $region38: #{actor_forward.1} parent=0 // pred_check
    _
  $region39: #{actor_forward.1} parent=0 // pred_check_branch
    %34 = sbr.rel (0) target = $region41
  $region40: #{actor_forward.1} parent=0 // pred_region
    _
  $region41: #{actor_forward.1} parent=0 // pred_fallthru
    _
  %v35 = vld [vmem:[%s0] sm:$0xff]
  %v36 = vld [vmem:[%s0 + $0x8] sm:$0xff]
  %v37 = vld [vmem:[%s0 + $0x10] sm:$0xff]
  %v38 = vld [vmem:[%s0 + $0x18] sm:$0xff]
  %v39 = vld [vmem:[%s0 + $0x20] sm:$0xff]
  %v40 = vld [vmem:[%s0 + $0x28] sm:$0xff]
  %v41 = vld [vmem:[%s0 + $0x30] sm:$0xff]
  %v42 = vld [vmem:[%s0 + $0x38] sm:$0xff]
  %v43 = vld [vmem:[%s0 + $0x40] sm:$0xff]
  %v44 = vld [vmem:[%s0 + $0x48] sm:$0xff]
  %v45 = vld [vmem:[%s0 + $0x50] sm:$0xff]
  %v46 = vld [vmem:[%s0 + $0x58] sm:$0xff]
  %v47 = vld [vmem:[%s0 + $0x60] sm:$0xff]
  %v48 = vld [vmem:[%s0 + $0x68] sm:$0xff]
  %v49 = vld [vmem:[%s0 + $0x70] sm:$0xff]
  %v50 = vld [vmem:[%s0 + $0x78] sm:$0xff]
  %v51 = vld [vmem:[%s0 + $0x80] sm:$0xff]
  %v52 = vld [vmem:[%s0 + $0x88] sm:$0xff]
  %v53 = vld [vmem:[%s0 + $0x90] sm:$0xff]
  %v54 = vld [vmem:[%s0 + $0x98] sm:$0xff]
  %v55 = vld [vmem:[%s0 + $0xa0] sm:$0xff]
  %v56 = vld [vmem:[%s0 + $0xa8] sm:$0xff]
  %v57 = vld [vmem:[%s0 + $0xb0] sm:$0xff]
  %v58 = vld [vmem:[%s0 + $0xb8] sm:$0xff]
  %v59 = vld [vmem:[%s0 + $0xc0] sm:$0xff]
  %v60 = vld [vmem:[%s1] sm:$0xff]
  %v61 = vld [vmem:[%s1 + $0x8] sm:$0xff]
  %v62 = vld [vmem:[%s2] sm:$0x1]
  %v64 = vlaneseq
  %v65 = vshrl.u32 %v64, 7
  %v66 = vsub.s32 0, %v65
  %v67 = vrot.slane %v62, %v66
  %vm69 = vcmask 130048
  %v71 = vsel %vm69, %v35, 0
  %v74 = vsel %vm69, %v36, 0
  %v77 = vsel %vm69, %v37, 0
  %v80 = vsel %vm69, %v38, 0
  %v83 = vsel %vm69, %v39, 0
  %v86 = vsel %vm69, %v40, 0
  %v89 = vsel %vm69, %v41, 0
  %v92 = vsel %vm69, %v42, 0
  %v95 = vsel %vm69, %v43, 0
  %v98 = vsel %vm69, %v44, 0
  %v101 = vsel %vm69, %v45, 0
  %v104 = vsel %vm69, %v46, 0
  %v107 = vsel %vm69, %v47, 0
  %v110 = vsel %vm69, %v48, 0
  %v113 = vsel %vm69, %v49, 0
  %v116 = vsel %vm69, %v50, 0
  %v119 = vsel %vm69, %v51, 0
  %v122 = vsel %vm69, %v52, 0
  %v125 = vsel %vm69, %v53, 0
  %v128 = vsel %vm69, %v54, 0
  %v131 = vsel %vm69, %v55, 0
  %v134 = vsel %vm69, %v56, 0
  %v137 = vsel %vm69, %v57, 0
  %v140 = vsel %vm69, %v58, 0
  %v143 = vsel %vm69, %v59, 0
  %145 = vmatprep.subr.mxu0 0.0
  %146 = vmatpush1.msra.mxu0 0.0
  %147 = vmatprep.subr.mxu0 0.0
  %148 = vmatpush1.msra.mxu0 0.0
  %149 = vmatprep.subr.mxu0 0.0
  %150 = vmatpush1.msra.mxu0 0.0
  %151 = vmatprep.subr.mxu0 0.0
  %152 = vmatpush1.msra.mxu0 0.0
  %153 = vmatprep.subr.mxu0 0.0
  %154 = vmatpush1.msra.mxu0 0.0
  %155 = vmatprep.subr.mxu0 0.0
  %156 = vmatpush1.msra.mxu0 0.0
  %157 = vmatprep.subr.mxu0 0.0
  %158 = vmatpush1.msra.mxu0 0.0
  %159 = vmatprep.subr.mxu0 0.0
  %160 = vmatpush1.msra.mxu0 0.0
  %161 = vmatprep.subr.mxu0 0.0
  %162 = vmatpush1.msra.mxu0 0.0
  %163 = vmatprep.subr.mxu0 0.0
  %164 = vmatpush1.msra.mxu0 0.0
  %165 = vmatprep.subr.mxu0 0.0
  %166 = vmatpush1.msra.mxu0 0.0
  %167 = vmatprep.subr.mxu0 0.0
  %168 = vmatpush1.msra.mxu0 0.0
  %169 = vmatprep.subr.mxu0 0.0
  %170 = vmatpush1.msra.mxu0 0.0
  %171 = vmatprep.subr.mxu0 0.0
  %172 = vmatpush1.msra.mxu0 0.0
  %173 = vmatprep.subr.mxu0 0.0
  %174 = vmatpush1.msra.mxu0 %v61
  %175 = vmatprep.subr.mxu0 0.0
  %176 = vmatpush1.msra.mxu0 %v60
  %177 = vmatprep.subr.mxu0 0.0
  %178 = vmatpush2.msra.mxu0 0.0
  %179 = vmatprep.subr.mxu0 0.0
  %180 = vmatpush2.msra.mxu0 0.0
  %181 = vmatprep.subr.mxu0 0.0
  %182 = vmatpush2.msra.mxu0 0.0
  %183 = vmatprep.subr.mxu0 0.0
  %184 = vmatpush2.msra.mxu0 0.0
  %185 = vmatprep.subr.mxu0 0.0
  %186 = vmatpush2.msra.mxu0 0.0
  %187 = vmatprep.subr.mxu0 0.0
  %188 = vmatpush2.msra.mxu0 0.0
  %189 = vmatprep.subr.mxu0 0.0
  %190 = vmatpush2.msra.mxu0 0.0
  %191 = vmatprep.subr.mxu0 0.0
  %192 = vmatpush2.msra.mxu0 0.0
  %193 = vmatprep.subr.mxu0 0.0
  %194 = vmatpush2.msra.mxu0 0.0
  %195 = vmatprep.subr.mxu0 0.0
  %196 = vmatpush2.msra.mxu0 0.0
  %197 = vmatprep.subr.mxu0 0.0
  %198 = vmatpush2.msra.mxu0 0.0
  %199 = vmatprep.subr.mxu0 0.0
  %200 = vmatpush2.msra.mxu0 0.0
  %201 = vmatprep.subr.mxu0 0.0
  %202 = vmatpush2.msra.mxu0 0.0
  %203 = vmatprep.subr.mxu0 0.0
  %204 = vmatpush2.msra.mxu0 0.0
  %205 = vmatprep.subr.mxu0 0.0
  %206 = vmatpush2.msra.mxu0 0.0
  %207 = vmatprep.subr.mxu0 0.0
  %208 = vmatpush2.msra.mxu0 0.0
  %209 = vmatprep.mubr.f32.mxu0 0.0
  %210 = vmatmul.mubr.f32.gmra.mxu0 %v71
  %v211 = vpop.f32.mrf.mxu0
  %v212 = vadd.f32 %v67, %v211
  %v213 = vpop.f32.mrf.mxu0
  %214 = vmatprep.mubr.f32.mxu0 0.0
  %215 = vmatmul.mubr.f32.gmra.mxu0 %v74
  %v216 = vpop.f32.mrf.mxu0
  %v217 = vadd.f32 %v67, %v216
  %v218 = vpop.f32.mrf.mxu0
  %219 = vmatprep.mubr.f32.mxu0 0.0
  %220 = vmatmul.mubr.f32.gmra.mxu0 %v77
  %v221 = vpop.f32.mrf.mxu0
  %v222 = vadd.f32 %v67, %v221
  %v223 = vpop.f32.mrf.mxu0
  %224 = vmatprep.mubr.f32.mxu0 0.0
  %225 = vmatmul.mubr.f32.gmra.mxu0 %v80
  %v226 = vpop.f32.mrf.mxu0
  %v227 = vadd.f32 %v67, %v226
  %v228 = vpop.f32.mrf.mxu0
  %229 = vmatprep.mubr.f32.mxu0 0.0
  %230 = vmatmul.mubr.f32.gmra.mxu0 %v83
  %v231 = vpop.f32.mrf.mxu0
  %v232 = vadd.f32 %v67, %v231
  %v233 = vpop.f32.mrf.mxu0
  %234 = vmatprep.mubr.f32.mxu0 0.0
  %235 = vmatmul.mubr.f32.gmra.mxu0 %v86
  %v236 = vpop.f32.mrf.mxu0
  %v237 = vadd.f32 %v67, %v236
  %v238 = vpop.f32.mrf.mxu0
  %239 = vmatprep.mubr.f32.mxu0 0.0
  %240 = vmatmul.mubr.f32.gmra.mxu0 %v89
  %v241 = vpop.f32.mrf.mxu0
  %v242 = vadd.f32 %v67, %v241
  %v243 = vpop.f32.mrf.mxu0
  %244 = vmatprep.mubr.f32.mxu0 0.0
  %245 = vmatmul.mubr.f32.gmra.mxu0 %v92
  %v246 = vpop.f32.mrf.mxu0
  %v247 = vadd.f32 %v67, %v246
  %v248 = vpop.f32.mrf.mxu0
  %249 = vmatprep.mubr.f32.mxu0 0.0
  %250 = vmatmul.mubr.f32.gmra.mxu0 %v95
  %v251 = vpop.f32.mrf.mxu0
  %v252 = vadd.f32 %v67, %v251
  %v253 = vpop.f32.mrf.mxu0
  %254 = vmatprep.mubr.f32.mxu0 0.0
  %255 = vmatmul.mubr.f32.gmra.mxu0 %v98
  %v256 = vpop.f32.mrf.mxu0
  %v257 = vadd.f32 %v67, %v256
  %v258 = vpop.f32.mrf.mxu0
  %259 = vmatprep.mubr.f32.mxu0 0.0
  %260 = vmatmul.mubr.f32.gmra.mxu0 %v101
  %v261 = vpop.f32.mrf.mxu0
  %v262 = vadd.f32 %v67, %v261
  %v263 = vpop.f32.mrf.mxu0
  %264 = vmatprep.mubr.f32.mxu0 0.0
  %265 = vmatmul.mubr.f32.gmra.mxu0 %v104
  %v266 = vpop.f32.mrf.mxu0
  %v267 = vadd.f32 %v67, %v266
  %v268 = vpop.f32.mrf.mxu0
  %269 = vmatprep.mubr.f32.mxu0 0.0
  %270 = vmatmul.mubr.f32.gmra.mxu0 %v107
  %v271 = vpop.f32.mrf.mxu0
  %v272 = vadd.f32 %v67, %v271
  %v273 = vpop.f32.mrf.mxu0
  %274 = vmatprep.mubr.f32.mxu0 0.0
  %275 = vmatmul.mubr.f32.gmra.mxu0 %v110
  %v276 = vpop.f32.mrf.mxu0
  %v277 = vadd.f32 %v67, %v276
  %v278 = vpop.f32.mrf.mxu0
  %279 = vmatprep.mubr.f32.mxu0 0.0
  %280 = vmatmul.mubr.f32.gmra.mxu0 %v113
  %v281 = vpop.f32.mrf.mxu0
  %v282 = vadd.f32 %v67, %v281
  %v283 = vpop.f32.mrf.mxu0
  %284 = vmatprep.mubr.f32.mxu0 0.0
  %285 = vmatmul.mubr.f32.gmra.mxu0 %v116
  %v286 = vpop.f32.mrf.mxu0
  %v287 = vadd.f32 %v67, %v286
  %v288 = vpop.f32.mrf.mxu0
  %289 = vmatprep.mubr.f32.mxu0 0.0
  %290 = vmatmul.mubr.f32.gmra.mxu0 %v119
  %v291 = vpop.f32.mrf.mxu0
  %v292 = vadd.f32 %v67, %v291
  %v293 = vpop.f32.mrf.mxu0
  %294 = vmatprep.mubr.f32.mxu0 0.0
  %295 = vmatmul.mubr.f32.gmra.mxu0 %v122
  %v296 = vpop.f32.mrf.mxu0
  %v297 = vadd.f32 %v67, %v296
  %v298 = vpop.f32.mrf.mxu0
  %299 = vmatprep.mubr.f32.mxu0 0.0
  %300 = vmatmul.mubr.f32.gmra.mxu0 %v125
  %v301 = vpop.f32.mrf.mxu0
  %v302 = vadd.f32 %v67, %v301
  %v303 = vpop.f32.mrf.mxu0
  %304 = vmatprep.mubr.f32.mxu0 0.0
  %305 = vmatmul.mubr.f32.gmra.mxu0 %v128
  %v306 = vpop.f32.mrf.mxu0
  %v307 = vadd.f32 %v67, %v306
  %v308 = vpop.f32.mrf.mxu0
  %309 = vmatprep.mubr.f32.mxu0 0.0
  %310 = vmatmul.mubr.f32.gmra.mxu0 %v131
  %v311 = vpop.f32.mrf.mxu0
  %v312 = vadd.f32 %v67, %v311
  %v313 = vpop.f32.mrf.mxu0
  %314 = vmatprep.mubr.f32.mxu0 0.0
  %315 = vmatmul.mubr.f32.gmra.mxu0 %v134
  %v316 = vpop.f32.mrf.mxu0
  %v317 = vadd.f32 %v67, %v316
  %v318 = vpop.f32.mrf.mxu0
  %319 = vmatprep.mubr.f32.mxu0 0.0
  %320 = vmatmul.mubr.f32.gmra.mxu0 %v137
  %v321 = vpop.f32.mrf.mxu0
  %v322 = vadd.f32 %v67, %v321
  %v323 = vpop.f32.mrf.mxu0
  %324 = vmatprep.mubr.f32.mxu0 0.0
  %325 = vmatmul.mubr.f32.gmra.mxu0 %v140
  %v326 = vpop.f32.mrf.mxu0
  %v327 = vadd.f32 %v67, %v326
  %v328 = vpop.f32.mrf.mxu0
  %329 = vmatprep.mubr.f32.mxu0 0.0
  %330 = vmatmul.mubr.f32.gmra.mxu0 %v143
  %v331 = vpop.f32.mrf.mxu0
  %v332 = vadd.f32 %v67, %v331
  %v333 = vpop.f32.mrf.mxu0
  %334 = vdwg.mxu0
  %v335 = vmax.f32 %v212, 0.0
  %v336 = vmax.f32 %v217, 0.0
  %v337 = vmax.f32 %v222, 0.0
  %v338 = vmax.f32 %v227, 0.0
  %v339 = vmax.f32 %v232, 0.0
  %v340 = vmax.f32 %v237, 0.0
  %v341 = vmax.f32 %v242, 0.0
  %v342 = vmax.f32 %v247, 0.0
  %v343 = vmax.f32 %v252, 0.0
  %v344 = vmax.f32 %v257, 0.0
  %v345 = vmax.f32 %v262, 0.0
  %v346 = vmax.f32 %v267, 0.0
  %v347 = vmax.f32 %v272, 0.0
  %v348 = vmax.f32 %v277, 0.0
  %v349 = vmax.f32 %v282, 0.0
  %v350 = vmax.f32 %v287, 0.0
  %v351 = vmax.f32 %v292, 0.0
  %v352 = vmax.f32 %v297, 0.0
  %v353 = vmax.f32 %v302, 0.0
  %v354 = vmax.f32 %v307, 0.0
  %v355 = vmax.f32 %v312, 0.0
  %v356 = vmax.f32 %v317, 0.0
  %v357 = vmax.f32 %v322, 0.0
  %v358 = vmax.f32 %v327, 0.0
  %v359 = vmax.f32 %v332, 0.0
  %360 = vst.msk [vmem:[#allocation2] sm:$0xff] %vm69, %v335
  %361 = vst.msk [vmem:[#allocation2 + $0x8] sm:$0xff] %vm69, %v336
  %362 = vst.msk [vmem:[#allocation2 + $0x10] sm:$0xff] %vm69, %v337
  %363 = vst.msk [vmem:[#allocation2 + $0x18] sm:$0xff] %vm69, %v338
  %364 = vst.msk [vmem:[#allocation2 + $0x20] sm:$0xff] %vm69, %v339
  %365 = vst.msk [vmem:[#allocation2 + $0x28] sm:$0xff] %vm69, %v340
  %366 = vst.msk [vmem:[#allocation2 + $0x30] sm:$0xff] %vm69, %v341
  %367 = vst.msk [vmem:[#allocation2 + $0x38] sm:$0xff] %vm69, %v342
  %368 = vst.msk [vmem:[#allocation2 + $0x40] sm:$0xff] %vm69, %v343
  %369 = vst.msk [vmem:[#allocation2 + $0x48] sm:$0xff] %vm69, %v344
  %370 = vst.msk [vmem:[#allocation2 + $0x50] sm:$0xff] %vm69, %v345
  %371 = vst.msk [vmem:[#allocation2 + $0x58] sm:$0xff] %vm69, %v346
  %372 = vst.msk [vmem:[#allocation2 + $0x60] sm:$0xff] %vm69, %v347
  %373 = vst.msk [vmem:[#allocation2 + $0x68] sm:$0xff] %vm69, %v348
  %374 = vst.msk [vmem:[#allocation2 + $0x70] sm:$0xff] %vm69, %v349
  %375 = vst.msk [vmem:[#allocation2 + $0x78] sm:$0xff] %vm69, %v350
  %376 = vst.msk [vmem:[#allocation2 + $0x80] sm:$0xff] %vm69, %v351
  %377 = vst.msk [vmem:[#allocation2 + $0x88] sm:$0xff] %vm69, %v352
  %378 = vst.msk [vmem:[#allocation2 + $0x90] sm:$0xff] %vm69, %v353
  %379 = vst.msk [vmem:[#allocation2 + $0x98] sm:$0xff] %vm69, %v354
  %380 = vst.msk [vmem:[#allocation2 + $0xa0] sm:$0xff] %vm69, %v355
  %381 = vst.msk [vmem:[#allocation2 + $0xa8] sm:$0xff] %vm69, %v356
  %382 = vst.msk [vmem:[#allocation2 + $0xb0] sm:$0xff] %vm69, %v357
  %383 = vst.msk [vmem:[#allocation2 + $0xb8] sm:$0xff] %vm69, %v358
  %384 = vst.msk [vmem:[#allocation2 + $0xc0] sm:$0xff] %vm69, %v359
  %385 = vst.msk [vmem:[#allocation3] sm:$0xff] %vm69, 0.0
  %386 = vst.msk [vmem:[#allocation3 + $0x8] sm:$0xff] %vm69, 0.0
  %387 = vst.msk [vmem:[#allocation3 + $0x10] sm:$0xff] %vm69, 0.0
  %388 = vst.msk [vmem:[#allocation3 + $0x18] sm:$0xff] %vm69, 0.0
  %389 = vst.msk [vmem:[#allocation3 + $0x20] sm:$0xff] %vm69, 0.0
  %390 = vst.msk [vmem:[#allocation3 + $0x28] sm:$0xff] %vm69, 0.0
  %391 = vst.msk [vmem:[#allocation3 + $0x30] sm:$0xff] %vm69, 0.0
  %392 = vst.msk [vmem:[#allocation3 + $0x38] sm:$0xff] %vm69, 0.0
  %393 = vst.msk [vmem:[#allocation3 + $0x40] sm:$0xff] %vm69, 0.0
  %394 = vst.msk [vmem:[#allocation3 + $0x48] sm:$0xff] %vm69, 0.0
  %395 = vst.msk [vmem:[#allocation3 + $0x50] sm:$0xff] %vm69, 0.0
  %396 = vst.msk [vmem:[#allocation3 + $0x58] sm:$0xff] %vm69, 0.0
  %397 = vst.msk [vmem:[#allocation3 + $0x60] sm:$0xff] %vm69, 0.0
  %398 = vst.msk [vmem:[#allocation3 + $0x68] sm:$0xff] %vm69, 0.0
  %399 = vst.msk [vmem:[#allocation3 + $0x70] sm:$0xff] %vm69, 0.0
  %400 = vst.msk [vmem:[#allocation3 + $0x78] sm:$0xff] %vm69, 0.0
  %401 = vst.msk [vmem:[#allocation3 + $0x80] sm:$0xff] %vm69, 0.0
  %402 = vst.msk [vmem:[#allocation3 + $0x88] sm:$0xff] %vm69, 0.0
  %403 = vst.msk [vmem:[#allocation3 + $0x90] sm:$0xff] %vm69, 0.0
  %404 = vst.msk [vmem:[#allocation3 + $0x98] sm:$0xff] %vm69, 0.0
  %405 = vst.msk [vmem:[#allocation3 + $0xa0] sm:$0xff] %vm69, 0.0
  %406 = vst.msk [vmem:[#allocation3 + $0xa8] sm:$0xff] %vm69, 0.0
  %407 = vst.msk [vmem:[#allocation3 + $0xb0] sm:$0xff] %vm69, 0.0
  %408 = vst.msk [vmem:[#allocation3 + $0xb8] sm:$0xff] %vm69, 0.0
  %409 = vst.msk [vmem:[#allocation3 + $0xc0] sm:$0xff] %vm69, 0.0
  %410 = vst.msk [vmem:[#allocation3 + $0xc8] sm:$0xff] %vm69, 0.0
  %411 = vst.msk [vmem:[#allocation3 + $0xd0] sm:$0xff] %vm69, 0.0
  %412 = vst.msk [vmem:[#allocation3 + $0xd8] sm:$0xff] %vm69, 0.0
  %413 = vst.msk [vmem:[#allocation3 + $0xe0] sm:$0xff] %vm69, 0.0
  %414 = vst.msk [vmem:[#allocation3 + $0xe8] sm:$0xff] %vm69, 0.0
  %415 = vst.msk [vmem:[#allocation3 + $0xf0] sm:$0xff] %vm69, 0.0
  %416 = vst.msk [vmem:[#allocation3 + $0xf8] sm:$0xff] %vm69, 0.0
  %417 = vst.msk [vmem:[#allocation3 + $0x100] sm:$0xff] %vm69, 0.0
  %418 = vst.msk [vmem:[#allocation3 + $0x108] sm:$0xff] %vm69, 0.0
  %419 = vst.msk [vmem:[#allocation3 + $0x110] sm:$0xff] %vm69, 0.0
  %420 = vst.msk [vmem:[#allocation3 + $0x118] sm:$0xff] %vm69, 0.0
  %421 = vst.msk [vmem:[#allocation3 + $0x120] sm:$0xff] %vm69, 0.0
  %422 = vst.msk [vmem:[#allocation3 + $0x128] sm:$0xff] %vm69, 0.0
  %423 = vst.msk [vmem:[#allocation3 + $0x130] sm:$0xff] %vm69, 0.0
  %424 = vst.msk [vmem:[#allocation3 + $0x138] sm:$0xff] %vm69, 0.0
  %425 = vst.msk [vmem:[#allocation3 + $0x140] sm:$0xff] %vm69, 0.0
  %426 = vst.msk [vmem:[#allocation3 + $0x148] sm:$0xff] %vm69, 0.0
  %427 = vst.msk [vmem:[#allocation3 + $0x150] sm:$0xff] %vm69, 0.0
  %428 = vst.msk [vmem:[#allocation3 + $0x158] sm:$0xff] %vm69, 0.0
  %429 = vst.msk [vmem:[#allocation3 + $0x160] sm:$0xff] %vm69, 0.0
  %430 = vst.msk [vmem:[#allocation3 + $0x168] sm:$0xff] %vm69, 0.0
  %431 = vst.msk [vmem:[#allocation3 + $0x170] sm:$0xff] %vm69, 0.0
  %432 = vst.msk [vmem:[#allocation3 + $0x178] sm:$0xff] %vm69, 0.0
  %433 = vst.msk [vmem:[#allocation3 + $0x180] sm:$0xff] %vm69, 0.0
  %v434 = vld [vmem:[#allocation2] sm:$0xff]
  %v435 = vld [vmem:[#allocation2 + $0x8] sm:$0xff]
  %v436 = vld [vmem:[#allocation2 + $0x10] sm:$0xff]
  %v437 = vld [vmem:[#allocation2 + $0x18] sm:$0xff]
  %v438 = vld [vmem:[#allocation2 + $0x20] sm:$0xff]
  %v439 = vld [vmem:[#allocation2 + $0x28] sm:$0xff]
  %v440 = vld [vmem:[#allocation2 + $0x30] sm:$0xff]
  %v441 = vld [vmem:[#allocation2 + $0x38] sm:$0xff]
  %v442 = vld [vmem:[#allocation2 + $0x40] sm:$0xff]
  %v443 = vld [vmem:[#allocation2 + $0x48] sm:$0xff]
  %v444 = vld [vmem:[#allocation2 + $0x50] sm:$0xff]
  %v445 = vld [vmem:[#allocation2 + $0x58] sm:$0xff]
  %v446 = vld [vmem:[#allocation2 + $0x60] sm:$0xff]
  %v447 = vld [vmem:[#allocation2 + $0x68] sm:$0xff]
  %v448 = vld [vmem:[#allocation2 + $0x70] sm:$0xff]
  %v449 = vld [vmem:[#allocation2 + $0x78] sm:$0xff]
  %v450 = vld [vmem:[#allocation2 + $0x80] sm:$0xff]
  %v451 = vld [vmem:[#allocation2 + $0x88] sm:$0xff]
  %v452 = vld [vmem:[#allocation2 + $0x90] sm:$0xff]
  %v453 = vld [vmem:[#allocation2 + $0x98] sm:$0xff]
  %v454 = vld [vmem:[#allocation2 + $0xa0] sm:$0xff]
  %v455 = vld [vmem:[#allocation2 + $0xa8] sm:$0xff]
  %v456 = vld [vmem:[#allocation2 + $0xb0] sm:$0xff]
  %v457 = vld [vmem:[#allocation2 + $0xb8] sm:$0xff]
  %v458 = vld [vmem:[#allocation2 + $0xc0] sm:$0xff]
  %v459 = vld [vmem:[%s4] sm:$0xff]
  %v460 = vld [vmem:[%s4 + $0x8] sm:$0xff]
  %v462 = vsel %vm69, %v434, 0
  %v465 = vsel %vm69, %v435, 0
  %v468 = vsel %vm69, %v436, 0
  %v471 = vsel %vm69, %v437, 0
  %v474 = vsel %vm69, %v438, 0
  %v477 = vsel %vm69, %v439, 0
  %v480 = vsel %vm69, %v440, 0
  %v483 = vsel %vm69, %v441, 0
  %v486 = vsel %vm69, %v442, 0
  %v489 = vsel %vm69, %v443, 0
  %v492 = vsel %vm69, %v444, 0
  %v495 = vsel %vm69, %v445, 0
  %v498 = vsel %vm69, %v446, 0
  %v501 = vsel %vm69, %v447, 0
  %v504 = vsel %vm69, %v448, 0
  %v507 = vsel %vm69, %v449, 0
  %v510 = vsel %vm69, %v450, 0
  %v513 = vsel %vm69, %v451, 0
  %v516 = vsel %vm69, %v452, 0
  %v519 = vsel %vm69, %v453, 0
  %v522 = vsel %vm69, %v454, 0
  %v525 = vsel %vm69, %v455, 0
  %v528 = vsel %vm69, %v456, 0
  %v531 = vsel %vm69, %v457, 0
  %v534 = vsel %vm69, %v458, 0
  %536 = vmatprep.subr.mxu0 0.0
  %537 = vmatpush1.msra.mxu0 0.0
  %538 = vmatprep.subr.mxu0 0.0
  %539 = vmatpush1.msra.mxu0 0.0
  %540 = vmatprep.subr.mxu0 0.0
  %541 = vmatpush1.msra.mxu0 0.0
  %542 = vmatprep.subr.mxu0 0.0
  %543 = vmatpush1.msra.mxu0 0.0
  %544 = vmatprep.subr.mxu0 0.0
  %545 = vmatpush1.msra.mxu0 0.0
  %546 = vmatprep.subr.mxu0 0.0
  %547 = vmatpush1.msra.mxu0 0.0
  %548 = vmatprep.subr.mxu0 0.0
  %549 = vmatpush1.msra.mxu0 0.0
  %550 = vmatprep.subr.mxu0 0.0
  %551 = vmatpush1.msra.mxu0 0.0
  %552 = vmatprep.subr.mxu0 0.0
  %553 = vmatpush1.msra.mxu0 0.0
  %554 = vmatprep.subr.mxu0 0.0
  %555 = vmatpush1.msra.mxu0 0.0
  %556 = vmatprep.subr.mxu0 0.0
  %557 = vmatpush1.msra.mxu0 0.0
  %558 = vmatprep.subr.mxu0 0.0
  %559 = vmatpush1.msra.mxu0 0.0
  %560 = vmatprep.subr.mxu0 0.0
  %561 = vmatpush1.msra.mxu0 0.0
  %562 = vmatprep.subr.mxu0 0.0
  %563 = vmatpush1.msra.mxu0 0.0
  %564 = vmatprep.subr.mxu0 0.0
  %565 = vmatpush1.msra.mxu0 %v460
  %566 = vmatprep.subr.mxu0 0.0
  %567 = vmatpush1.msra.mxu0 %v459
  %568 = vmatprep.subr.mxu0 0.0
  %569 = vmatpush2.msra.mxu0 0.0
  %570 = vmatprep.subr.mxu0 0.0
  %571 = vmatpush2.msra.mxu0 0.0
  %572 = vmatprep.subr.mxu0 0.0
  %573 = vmatpush2.msra.mxu0 0.0
  %574 = vmatprep.subr.mxu0 0.0
  %575 = vmatpush2.msra.mxu0 0.0
  %576 = vmatprep.subr.mxu0 0.0
  %577 = vmatpush2.msra.mxu0 0.0
  %578 = vmatprep.subr.mxu0 0.0
  %579 = vmatpush2.msra.mxu0 0.0
  %580 = vmatprep.subr.mxu0 0.0
  %581 = vmatpush2.msra.mxu0 0.0
  %582 = vmatprep.subr.mxu0 0.0
  %583 = vmatpush2.msra.mxu0 0.0
  %584 = vmatprep.subr.mxu0 0.0
  %585 = vmatpush2.msra.mxu0 0.0
  %586 = vmatprep.subr.mxu0 0.0
  %587 = vmatpush2.msra.mxu0 0.0
  %588 = vmatprep.subr.mxu0 0.0
  %589 = vmatpush2.msra.mxu0 0.0
  %590 = vmatprep.subr.mxu0 0.0
  %591 = vmatpush2.msra.mxu0 0.0
  %592 = vmatprep.subr.mxu0 0.0
  %593 = vmatpush2.msra.mxu0 0.0
  %594 = vmatprep.subr.mxu0 0.0
  %595 = vmatpush2.msra.mxu0 0.0
  %596 = vmatprep.subr.mxu0 0.0
  %597 = vmatpush2.msra.mxu0 0.0
  %598 = vmatprep.subr.mxu0 0.0
  %599 = vmatpush2.msra.mxu0 0.0
  %600 = vmatprep.mubr.f32.mxu0 0.0
  %601 = vmatmul.mubr.f32.gmra.mxu0 %v462
  %v602 = vpop.f32.mrf.mxu0
  %v603 = vadd.f32 0.0, %v602
  %v604 = vpop.f32.mrf.mxu0
  %605 = vmatprep.mubr.f32.mxu0 0.0
  %606 = vmatmul.mubr.f32.gmra.mxu0 %v465
  %v607 = vpop.f32.mrf.mxu0
  %v608 = vadd.f32 0.0, %v607
  %v609 = vpop.f32.mrf.mxu0
  %610 = vmatprep.mubr.f32.mxu0 0.0
  %611 = vmatmul.mubr.f32.gmra.mxu0 %v468
  %v612 = vpop.f32.mrf.mxu0
  %v613 = vadd.f32 0.0, %v612
  %v614 = vpop.f32.mrf.mxu0
  %615 = vmatprep.mubr.f32.mxu0 0.0
  %616 = vmatmul.mubr.f32.gmra.mxu0 %v471
  %v617 = vpop.f32.mrf.mxu0
  %v618 = vadd.f32 0.0, %v617
  %v619 = vpop.f32.mrf.mxu0
  %620 = vmatprep.mubr.f32.mxu0 0.0
  %621 = vmatmul.mubr.f32.gmra.mxu0 %v474
  %v622 = vpop.f32.mrf.mxu0
  %v623 = vadd.f32 0.0, %v622
  %v624 = vpop.f32.mrf.mxu0
  %625 = vmatprep.mubr.f32.mxu0 0.0
  %626 = vmatmul.mubr.f32.gmra.mxu0 %v477
  %v627 = vpop.f32.mrf.mxu0
  %v628 = vadd.f32 0.0, %v627
  %v629 = vpop.f32.mrf.mxu0
  %630 = vmatprep.mubr.f32.mxu0 0.0
  %631 = vmatmul.mubr.f32.gmra.mxu0 %v480
  %v632 = vpop.f32.mrf.mxu0
  %v633 = vadd.f32 0.0, %v632
  %v634 = vpop.f32.mrf.mxu0
  %635 = vmatprep.mubr.f32.mxu0 0.0
  %636 = vmatmul.mubr.f32.gmra.mxu0 %v483
  %v637 = vpop.f32.mrf.mxu0
  %v638 = vadd.f32 0.0, %v637
  %v639 = vpop.f32.mrf.mxu0
  %640 = vmatprep.mubr.f32.mxu0 0.0
  %641 = vmatmul.mubr.f32.gmra.mxu0 %v486
  %v642 = vpop.f32.mrf.mxu0
  %v643 = vadd.f32 0.0, %v642
  %v644 = vpop.f32.mrf.mxu0
  %645 = vmatprep.mubr.f32.mxu0 0.0
  %646 = vmatmul.mubr.f32.gmra.mxu0 %v489
  %v647 = vpop.f32.mrf.mxu0
  %v648 = vadd.f32 0.0, %v647
  %v649 = vpop.f32.mrf.mxu0
  %650 = vmatprep.mubr.f32.mxu0 0.0
  %651 = vmatmul.mubr.f32.gmra.mxu0 %v492
  %v652 = vpop.f32.mrf.mxu0
  %v653 = vadd.f32 0.0, %v652
  %v654 = vpop.f32.mrf.mxu0
  %655 = vmatprep.mubr.f32.mxu0 0.0
  %656 = vmatmul.mubr.f32.gmra.mxu0 %v495
  %v657 = vpop.f32.mrf.mxu0
  %v658 = vadd.f32 0.0, %v657
  %v659 = vpop.f32.mrf.mxu0
  %660 = vmatprep.mubr.f32.mxu0 0.0
  %661 = vmatmul.mubr.f32.gmra.mxu0 %v498
  %v662 = vpop.f32.mrf.mxu0
  %v663 = vadd.f32 0.0, %v662
  %v664 = vpop.f32.mrf.mxu0
  %665 = vmatprep.mubr.f32.mxu0 0.0
  %666 = vmatmul.mubr.f32.gmra.mxu0 %v501
  %v667 = vpop.f32.mrf.mxu0
  %v668 = vadd.f32 0.0, %v667
  %v669 = vpop.f32.mrf.mxu0
  %670 = vmatprep.mubr.f32.mxu0 0.0
  %671 = vmatmul.mubr.f32.gmra.mxu0 %v504
  %v672 = vpop.f32.mrf.mxu0
  %v673 = vadd.f32 0.0, %v672
  %v674 = vpop.f32.mrf.mxu0
  %675 = vmatprep.mubr.f32.mxu0 0.0
  %676 = vmatmul.mubr.f32.gmra.mxu0 %v507
  %v677 = vpop.f32.mrf.mxu0
  %v678 = vadd.f32 0.0, %v677
  %v679 = vpop.f32.mrf.mxu0
  %680 = vmatprep.mubr.f32.mxu0 0.0
  %681 = vmatmul.mubr.f32.gmra.mxu0 %v510
  %v682 = vpop.f32.mrf.mxu0
  %v683 = vadd.f32 0.0, %v682
  %v684 = vpop.f32.mrf.mxu0
  %685 = vmatprep.mubr.f32.mxu0 0.0
  %686 = vmatmul.mubr.f32.gmra.mxu0 %v513
  %v687 = vpop.f32.mrf.mxu0
  %v688 = vadd.f32 0.0, %v687
  %v689 = vpop.f32.mrf.mxu0
  %690 = vmatprep.mubr.f32.mxu0 0.0
  %691 = vmatmul.mubr.f32.gmra.mxu0 %v516
  %v692 = vpop.f32.mrf.mxu0
  %v693 = vadd.f32 0.0, %v692
  %v694 = vpop.f32.mrf.mxu0
  %695 = vmatprep.mubr.f32.mxu0 0.0
  %696 = vmatmul.mubr.f32.gmra.mxu0 %v519
  %v697 = vpop.f32.mrf.mxu0
  %v698 = vadd.f32 0.0, %v697
  %v699 = vpop.f32.mrf.mxu0
  %700 = vmatprep.mubr.f32.mxu0 0.0
  %701 = vmatmul.mubr.f32.gmra.mxu0 %v522
  %v702 = vpop.f32.mrf.mxu0
  %v703 = vadd.f32 0.0, %v702
  %v704 = vpop.f32.mrf.mxu0
  %705 = vmatprep.mubr.f32.mxu0 0.0
  %706 = vmatmul.mubr.f32.gmra.mxu0 %v525
  %v707 = vpop.f32.mrf.mxu0
  %v708 = vadd.f32 0.0, %v707
  %v709 = vpop.f32.mrf.mxu0
  %710 = vmatprep.mubr.f32.mxu0 0.0
  %711 = vmatmul.mubr.f32.gmra.mxu0 %v528
  %v712 = vpop.f32.mrf.mxu0
  %v713 = vadd.f32 0.0, %v712
  %v714 = vpop.f32.mrf.mxu0
  %715 = vmatprep.mubr.f32.mxu0 0.0
  %716 = vmatmul.mubr.f32.gmra.mxu0 %v531
  %v717 = vpop.f32.mrf.mxu0
  %v718 = vadd.f32 0.0, %v717
  %v719 = vpop.f32.mrf.mxu0
  %720 = vmatprep.mubr.f32.mxu0 0.0
  %721 = vmatmul.mubr.f32.gmra.mxu0 %v534
  %v722 = vpop.f32.mrf.mxu0
  %v723 = vadd.f32 0.0, %v722
  %v724 = vpop.f32.mrf.mxu0
  %725 = vdwg.mxu0
  %v726 = vld [vmem:[#allocation3] sm:$0xff]
  %v727 = vld [vmem:[#allocation3 + $0x8] sm:$0xff]
  %v728 = vld [vmem:[#allocation3 + $0x10] sm:$0xff]
  %v729 = vld [vmem:[#allocation3 + $0x18] sm:$0xff]
  %v730 = vld [vmem:[#allocation3 + $0x20] sm:$0xff]
  %v731 = vld [vmem:[#allocation3 + $0x28] sm:$0xff]
  %v732 = vld [vmem:[#allocation3 + $0x30] sm:$0xff]
  %v733 = vld [vmem:[#allocation3 + $0x38] sm:$0xff]
  %v734 = vld [vmem:[#allocation3 + $0x40] sm:$0xff]
  %v735 = vld [vmem:[#allocation3 + $0x48] sm:$0xff]
  %v736 = vld [vmem:[#allocation3 + $0x50] sm:$0xff]
  %v737 = vld [vmem:[#allocation3 + $0x58] sm:$0xff]
  %v738 = vld [vmem:[#allocation3 + $0x60] sm:$0xff]
  %v739 = vld [vmem:[#allocation3 + $0x68] sm:$0xff]
  %v740 = vld [vmem:[#allocation3 + $0x70] sm:$0xff]
  %v741 = vld [vmem:[#allocation3 + $0x78] sm:$0xff]
  %v742 = vld [vmem:[#allocation3 + $0x80] sm:$0xff]
  %v743 = vld [vmem:[#allocation3 + $0x88] sm:$0xff]
  %v744 = vld [vmem:[#allocation3 + $0x90] sm:$0xff]
  %v745 = vld [vmem:[#allocation3 + $0x98] sm:$0xff]
  %v746 = vld [vmem:[#allocation3 + $0xa0] sm:$0xff]
  %v747 = vld [vmem:[#allocation3 + $0xa8] sm:$0xff]
  %v748 = vld [vmem:[#allocation3 + $0xb0] sm:$0xff]
  %v749 = vld [vmem:[#allocation3 + $0xb8] sm:$0xff]
  %v750 = vld [vmem:[#allocation3 + $0xc0] sm:$0xff]
  %v751 = vld [vmem:[#allocation3 + $0xc8] sm:$0xff]
  %v752 = vld [vmem:[#allocation3 + $0xd0] sm:$0xff]
  %v753 = vld [vmem:[#allocation3 + $0xd8] sm:$0xff]
  %v754 = vld [vmem:[#allocation3 + $0xe0] sm:$0xff]
  %v755 = vld [vmem:[#allocation3 + $0xe8] sm:$0xff]
  %v756 = vld [vmem:[#allocation3 + $0xf0] sm:$0xff]
  %v757 = vld [vmem:[#allocation3 + $0xf8] sm:$0xff]
  %v758 = vld [vmem:[#allocation3 + $0x100] sm:$0xff]
  %v759 = vld [vmem:[#allocation3 + $0x108] sm:$0xff]
  %v760 = vld [vmem:[#allocation3 + $0x110] sm:$0xff]
  %v761 = vld [vmem:[#allocation3 + $0x118] sm:$0xff]
  %v762 = vld [vmem:[#allocation3 + $0x120] sm:$0xff]
  %v763 = vld [vmem:[#allocation3 + $0x128] sm:$0xff]
  %v764 = vld [vmem:[#allocation3 + $0x130] sm:$0xff]
  %v765 = vld [vmem:[#allocation3 + $0x138] sm:$0xff]
  %v766 = vld [vmem:[#allocation3 + $0x140] sm:$0xff]
  %v767 = vld [vmem:[#allocation3 + $0x148] sm:$0xff]
  %v768 = vld [vmem:[#allocation3 + $0x150] sm:$0xff]
  %v769 = vld [vmem:[#allocation3 + $0x158] sm:$0xff]
  %v770 = vld [vmem:[#allocation3 + $0x160] sm:$0xff]
  %v771 = vld [vmem:[#allocation3 + $0x168] sm:$0xff]
  %v772 = vld [vmem:[#allocation3 + $0x170] sm:$0xff]
  %v773 = vld [vmem:[#allocation3 + $0x178] sm:$0xff]
  %v774 = vld [vmem:[#allocation3 + $0x180] sm:$0xff]
  %v775 = vld [vmem:[%s3] sm:$0xff]
  %v776 = vld [vmem:[%s3 + $0x8] sm:$0xff]
  %v777 = vld [vmem:[%s3 + $0x10] sm:$0xff]
  %v778 = vld [vmem:[%s3 + $0x18] sm:$0xff]
  %v779 = vld [vmem:[%s3 + $0x20] sm:$0xff]
  %v780 = vld [vmem:[%s3 + $0x28] sm:$0xff]
  %v781 = vld [vmem:[%s3 + $0x30] sm:$0xff]
  %v782 = vld [vmem:[%s3 + $0x38] sm:$0xff]
  %v783 = vld [vmem:[%s3 + $0x40] sm:$0xff]
  %v784 = vld [vmem:[%s3 + $0x48] sm:$0xff]
  %v785 = vld [vmem:[%s3 + $0x50] sm:$0xff]
  %v786 = vld [vmem:[%s3 + $0x58] sm:$0xff]
  %v787 = vld [vmem:[%s3 + $0x60] sm:$0xff]
  %v788 = vld [vmem:[%s3 + $0x68] sm:$0xff]
  %v789 = vld [vmem:[%s3 + $0x70] sm:$0xff]
  %v790 = vld [vmem:[%s3 + $0x78] sm:$0xff]
  %v791 = vld [vmem:[%s3 + $0x80] sm:$0xff]
  %v792 = vld [vmem:[%s3 + $0x88] sm:$0xff]
  %v793 = vld [vmem:[%s3 + $0x90] sm:$0xff]
  %v794 = vld [vmem:[%s3 + $0x98] sm:$0xff]
  %v795 = vld [vmem:[%s3 + $0xa0] sm:$0xff]
  %v796 = vld [vmem:[%s3 + $0xa8] sm:$0xff]
  %v797 = vld [vmem:[%s3 + $0xb0] sm:$0xff]
  %v798 = vld [vmem:[%s3 + $0xb8] sm:$0xff]
  %v799 = vld [vmem:[%s3 + $0xc0] sm:$0xff]
  %v800 = vld [vmem:[%s3 + $0xc8] sm:$0xff]
  %v801 = vld [vmem:[%s3 + $0xd0] sm:$0xff]
  %v802 = vld [vmem:[%s3 + $0xd8] sm:$0xff]
  %v803 = vld [vmem:[%s3 + $0xe0] sm:$0xff]
  %v804 = vld [vmem:[%s3 + $0xe8] sm:$0xff]
  %v805 = vld [vmem:[%s3 + $0xf0] sm:$0xff]
  %v806 = vld [vmem:[%s3 + $0xf8] sm:$0xff]
  %v807 = vld [vmem:[%s3 + $0x100] sm:$0xff]
  %v808 = vld [vmem:[%s3 + $0x108] sm:$0xff]
  %v809 = vld [vmem:[%s3 + $0x110] sm:$0xff]
  %v810 = vld [vmem:[%s3 + $0x118] sm:$0xff]
  %v811 = vld [vmem:[%s3 + $0x120] sm:$0xff]
  %v812 = vld [vmem:[%s3 + $0x128] sm:$0xff]
  %v813 = vld [vmem:[%s3 + $0x130] sm:$0xff]
  %v814 = vld [vmem:[%s3 + $0x138] sm:$0xff]
  %v815 = vld [vmem:[%s3 + $0x140] sm:$0xff]
  %v816 = vld [vmem:[%s3 + $0x148] sm:$0xff]
  %v817 = vld [vmem:[%s3 + $0x150] sm:$0xff]
  %v818 = vld [vmem:[%s3 + $0x158] sm:$0xff]
  %v819 = vld [vmem:[%s3 + $0x160] sm:$0xff]
  %v820 = vld [vmem:[%s3 + $0x168] sm:$0xff]
  %v821 = vld [vmem:[%s3 + $0x170] sm:$0xff]
  %v822 = vld [vmem:[%s3 + $0x178] sm:$0xff]
  %v823 = vld [vmem:[%s3 + $0x180] sm:$0xff]
  %v824 = vld [vmem:[%s3 + $0x188] sm:$0xff]
  %v825 = vld [vmem:[%s3 + $0x190] sm:$0xff]
  %v826 = vld [vmem:[%s3 + $0x198] sm:$0xff]
  %v827 = vld [vmem:[%s3 + $0x1a0] sm:$0xff]
  %v828 = vld [vmem:[%s3 + $0x1a8] sm:$0xff]
  %v829 = vld [vmem:[%s3 + $0x1b0] sm:$0xff]
  %v830 = vld [vmem:[%s3 + $0x1b8] sm:$0xff]
  %v831 = vld [vmem:[%s3 + $0x1c0] sm:$0xff]
  %v832 = vld [vmem:[%s3 + $0x1c8] sm:$0xff]
  %v833 = vld [vmem:[%s3 + $0x1d0] sm:$0xff]
  %v834 = vld [vmem:[%s3 + $0x1d8] sm:$0xff]
  %v835 = vld [vmem:[%s3 + $0x1e0] sm:$0xff]
  %v836 = vld [vmem:[%s3 + $0x1e8] sm:$0xff]
  %v837 = vld [vmem:[%s3 + $0x1f0] sm:$0xff]
  %v838 = vld [vmem:[%s3 + $0x1f8] sm:$0xff]
  %v839 = vld [vmem:[%s3 + $0x200] sm:$0xff]
  %v840 = vld [vmem:[%s3 + $0x208] sm:$0xff]
  %v841 = vld [vmem:[%s3 + $0x210] sm:$0xff]
  %v842 = vld [vmem:[%s3 + $0x218] sm:$0xff]
  %v843 = vld [vmem:[%s3 + $0x220] sm:$0xff]
  %v844 = vld [vmem:[%s3 + $0x228] sm:$0xff]
  %v845 = vld [vmem:[%s3 + $0x230] sm:$0xff]
  %v846 = vld [vmem:[%s3 + $0x238] sm:$0xff]
  %v847 = vld [vmem:[%s3 + $0x240] sm:$0xff]
  %v848 = vld [vmem:[%s3 + $0x248] sm:$0xff]
  %v849 = vld [vmem:[%s3 + $0x250] sm:$0xff]
  %v850 = vld [vmem:[%s3 + $0x258] sm:$0xff]
  %v851 = vld [vmem:[%s3 + $0x260] sm:$0xff]
  %v852 = vld [vmem:[%s3 + $0x268] sm:$0xff]
  %v853 = vld [vmem:[%s3 + $0x270] sm:$0xff]
  %v854 = vld [vmem:[%s3 + $0x278] sm:$0xff]
  %v855 = vld [vmem:[%s3 + $0x280] sm:$0xff]
  %v856 = vld [vmem:[%s3 + $0x288] sm:$0xff]
  %v857 = vld [vmem:[%s3 + $0x290] sm:$0xff]
  %v858 = vld [vmem:[%s3 + $0x298] sm:$0xff]
  %v859 = vld [vmem:[%s3 + $0x2a0] sm:$0xff]
  %v860 = vld [vmem:[%s3 + $0x2a8] sm:$0xff]
  %v861 = vld [vmem:[%s3 + $0x2b0] sm:$0xff]
  %v862 = vld [vmem:[%s3 + $0x2b8] sm:$0xff]
  %v863 = vld [vmem:[%s3 + $0x2c0] sm:$0xff]
  %v864 = vld [vmem:[%s3 + $0x2c8] sm:$0xff]
  %v865 = vld [vmem:[%s3 + $0x2d0] sm:$0xff]
  %v866 = vld [vmem:[%s3 + $0x2d8] sm:$0xff]
  %v867 = vld [vmem:[%s3 + $0x2e0] sm:$0xff]
  %v868 = vld [vmem:[%s3 + $0x2e8] sm:$0xff]
  %v869 = vld [vmem:[%s3 + $0x2f0] sm:$0xff]
  %v870 = vld [vmem:[%s3 + $0x2f8] sm:$0xff]
  %v871 = vld [vmem:[%s3 + $0x300] sm:$0xff]
  %v872 = vld [vmem:[%s3 + $0x308] sm:$0xff]
  %vm873 = vcmask 588800
  %v875 = vsel %vm873, %v776, 0
  %v878 = vsel %vm873, %v778, 0
  %v881 = vsel %vm873, %v780, 0
  %v884 = vsel %vm873, %v782, 0
  %v887 = vsel %vm873, %v784, 0
  %v890 = vsel %vm873, %v786, 0
  %v893 = vsel %vm873, %v788, 0
  %v896 = vsel %vm873, %v790, 0
  %v899 = vsel %vm873, %v792, 0
  %v902 = vsel %vm873, %v794, 0
  %v905 = vsel %vm873, %v796, 0
  %v908 = vsel %vm873, %v798, 0
  %v911 = vsel %vm873, %v800, 0
  %v914 = vsel %vm873, %v802, 0
  %v917 = vsel %vm873, %v804, 0
  %v920 = vsel %vm873, %v806, 0
  %v923 = vsel %vm873, %v808, 0
  %v926 = vsel %vm873, %v810, 0
  %v929 = vsel %vm873, %v812, 0
  %v932 = vsel %vm873, %v814, 0
  %v935 = vsel %vm873, %v816, 0
  %v938 = vsel %vm873, %v818, 0
  %v941 = vsel %vm873, %v820, 0
  %v944 = vsel %vm873, %v822, 0
  %v947 = vsel %vm873, %v824, 0
  %v950 = vsel %vm873, %v826, 0
  %v953 = vsel %vm873, %v828, 0
  %v956 = vsel %vm873, %v830, 0
  %v959 = vsel %vm873, %v832, 0
  %v962 = vsel %vm873, %v834, 0
  %v965 = vsel %vm873, %v836, 0
  %v968 = vsel %vm873, %v838, 0
  %v971 = vsel %vm873, %v840, 0
  %v974 = vsel %vm873, %v842, 0
  %v977 = vsel %vm873, %v844, 0
  %v980 = vsel %vm873, %v846, 0
  %v983 = vsel %vm873, %v848, 0
  %v986 = vsel %vm873, %v850, 0
  %v989 = vsel %vm873, %v852, 0
  %v992 = vsel %vm873, %v854, 0
  %v995 = vsel %vm873, %v856, 0
  %v998 = vsel %vm873, %v858, 0
  %v1001 = vsel %vm873, %v860, 0
  %v1004 = vsel %vm873, %v862, 0
  %v1007 = vsel %vm873, %v864, 0
  %v1010 = vsel %vm873, %v866, 0
  %v1013 = vsel %vm873, %v868, 0
  %v1016 = vsel %vm873, %v870, 0
  %v1019 = vsel %vm873, %v872, 0
  %1021 = vmatprep.subr.mxu0 0.0
  %1022 = vmatpush1.msra.mxu0 %v678
  %1023 = vmatprep.subr.mxu0 0.0
  %1024 = vmatpush1.msra.mxu0 %v673
  %1025 = vmatprep.subr.mxu0 0.0
  %1026 = vmatpush1.msra.mxu0 %v668
  %1027 = vmatprep.subr.mxu0 0.0
  %1028 = vmatpush1.msra.mxu0 %v663
  %1029 = vmatprep.subr.mxu0 0.0
  %1030 = vmatpush1.msra.mxu0 %v658
  %1031 = vmatprep.subr.mxu0 0.0
  %1032 = vmatpush1.msra.mxu0 %v653
  %1033 = vmatprep.subr.mxu0 0.0
  %1034 = vmatpush1.msra.mxu0 %v648
  %1035 = vmatprep.subr.mxu0 0.0
  %1036 = vmatpush1.msra.mxu0 %v643
  %1037 = vmatprep.subr.mxu0 0.0
  %1038 = vmatpush1.msra.mxu0 %v638
  %1039 = vmatprep.subr.mxu0 0.0
  %1040 = vmatpush1.msra.mxu0 %v633
  %1041 = vmatprep.subr.mxu0 0.0
  %1042 = vmatpush1.msra.mxu0 %v628
  %1043 = vmatprep.subr.mxu0 0.0
  %1044 = vmatpush1.msra.mxu0 %v623
  %1045 = vmatprep.subr.mxu0 0.0
  %1046 = vmatpush1.msra.mxu0 %v618
  %1047 = vmatprep.subr.mxu0 0.0
  %1048 = vmatpush1.msra.mxu0 %v613
  %1049 = vmatprep.subr.mxu0 0.0
  %1050 = vmatpush1.msra.mxu0 %v608
  %1051 = vmatprep.subr.mxu0 0.0
  %1052 = vmatpush1.msra.mxu0 %v603
  %1053 = vmatprep.subr.mxu0 0.0
  %1054 = vmatpush2.msra.mxu0 0.0
  %1055 = vmatprep.subr.mxu0 0.0
  %1056 = vmatpush2.msra.mxu0 0.0
  %1057 = vmatprep.subr.mxu0 0.0
  %1058 = vmatpush2.msra.mxu0 0.0
  %1059 = vmatprep.subr.mxu0 0.0
  %1060 = vmatpush2.msra.mxu0 0.0
  %1061 = vmatprep.subr.mxu0 0.0
  %1062 = vmatpush2.msra.mxu0 0.0
  %1063 = vmatprep.subr.mxu0 0.0
  %1064 = vmatpush2.msra.mxu0 0.0
  %1065 = vmatprep.subr.mxu0 0.0
  %1066 = vmatpush2.msra.mxu0 0.0
  %1067 = vmatprep.subr.mxu0 0.0
  %1068 = vmatpush2.msra.mxu0 %v723
  %1069 = vmatprep.subr.mxu0 0.0
  %1070 = vmatpush2.msra.mxu0 %v718
  %1071 = vmatprep.subr.mxu0 0.0
  %1072 = vmatpush2.msra.mxu0 %v713
  %1073 = vmatprep.subr.mxu0 0.0
  %1074 = vmatpush2.msra.mxu0 %v708
  %1075 = vmatprep.subr.mxu0 0.0
  %1076 = vmatpush2.msra.mxu0 %v703
  %1077 = vmatprep.subr.mxu0 0.0
  %1078 = vmatpush2.msra.mxu0 %v698
  %1079 = vmatprep.subr.mxu0 0.0
  %1080 = vmatpush2.msra.mxu0 %v693
  %1081 = vmatprep.subr.mxu0 0.0
  %1082 = vmatpush2.msra.mxu0 %v688
  %1083 = vmatprep.subr.mxu0 0.0
  %1084 = vmatpush2.msra.mxu0 %v683
  %1085 = vmatprep.mubr.f32.mxu0 %v875
  %1086 = vmatmul.mubr.f32.gmra.mxu0 %v775
  %v1087 = vpop.f32.mrf.mxu0
  %v1088 = vadd.f32 0.0, %v1087
  %v1089 = vpop.f32.mrf.mxu0
  %1090 = vmatprep.mubr.f32.mxu0 %v878
  %1091 = vmatmul.mubr.f32.gmra.mxu0 %v777
  %v1092 = vpop.f32.mrf.mxu0
  %v1093 = vadd.f32 0.0, %v1092
  %v1094 = vpop.f32.mrf.mxu0
  %1095 = vmatprep.mubr.f32.mxu0 %v881
  %1096 = vmatmul.mubr.f32.gmra.mxu0 %v779
  %v1097 = vpop.f32.mrf.mxu0
  %v1098 = vadd.f32 0.0, %v1097
  %v1099 = vpop.f32.mrf.mxu0
  %1100 = vmatprep.mubr.f32.mxu0 %v884
  %1101 = vmatmul.mubr.f32.gmra.mxu0 %v781
  %v1102 = vpop.f32.mrf.mxu0
  %v1103 = vadd.f32 0.0, %v1102
  %v1104 = vpop.f32.mrf.mxu0
  %1105 = vmatprep.mubr.f32.mxu0 %v887
  %1106 = vmatmul.mubr.f32.gmra.mxu0 %v783
  %v1107 = vpop.f32.mrf.mxu0
  %v1108 = vadd.f32 0.0, %v1107
  %v1109 = vpop.f32.mrf.mxu0
  %1110 = vmatprep.mubr.f32.mxu0 %v890
  %1111 = vmatmul.mubr.f32.gmra.mxu0 %v785
  %v1112 = vpop.f32.mrf.mxu0
  %v1113 = vadd.f32 0.0, %v1112
  %v1114 = vpop.f32.mrf.mxu0
  %1115 = vmatprep.mubr.f32.mxu0 %v893
  %1116 = vmatmul.mubr.f32.gmra.mxu0 %v787
  %v1117 = vpop.f32.mrf.mxu0
  %v1118 = vadd.f32 0.0, %v1117
  %v1119 = vpop.f32.mrf.mxu0
  %1120 = vmatprep.mubr.f32.mxu0 %v896
  %1121 = vmatmul.mubr.f32.gmra.mxu0 %v789
  %v1122 = vpop.f32.mrf.mxu0
  %v1123 = vadd.f32 0.0, %v1122
  %v1124 = vpop.f32.mrf.mxu0
  %1125 = vmatprep.mubr.f32.mxu0 %v899
  %1126 = vmatmul.mubr.f32.gmra.mxu0 %v791
  %v1127 = vpop.f32.mrf.mxu0
  %v1128 = vadd.f32 0.0, %v1127
  %v1129 = vpop.f32.mrf.mxu0
  %1130 = vmatprep.mubr.f32.mxu0 %v902
  %1131 = vmatmul.mubr.f32.gmra.mxu0 %v793
  %v1132 = vpop.f32.mrf.mxu0
  %v1133 = vadd.f32 0.0, %v1132
  %v1134 = vpop.f32.mrf.mxu0
  %1135 = vmatprep.mubr.f32.mxu0 %v905
  %1136 = vmatmul.mubr.f32.gmra.mxu0 %v795
  %v1137 = vpop.f32.mrf.mxu0
  %v1138 = vadd.f32 0.0, %v1137
  %v1139 = vpop.f32.mrf.mxu0
  %1140 = vmatprep.mubr.f32.mxu0 %v908
  %1141 = vmatmul.mubr.f32.gmra.mxu0 %v797
  %v1142 = vpop.f32.mrf.mxu0
  %v1143 = vadd.f32 0.0, %v1142
  %v1144 = vpop.f32.mrf.mxu0
  %1145 = vmatprep.mubr.f32.mxu0 %v911
  %1146 = vmatmul.mubr.f32.gmra.mxu0 %v799
  %v1147 = vpop.f32.mrf.mxu0
  %v1148 = vadd.f32 0.0, %v1147
  %v1149 = vpop.f32.mrf.mxu0
  %1150 = vmatprep.mubr.f32.mxu0 %v914
  %1151 = vmatmul.mubr.f32.gmra.mxu0 %v801
  %v1152 = vpop.f32.mrf.mxu0
  %v1153 = vadd.f32 0.0, %v1152
  %v1154 = vpop.f32.mrf.mxu0
  %1155 = vmatprep.mubr.f32.mxu0 %v917
  %1156 = vmatmul.mubr.f32.gmra.mxu0 %v803
  %v1157 = vpop.f32.mrf.mxu0
  %v1158 = vadd.f32 0.0, %v1157
  %v1159 = vpop.f32.mrf.mxu0
  %1160 = vmatprep.mubr.f32.mxu0 %v920
  %1161 = vmatmul.mubr.f32.gmra.mxu0 %v805
  %v1162 = vpop.f32.mrf.mxu0
  %v1163 = vadd.f32 0.0, %v1162
  %v1164 = vpop.f32.mrf.mxu0
  %1165 = vmatprep.mubr.f32.mxu0 %v923
  %1166 = vmatmul.mubr.f32.gmra.mxu0 %v807
  %v1167 = vpop.f32.mrf.mxu0
  %v1168 = vadd.f32 0.0, %v1167
  %v1169 = vpop.f32.mrf.mxu0
  %1170 = vmatprep.mubr.f32.mxu0 %v926
  %1171 = vmatmul.mubr.f32.gmra.mxu0 %v809
  %v1172 = vpop.f32.mrf.mxu0
  %v1173 = vadd.f32 0.0, %v1172
  %v1174 = vpop.f32.mrf.mxu0
  %1175 = vmatprep.mubr.f32.mxu0 %v929
  %1176 = vmatmul.mubr.f32.gmra.mxu0 %v811
  %v1177 = vpop.f32.mrf.mxu0
  %v1178 = vadd.f32 0.0, %v1177
  %v1179 = vpop.f32.mrf.mxu0
  %1180 = vmatprep.mubr.f32.mxu0 %v932
  %1181 = vmatmul.mubr.f32.gmra.mxu0 %v813
  %v1182 = vpop.f32.mrf.mxu0
  %v1183 = vadd.f32 0.0, %v1182
  %v1184 = vpop.f32.mrf.mxu0
  %1185 = vmatprep.mubr.f32.mxu0 %v935
  %1186 = vmatmul.mubr.f32.gmra.mxu0 %v815
  %v1187 = vpop.f32.mrf.mxu0
  %v1188 = vadd.f32 0.0, %v1187
  %v1189 = vpop.f32.mrf.mxu0
  %1190 = vmatprep.mubr.f32.mxu0 %v938
  %1191 = vmatmul.mubr.f32.gmra.mxu0 %v817
  %v1192 = vpop.f32.mrf.mxu0
  %v1193 = vadd.f32 0.0, %v1192
  %v1194 = vpop.f32.mrf.mxu0
  %1195 = vmatprep.mubr.f32.mxu0 %v941
  %1196 = vmatmul.mubr.f32.gmra.mxu0 %v819
  %v1197 = vpop.f32.mrf.mxu0
  %v1198 = vadd.f32 0.0, %v1197
  %v1199 = vpop.f32.mrf.mxu0
  %1200 = vmatprep.mubr.f32.mxu0 %v944
  %1201 = vmatmul.mubr.f32.gmra.mxu0 %v821
  %v1202 = vpop.f32.mrf.mxu0
  %v1203 = vadd.f32 0.0, %v1202
  %v1204 = vpop.f32.mrf.mxu0
  %1205 = vmatprep.mubr.f32.mxu0 %v947
  %1206 = vmatmul.mubr.f32.gmra.mxu0 %v823
  %v1207 = vpop.f32.mrf.mxu0
  %v1208 = vadd.f32 0.0, %v1207
  %v1209 = vpop.f32.mrf.mxu0
  %1210 = vmatprep.mubr.f32.mxu0 %v950
  %1211 = vmatmul.mubr.f32.gmra.mxu0 %v825
  %v1212 = vpop.f32.mrf.mxu0
  %v1213 = vadd.f32 0.0, %v1212
  %v1214 = vpop.f32.mrf.mxu0
  %1215 = vmatprep.mubr.f32.mxu0 %v953
  %1216 = vmatmul.mubr.f32.gmra.mxu0 %v827
  %v1217 = vpop.f32.mrf.mxu0
  %v1218 = vadd.f32 0.0, %v1217
  %v1219 = vpop.f32.mrf.mxu0
  %1220 = vmatprep.mubr.f32.mxu0 %v956
  %1221 = vmatmul.mubr.f32.gmra.mxu0 %v829
  %v1222 = vpop.f32.mrf.mxu0
  %v1223 = vadd.f32 0.0, %v1222
  %v1224 = vpop.f32.mrf.mxu0
  %1225 = vmatprep.mubr.f32.mxu0 %v959
  %1226 = vmatmul.mubr.f32.gmra.mxu0 %v831
  %v1227 = vpop.f32.mrf.mxu0
  %v1228 = vadd.f32 0.0, %v1227
  %v1229 = vpop.f32.mrf.mxu0
  %1230 = vmatprep.mubr.f32.mxu0 %v962
  %1231 = vmatmul.mubr.f32.gmra.mxu0 %v833
  %v1232 = vpop.f32.mrf.mxu0
  %v1233 = vadd.f32 0.0, %v1232
  %v1234 = vpop.f32.mrf.mxu0
  %1235 = vmatprep.mubr.f32.mxu0 %v965
  %1236 = vmatmul.mubr.f32.gmra.mxu0 %v835
  %v1237 = vpop.f32.mrf.mxu0
  %v1238 = vadd.f32 0.0, %v1237
  %v1239 = vpop.f32.mrf.mxu0
  %1240 = vmatprep.mubr.f32.mxu0 %v968
  %1241 = vmatmul.mubr.f32.gmra.mxu0 %v837
  %v1242 = vpop.f32.mrf.mxu0
  %v1243 = vadd.f32 0.0, %v1242
  %v1244 = vpop.f32.mrf.mxu0
  %1245 = vmatprep.mubr.f32.mxu0 %v971
  %1246 = vmatmul.mubr.f32.gmra.mxu0 %v839
  %v1247 = vpop.f32.mrf.mxu0
  %v1248 = vadd.f32 0.0, %v1247
  %v1249 = vpop.f32.mrf.mxu0
  %1250 = vmatprep.mubr.f32.mxu0 %v974
  %1251 = vmatmul.mubr.f32.gmra.mxu0 %v841
  %v1252 = vpop.f32.mrf.mxu0
  %v1253 = vadd.f32 0.0, %v1252
  %v1254 = vpop.f32.mrf.mxu0
  %1255 = vmatprep.mubr.f32.mxu0 %v977
  %1256 = vmatmul.mubr.f32.gmra.mxu0 %v843
  %v1257 = vpop.f32.mrf.mxu0
  %v1258 = vadd.f32 0.0, %v1257
  %v1259 = vpop.f32.mrf.mxu0
  %1260 = vmatprep.mubr.f32.mxu0 %v980
  %1261 = vmatmul.mubr.f32.gmra.mxu0 %v845
  %v1262 = vpop.f32.mrf.mxu0
  %v1263 = vadd.f32 0.0, %v1262
  %v1264 = vpop.f32.mrf.mxu0
  %1265 = vmatprep.mubr.f32.mxu0 %v983
  %1266 = vmatmul.mubr.f32.gmra.mxu0 %v847
  %v1267 = vpop.f32.mrf.mxu0
  %v1268 = vadd.f32 0.0, %v1267
  %v1269 = vpop.f32.mrf.mxu0
  %1270 = vmatprep.mubr.f32.mxu0 %v986
  %1271 = vmatmul.mubr.f32.gmra.mxu0 %v849
  %v1272 = vpop.f32.mrf.mxu0
  %v1273 = vadd.f32 0.0, %v1272
  %v1274 = vpop.f32.mrf.mxu0
  %1275 = vmatprep.mubr.f32.mxu0 %v989
  %1276 = vmatmul.mubr.f32.gmra.mxu0 %v851
  %v1277 = vpop.f32.mrf.mxu0
  %v1278 = vadd.f32 0.0, %v1277
  %v1279 = vpop.f32.mrf.mxu0
  %1280 = vmatprep.mubr.f32.mxu0 %v992
  %1281 = vmatmul.mubr.f32.gmra.mxu0 %v853
  %v1282 = vpop.f32.mrf.mxu0
  %v1283 = vadd.f32 0.0, %v1282
  %v1284 = vpop.f32.mrf.mxu0
  %1285 = vmatprep.mubr.f32.mxu0 %v995
  %1286 = vmatmul.mubr.f32.gmra.mxu0 %v855
  %v1287 = vpop.f32.mrf.mxu0
  %v1288 = vadd.f32 0.0, %v1287
  %v1289 = vpop.f32.mrf.mxu0
  %1290 = vmatprep.mubr.f32.mxu0 %v998
  %1291 = vmatmul.mubr.f32.gmra.mxu0 %v857
  %v1292 = vpop.f32.mrf.mxu0
  %v1293 = vadd.f32 0.0, %v1292
  %v1294 = vpop.f32.mrf.mxu0
  %1295 = vmatprep.mubr.f32.mxu0 %v1001
  %1296 = vmatmul.mubr.f32.gmra.mxu0 %v859
  %v1297 = vpop.f32.mrf.mxu0
  %v1298 = vadd.f32 0.0, %v1297
  %v1299 = vpop.f32.mrf.mxu0
  %1300 = vmatprep.mubr.f32.mxu0 %v1004
  %1301 = vmatmul.mubr.f32.gmra.mxu0 %v861
  %v1302 = vpop.f32.mrf.mxu0
  %v1303 = vadd.f32 0.0, %v1302
  %v1304 = vpop.f32.mrf.mxu0
  %1305 = vmatprep.mubr.f32.mxu0 %v1007
  %1306 = vmatmul.mubr.f32.gmra.mxu0 %v863
  %v1307 = vpop.f32.mrf.mxu0
  %v1308 = vadd.f32 0.0, %v1307
  %v1309 = vpop.f32.mrf.mxu0
  %1310 = vmatprep.mubr.f32.mxu0 %v1010
  %1311 = vmatmul.mubr.f32.gmra.mxu0 %v865
  %v1312 = vpop.f32.mrf.mxu0
  %v1313 = vadd.f32 0.0, %v1312
  %v1314 = vpop.f32.mrf.mxu0
  %1315 = vmatprep.mubr.f32.mxu0 %v1013
  %1316 = vmatmul.mubr.f32.gmra.mxu0 %v867
  %v1317 = vpop.f32.mrf.mxu0
  %v1318 = vadd.f32 0.0, %v1317
  %v1319 = vpop.f32.mrf.mxu0
  %1320 = vmatprep.mubr.f32.mxu0 %v1016
  %1321 = vmatmul.mubr.f32.gmra.mxu0 %v869
  %v1322 = vpop.f32.mrf.mxu0
  %v1323 = vadd.f32 0.0, %v1322
  %v1324 = vpop.f32.mrf.mxu0
  %1325 = vmatprep.mubr.f32.mxu0 %v1019
  %1326 = vmatmul.mubr.f32.gmra.mxu0 %v871
  %v1327 = vpop.f32.mrf.mxu0
  %v1328 = vadd.f32 0.0, %v1327
  %v1329 = vpop.f32.mrf.mxu0
  %1330 = vdwg.mxu0
  %v1331 = vadd.f32 %v726, %v1088
  %v1332 = vadd.f32 %v727, %v1093
  %v1333 = vadd.f32 %v728, %v1098
  %v1334 = vadd.f32 %v729, %v1103
  %v1335 = vadd.f32 %v730, %v1108
  %v1336 = vadd.f32 %v731, %v1113
  %v1337 = vadd.f32 %v732, %v1118
  %v1338 = vadd.f32 %v733, %v1123
  %v1339 = vadd.f32 %v734, %v1128
  %v1340 = vadd.f32 %v735, %v1133
  %v1341 = vadd.f32 %v736, %v1138
  %v1342 = vadd.f32 %v737, %v1143
  %v1343 = vadd.f32 %v738, %v1148
  %v1344 = vadd.f32 %v739, %v1153
  %v1345 = vadd.f32 %v740, %v1158
  %v1346 = vadd.f32 %v741, %v1163
  %v1347 = vadd.f32 %v742, %v1168
  %v1348 = vadd.f32 %v743, %v1173
  %v1349 = vadd.f32 %v744, %v1178
  %v1350 = vadd.f32 %v745, %v1183
  %v1351 = vadd.f32 %v746, %v1188
  %v1352 = vadd.f32 %v747, %v1193
  %v1353 = vadd.f32 %v748, %v1198
  %v1354 = vadd.f32 %v749, %v1203
  %v1355 = vadd.f32 %v750, %v1208
  %v1356 = vadd.f32 %v751, %v1213
  %v1357 = vadd.f32 %v752, %v1218
  %v1358 = vadd.f32 %v753, %v1223
  %v1359 = vadd.f32 %v754, %v1228
  %v1360 = vadd.f32 %v755, %v1233
  %v1361 = vadd.f32 %v756, %v1238
  %v1362 = vadd.f32 %v757, %v1243
  %v1363 = vadd.f32 %v758, %v1248
  %v1364 = vadd.f32 %v759, %v1253
  %v1365 = vadd.f32 %v760, %v1258
  %v1366 = vadd.f32 %v761, %v1263
  %v1367 = vadd.f32 %v762, %v1268
  %v1368 = vadd.f32 %v763, %v1273
  %v1369 = vadd.f32 %v764, %v1278
  %v1370 = vadd.f32 %v765, %v1283
  %v1371 = vadd.f32 %v766, %v1288
  %v1372 = vadd.f32 %v767, %v1293
  %v1373 = vadd.f32 %v768, %v1298
  %v1374 = vadd.f32 %v769, %v1303
  %v1375 = vadd.f32 %v770, %v1308
  %v1376 = vadd.f32 %v771, %v1313
  %v1377 = vadd.f32 %v772, %v1318
  %v1378 = vadd.f32 %v773, %v1323
  %v1379 = vadd.f32 %v774, %v1328
  %1380 = vst.msk [vmem:[#allocation3] sm:$0xff] %vm69, %v1331
  %1381 = vst.msk [vmem:[#allocation3 + $0x8] sm:$0xff] %vm69, %v1332
  %1382 = vst.msk [vmem:[#allocation3 + $0x10] sm:$0xff] %vm69, %v1333
  %1383 = vst.msk [vmem:[#allocation3 + $0x18] sm:$0xff] %vm69, %v1334
  %1384 = vst.msk [vmem:[#allocation3 + $0x20] sm:$0xff] %vm69, %v1335
  %1385 = vst.msk [vmem:[#allocation3 + $0x28] sm:$0xff] %vm69, %v1336
  %1386 = vst.msk [vmem:[#allocation3 + $0x30] sm:$0xff] %vm69, %v1337
  %1387 = vst.msk [vmem:[#allocation3 + $0x38] sm:$0xff] %vm69, %v1338
  %1388 = vst.msk [vmem:[#allocation3 + $0x40] sm:$0xff] %vm69, %v1339
  %1389 = vst.msk [vmem:[#allocation3 + $0x48] sm:$0xff] %vm69, %v1340
  %1390 = vst.msk [vmem:[#allocation3 + $0x50] sm:$0xff] %vm69, %v1341
  %1391 = vst.msk [vmem:[#allocation3 + $0x58] sm:$0xff] %vm69, %v1342
  %1392 = vst.msk [vmem:[#allocation3 + $0x60] sm:$0xff] %vm69, %v1343
  %1393 = vst.msk [vmem:[#allocation3 + $0x68] sm:$0xff] %vm69, %v1344
  %1394 = vst.msk [vmem:[#allocation3 + $0x70] sm:$0xff] %vm69, %v1345
  %1395 = vst.msk [vmem:[#allocation3 + $0x78] sm:$0xff] %vm69, %v1346
  %1396 = vst.msk [vmem:[#allocation3 + $0x80] sm:$0xff] %vm69, %v1347
  %1397 = vst.msk [vmem:[#allocation3 + $0x88] sm:$0xff] %vm69, %v1348
  %1398 = vst.msk [vmem:[#allocation3 + $0x90] sm:$0xff] %vm69, %v1349
  %1399 = vst.msk [vmem:[#allocation3 + $0x98] sm:$0xff] %vm69, %v1350
  %1400 = vst.msk [vmem:[#allocation3 + $0xa0] sm:$0xff] %vm69, %v1351
  %1401 = vst.msk [vmem:[#allocation3 + $0xa8] sm:$0xff] %vm69, %v1352
  %1402 = vst.msk [vmem:[#allocation3 + $0xb0] sm:$0xff] %vm69, %v1353
  %1403 = vst.msk [vmem:[#allocation3 + $0xb8] sm:$0xff] %vm69, %v1354
  %1404 = vst.msk [vmem:[#allocation3 + $0xc0] sm:$0xff] %vm69, %v1355
  %1405 = vst.msk [vmem:[#allocation3 + $0xc8] sm:$0xff] %vm69, %v1356
  %1406 = vst.msk [vmem:[#allocation3 + $0xd0] sm:$0xff] %vm69, %v1357
  %1407 = vst.msk [vmem:[#allocation3 + $0xd8] sm:$0xff] %vm69, %v1358
  %1408 = vst.msk [vmem:[#allocation3 + $0xe0] sm:$0xff] %vm69, %v1359
  %1409 = vst.msk [vmem:[#allocation3 + $0xe8] sm:$0xff] %vm69, %v1360
  %1410 = vst.msk [vmem:[#allocation3 + $0xf0] sm:$0xff] %vm69, %v1361
  %1411 = vst.msk [vmem:[#allocation3 + $0xf8] sm:$0xff] %vm69, %v1362
  %1412 = vst.msk [vmem:[#allocation3 + $0x100] sm:$0xff] %vm69, %v1363
  %1413 = vst.msk [vmem:[#allocation3 + $0x108] sm:$0xff] %vm69, %v1364
  %1414 = vst.msk [vmem:[#allocation3 + $0x110] sm:$0xff] %vm69, %v1365
  %1415 = vst.msk [vmem:[#allocation3 + $0x118] sm:$0xff] %vm69, %v1366
  %1416 = vst.msk [vmem:[#allocation3 + $0x120] sm:$0xff] %vm69, %v1367
  %1417 = vst.msk [vmem:[#allocation3 + $0x128] sm:$0xff] %vm69, %v1368
  %1418 = vst.msk [vmem:[#allocation3 + $0x130] sm:$0xff] %vm69, %v1369
  %1419 = vst.msk [vmem:[#allocation3 + $0x138] sm:$0xff] %vm69, %v1370
  %1420 = vst.msk [vmem:[#allocation3 + $0x140] sm:$0xff] %vm69, %v1371
  %1421 = vst.msk [vmem:[#allocation3 + $0x148] sm:$0xff] %vm69, %v1372
  %1422 = vst.msk [vmem:[#allocation3 + $0x150] sm:$0xff] %vm69, %v1373
  %1423 = vst.msk [vmem:[#allocation3 + $0x158] sm:$0xff] %vm69, %v1374
  %1424 = vst.msk [vmem:[#allocation3 + $0x160] sm:$0xff] %vm69, %v1375
  %1425 = vst.msk [vmem:[#allocation3 + $0x168] sm:$0xff] %vm69, %v1376
  %1426 = vst.msk [vmem:[#allocation3 + $0x170] sm:$0xff] %vm69, %v1377
  %1427 = vst.msk [vmem:[#allocation3 + $0x178] sm:$0xff] %vm69, %v1378
  %1428 = vst.msk [vmem:[#allocation3 + $0x180] sm:$0xff] %vm69, %v1379
  %v1429 = vld [vmem:[#allocation2] sm:$0xff]
  %v1430 = vld [vmem:[#allocation2 + $0x8] sm:$0xff]
  %v1431 = vld [vmem:[#allocation2 + $0x10] sm:$0xff]
  %v1432 = vld [vmem:[#allocation2 + $0x18] sm:$0xff]
  %v1433 = vld [vmem:[#allocation2 + $0x20] sm:$0xff]
  %v1434 = vld [vmem:[#allocation2 + $0x28] sm:$0xff]
  %v1435 = vld [vmem:[#allocation2 + $0x30] sm:$0xff]
  %v1436 = vld [vmem:[#allocation2 + $0x38] sm:$0xff]
  %v1437 = vld [vmem:[#allocation2 + $0x40] sm:$0xff]
  %v1438 = vld [vmem:[#allocation2 + $0x48] sm:$0xff]
  %v1439 = vld [vmem:[#allocation2 + $0x50] sm:$0xff]
  %v1440 = vld [vmem:[#allocation2 + $0x58] sm:$0xff]
  %v1441 = vld [vmem:[#allocation2 + $0x60] sm:$0xff]
  %v1442 = vld [vmem:[#allocation2 + $0x68] sm:$0xff]
  %v1443 = vld [vmem:[#allocation2 + $0x70] sm:$0xff]
  %v1444 = vld [vmem:[#allocation2 + $0x78] sm:$0xff]
  %v1445 = vld [vmem:[#allocation2 + $0x80] sm:$0xff]
  %v1446 = vld [vmem:[#allocation2 + $0x88] sm:$0xff]
  %v1447 = vld [vmem:[#allocation2 + $0x90] sm:$0xff]
  %v1448 = vld [vmem:[#allocation2 + $0x98] sm:$0xff]
  %v1449 = vld [vmem:[#allocation2 + $0xa0] sm:$0xff]
  %v1450 = vld [vmem:[#allocation2 + $0xa8] sm:$0xff]
  %v1451 = vld [vmem:[#allocation2 + $0xb0] sm:$0xff]
  %v1452 = vld [vmem:[#allocation2 + $0xb8] sm:$0xff]
  %v1453 = vld [vmem:[#allocation2 + $0xc0] sm:$0xff]
  %s1454 = scalar_lea.vmem %s4, 16
  %v1455 = vld [vmem:[%s1454] sm:$0xff]
  %v1456 = vld [vmem:[%s1454 + $0x8] sm:$0xff]
  %v1458 = vsel %vm69, %v1429, 0
  %v1461 = vsel %vm69, %v1430, 0
  %v1464 = vsel %vm69, %v1431, 0
  %v1467 = vsel %vm69, %v1432, 0
  %v1470 = vsel %vm69, %v1433, 0
  %v1473 = vsel %vm69, %v1434, 0
  %v1476 = vsel %vm69, %v1435, 0
  %v1479 = vsel %vm69, %v1436, 0
  %v1482 = vsel %vm69, %v1437, 0
  %v1485 = vsel %vm69, %v1438, 0
  %v1488 = vsel %vm69, %v1439, 0
  %v1491 = vsel %vm69, %v1440, 0
  %v1494 = vsel %vm69, %v1441, 0
  %v1497 = vsel %vm69, %v1442, 0
  %v1500 = vsel %vm69, %v1443, 0
  %v1503 = vsel %vm69, %v1444, 0
  %v1506 = vsel %vm69, %v1445, 0
  %v1509 = vsel %vm69, %v1446, 0
  %v1512 = vsel %vm69, %v1447, 0
  %v1515 = vsel %vm69, %v1448, 0
  %v1518 = vsel %vm69, %v1449, 0
  %v1521 = vsel %vm69, %v1450, 0
  %v1524 = vsel %vm69, %v1451, 0
  %v1527 = vsel %vm69, %v1452, 0
  %v1530 = vsel %vm69, %v1453, 0
  %1532 = vmatprep.subr.mxu0 0.0
  %1533 = vmatpush1.msra.mxu0 0.0
  %1534 = vmatprep.subr.mxu0 0.0
  %1535 = vmatpush1.msra.mxu0 0.0
  %1536 = vmatprep.subr.mxu0 0.0
  %1537 = vmatpush1.msra.mxu0 0.0
  %1538 = vmatprep.subr.mxu0 0.0
  %1539 = vmatpush1.msra.mxu0 0.0
  %1540 = vmatprep.subr.mxu0 0.0
  %1541 = vmatpush1.msra.mxu0 0.0
  %1542 = vmatprep.subr.mxu0 0.0
  %1543 = vmatpush1.msra.mxu0 0.0
  %1544 = vmatprep.subr.mxu0 0.0
  %1545 = vmatpush1.msra.mxu0 0.0
  %1546 = vmatprep.subr.mxu0 0.0
  %1547 = vmatpush1.msra.mxu0 0.0
  %1548 = vmatprep.subr.mxu0 0.0
  %1549 = vmatpush1.msra.mxu0 0.0
  %1550 = vmatprep.subr.mxu0 0.0
  %1551 = vmatpush1.msra.mxu0 0.0
  %1552 = vmatprep.subr.mxu0 0.0
  %1553 = vmatpush1.msra.mxu0 0.0
  %1554 = vmatprep.subr.mxu0 0.0
  %1555 = vmatpush1.msra.mxu0 0.0
  %1556 = vmatprep.subr.mxu0 0.0
  %1557 = vmatpush1.msra.mxu0 0.0
  %1558 = vmatprep.subr.mxu0 0.0
  %1559 = vmatpush1.msra.mxu0 0.0
  %1560 = vmatprep.subr.mxu0 0.0
  %1561 = vmatpush1.msra.mxu0 %v1456
  %1562 = vmatprep.subr.mxu0 0.0
  %1563 = vmatpush1.msra.mxu0 %v1455
  %1564 = vmatprep.subr.mxu0 0.0
  %1565 = vmatpush2.msra.mxu0 0.0
  %1566 = vmatprep.subr.mxu0 0.0
  %1567 = vmatpush2.msra.mxu0 0.0
  %1568 = vmatprep.subr.mxu0 0.0
  %1569 = vmatpush2.msra.mxu0 0.0
  %1570 = vmatprep.subr.mxu0 0.0
  %1571 = vmatpush2.msra.mxu0 0.0
  %1572 = vmatprep.subr.mxu0 0.0
  %1573 = vmatpush2.msra.mxu0 0.0
  %1574 = vmatprep.subr.mxu0 0.0
  %1575 = vmatpush2.msra.mxu0 0.0
  %1576 = vmatprep.subr.mxu0 0.0
  %1577 = vmatpush2.msra.mxu0 0.0
  %1578 = vmatprep.subr.mxu0 0.0
  %1579 = vmatpush2.msra.mxu0 0.0
  %1580 = vmatprep.subr.mxu0 0.0
  %1581 = vmatpush2.msra.mxu0 0.0
  %1582 = vmatprep.subr.mxu0 0.0
  %1583 = vmatpush2.msra.mxu0 0.0
  %1584 = vmatprep.subr.mxu0 0.0
  %1585 = vmatpush2.msra.mxu0 0.0
  %1586 = vmatprep.subr.mxu0 0.0
  %1587 = vmatpush2.msra.mxu0 0.0
  %1588 = vmatprep.subr.mxu0 0.0
  %1589 = vmatpush2.msra.mxu0 0.0
  %1590 = vmatprep.subr.mxu0 0.0
  %1591 = vmatpush2.msra.mxu0 0.0
  %1592 = vmatprep.subr.mxu0 0.0
  %1593 = vmatpush2.msra.mxu0 0.0
  %1594 = vmatprep.subr.mxu0 0.0
  %1595 = vmatpush2.msra.mxu0 0.0
  %1596 = vmatprep.mubr.f32.mxu0 0.0
  %1597 = vmatmul.mubr.f32.gmra.mxu0 %v1458
  %v1598 = vpop.f32.mrf.mxu0
  %v1599 = vadd.f32 0.0, %v1598
  %v1600 = vpop.f32.mrf.mxu0
  %1601 = vmatprep.mubr.f32.mxu0 0.0
  %1602 = vmatmul.mubr.f32.gmra.mxu0 %v1461
  %v1603 = vpop.f32.mrf.mxu0
  %v1604 = vadd.f32 0.0, %v1603
  %v1605 = vpop.f32.mrf.mxu0
  %1606 = vmatprep.mubr.f32.mxu0 0.0
  %1607 = vmatmul.mubr.f32.gmra.mxu0 %v1464
  %v1608 = vpop.f32.mrf.mxu0
  %v1609 = vadd.f32 0.0, %v1608
  %v1610 = vpop.f32.mrf.mxu0
  %1611 = vmatprep.mubr.f32.mxu0 0.0
  %1612 = vmatmul.mubr.f32.gmra.mxu0 %v1467
  %v1613 = vpop.f32.mrf.mxu0
  %v1614 = vadd.f32 0.0, %v1613
  %v1615 = vpop.f32.mrf.mxu0
  %1616 = vmatprep.mubr.f32.mxu0 0.0
  %1617 = vmatmul.mubr.f32.gmra.mxu0 %v1470
  %v1618 = vpop.f32.mrf.mxu0
  %v1619 = vadd.f32 0.0, %v1618
  %v1620 = vpop.f32.mrf.mxu0
  %1621 = vmatprep.mubr.f32.mxu0 0.0
  %1622 = vmatmul.mubr.f32.gmra.mxu0 %v1473
  %v1623 = vpop.f32.mrf.mxu0
  %v1624 = vadd.f32 0.0, %v1623
  %v1625 = vpop.f32.mrf.mxu0
  %1626 = vmatprep.mubr.f32.mxu0 0.0
  %1627 = vmatmul.mubr.f32.gmra.mxu0 %v1476
  %v1628 = vpop.f32.mrf.mxu0
  %v1629 = vadd.f32 0.0, %v1628
  %v1630 = vpop.f32.mrf.mxu0
  %1631 = vmatprep.mubr.f32.mxu0 0.0
  %1632 = vmatmul.mubr.f32.gmra.mxu0 %v1479
  %v1633 = vpop.f32.mrf.mxu0
  %v1634 = vadd.f32 0.0, %v1633
  %v1635 = vpop.f32.mrf.mxu0
  %1636 = vmatprep.mubr.f32.mxu0 0.0
  %1637 = vmatmul.mubr.f32.gmra.mxu0 %v1482
  %v1638 = vpop.f32.mrf.mxu0
  %v1639 = vadd.f32 0.0, %v1638
  %v1640 = vpop.f32.mrf.mxu0
  %1641 = vmatprep.mubr.f32.mxu0 0.0
  %1642 = vmatmul.mubr.f32.gmra.mxu0 %v1485
  %v1643 = vpop.f32.mrf.mxu0
  %v1644 = vadd.f32 0.0, %v1643
  %v1645 = vpop.f32.mrf.mxu0
  %1646 = vmatprep.mubr.f32.mxu0 0.0
  %1647 = vmatmul.mubr.f32.gmra.mxu0 %v1488
  %v1648 = vpop.f32.mrf.mxu0
  %v1649 = vadd.f32 0.0, %v1648
  %v1650 = vpop.f32.mrf.mxu0
  %1651 = vmatprep.mubr.f32.mxu0 0.0
  %1652 = vmatmul.mubr.f32.gmra.mxu0 %v1491
  %v1653 = vpop.f32.mrf.mxu0
  %v1654 = vadd.f32 0.0, %v1653
  %v1655 = vpop.f32.mrf.mxu0
  %1656 = vmatprep.mubr.f32.mxu0 0.0
  %1657 = vmatmul.mubr.f32.gmra.mxu0 %v1494
  %v1658 = vpop.f32.mrf.mxu0
  %v1659 = vadd.f32 0.0, %v1658
  %v1660 = vpop.f32.mrf.mxu0
  %1661 = vmatprep.mubr.f32.mxu0 0.0
  %1662 = vmatmul.mubr.f32.gmra.mxu0 %v1497
  %v1663 = vpop.f32.mrf.mxu0
  %v1664 = vadd.f32 0.0, %v1663
  %v1665 = vpop.f32.mrf.mxu0
  %1666 = vmatprep.mubr.f32.mxu0 0.0
  %1667 = vmatmul.mubr.f32.gmra.mxu0 %v1500
  %v1668 = vpop.f32.mrf.mxu0
  %v1669 = vadd.f32 0.0, %v1668
  %v1670 = vpop.f32.mrf.mxu0
  %1671 = vmatprep.mubr.f32.mxu0 0.0
  %1672 = vmatmul.mubr.f32.gmra.mxu0 %v1503
  %v1673 = vpop.f32.mrf.mxu0
  %v1674 = vadd.f32 0.0, %v1673
  %v1675 = vpop.f32.mrf.mxu0
  %1676 = vmatprep.mubr.f32.mxu0 0.0
  %1677 = vmatmul.mubr.f32.gmra.mxu0 %v1506
  %v1678 = vpop.f32.mrf.mxu0
  %v1679 = vadd.f32 0.0, %v1678
  %v1680 = vpop.f32.mrf.mxu0
  %1681 = vmatprep.mubr.f32.mxu0 0.0
  %1682 = vmatmul.mubr.f32.gmra.mxu0 %v1509
  %v1683 = vpop.f32.mrf.mxu0
  %v1684 = vadd.f32 0.0, %v1683
  %v1685 = vpop.f32.mrf.mxu0
  %1686 = vmatprep.mubr.f32.mxu0 0.0
  %1687 = vmatmul.mubr.f32.gmra.mxu0 %v1512
  %v1688 = vpop.f32.mrf.mxu0
  %v1689 = vadd.f32 0.0, %v1688
  %v1690 = vpop.f32.mrf.mxu0
  %1691 = vmatprep.mubr.f32.mxu0 0.0
  %1692 = vmatmul.mubr.f32.gmra.mxu0 %v1515
  %v1693 = vpop.f32.mrf.mxu0
  %v1694 = vadd.f32 0.0, %v1693
  %v1695 = vpop.f32.mrf.mxu0
  %1696 = vmatprep.mubr.f32.mxu0 0.0
  %1697 = vmatmul.mubr.f32.gmra.mxu0 %v1518
  %v1698 = vpop.f32.mrf.mxu0
  %v1699 = vadd.f32 0.0, %v1698
  %v1700 = vpop.f32.mrf.mxu0
  %1701 = vmatprep.mubr.f32.mxu0 0.0
  %1702 = vmatmul.mubr.f32.gmra.mxu0 %v1521
  %v1703 = vpop.f32.mrf.mxu0
  %v1704 = vadd.f32 0.0, %v1703
  %v1705 = vpop.f32.mrf.mxu0
  %1706 = vmatprep.mubr.f32.mxu0 0.0
  %1707 = vmatmul.mubr.f32.gmra.mxu0 %v1524
  %v1708 = vpop.f32.mrf.mxu0
  %v1709 = vadd.f32 0.0, %v1708
  %v1710 = vpop.f32.mrf.mxu0
  %1711 = vmatprep.mubr.f32.mxu0 0.0
  %1712 = vmatmul.mubr.f32.gmra.mxu0 %v1527
  %v1713 = vpop.f32.mrf.mxu0
  %v1714 = vadd.f32 0.0, %v1713
  %v1715 = vpop.f32.mrf.mxu0
  %1716 = vmatprep.mubr.f32.mxu0 0.0
  %1717 = vmatmul.mubr.f32.gmra.mxu0 %v1530
  %v1718 = vpop.f32.mrf.mxu0
  %v1719 = vadd.f32 0.0, %v1718
  %v1720 = vpop.f32.mrf.mxu0
  %1721 = vdwg.mxu0
  %v1722 = vld [vmem:[#allocation3] sm:$0xff]
  %v1723 = vld [vmem:[#allocation3 + $0x8] sm:$0xff]
  %v1724 = vld [vmem:[#allocation3 + $0x10] sm:$0xff]
  %v1725 = vld [vmem:[#allocation3 + $0x18] sm:$0xff]
  %v1726 = vld [vmem:[#allocation3 + $0x20] sm:$0xff]
  %v1727 = vld [vmem:[#allocation3 + $0x28] sm:$0xff]
  %v1728 = vld [vmem:[#allocation3 + $0x30] sm:$0xff]
  %v1729 = vld [vmem:[#allocation3 + $0x38] sm:$0xff]
  %v1730 = vld [vmem:[#allocation3 + $0x40] sm:$0xff]
  %v1731 = vld [vmem:[#allocation3 + $0x48] sm:$0xff]
  %v1732 = vld [vmem:[#allocation3 + $0x50] sm:$0xff]
  %v1733 = vld [vmem:[#allocation3 + $0x58] sm:$0xff]
  %v1734 = vld [vmem:[#allocation3 + $0x60] sm:$0xff]
  %v1735 = vld [vmem:[#allocation3 + $0x68] sm:$0xff]
  %v1736 = vld [vmem:[#allocation3 + $0x70] sm:$0xff]
  %v1737 = vld [vmem:[#allocation3 + $0x78] sm:$0xff]
  %v1738 = vld [vmem:[#allocation3 + $0x80] sm:$0xff]
  %v1739 = vld [vmem:[#allocation3 + $0x88] sm:$0xff]
  %v1740 = vld [vmem:[#allocation3 + $0x90] sm:$0xff]
  %v1741 = vld [vmem:[#allocation3 + $0x98] sm:$0xff]
  %v1742 = vld [vmem:[#allocation3 + $0xa0] sm:$0xff]
  %v1743 = vld [vmem:[#allocation3 + $0xa8] sm:$0xff]
  %v1744 = vld [vmem:[#allocation3 + $0xb0] sm:$0xff]
  %v1745 = vld [vmem:[#allocation3 + $0xb8] sm:$0xff]
  %v1746 = vld [vmem:[#allocation3 + $0xc0] sm:$0xff]
  %v1747 = vld [vmem:[#allocation3 + $0xc8] sm:$0xff]
  %v1748 = vld [vmem:[#allocation3 + $0xd0] sm:$0xff]
  %v1749 = vld [vmem:[#allocation3 + $0xd8] sm:$0xff]
  %v1750 = vld [vmem:[#allocation3 + $0xe0] sm:$0xff]
  %v1751 = vld [vmem:[#allocation3 + $0xe8] sm:$0xff]
  %v1752 = vld [vmem:[#allocation3 + $0xf0] sm:$0xff]
  %v1753 = vld [vmem:[#allocation3 + $0xf8] sm:$0xff]
  %v1754 = vld [vmem:[#allocation3 + $0x100] sm:$0xff]
  %v1755 = vld [vmem:[#allocation3 + $0x108] sm:$0xff]
  %v1756 = vld [vmem:[#allocation3 + $0x110] sm:$0xff]
  %v1757 = vld [vmem:[#allocation3 + $0x118] sm:$0xff]
  %v1758 = vld [vmem:[#allocation3 + $0x120] sm:$0xff]
  %v1759 = vld [vmem:[#allocation3 + $0x128] sm:$0xff]
  %v1760 = vld [vmem:[#allocation3 + $0x130] sm:$0xff]
  %v1761 = vld [vmem:[#allocation3 + $0x138] sm:$0xff]
  %v1762 = vld [vmem:[#allocation3 + $0x140] sm:$0xff]
  %v1763 = vld [vmem:[#allocation3 + $0x148] sm:$0xff]
  %v1764 = vld [vmem:[#allocation3 + $0x150] sm:$0xff]
  %v1765 = vld [vmem:[#allocation3 + $0x158] sm:$0xff]
  %v1766 = vld [vmem:[#allocation3 + $0x160] sm:$0xff]
  %v1767 = vld [vmem:[#allocation3 + $0x168] sm:$0xff]
  %v1768 = vld [vmem:[#allocation3 + $0x170] sm:$0xff]
  %v1769 = vld [vmem:[#allocation3 + $0x178] sm:$0xff]
  %v1770 = vld [vmem:[#allocation3 + $0x180] sm:$0xff]
  %s1771 = scalar_lea.vmem %s3, 784
  %v1772 = vld [vmem:[%s1771] sm:$0xff]
  %v1773 = vld [vmem:[%s1771 + $0x8] sm:$0xff]
  %v1774 = vld [vmem:[%s1771 + $0x10] sm:$0xff]
  %v1775 = vld [vmem:[%s1771 + $0x18] sm:$0xff]
  %v1776 = vld [vmem:[%s1771 + $0x20] sm:$0xff]
  %v1777 = vld [vmem:[%s1771 + $0x28] sm:$0xff]
  %v1778 = vld [vmem:[%s1771 + $0x30] sm:$0xff]
  %v1779 = vld [vmem:[%s1771 + $0x38] sm:$0xff]
  %v1780 = vld [vmem:[%s1771 + $0x40] sm:$0xff]
  %v1781 = vld [vmem:[%s1771 + $0x48] sm:$0xff]
  %v1782 = vld [vmem:[%s1771 + $0x50] sm:$0xff]
  %v1783 = vld [vmem:[%s1771 + $0x58] sm:$0xff]
  %v1784 = vld [vmem:[%s1771 + $0x60] sm:$0xff]
  %v1785 = vld [vmem:[%s1771 + $0x68] sm:$0xff]
  %v1786 = vld [vmem:[%s1771 + $0x70] sm:$0xff]
  %v1787 = vld [vmem:[%s1771 + $0x78] sm:$0xff]
  %v1788 = vld [vmem:[%s1771 + $0x80] sm:$0xff]
  %v1789 = vld [vmem:[%s1771 + $0x88] sm:$0xff]
  %v1790 = vld [vmem:[%s1771 + $0x90] sm:$0xff]
  %v1791 = vld [vmem:[%s1771 + $0x98] sm:$0xff]
  %v1792 = vld [vmem:[%s1771 + $0xa0] sm:$0xff]
  %v1793 = vld [vmem:[%s1771 + $0xa8] sm:$0xff]
  %v1794 = vld [vmem:[%s1771 + $0xb0] sm:$0xff]
  %v1795 = vld [vmem:[%s1771 + $0xb8] sm:$0xff]
  %v1796 = vld [vmem:[%s1771 + $0xc0] sm:$0xff]
  %v1797 = vld [vmem:[%s1771 + $0xc8] sm:$0xff]
  %v1798 = vld [vmem:[%s1771 + $0xd0] sm:$0xff]
  %v1799 = vld [vmem:[%s1771 + $0xd8] sm:$0xff]
  %v1800 = vld [vmem:[%s1771 + $0xe0] sm:$0xff]
  %v1801 = vld [vmem:[%s1771 + $0xe8] sm:$0xff]
  %v1802 = vld [vmem:[%s1771 + $0xf0] sm:$0xff]
  %v1803 = vld [vmem:[%s1771 + $0xf8] sm:$0xff]
  %v1804 = vld [vmem:[%s1771 + $0x100] sm:$0xff]
  %v1805 = vld [vmem:[%s1771 + $0x108] sm:$0xff]
  %v1806 = vld [vmem:[%s1771 + $0x110] sm:$0xff]
  %v1807 = vld [vmem:[%s1771 + $0x118] sm:$0xff]
  %v1808 = vld [vmem:[%s1771 + $0x120] sm:$0xff]
  %v1809 = vld [vmem:[%s1771 + $0x128] sm:$0xff]
  %v1810 = vld [vmem:[%s1771 + $0x130] sm:$0xff]
  %v1811 = vld [vmem:[%s1771 + $0x138] sm:$0xff]
  %v1812 = vld [vmem:[%s1771 + $0x140] sm:$0xff]
  %v1813 = vld [vmem:[%s1771 + $0x148] sm:$0xff]
  %v1814 = vld [vmem:[%s1771 + $0x150] sm:$0xff]
  %v1815 = vld [vmem:[%s1771 + $0x158] sm:$0xff]
  %v1816 = vld [vmem:[%s1771 + $0x160] sm:$0xff]
  %v1817 = vld [vmem:[%s1771 + $0x168] sm:$0xff]
  %v1818 = vld [vmem:[%s1771 + $0x170] sm:$0xff]
  %v1819 = vld [vmem:[%s1771 + $0x178] sm:$0xff]
  %v1820 = vld [vmem:[%s1771 + $0x180] sm:$0xff]
  %v1821 = vld [vmem:[%s1771 + $0x188] sm:$0xff]
  %v1822 = vld [vmem:[%s1771 + $0x190] sm:$0xff]
  %v1823 = vld [vmem:[%s1771 + $0x198] sm:$0xff]
  %v1824 = vld [vmem:[%s1771 + $0x1a0] sm:$0xff]
  %v1825 = vld [vmem:[%s1771 + $0x1a8] sm:$0xff]
  %v1826 = vld [vmem:[%s1771 + $0x1b0] sm:$0xff]
  %v1827 = vld [vmem:[%s1771 + $0x1b8] sm:$0xff]
  %v1828 = vld [vmem:[%s1771 + $0x1c0] sm:$0xff]
  %v1829 = vld [vmem:[%s1771 + $0x1c8] sm:$0xff]
  %v1830 = vld [vmem:[%s1771 + $0x1d0] sm:$0xff]
  %v1831 = vld [vmem:[%s1771 + $0x1d8] sm:$0xff]
  %v1832 = vld [vmem:[%s1771 + $0x1e0] sm:$0xff]
  %v1833 = vld [vmem:[%s1771 + $0x1e8] sm:$0xff]
  %v1834 = vld [vmem:[%s1771 + $0x1f0] sm:$0xff]
  %v1835 = vld [vmem:[%s1771 + $0x1f8] sm:$0xff]
  %v1836 = vld [vmem:[%s1771 + $0x200] sm:$0xff]
  %v1837 = vld [vmem:[%s1771 + $0x208] sm:$0xff]
  %v1838 = vld [vmem:[%s1771 + $0x210] sm:$0xff]
  %v1839 = vld [vmem:[%s1771 + $0x218] sm:$0xff]
  %v1840 = vld [vmem:[%s1771 + $0x220] sm:$0xff]
  %v1841 = vld [vmem:[%s1771 + $0x228] sm:$0xff]
  %v1842 = vld [vmem:[%s1771 + $0x230] sm:$0xff]
  %v1843 = vld [vmem:[%s1771 + $0x238] sm:$0xff]
  %v1844 = vld [vmem:[%s1771 + $0x240] sm:$0xff]
  %v1845 = vld [vmem:[%s1771 + $0x248] sm:$0xff]
  %v1846 = vld [vmem:[%s1771 + $0x250] sm:$0xff]
  %v1847 = vld [vmem:[%s1771 + $0x258] sm:$0xff]
  %v1848 = vld [vmem:[%s1771 + $0x260] sm:$0xff]
  %v1849 = vld [vmem:[%s1771 + $0x268] sm:$0xff]
  %v1850 = vld [vmem:[%s1771 + $0x270] sm:$0xff]
  %v1851 = vld [vmem:[%s1771 + $0x278] sm:$0xff]
  %v1852 = vld [vmem:[%s1771 + $0x280] sm:$0xff]
  %v1853 = vld [vmem:[%s1771 + $0x288] sm:$0xff]
  %v1854 = vld [vmem:[%s1771 + $0x290] sm:$0xff]
  %v1855 = vld [vmem:[%s1771 + $0x298] sm:$0xff]
  %v1856 = vld [vmem:[%s1771 + $0x2a0] sm:$0xff]
  %v1857 = vld [vmem:[%s1771 + $0x2a8] sm:$0xff]
  %v1858 = vld [vmem:[%s1771 + $0x2b0] sm:$0xff]
  %v1859 = vld [vmem:[%s1771 + $0x2b8] sm:$0xff]
  %v1860 = vld [vmem:[%s1771 + $0x2c0] sm:$0xff]
  %v1861 = vld [vmem:[%s1771 + $0x2c8] sm:$0xff]
  %v1862 = vld [vmem:[%s1771 + $0x2d0] sm:$0xff]
  %v1863 = vld [vmem:[%s1771 + $0x2d8] sm:$0xff]
  %v1864 = vld [vmem:[%s1771 + $0x2e0] sm:$0xff]
  %v1865 = vld [vmem:[%s1771 + $0x2e8] sm:$0xff]
  %v1866 = vld [vmem:[%s1771 + $0x2f0] sm:$0xff]
  %v1867 = vld [vmem:[%s1771 + $0x2f8] sm:$0xff]
  %v1868 = vld [vmem:[%s1771 + $0x300] sm:$0xff]
  %v1869 = vld [vmem:[%s1771 + $0x308] sm:$0xff]
  %v1871 = vsel %vm873, %v1773, 0
  %v1874 = vsel %vm873, %v1775, 0
  %v1877 = vsel %vm873, %v1777, 0
  %v1880 = vsel %vm873, %v1779, 0
  %v1883 = vsel %vm873, %v1781, 0
  %v1886 = vsel %vm873, %v1783, 0
  %v1889 = vsel %vm873, %v1785, 0
  %v1892 = vsel %vm873, %v1787, 0
  %v1895 = vsel %vm873, %v1789, 0
  %v1898 = vsel %vm873, %v1791, 0
  %v1901 = vsel %vm873, %v1793, 0
  %v1904 = vsel %vm873, %v1795, 0
  %v1907 = vsel %vm873, %v1797, 0
  %v1910 = vsel %vm873, %v1799, 0
  %v1913 = vsel %vm873, %v1801, 0
  %v1916 = vsel %vm873, %v1803, 0
  %v1919 = vsel %vm873, %v1805, 0
  %v1922 = vsel %vm873, %v1807, 0
  %v1925 = vsel %vm873, %v1809, 0
  %v1928 = vsel %vm873, %v1811, 0
  %v1931 = vsel %vm873, %v1813, 0
  %v1934 = vsel %vm873, %v1815, 0
  %v1937 = vsel %vm873, %v1817, 0
  %v1940 = vsel %vm873, %v1819, 0
  %v1943 = vsel %vm873, %v1821, 0
  %v1946 = vsel %vm873, %v1823, 0
  %v1949 = vsel %vm873, %v1825, 0
  %v1952 = vsel %vm873, %v1827, 0
  %v1955 = vsel %vm873, %v1829, 0
  %v1958 = vsel %vm873, %v1831, 0
  %v1961 = vsel %vm873, %v1833, 0
  %v1964 = vsel %vm873, %v1835, 0
  %v1967 = vsel %vm873, %v1837, 0
  %v1970 = vsel %vm873, %v1839, 0
  %v1973 = vsel %vm873, %v1841, 0
  %v1976 = vsel %vm873, %v1843, 0
  %v1979 = vsel %vm873, %v1845, 0
  %v1982 = vsel %vm873, %v1847, 0
  %v1985 = vsel %vm873, %v1849, 0
  %v1988 = vsel %vm873, %v1851, 0
  %v1991 = vsel %vm873, %v1853, 0
  %v1994 = vsel %vm873, %v1855, 0
  %v1997 = vsel %vm873, %v1857, 0
  %v2000 = vsel %vm873, %v1859, 0
  %v2003 = vsel %vm873, %v1861, 0
  %v2006 = vsel %vm873, %v1863, 0
  %v2009 = vsel %vm873, %v1865, 0
  %v2012 = vsel %vm873, %v1867, 0
  %v2015 = vsel %vm873, %v1869, 0
  %2017 = vmatprep.subr.mxu0 0.0
  %2018 = vmatpush1.msra.mxu0 %v1674
  %2019 = vmatprep.subr.mxu0 0.0
  %2020 = vmatpush1.msra.mxu0 %v1669
  %2021 = vmatprep.subr.mxu0 0.0
  %2022 = vmatpush1.msra.mxu0 %v1664
  %2023 = vmatprep.subr.mxu0 0.0
  %2024 = vmatpush1.msra.mxu0 %v1659
  %2025 = vmatprep.subr.mxu0 0.0
  %2026 = vmatpush1.msra.mxu0 %v1654
  %2027 = vmatprep.subr.mxu0 0.0
  %2028 = vmatpush1.msra.mxu0 %v1649
  %2029 = vmatprep.subr.mxu0 0.0
  %2030 = vmatpush1.msra.mxu0 %v1644
  %2031 = vmatprep.subr.mxu0 0.0
  %2032 = vmatpush1.msra.mxu0 %v1639
  %2033 = vmatprep.subr.mxu0 0.0
  %2034 = vmatpush1.msra.mxu0 %v1634
  %2035 = vmatprep.subr.mxu0 0.0
  %2036 = vmatpush1.msra.mxu0 %v1629
  %2037 = vmatprep.subr.mxu0 0.0
  %2038 = vmatpush1.msra.mxu0 %v1624
  %2039 = vmatprep.subr.mxu0 0.0
  %2040 = vmatpush1.msra.mxu0 %v1619
  %2041 = vmatprep.subr.mxu0 0.0
  %2042 = vmatpush1.msra.mxu0 %v1614
  %2043 = vmatprep.subr.mxu0 0.0
  %2044 = vmatpush1.msra.mxu0 %v1609
  %2045 = vmatprep.subr.mxu0 0.0
  %2046 = vmatpush1.msra.mxu0 %v1604
  %2047 = vmatprep.subr.mxu0 0.0
  %2048 = vmatpush1.msra.mxu0 %v1599
  %2049 = vmatprep.subr.mxu0 0.0
  %2050 = vmatpush2.msra.mxu0 0.0
  %2051 = vmatprep.subr.mxu0 0.0
  %2052 = vmatpush2.msra.mxu0 0.0
  %2053 = vmatprep.subr.mxu0 0.0
  %2054 = vmatpush2.msra.mxu0 0.0
  %2055 = vmatprep.subr.mxu0 0.0
  %2056 = vmatpush2.msra.mxu0 0.0
  %2057 = vmatprep.subr.mxu0 0.0
  %2058 = vmatpush2.msra.mxu0 0.0
  %2059 = vmatprep.subr.mxu0 0.0
  %2060 = vmatpush2.msra.mxu0 0.0
  %2061 = vmatprep.subr.mxu0 0.0
  %2062 = vmatpush2.msra.mxu0 0.0
  %2063 = vmatprep.subr.mxu0 0.0
  %2064 = vmatpush2.msra.mxu0 %v1719
  %2065 = vmatprep.subr.mxu0 0.0
  %2066 = vmatpush2.msra.mxu0 %v1714
  %2067 = vmatprep.subr.mxu0 0.0
  %2068 = vmatpush2.msra.mxu0 %v1709
  %2069 = vmatprep.subr.mxu0 0.0
  %2070 = vmatpush2.msra.mxu0 %v1704
  %2071 = vmatprep.subr.mxu0 0.0
  %2072 = vmatpush2.msra.mxu0 %v1699
  %2073 = vmatprep.subr.mxu0 0.0
  %2074 = vmatpush2.msra.mxu0 %v1694
  %2075 = vmatprep.subr.mxu0 0.0
  %2076 = vmatpush2.msra.mxu0 %v1689
  %2077 = vmatprep.subr.mxu0 0.0
  %2078 = vmatpush2.msra.mxu0 %v1684
  %2079 = vmatprep.subr.mxu0 0.0
  %2080 = vmatpush2.msra.mxu0 %v1679
  %2081 = vmatprep.mubr.f32.mxu0 %v1871
  %2082 = vmatmul.mubr.f32.gmra.mxu0 %v1772
  %v2083 = vpop.f32.mrf.mxu0
  %v2084 = vadd.f32 0.0, %v2083
  %v2085 = vpop.f32.mrf.mxu0
  %2086 = vmatprep.mubr.f32.mxu0 %v1874
  %2087 = vmatmul.mubr.f32.gmra.mxu0 %v1774
  %v2088 = vpop.f32.mrf.mxu0
  %v2089 = vadd.f32 0.0, %v2088
  %v2090 = vpop.f32.mrf.mxu0
  %2091 = vmatprep.mubr.f32.mxu0 %v1877
  %2092 = vmatmul.mubr.f32.gmra.mxu0 %v1776
  %v2093 = vpop.f32.mrf.mxu0
  %v2094 = vadd.f32 0.0, %v2093
  %v2095 = vpop.f32.mrf.mxu0
  %2096 = vmatprep.mubr.f32.mxu0 %v1880
  %2097 = vmatmul.mubr.f32.gmra.mxu0 %v1778
  %v2098 = vpop.f32.mrf.mxu0
  %v2099 = vadd.f32 0.0, %v2098
  %v2100 = vpop.f32.mrf.mxu0
  %2101 = vmatprep.mubr.f32.mxu0 %v1883
  %2102 = vmatmul.mubr.f32.gmra.mxu0 %v1780
  %v2103 = vpop.f32.mrf.mxu0
  %v2104 = vadd.f32 0.0, %v2103
  %v2105 = vpop.f32.mrf.mxu0
  %2106 = vmatprep.mubr.f32.mxu0 %v1886
  %2107 = vmatmul.mubr.f32.gmra.mxu0 %v1782
  %v2108 = vpop.f32.mrf.mxu0
  %v2109 = vadd.f32 0.0, %v2108
  %v2110 = vpop.f32.mrf.mxu0
  %2111 = vmatprep.mubr.f32.mxu0 %v1889
  %2112 = vmatmul.mubr.f32.gmra.mxu0 %v1784
  %v2113 = vpop.f32.mrf.mxu0
  %v2114 = vadd.f32 0.0, %v2113
  %v2115 = vpop.f32.mrf.mxu0
  %2116 = vmatprep.mubr.f32.mxu0 %v1892
  %2117 = vmatmul.mubr.f32.gmra.mxu0 %v1786
  %v2118 = vpop.f32.mrf.mxu0
  %v2119 = vadd.f32 0.0, %v2118
  %v2120 = vpop.f32.mrf.mxu0
  %2121 = vmatprep.mubr.f32.mxu0 %v1895
  %2122 = vmatmul.mubr.f32.gmra.mxu0 %v1788
  %v2123 = vpop.f32.mrf.mxu0
  %v2124 = vadd.f32 0.0, %v2123
  %v2125 = vpop.f32.mrf.mxu0
  %2126 = vmatprep.mubr.f32.mxu0 %v1898
  %2127 = vmatmul.mubr.f32.gmra.mxu0 %v1790
  %v2128 = vpop.f32.mrf.mxu0
  %v2129 = vadd.f32 0.0, %v2128
  %v2130 = vpop.f32.mrf.mxu0
  %2131 = vmatprep.mubr.f32.mxu0 %v1901
  %2132 = vmatmul.mubr.f32.gmra.mxu0 %v1792
  %v2133 = vpop.f32.mrf.mxu0
  %v2134 = vadd.f32 0.0, %v2133
  %v2135 = vpop.f32.mrf.mxu0
  %2136 = vmatprep.mubr.f32.mxu0 %v1904
  %2137 = vmatmul.mubr.f32.gmra.mxu0 %v1794
  %v2138 = vpop.f32.mrf.mxu0
  %v2139 = vadd.f32 0.0, %v2138
  %v2140 = vpop.f32.mrf.mxu0
  %2141 = vmatprep.mubr.f32.mxu0 %v1907
  %2142 = vmatmul.mubr.f32.gmra.mxu0 %v1796
  %v2143 = vpop.f32.mrf.mxu0
  %v2144 = vadd.f32 0.0, %v2143
  %v2145 = vpop.f32.mrf.mxu0
  %2146 = vmatprep.mubr.f32.mxu0 %v1910
  %2147 = vmatmul.mubr.f32.gmra.mxu0 %v1798
  %v2148 = vpop.f32.mrf.mxu0
  %v2149 = vadd.f32 0.0, %v2148
  %v2150 = vpop.f32.mrf.mxu0
  %2151 = vmatprep.mubr.f32.mxu0 %v1913
  %2152 = vmatmul.mubr.f32.gmra.mxu0 %v1800
  %v2153 = vpop.f32.mrf.mxu0
  %v2154 = vadd.f32 0.0, %v2153
  %v2155 = vpop.f32.mrf.mxu0
  %2156 = vmatprep.mubr.f32.mxu0 %v1916
  %2157 = vmatmul.mubr.f32.gmra.mxu0 %v1802
  %v2158 = vpop.f32.mrf.mxu0
  %v2159 = vadd.f32 0.0, %v2158
  %v2160 = vpop.f32.mrf.mxu0
  %2161 = vmatprep.mubr.f32.mxu0 %v1919
  %2162 = vmatmul.mubr.f32.gmra.mxu0 %v1804
  %v2163 = vpop.f32.mrf.mxu0
  %v2164 = vadd.f32 0.0, %v2163
  %v2165 = vpop.f32.mrf.mxu0
  %2166 = vmatprep.mubr.f32.mxu0 %v1922
  %2167 = vmatmul.mubr.f32.gmra.mxu0 %v1806
  %v2168 = vpop.f32.mrf.mxu0
  %v2169 = vadd.f32 0.0, %v2168
  %v2170 = vpop.f32.mrf.mxu0
  %2171 = vmatprep.mubr.f32.mxu0 %v1925
  %2172 = vmatmul.mubr.f32.gmra.mxu0 %v1808
  %v2173 = vpop.f32.mrf.mxu0
  %v2174 = vadd.f32 0.0, %v2173
  %v2175 = vpop.f32.mrf.mxu0
  %2176 = vmatprep.mubr.f32.mxu0 %v1928
  %2177 = vmatmul.mubr.f32.gmra.mxu0 %v1810
  %v2178 = vpop.f32.mrf.mxu0
  %v2179 = vadd.f32 0.0, %v2178
  %v2180 = vpop.f32.mrf.mxu0
  %2181 = vmatprep.mubr.f32.mxu0 %v1931
  %2182 = vmatmul.mubr.f32.gmra.mxu0 %v1812
  %v2183 = vpop.f32.mrf.mxu0
  %v2184 = vadd.f32 0.0, %v2183
  %v2185 = vpop.f32.mrf.mxu0
  %2186 = vmatprep.mubr.f32.mxu0 %v1934
  %2187 = vmatmul.mubr.f32.gmra.mxu0 %v1814
  %v2188 = vpop.f32.mrf.mxu0
  %v2189 = vadd.f32 0.0, %v2188
  %v2190 = vpop.f32.mrf.mxu0
  %2191 = vmatprep.mubr.f32.mxu0 %v1937
  %2192 = vmatmul.mubr.f32.gmra.mxu0 %v1816
  %v2193 = vpop.f32.mrf.mxu0
  %v2194 = vadd.f32 0.0, %v2193
  %v2195 = vpop.f32.mrf.mxu0
  %2196 = vmatprep.mubr.f32.mxu0 %v1940
  %2197 = vmatmul.mubr.f32.gmra.mxu0 %v1818
  %v2198 = vpop.f32.mrf.mxu0
  %v2199 = vadd.f32 0.0, %v2198
  %v2200 = vpop.f32.mrf.mxu0
  %2201 = vmatprep.mubr.f32.mxu0 %v1943
  %2202 = vmatmul.mubr.f32.gmra.mxu0 %v1820
  %v2203 = vpop.f32.mrf.mxu0
  %v2204 = vadd.f32 0.0, %v2203
  %v2205 = vpop.f32.mrf.mxu0
  %2206 = vmatprep.mubr.f32.mxu0 %v1946
  %2207 = vmatmul.mubr.f32.gmra.mxu0 %v1822
  %v2208 = vpop.f32.mrf.mxu0
  %v2209 = vadd.f32 0.0, %v2208
  %v2210 = vpop.f32.mrf.mxu0
  %2211 = vmatprep.mubr.f32.mxu0 %v1949
  %2212 = vmatmul.mubr.f32.gmra.mxu0 %v1824
  %v2213 = vpop.f32.mrf.mxu0
  %v2214 = vadd.f32 0.0, %v2213
  %v2215 = vpop.f32.mrf.mxu0
  %2216 = vmatprep.mubr.f32.mxu0 %v1952
  %2217 = vmatmul.mubr.f32.gmra.mxu0 %v1826
  %v2218 = vpop.f32.mrf.mxu0
  %v2219 = vadd.f32 0.0, %v2218
  %v2220 = vpop.f32.mrf.mxu0
  %2221 = vmatprep.mubr.f32.mxu0 %v1955
  %2222 = vmatmul.mubr.f32.gmra.mxu0 %v1828
  %v2223 = vpop.f32.mrf.mxu0
  %v2224 = vadd.f32 0.0, %v2223
  %v2225 = vpop.f32.mrf.mxu0
  %2226 = vmatprep.mubr.f32.mxu0 %v1958
  %2227 = vmatmul.mubr.f32.gmra.mxu0 %v1830
  %v2228 = vpop.f32.mrf.mxu0
  %v2229 = vadd.f32 0.0, %v2228
  %v2230 = vpop.f32.mrf.mxu0
  %2231 = vmatprep.mubr.f32.mxu0 %v1961
  %2232 = vmatmul.mubr.f32.gmra.mxu0 %v1832
  %v2233 = vpop.f32.mrf.mxu0
  %v2234 = vadd.f32 0.0, %v2233
  %v2235 = vpop.f32.mrf.mxu0
  %2236 = vmatprep.mubr.f32.mxu0 %v1964
  %2237 = vmatmul.mubr.f32.gmra.mxu0 %v1834
  %v2238 = vpop.f32.mrf.mxu0
  %v2239 = vadd.f32 0.0, %v2238
  %v2240 = vpop.f32.mrf.mxu0
  %2241 = vmatprep.mubr.f32.mxu0 %v1967
  %2242 = vmatmul.mubr.f32.gmra.mxu0 %v1836
  %v2243 = vpop.f32.mrf.mxu0
  %v2244 = vadd.f32 0.0, %v2243
  %v2245 = vpop.f32.mrf.mxu0
  %2246 = vmatprep.mubr.f32.mxu0 %v1970
  %2247 = vmatmul.mubr.f32.gmra.mxu0 %v1838
  %v2248 = vpop.f32.mrf.mxu0
  %v2249 = vadd.f32 0.0, %v2248
  %v2250 = vpop.f32.mrf.mxu0
  %2251 = vmatprep.mubr.f32.mxu0 %v1973
  %2252 = vmatmul.mubr.f32.gmra.mxu0 %v1840
  %v2253 = vpop.f32.mrf.mxu0
  %v2254 = vadd.f32 0.0, %v2253
  %v2255 = vpop.f32.mrf.mxu0
  %2256 = vmatprep.mubr.f32.mxu0 %v1976
  %2257 = vmatmul.mubr.f32.gmra.mxu0 %v1842
  %v2258 = vpop.f32.mrf.mxu0
  %v2259 = vadd.f32 0.0, %v2258
  %v2260 = vpop.f32.mrf.mxu0
  %2261 = vmatprep.mubr.f32.mxu0 %v1979
  %2262 = vmatmul.mubr.f32.gmra.mxu0 %v1844
  %v2263 = vpop.f32.mrf.mxu0
  %v2264 = vadd.f32 0.0, %v2263
  %v2265 = vpop.f32.mrf.mxu0
  %2266 = vmatprep.mubr.f32.mxu0 %v1982
  %2267 = vmatmul.mubr.f32.gmra.mxu0 %v1846
  %v2268 = vpop.f32.mrf.mxu0
  %v2269 = vadd.f32 0.0, %v2268
  %v2270 = vpop.f32.mrf.mxu0
  %2271 = vmatprep.mubr.f32.mxu0 %v1985
  %2272 = vmatmul.mubr.f32.gmra.mxu0 %v1848
  %v2273 = vpop.f32.mrf.mxu0
  %v2274 = vadd.f32 0.0, %v2273
  %v2275 = vpop.f32.mrf.mxu0
  %2276 = vmatprep.mubr.f32.mxu0 %v1988
  %2277 = vmatmul.mubr.f32.gmra.mxu0 %v1850
  %v2278 = vpop.f32.mrf.mxu0
  %v2279 = vadd.f32 0.0, %v2278
  %v2280 = vpop.f32.mrf.mxu0
  %2281 = vmatprep.mubr.f32.mxu0 %v1991
  %2282 = vmatmul.mubr.f32.gmra.mxu0 %v1852
  %v2283 = vpop.f32.mrf.mxu0
  %v2284 = vadd.f32 0.0, %v2283
  %v2285 = vpop.f32.mrf.mxu0
  %2286 = vmatprep.mubr.f32.mxu0 %v1994
  %2287 = vmatmul.mubr.f32.gmra.mxu0 %v1854
  %v2288 = vpop.f32.mrf.mxu0
  %v2289 = vadd.f32 0.0, %v2288
  %v2290 = vpop.f32.mrf.mxu0
  %2291 = vmatprep.mubr.f32.mxu0 %v1997
  %2292 = vmatmul.mubr.f32.gmra.mxu0 %v1856
  %v2293 = vpop.f32.mrf.mxu0
  %v2294 = vadd.f32 0.0, %v2293
  %v2295 = vpop.f32.mrf.mxu0
  %2296 = vmatprep.mubr.f32.mxu0 %v2000
  %2297 = vmatmul.mubr.f32.gmra.mxu0 %v1858
  %v2298 = vpop.f32.mrf.mxu0
  %v2299 = vadd.f32 0.0, %v2298
  %v2300 = vpop.f32.mrf.mxu0
  %2301 = vmatprep.mubr.f32.mxu0 %v2003
  %2302 = vmatmul.mubr.f32.gmra.mxu0 %v1860
  %v2303 = vpop.f32.mrf.mxu0
  %v2304 = vadd.f32 0.0, %v2303
  %v2305 = vpop.f32.mrf.mxu0
  %2306 = vmatprep.mubr.f32.mxu0 %v2006
  %2307 = vmatmul.mubr.f32.gmra.mxu0 %v1862
  %v2308 = vpop.f32.mrf.mxu0
  %v2309 = vadd.f32 0.0, %v2308
  %v2310 = vpop.f32.mrf.mxu0
  %2311 = vmatprep.mubr.f32.mxu0 %v2009
  %2312 = vmatmul.mubr.f32.gmra.mxu0 %v1864
  %v2313 = vpop.f32.mrf.mxu0
  %v2314 = vadd.f32 0.0, %v2313
  %v2315 = vpop.f32.mrf.mxu0
  %2316 = vmatprep.mubr.f32.mxu0 %v2012
  %2317 = vmatmul.mubr.f32.gmra.mxu0 %v1866
  %v2318 = vpop.f32.mrf.mxu0
  %v2319 = vadd.f32 0.0, %v2318
  %v2320 = vpop.f32.mrf.mxu0
  %2321 = vmatprep.mubr.f32.mxu0 %v2015
  %2322 = vmatmul.mubr.f32.gmra.mxu0 %v1868
  %v2323 = vpop.f32.mrf.mxu0
  %v2324 = vadd.f32 0.0, %v2323
  %v2325 = vpop.f32.mrf.mxu0
  %2326 = vdwg.mxu0
  %v2327 = vadd.f32 %v1722, %v2084
  %v2328 = vadd.f32 %v1723, %v2089
  %v2329 = vadd.f32 %v1724, %v2094
  %v2330 = vadd.f32 %v1725, %v2099
  %v2331 = vadd.f32 %v1726, %v2104
  %v2332 = vadd.f32 %v1727, %v2109
  %v2333 = vadd.f32 %v1728, %v2114
  %v2334 = vadd.f32 %v1729, %v2119
  %v2335 = vadd.f32 %v1730, %v2124
  %v2336 = vadd.f32 %v1731, %v2129
  %v2337 = vadd.f32 %v1732, %v2134
  %v2338 = vadd.f32 %v1733, %v2139
  %v2339 = vadd.f32 %v1734, %v2144
  %v2340 = vadd.f32 %v1735, %v2149
  %v2341 = vadd.f32 %v1736, %v2154
  %v2342 = vadd.f32 %v1737, %v2159
  %v2343 = vadd.f32 %v1738, %v2164
  %v2344 = vadd.f32 %v1739, %v2169
  %v2345 = vadd.f32 %v1740, %v2174
  %v2346 = vadd.f32 %v1741, %v2179
  %v2347 = vadd.f32 %v1742, %v2184
  %v2348 = vadd.f32 %v1743, %v2189
  %v2349 = vadd.f32 %v1744, %v2194
  %v2350 = vadd.f32 %v1745, %v2199
  %v2351 = vadd.f32 %v1746, %v2204
  %v2352 = vadd.f32 %v1747, %v2209
  %v2353 = vadd.f32 %v1748, %v2214
  %v2354 = vadd.f32 %v1749, %v2219
  %v2355 = vadd.f32 %v1750, %v2224
  %v2356 = vadd.f32 %v1751, %v2229
  %v2357 = vadd.f32 %v1752, %v2234
  %v2358 = vadd.f32 %v1753, %v2239
  %v2359 = vadd.f32 %v1754, %v2244
  %v2360 = vadd.f32 %v1755, %v2249
  %v2361 = vadd.f32 %v1756, %v2254
  %v2362 = vadd.f32 %v1757, %v2259
  %v2363 = vadd.f32 %v1758, %v2264
  %v2364 = vadd.f32 %v1759, %v2269
  %v2365 = vadd.f32 %v1760, %v2274
  %v2366 = vadd.f32 %v1761, %v2279
  %v2367 = vadd.f32 %v1762, %v2284
  %v2368 = vadd.f32 %v1763, %v2289
  %v2369 = vadd.f32 %v1764, %v2294
  %v2370 = vadd.f32 %v1765, %v2299
  %v2371 = vadd.f32 %v1766, %v2304
  %v2372 = vadd.f32 %v1767, %v2309
  %v2373 = vadd.f32 %v1768, %v2314
  %v2374 = vadd.f32 %v1769, %v2319
  %v2375 = vadd.f32 %v1770, %v2324
  %2376 = vst.msk [vmem:[#allocation3] sm:$0xff] %vm69, %v2327
  %2377 = vst.msk [vmem:[#allocation3 + $0x8] sm:$0xff] %vm69, %v2328
  %2378 = vst.msk [vmem:[#allocation3 + $0x10] sm:$0xff] %vm69, %v2329
  %2379 = vst.msk [vmem:[#allocation3 + $0x18] sm:$0xff] %vm69, %v2330
  %2380 = vst.msk [vmem:[#allocation3 + $0x20] sm:$0xff] %vm69, %v2331
  %2381 = vst.msk [vmem:[#allocation3 + $0x28] sm:$0xff] %vm69, %v2332
  %2382 = vst.msk [vmem:[#allocation3 + $0x30] sm:$0xff] %vm69, %v2333
  %2383 = vst.msk [vmem:[#allocation3 + $0x38] sm:$0xff] %vm69, %v2334
  %2384 = vst.msk [vmem:[#allocation3 + $0x40] sm:$0xff] %vm69, %v2335
  %2385 = vst.msk [vmem:[#allocation3 + $0x48] sm:$0xff] %vm69, %v2336
  %2386 = vst.msk [vmem:[#allocation3 + $0x50] sm:$0xff] %vm69, %v2337
  %2387 = vst.msk [vmem:[#allocation3 + $0x58] sm:$0xff] %vm69, %v2338
  %2388 = vst.msk [vmem:[#allocation3 + $0x60] sm:$0xff] %vm69, %v2339
  %2389 = vst.msk [vmem:[#allocation3 + $0x68] sm:$0xff] %vm69, %v2340
  %2390 = vst.msk [vmem:[#allocation3 + $0x70] sm:$0xff] %vm69, %v2341
  %2391 = vst.msk [vmem:[#allocation3 + $0x78] sm:$0xff] %vm69, %v2342
  %2392 = vst.msk [vmem:[#allocation3 + $0x80] sm:$0xff] %vm69, %v2343
  %2393 = vst.msk [vmem:[#allocation3 + $0x88] sm:$0xff] %vm69, %v2344
  %2394 = vst.msk [vmem:[#allocation3 + $0x90] sm:$0xff] %vm69, %v2345
  %2395 = vst.msk [vmem:[#allocation3 + $0x98] sm:$0xff] %vm69, %v2346
  %2396 = vst.msk [vmem:[#allocation3 + $0xa0] sm:$0xff] %vm69, %v2347
  %2397 = vst.msk [vmem:[#allocation3 + $0xa8] sm:$0xff] %vm69, %v2348
  %2398 = vst.msk [vmem:[#allocation3 + $0xb0] sm:$0xff] %vm69, %v2349
  %2399 = vst.msk [vmem:[#allocation3 + $0xb8] sm:$0xff] %vm69, %v2350
  %2400 = vst.msk [vmem:[#allocation3 + $0xc0] sm:$0xff] %vm69, %v2351
  %2401 = vst.msk [vmem:[#allocation3 + $0xc8] sm:$0xff] %vm69, %v2352
  %2402 = vst.msk [vmem:[#allocation3 + $0xd0] sm:$0xff] %vm69, %v2353
  %2403 = vst.msk [vmem:[#allocation3 + $0xd8] sm:$0xff] %vm69, %v2354
  %2404 = vst.msk [vmem:[#allocation3 + $0xe0] sm:$0xff] %vm69, %v2355
  %2405 = vst.msk [vmem:[#allocation3 + $0xe8] sm:$0xff] %vm69, %v2356
  %2406 = vst.msk [vmem:[#allocation3 + $0xf0] sm:$0xff] %vm69, %v2357
  %2407 = vst.msk [vmem:[#allocation3 + $0xf8] sm:$0xff] %vm69, %v2358
  %2408 = vst.msk [vmem:[#allocation3 + $0x100] sm:$0xff] %vm69, %v2359
  %2409 = vst.msk [vmem:[#allocation3 + $0x108] sm:$0xff] %vm69, %v2360
  %2410 = vst.msk [vmem:[#allocation3 + $0x110] sm:$0xff] %vm69, %v2361
  %2411 = vst.msk [vmem:[#allocation3 + $0x118] sm:$0xff] %vm69, %v2362
  %2412 = vst.msk [vmem:[#allocation3 + $0x120] sm:$0xff] %vm69, %v2363
  %2413 = vst.msk [vmem:[#allocation3 + $0x128] sm:$0xff] %vm69, %v2364
  %2414 = vst.msk [vmem:[#allocation3 + $0x130] sm:$0xff] %vm69, %v2365
  %2415 = vst.msk [vmem:[#allocation3 + $0x138] sm:$0xff] %vm69, %v2366
  %2416 = vst.msk [vmem:[#allocation3 + $0x140] sm:$0xff] %vm69, %v2367
  %2417 = vst.msk [vmem:[#allocation3 + $0x148] sm:$0xff] %vm69, %v2368
  %2418 = vst.msk [vmem:[#allocation3 + $0x150] sm:$0xff] %vm69, %v2369
  %2419 = vst.msk [vmem:[#allocation3 + $0x158] sm:$0xff] %vm69, %v2370
  %2420 = vst.msk [vmem:[#allocation3 + $0x160] sm:$0xff] %vm69, %v2371
  %2421 = vst.msk [vmem:[#allocation3 + $0x168] sm:$0xff] %vm69, %v2372
  %2422 = vst.msk [vmem:[#allocation3 + $0x170] sm:$0xff] %vm69, %v2373
  %2423 = vst.msk [vmem:[#allocation3 + $0x178] sm:$0xff] %vm69, %v2374
  %2424 = vst.msk [vmem:[#allocation3 + $0x180] sm:$0xff] %vm69, %v2375
  %v2425 = vld [vmem:[#allocation2] sm:$0xff]
  %v2426 = vld [vmem:[#allocation2 + $0x8] sm:$0xff]
  %v2427 = vld [vmem:[#allocation2 + $0x10] sm:$0xff]
  %v2428 = vld [vmem:[#allocation2 + $0x18] sm:$0xff]
  %v2429 = vld [vmem:[#allocation2 + $0x20] sm:$0xff]
  %v2430 = vld [vmem:[#allocation2 + $0x28] sm:$0xff]
  %v2431 = vld [vmem:[#allocation2 + $0x30] sm:$0xff]
  %v2432 = vld [vmem:[#allocation2 + $0x38] sm:$0xff]
  %v2433 = vld [vmem:[#allocation2 + $0x40] sm:$0xff]
  %v2434 = vld [vmem:[#allocation2 + $0x48] sm:$0xff]
  %v2435 = vld [vmem:[#allocation2 + $0x50] sm:$0xff]
  %v2436 = vld [vmem:[#allocation2 + $0x58] sm:$0xff]
  %v2437 = vld [vmem:[#allocation2 + $0x60] sm:$0xff]
  %v2438 = vld [vmem:[#allocation2 + $0x68] sm:$0xff]
  %v2439 = vld [vmem:[#allocation2 + $0x70] sm:$0xff]
  %v2440 = vld [vmem:[#allocation2 + $0x78] sm:$0xff]
  %v2441 = vld [vmem:[#allocation2 + $0x80] sm:$0xff]
  %v2442 = vld [vmem:[#allocation2 + $0x88] sm:$0xff]
  %v2443 = vld [vmem:[#allocation2 + $0x90] sm:$0xff]
  %v2444 = vld [vmem:[#allocation2 + $0x98] sm:$0xff]
  %v2445 = vld [vmem:[#allocation2 + $0xa0] sm:$0xff]
  %v2446 = vld [vmem:[#allocation2 + $0xa8] sm:$0xff]
  %v2447 = vld [vmem:[#allocation2 + $0xb0] sm:$0xff]
  %v2448 = vld [vmem:[#allocation2 + $0xb8] sm:$0xff]
  %v2449 = vld [vmem:[#allocation2 + $0xc0] sm:$0xff]
  %s2450 = scalar_lea.vmem %s4, 32
  %v2451 = vld [vmem:[%s2450] sm:$0xff]
  %v2452 = vld [vmem:[%s2450 + $0x8] sm:$0xff]
  %v2454 = vsel %vm69, %v2425, 0
  %v2457 = vsel %vm69, %v2426, 0
  %v2460 = vsel %vm69, %v2427, 0
  %v2463 = vsel %vm69, %v2428, 0
  %v2466 = vsel %vm69, %v2429, 0
  %v2469 = vsel %vm69, %v2430, 0
  %v2472 = vsel %vm69, %v2431, 0
  %v2475 = vsel %vm69, %v2432, 0
  %v2478 = vsel %vm69, %v2433, 0
  %v2481 = vsel %vm69, %v2434, 0
  %v2484 = vsel %vm69, %v2435, 0
  %v2487 = vsel %vm69, %v2436, 0
  %v2490 = vsel %vm69, %v2437, 0
  %v2493 = vsel %vm69, %v2438, 0
  %v2496 = vsel %vm69, %v2439, 0
  %v2499 = vsel %vm69, %v2440, 0
  %v2502 = vsel %vm69, %v2441, 0
  %v2505 = vsel %vm69, %v2442, 0
  %v2508 = vsel %vm69, %v2443, 0
  %v2511 = vsel %vm69, %v2444, 0
  %v2514 = vsel %vm69, %v2445, 0
  %v2517 = vsel %vm69, %v2446, 0
  %v2520 = vsel %vm69, %v2447, 0
  %v2523 = vsel %vm69, %v2448, 0
  %v2526 = vsel %vm69, %v2449, 0
  %2528 = vmatprep.subr.mxu0 0.0
  %2529 = vmatpush1.msra.mxu0 0.0
  %2530 = vmatprep.subr.mxu0 0.0
  %2531 = vmatpush1.msra.mxu0 0.0
  %2532 = vmatprep.subr.mxu0 0.0
  %2533 = vmatpush1.msra.mxu0 0.0
  %2534 = vmatprep.subr.mxu0 0.0
  %2535 = vmatpush1.msra.mxu0 0.0
  %2536 = vmatprep.subr.mxu0 0.0
  %2537 = vmatpush1.msra.mxu0 0.0
  %2538 = vmatprep.subr.mxu0 0.0
  %2539 = vmatpush1.msra.mxu0 0.0
  %2540 = vmatprep.subr.mxu0 0.0
  %2541 = vmatpush1.msra.mxu0 0.0
  %2542 = vmatprep.subr.mxu0 0.0
  %2543 = vmatpush1.msra.mxu0 0.0
  %2544 = vmatprep.subr.mxu0 0.0
  %2545 = vmatpush1.msra.mxu0 0.0
  %2546 = vmatprep.subr.mxu0 0.0
  %2547 = vmatpush1.msra.mxu0 0.0
  %2548 = vmatprep.subr.mxu0 0.0
  %2549 = vmatpush1.msra.mxu0 0.0
  %2550 = vmatprep.subr.mxu0 0.0
  %2551 = vmatpush1.msra.mxu0 0.0
  %2552 = vmatprep.subr.mxu0 0.0
  %2553 = vmatpush1.msra.mxu0 0.0
  %2554 = vmatprep.subr.mxu0 0.0
  %2555 = vmatpush1.msra.mxu0 0.0
  %2556 = vmatprep.subr.mxu0 0.0
  %2557 = vmatpush1.msra.mxu0 %v2452
  %2558 = vmatprep.subr.mxu0 0.0
  %2559 = vmatpush1.msra.mxu0 %v2451
  %2560 = vmatprep.subr.mxu0 0.0
  %2561 = vmatpush2.msra.mxu0 0.0
  %2562 = vmatprep.subr.mxu0 0.0
  %2563 = vmatpush2.msra.mxu0 0.0
  %2564 = vmatprep.subr.mxu0 0.0
  %2565 = vmatpush2.msra.mxu0 0.0
  %2566 = vmatprep.subr.mxu0 0.0
  %2567 = vmatpush2.msra.mxu0 0.0
  %2568 = vmatprep.subr.mxu0 0.0
  %2569 = vmatpush2.msra.mxu0 0.0
  %2570 = vmatprep.subr.mxu0 0.0
  %2571 = vmatpush2.msra.mxu0 0.0
  %2572 = vmatprep.subr.mxu0 0.0
  %2573 = vmatpush2.msra.mxu0 0.0
  %2574 = vmatprep.subr.mxu0 0.0
  %2575 = vmatpush2.msra.mxu0 0.0
  %2576 = vmatprep.subr.mxu0 0.0
  %2577 = vmatpush2.msra.mxu0 0.0
  %2578 = vmatprep.subr.mxu0 0.0
  %2579 = vmatpush2.msra.mxu0 0.0
  %2580 = vmatprep.subr.mxu0 0.0
  %2581 = vmatpush2.msra.mxu0 0.0
  %2582 = vmatprep.subr.mxu0 0.0
  %2583 = vmatpush2.msra.mxu0 0.0
  %2584 = vmatprep.subr.mxu0 0.0
  %2585 = vmatpush2.msra.mxu0 0.0
  %2586 = vmatprep.subr.mxu0 0.0
  %2587 = vmatpush2.msra.mxu0 0.0
  %2588 = vmatprep.subr.mxu0 0.0
  %2589 = vmatpush2.msra.mxu0 0.0
  %2590 = vmatprep.subr.mxu0 0.0
  %2591 = vmatpush2.msra.mxu0 0.0
  %2592 = vmatprep.mubr.f32.mxu0 0.0
  %2593 = vmatmul.mubr.f32.gmra.mxu0 %v2454
  %v2594 = vpop.f32.mrf.mxu0
  %v2595 = vadd.f32 0.0, %v2594
  %v2596 = vpop.f32.mrf.mxu0
  %2597 = vmatprep.mubr.f32.mxu0 0.0
  %2598 = vmatmul.mubr.f32.gmra.mxu0 %v2457
  %v2599 = vpop.f32.mrf.mxu0
  %v2600 = vadd.f32 0.0, %v2599
  %v2601 = vpop.f32.mrf.mxu0
  %2602 = vmatprep.mubr.f32.mxu0 0.0
  %2603 = vmatmul.mubr.f32.gmra.mxu0 %v2460
  %v2604 = vpop.f32.mrf.mxu0
  %v2605 = vadd.f32 0.0, %v2604
  %v2606 = vpop.f32.mrf.mxu0
  %2607 = vmatprep.mubr.f32.mxu0 0.0
  %2608 = vmatmul.mubr.f32.gmra.mxu0 %v2463
  %v2609 = vpop.f32.mrf.mxu0
  %v2610 = vadd.f32 0.0, %v2609
  %v2611 = vpop.f32.mrf.mxu0
  %2612 = vmatprep.mubr.f32.mxu0 0.0
  %2613 = vmatmul.mubr.f32.gmra.mxu0 %v2466
  %v2614 = vpop.f32.mrf.mxu0
  %v2615 = vadd.f32 0.0, %v2614
  %v2616 = vpop.f32.mrf.mxu0
  %2617 = vmatprep.mubr.f32.mxu0 0.0
  %2618 = vmatmul.mubr.f32.gmra.mxu0 %v2469
  %v2619 = vpop.f32.mrf.mxu0
  %v2620 = vadd.f32 0.0, %v2619
  %v2621 = vpop.f32.mrf.mxu0
  %2622 = vmatprep.mubr.f32.mxu0 0.0
  %2623 = vmatmul.mubr.f32.gmra.mxu0 %v2472
  %v2624 = vpop.f32.mrf.mxu0
  %v2625 = vadd.f32 0.0, %v2624
  %v2626 = vpop.f32.mrf.mxu0
  %2627 = vmatprep.mubr.f32.mxu0 0.0
  %2628 = vmatmul.mubr.f32.gmra.mxu0 %v2475
  %v2629 = vpop.f32.mrf.mxu0
  %v2630 = vadd.f32 0.0, %v2629
  %v2631 = vpop.f32.mrf.mxu0
  %2632 = vmatprep.mubr.f32.mxu0 0.0
  %2633 = vmatmul.mubr.f32.gmra.mxu0 %v2478
  %v2634 = vpop.f32.mrf.mxu0
  %v2635 = vadd.f32 0.0, %v2634
  %v2636 = vpop.f32.mrf.mxu0
  %2637 = vmatprep.mubr.f32.mxu0 0.0
  %2638 = vmatmul.mubr.f32.gmra.mxu0 %v2481
  %v2639 = vpop.f32.mrf.mxu0
  %v2640 = vadd.f32 0.0, %v2639
  %v2641 = vpop.f32.mrf.mxu0
  %2642 = vmatprep.mubr.f32.mxu0 0.0
  %2643 = vmatmul.mubr.f32.gmra.mxu0 %v2484
  %v2644 = vpop.f32.mrf.mxu0
  %v2645 = vadd.f32 0.0, %v2644
  %v2646 = vpop.f32.mrf.mxu0
  %2647 = vmatprep.mubr.f32.mxu0 0.0
  %2648 = vmatmul.mubr.f32.gmra.mxu0 %v2487
  %v2649 = vpop.f32.mrf.mxu0
  %v2650 = vadd.f32 0.0, %v2649
  %v2651 = vpop.f32.mrf.mxu0
  %2652 = vmatprep.mubr.f32.mxu0 0.0
  %2653 = vmatmul.mubr.f32.gmra.mxu0 %v2490
  %v2654 = vpop.f32.mrf.mxu0
  %v2655 = vadd.f32 0.0, %v2654
  %v2656 = vpop.f32.mrf.mxu0
  %2657 = vmatprep.mubr.f32.mxu0 0.0
  %2658 = vmatmul.mubr.f32.gmra.mxu0 %v2493
  %v2659 = vpop.f32.mrf.mxu0
  %v2660 = vadd.f32 0.0, %v2659
  %v2661 = vpop.f32.mrf.mxu0
  %2662 = vmatprep.mubr.f32.mxu0 0.0
  %2663 = vmatmul.mubr.f32.gmra.mxu0 %v2496
  %v2664 = vpop.f32.mrf.mxu0
  %v2665 = vadd.f32 0.0, %v2664
  %v2666 = vpop.f32.mrf.mxu0
  %2667 = vmatprep.mubr.f32.mxu0 0.0
  %2668 = vmatmul.mubr.f32.gmra.mxu0 %v2499
  %v2669 = vpop.f32.mrf.mxu0
  %v2670 = vadd.f32 0.0, %v2669
  %v2671 = vpop.f32.mrf.mxu0
  %2672 = vmatprep.mubr.f32.mxu0 0.0
  %2673 = vmatmul.mubr.f32.gmra.mxu0 %v2502
  %v2674 = vpop.f32.mrf.mxu0
  %v2675 = vadd.f32 0.0, %v2674
  %v2676 = vpop.f32.mrf.mxu0
  %2677 = vmatprep.mubr.f32.mxu0 0.0
  %2678 = vmatmul.mubr.f32.gmra.mxu0 %v2505
  %v2679 = vpop.f32.mrf.mxu0
  %v2680 = vadd.f32 0.0, %v2679
  %v2681 = vpop.f32.mrf.mxu0
  %2682 = vmatprep.mubr.f32.mxu0 0.0
  %2683 = vmatmul.mubr.f32.gmra.mxu0 %v2508
  %v2684 = vpop.f32.mrf.mxu0
  %v2685 = vadd.f32 0.0, %v2684
  %v2686 = vpop.f32.mrf.mxu0
  %2687 = vmatprep.mubr.f32.mxu0 0.0
  %2688 = vmatmul.mubr.f32.gmra.mxu0 %v2511
  %v2689 = vpop.f32.mrf.mxu0
  %v2690 = vadd.f32 0.0, %v2689
  %v2691 = vpop.f32.mrf.mxu0
  %2692 = vmatprep.mubr.f32.mxu0 0.0
  %2693 = vmatmul.mubr.f32.gmra.mxu0 %v2514
  %v2694 = vpop.f32.mrf.mxu0
  %v2695 = vadd.f32 0.0, %v2694
  %v2696 = vpop.f32.mrf.mxu0
  %2697 = vmatprep.mubr.f32.mxu0 0.0
  %2698 = vmatmul.mubr.f32.gmra.mxu0 %v2517
  %v2699 = vpop.f32.mrf.mxu0
  %v2700 = vadd.f32 0.0, %v2699
  %v2701 = vpop.f32.mrf.mxu0
  %2702 = vmatprep.mubr.f32.mxu0 0.0
  %2703 = vmatmul.mubr.f32.gmra.mxu0 %v2520
  %v2704 = vpop.f32.mrf.mxu0
  %v2705 = vadd.f32 0.0, %v2704
  %v2706 = vpop.f32.mrf.mxu0
  %2707 = vmatprep.mubr.f32.mxu0 0.0
  %2708 = vmatmul.mubr.f32.gmra.mxu0 %v2523
  %v2709 = vpop.f32.mrf.mxu0
  %v2710 = vadd.f32 0.0, %v2709
  %v2711 = vpop.f32.mrf.mxu0
  %2712 = vmatprep.mubr.f32.mxu0 0.0
  %2713 = vmatmul.mubr.f32.gmra.mxu0 %v2526
  %v2714 = vpop.f32.mrf.mxu0
  %v2715 = vadd.f32 0.0, %v2714
  %v2716 = vpop.f32.mrf.mxu0
  %2717 = vdwg.mxu0
  %v2718 = vld [vmem:[#allocation3] sm:$0xff]
  %v2719 = vld [vmem:[#allocation3 + $0x8] sm:$0xff]
  %v2720 = vld [vmem:[#allocation3 + $0x10] sm:$0xff]
  %v2721 = vld [vmem:[#allocation3 + $0x18] sm:$0xff]
  %v2722 = vld [vmem:[#allocation3 + $0x20] sm:$0xff]
  %v2723 = vld [vmem:[#allocation3 + $0x28] sm:$0xff]
  %v2724 = vld [vmem:[#allocation3 + $0x30] sm:$0xff]
  %v2725 = vld [vmem:[#allocation3 + $0x38] sm:$0xff]
  %v2726 = vld [vmem:[#allocation3 + $0x40] sm:$0xff]
  %v2727 = vld [vmem:[#allocation3 + $0x48] sm:$0xff]
  %v2728 = vld [vmem:[#allocation3 + $0x50] sm:$0xff]
  %v2729 = vld [vmem:[#allocation3 + $0x58] sm:$0xff]
  %v2730 = vld [vmem:[#allocation3 + $0x60] sm:$0xff]
  %v2731 = vld [vmem:[#allocation3 + $0x68] sm:$0xff]
  %v2732 = vld [vmem:[#allocation3 + $0x70] sm:$0xff]
  %v2733 = vld [vmem:[#allocation3 + $0x78] sm:$0xff]
  %v2734 = vld [vmem:[#allocation3 + $0x80] sm:$0xff]
  %v2735 = vld [vmem:[#allocation3 + $0x88] sm:$0xff]
  %v2736 = vld [vmem:[#allocation3 + $0x90] sm:$0xff]
  %v2737 = vld [vmem:[#allocation3 + $0x98] sm:$0xff]
  %v2738 = vld [vmem:[#allocation3 + $0xa0] sm:$0xff]
  %v2739 = vld [vmem:[#allocation3 + $0xa8] sm:$0xff]
  %v2740 = vld [vmem:[#allocation3 + $0xb0] sm:$0xff]
  %v2741 = vld [vmem:[#allocation3 + $0xb8] sm:$0xff]
  %v2742 = vld [vmem:[#allocation3 + $0xc0] sm:$0xff]
  %v2743 = vld [vmem:[#allocation3 + $0xc8] sm:$0xff]
  %v2744 = vld [vmem:[#allocation3 + $0xd0] sm:$0xff]
  %v2745 = vld [vmem:[#allocation3 + $0xd8] sm:$0xff]
  %v2746 = vld [vmem:[#allocation3 + $0xe0] sm:$0xff]
  %v2747 = vld [vmem:[#allocation3 + $0xe8] sm:$0xff]
  %v2748 = vld [vmem:[#allocation3 + $0xf0] sm:$0xff]
  %v2749 = vld [vmem:[#allocation3 + $0xf8] sm:$0xff]
  %v2750 = vld [vmem:[#allocation3 + $0x100] sm:$0xff]
  %v2751 = vld [vmem:[#allocation3 + $0x108] sm:$0xff]
  %v2752 = vld [vmem:[#allocation3 + $0x110] sm:$0xff]
  %v2753 = vld [vmem:[#allocation3 + $0x118] sm:$0xff]
  %v2754 = vld [vmem:[#allocation3 + $0x120] sm:$0xff]
  %v2755 = vld [vmem:[#allocation3 + $0x128] sm:$0xff]
  %v2756 = vld [vmem:[#allocation3 + $0x130] sm:$0xff]
  %v2757 = vld [vmem:[#allocation3 + $0x138] sm:$0xff]
  %v2758 = vld [vmem:[#allocation3 + $0x140] sm:$0xff]
  %v2759 = vld [vmem:[#allocation3 + $0x148] sm:$0xff]
  %v2760 = vld [vmem:[#allocation3 + $0x150] sm:$0xff]
  %v2761 = vld [vmem:[#allocation3 + $0x158] sm:$0xff]
  %v2762 = vld [vmem:[#allocation3 + $0x160] sm:$0xff]
  %v2763 = vld [vmem:[#allocation3 + $0x168] sm:$0xff]
  %v2764 = vld [vmem:[#allocation3 + $0x170] sm:$0xff]
  %v2765 = vld [vmem:[#allocation3 + $0x178] sm:$0xff]
  %v2766 = vld [vmem:[#allocation3 + $0x180] sm:$0xff]
  %s2767 = scalar_lea.vmem %s3, 1568
  %v2768 = vld [vmem:[%s2767] sm:$0xff]
  %v2769 = vld [vmem:[%s2767 + $0x8] sm:$0xff]
  %v2770 = vld [vmem:[%s2767 + $0x10] sm:$0xff]
  %v2771 = vld [vmem:[%s2767 + $0x18] sm:$0xff]
  %v2772 = vld [vmem:[%s2767 + $0x20] sm:$0xff]
  %v2773 = vld [vmem:[%s2767 + $0x28] sm:$0xff]
  %v2774 = vld [vmem:[%s2767 + $0x30] sm:$0xff]
  %v2775 = vld [vmem:[%s2767 + $0x38] sm:$0xff]
  %v2776 = vld [vmem:[%s2767 + $0x40] sm:$0xff]
  %v2777 = vld [vmem:[%s2767 + $0x48] sm:$0xff]
  %v2778 = vld [vmem:[%s2767 + $0x50] sm:$0xff]
  %v2779 = vld [vmem:[%s2767 + $0x58] sm:$0xff]
  %v2780 = vld [vmem:[%s2767 + $0x60] sm:$0xff]
  %v2781 = vld [vmem:[%s2767 + $0x68] sm:$0xff]
  %v2782 = vld [vmem:[%s2767 + $0x70] sm:$0xff]
  %v2783 = vld [vmem:[%s2767 + $0x78] sm:$0xff]
  %v2784 = vld [vmem:[%s2767 + $0x80] sm:$0xff]
  %v2785 = vld [vmem:[%s2767 + $0x88] sm:$0xff]
  %v2786 = vld [vmem:[%s2767 + $0x90] sm:$0xff]
  %v2787 = vld [vmem:[%s2767 + $0x98] sm:$0xff]
  %v2788 = vld [vmem:[%s2767 + $0xa0] sm:$0xff]
  %v2789 = vld [vmem:[%s2767 + $0xa8] sm:$0xff]
  %v2790 = vld [vmem:[%s2767 + $0xb0] sm:$0xff]
  %v2791 = vld [vmem:[%s2767 + $0xb8] sm:$0xff]
  %v2792 = vld [vmem:[%s2767 + $0xc0] sm:$0xff]
  %v2793 = vld [vmem:[%s2767 + $0xc8] sm:$0xff]
  %v2794 = vld [vmem:[%s2767 + $0xd0] sm:$0xff]
  %v2795 = vld [vmem:[%s2767 + $0xd8] sm:$0xff]
  %v2796 = vld [vmem:[%s2767 + $0xe0] sm:$0xff]
  %v2797 = vld [vmem:[%s2767 + $0xe8] sm:$0xff]
  %v2798 = vld [vmem:[%s2767 + $0xf0] sm:$0xff]
  %v2799 = vld [vmem:[%s2767 + $0xf8] sm:$0xff]
  %v2800 = vld [vmem:[%s2767 + $0x100] sm:$0xff]
  %v2801 = vld [vmem:[%s2767 + $0x108] sm:$0xff]
  %v2802 = vld [vmem:[%s2767 + $0x110] sm:$0xff]
  %v2803 = vld [vmem:[%s2767 + $0x118] sm:$0xff]
  %v2804 = vld [vmem:[%s2767 + $0x120] sm:$0xff]
  %v2805 = vld [vmem:[%s2767 + $0x128] sm:$0xff]
  %v2806 = vld [vmem:[%s2767 + $0x130] sm:$0xff]
  %v2807 = vld [vmem:[%s2767 + $0x138] sm:$0xff]
  %v2808 = vld [vmem:[%s2767 + $0x140] sm:$0xff]
  %v2809 = vld [vmem:[%s2767 + $0x148] sm:$0xff]
  %v2810 = vld [vmem:[%s2767 + $0x150] sm:$0xff]
  %v2811 = vld [vmem:[%s2767 + $0x158] sm:$0xff]
  %v2812 = vld [vmem:[%s2767 + $0x160] sm:$0xff]
  %v2813 = vld [vmem:[%s2767 + $0x168] sm:$0xff]
  %v2814 = vld [vmem:[%s2767 + $0x170] sm:$0xff]
  %v2815 = vld [vmem:[%s2767 + $0x178] sm:$0xff]
  %v2816 = vld [vmem:[%s2767 + $0x180] sm:$0xff]
  %v2817 = vld [vmem:[%s2767 + $0x188] sm:$0xff]
  %v2818 = vld [vmem:[%s2767 + $0x190] sm:$0xff]
  %v2819 = vld [vmem:[%s2767 + $0x198] sm:$0xff]
  %v2820 = vld [vmem:[%s2767 + $0x1a0] sm:$0xff]
  %v2821 = vld [vmem:[%s2767 + $0x1a8] sm:$0xff]
  %v2822 = vld [vmem:[%s2767 + $0x1b0] sm:$0xff]
  %v2823 = vld [vmem:[%s2767 + $0x1b8] sm:$0xff]
  %v2824 = vld [vmem:[%s2767 + $0x1c0] sm:$0xff]
  %v2825 = vld [vmem:[%s2767 + $0x1c8] sm:$0xff]
  %v2826 = vld [vmem:[%s2767 + $0x1d0] sm:$0xff]
  %v2827 = vld [vmem:[%s2767 + $0x1d8] sm:$0xff]
  %v2828 = vld [vmem:[%s2767 + $0x1e0] sm:$0xff]
  %v2829 = vld [vmem:[%s2767 + $0x1e8] sm:$0xff]
  %v2830 = vld [vmem:[%s2767 + $0x1f0] sm:$0xff]
  %v2831 = vld [vmem:[%s2767 + $0x1f8] sm:$0xff]
  %v2832 = vld [vmem:[%s2767 + $0x200] sm:$0xff]
  %v2833 = vld [vmem:[%s2767 + $0x208] sm:$0xff]
  %v2834 = vld [vmem:[%s2767 + $0x210] sm:$0xff]
  %v2835 = vld [vmem:[%s2767 + $0x218] sm:$0xff]
  %v2836 = vld [vmem:[%s2767 + $0x220] sm:$0xff]
  %v2837 = vld [vmem:[%s2767 + $0x228] sm:$0xff]
  %v2838 = vld [vmem:[%s2767 + $0x230] sm:$0xff]
  %v2839 = vld [vmem:[%s2767 + $0x238] sm:$0xff]
  %v2840 = vld [vmem:[%s2767 + $0x240] sm:$0xff]
  %v2841 = vld [vmem:[%s2767 + $0x248] sm:$0xff]
  %v2842 = vld [vmem:[%s2767 + $0x250] sm:$0xff]
  %v2843 = vld [vmem:[%s2767 + $0x258] sm:$0xff]
  %v2844 = vld [vmem:[%s2767 + $0x260] sm:$0xff]
  %v2845 = vld [vmem:[%s2767 + $0x268] sm:$0xff]
  %v2846 = vld [vmem:[%s2767 + $0x270] sm:$0xff]
  %v2847 = vld [vmem:[%s2767 + $0x278] sm:$0xff]
  %v2848 = vld [vmem:[%s2767 + $0x280] sm:$0xff]
  %v2849 = vld [vmem:[%s2767 + $0x288] sm:$0xff]
  %v2850 = vld [vmem:[%s2767 + $0x290] sm:$0xff]
  %v2851 = vld [vmem:[%s2767 + $0x298] sm:$0xff]
  %v2852 = vld [vmem:[%s2767 + $0x2a0] sm:$0xff]
  %v2853 = vld [vmem:[%s2767 + $0x2a8] sm:$0xff]
  %v2854 = vld [vmem:[%s2767 + $0x2b0] sm:$0xff]
  %v2855 = vld [vmem:[%s2767 + $0x2b8] sm:$0xff]
  %v2856 = vld [vmem:[%s2767 + $0x2c0] sm:$0xff]
  %v2857 = vld [vmem:[%s2767 + $0x2c8] sm:$0xff]
  %v2858 = vld [vmem:[%s2767 + $0x2d0] sm:$0xff]
  %v2859 = vld [vmem:[%s2767 + $0x2d8] sm:$0xff]
  %v2860 = vld [vmem:[%s2767 + $0x2e0] sm:$0xff]
  %v2861 = vld [vmem:[%s2767 + $0x2e8] sm:$0xff]
  %v2862 = vld [vmem:[%s2767 + $0x2f0] sm:$0xff]
  %v2863 = vld [vmem:[%s2767 + $0x2f8] sm:$0xff]
  %v2864 = vld [vmem:[%s2767 + $0x300] sm:$0xff]
  %v2865 = vld [vmem:[%s2767 + $0x308] sm:$0xff]
  %v2867 = vsel %vm873, %v2769, 0
  %v2870 = vsel %vm873, %v2771, 0
  %v2873 = vsel %vm873, %v2773, 0
  %v2876 = vsel %vm873, %v2775, 0
  %v2879 = vsel %vm873, %v2777, 0
  %v2882 = vsel %vm873, %v2779, 0
  %v2885 = vsel %vm873, %v2781, 0
  %v2888 = vsel %vm873, %v2783, 0
  %v2891 = vsel %vm873, %v2785, 0
  %v2894 = vsel %vm873, %v2787, 0
  %v2897 = vsel %vm873, %v2789, 0
  %v2900 = vsel %vm873, %v2791, 0
  %v2903 = vsel %vm873, %v2793, 0
  %v2906 = vsel %vm873, %v2795, 0
  %v2909 = vsel %vm873, %v2797, 0
  %v2912 = vsel %vm873, %v2799, 0
  %v2915 = vsel %vm873, %v2801, 0
  %v2918 = vsel %vm873, %v2803, 0
  %v2921 = vsel %vm873, %v2805, 0
  %v2924 = vsel %vm873, %v2807, 0
  %v2927 = vsel %vm873, %v2809, 0
  %v2930 = vsel %vm873, %v2811, 0
  %v2933 = vsel %vm873, %v2813, 0
  %v2936 = vsel %vm873, %v2815, 0
  %v2939 = vsel %vm873, %v2817, 0
  %v2942 = vsel %vm873, %v2819, 0
  %v2945 = vsel %vm873, %v2821, 0
  %v2948 = vsel %vm873, %v2823, 0
  %v2951 = vsel %vm873, %v2825, 0
  %v2954 = vsel %vm873, %v2827, 0
  %v2957 = vsel %vm873, %v2829, 0
  %v2960 = vsel %vm873, %v2831, 0
  %v2963 = vsel %vm873, %v2833, 0
  %v2966 = vsel %vm873, %v2835, 0
  %v2969 = vsel %vm873, %v2837, 0
  %v2972 = vsel %vm873, %v2839, 0
  %v2975 = vsel %vm873, %v2841, 0
  %v2978 = vsel %vm873, %v2843, 0
  %v2981 = vsel %vm873, %v2845, 0
  %v2984 = vsel %vm873, %v2847, 0
  %v2987 = vsel %vm873, %v2849, 0
  %v2990 = vsel %vm873, %v2851, 0
  %v2993 = vsel %vm873, %v2853, 0
  %v2996 = vsel %vm873, %v2855, 0
  %v2999 = vsel %vm873, %v2857, 0
  %v3002 = vsel %vm873, %v2859, 0
  %v3005 = vsel %vm873, %v2861, 0
  %v3008 = vsel %vm873, %v2863, 0
  %v3011 = vsel %vm873, %v2865, 0
  %3013 = vmatprep.subr.mxu0 0.0
  %3014 = vmatpush1.msra.mxu0 %v2670
  %3015 = vmatprep.subr.mxu0 0.0
  %3016 = vmatpush1.msra.mxu0 %v2665
  %3017 = vmatprep.subr.mxu0 0.0
  %3018 = vmatpush1.msra.mxu0 %v2660
  %3019 = vmatprep.subr.mxu0 0.0
  %3020 = vmatpush1.msra.mxu0 %v2655
  %3021 = vmatprep.subr.mxu0 0.0
  %3022 = vmatpush1.msra.mxu0 %v2650
  %3023 = vmatprep.subr.mxu0 0.0
  %3024 = vmatpush1.msra.mxu0 %v2645
  %3025 = vmatprep.subr.mxu0 0.0
  %3026 = vmatpush1.msra.mxu0 %v2640
  %3027 = vmatprep.subr.mxu0 0.0
  %3028 = vmatpush1.msra.mxu0 %v2635
  %3029 = vmatprep.subr.mxu0 0.0
  %3030 = vmatpush1.msra.mxu0 %v2630
  %3031 = vmatprep.subr.mxu0 0.0
  %3032 = vmatpush1.msra.mxu0 %v2625
  %3033 = vmatprep.subr.mxu0 0.0
  %3034 = vmatpush1.msra.mxu0 %v2620
  %3035 = vmatprep.subr.mxu0 0.0
  %3036 = vmatpush1.msra.mxu0 %v2615
  %3037 = vmatprep.subr.mxu0 0.0
  %3038 = vmatpush1.msra.mxu0 %v2610
  %3039 = vmatprep.subr.mxu0 0.0
  %3040 = vmatpush1.msra.mxu0 %v2605
  %3041 = vmatprep.subr.mxu0 0.0
  %3042 = vmatpush1.msra.mxu0 %v2600
  %3043 = vmatprep.subr.mxu0 0.0
  %3044 = vmatpush1.msra.mxu0 %v2595
  %3045 = vmatprep.subr.mxu0 0.0
  %3046 = vmatpush2.msra.mxu0 0.0
  %3047 = vmatprep.subr.mxu0 0.0
  %3048 = vmatpush2.msra.mxu0 0.0
  %3049 = vmatprep.subr.mxu0 0.0
  %3050 = vmatpush2.msra.mxu0 0.0
  %3051 = vmatprep.subr.mxu0 0.0
  %3052 = vmatpush2.msra.mxu0 0.0
  %3053 = vmatprep.subr.mxu0 0.0
  %3054 = vmatpush2.msra.mxu0 0.0
  %3055 = vmatprep.subr.mxu0 0.0
  %3056 = vmatpush2.msra.mxu0 0.0
  %3057 = vmatprep.subr.mxu0 0.0
  %3058 = vmatpush2.msra.mxu0 0.0
  %3059 = vmatprep.subr.mxu0 0.0
  %3060 = vmatpush2.msra.mxu0 %v2715
  %3061 = vmatprep.subr.mxu0 0.0
  %3062 = vmatpush2.msra.mxu0 %v2710
  %3063 = vmatprep.subr.mxu0 0.0
  %3064 = vmatpush2.msra.mxu0 %v2705
  %3065 = vmatprep.subr.mxu0 0.0
  %3066 = vmatpush2.msra.mxu0 %v2700
  %3067 = vmatprep.subr.mxu0 0.0
  %3068 = vmatpush2.msra.mxu0 %v2695
  %3069 = vmatprep.subr.mxu0 0.0
  %3070 = vmatpush2.msra.mxu0 %v2690
  %3071 = vmatprep.subr.mxu0 0.0
  %3072 = vmatpush2.msra.mxu0 %v2685
  %3073 = vmatprep.subr.mxu0 0.0
  %3074 = vmatpush2.msra.mxu0 %v2680
  %3075 = vmatprep.subr.mxu0 0.0
  %3076 = vmatpush2.msra.mxu0 %v2675
  %3077 = vmatprep.mubr.f32.mxu0 %v2867
  %3078 = vmatmul.mubr.f32.gmra.mxu0 %v2768
  %v3079 = vpop.f32.mrf.mxu0
  %v3080 = vadd.f32 0.0, %v3079
  %v3081 = vpop.f32.mrf.mxu0
  %3082 = vmatprep.mubr.f32.mxu0 %v2870
  %3083 = vmatmul.mubr.f32.gmra.mxu0 %v2770
  %v3084 = vpop.f32.mrf.mxu0
  %v3085 = vadd.f32 0.0, %v3084
  %v3086 = vpop.f32.mrf.mxu0
  %3087 = vmatprep.mubr.f32.mxu0 %v2873
  %3088 = vmatmul.mubr.f32.gmra.mxu0 %v2772
  %v3089 = vpop.f32.mrf.mxu0
  %v3090 = vadd.f32 0.0, %v3089
  %v3091 = vpop.f32.mrf.mxu0
  %3092 = vmatprep.mubr.f32.mxu0 %v2876
  %3093 = vmatmul.mubr.f32.gmra.mxu0 %v2774
  %v3094 = vpop.f32.mrf.mxu0
  %v3095 = vadd.f32 0.0, %v3094
  %v3096 = vpop.f32.mrf.mxu0
  %3097 = vmatprep.mubr.f32.mxu0 %v2879
  %3098 = vmatmul.mubr.f32.gmra.mxu0 %v2776
  %v3099 = vpop.f32.mrf.mxu0
  %v3100 = vadd.f32 0.0, %v3099
  %v3101 = vpop.f32.mrf.mxu0
  %3102 = vmatprep.mubr.f32.mxu0 %v2882
  %3103 = vmatmul.mubr.f32.gmra.mxu0 %v2778
  %v3104 = vpop.f32.mrf.mxu0
  %v3105 = vadd.f32 0.0, %v3104
  %v3106 = vpop.f32.mrf.mxu0
  %3107 = vmatprep.mubr.f32.mxu0 %v2885
  %3108 = vmatmul.mubr.f32.gmra.mxu0 %v2780
  %v3109 = vpop.f32.mrf.mxu0
  %v3110 = vadd.f32 0.0, %v3109
  %v3111 = vpop.f32.mrf.mxu0
  %3112 = vmatprep.mubr.f32.mxu0 %v2888
  %3113 = vmatmul.mubr.f32.gmra.mxu0 %v2782
  %v3114 = vpop.f32.mrf.mxu0
  %v3115 = vadd.f32 0.0, %v3114
  %v3116 = vpop.f32.mrf.mxu0
  %3117 = vmatprep.mubr.f32.mxu0 %v2891
  %3118 = vmatmul.mubr.f32.gmra.mxu0 %v2784
  %v3119 = vpop.f32.mrf.mxu0
  %v3120 = vadd.f32 0.0, %v3119
  %v3121 = vpop.f32.mrf.mxu0
  %3122 = vmatprep.mubr.f32.mxu0 %v2894
  %3123 = vmatmul.mubr.f32.gmra.mxu0 %v2786
  %v3124 = vpop.f32.mrf.mxu0
  %v3125 = vadd.f32 0.0, %v3124
  %v3126 = vpop.f32.mrf.mxu0
  %3127 = vmatprep.mubr.f32.mxu0 %v2897
  %3128 = vmatmul.mubr.f32.gmra.mxu0 %v2788
  %v3129 = vpop.f32.mrf.mxu0
  %v3130 = vadd.f32 0.0, %v3129
  %v3131 = vpop.f32.mrf.mxu0
  %3132 = vmatprep.mubr.f32.mxu0 %v2900
  %3133 = vmatmul.mubr.f32.gmra.mxu0 %v2790
  %v3134 = vpop.f32.mrf.mxu0
  %v3135 = vadd.f32 0.0, %v3134
  %v3136 = vpop.f32.mrf.mxu0
  %3137 = vmatprep.mubr.f32.mxu0 %v2903
  %3138 = vmatmul.mubr.f32.gmra.mxu0 %v2792
  %v3139 = vpop.f32.mrf.mxu0
  %v3140 = vadd.f32 0.0, %v3139
  %v3141 = vpop.f32.mrf.mxu0
  %3142 = vmatprep.mubr.f32.mxu0 %v2906
  %3143 = vmatmul.mubr.f32.gmra.mxu0 %v2794
  %v3144 = vpop.f32.mrf.mxu0
  %v3145 = vadd.f32 0.0, %v3144
  %v3146 = vpop.f32.mrf.mxu0
  %3147 = vmatprep.mubr.f32.mxu0 %v2909
  %3148 = vmatmul.mubr.f32.gmra.mxu0 %v2796
  %v3149 = vpop.f32.mrf.mxu0
  %v3150 = vadd.f32 0.0, %v3149
  %v3151 = vpop.f32.mrf.mxu0
  %3152 = vmatprep.mubr.f32.mxu0 %v2912
  %3153 = vmatmul.mubr.f32.gmra.mxu0 %v2798
  %v3154 = vpop.f32.mrf.mxu0
  %v3155 = vadd.f32 0.0, %v3154
  %v3156 = vpop.f32.mrf.mxu0
  %3157 = vmatprep.mubr.f32.mxu0 %v2915
  %3158 = vmatmul.mubr.f32.gmra.mxu0 %v2800
  %v3159 = vpop.f32.mrf.mxu0
  %v3160 = vadd.f32 0.0, %v3159
  %v3161 = vpop.f32.mrf.mxu0
  %3162 = vmatprep.mubr.f32.mxu0 %v2918
  %3163 = vmatmul.mubr.f32.gmra.mxu0 %v2802
  %v3164 = vpop.f32.mrf.mxu0
  %v3165 = vadd.f32 0.0, %v3164
  %v3166 = vpop.f32.mrf.mxu0
  %3167 = vmatprep.mubr.f32.mxu0 %v2921
  %3168 = vmatmul.mubr.f32.gmra.mxu0 %v2804
  %v3169 = vpop.f32.mrf.mxu0
  %v3170 = vadd.f32 0.0, %v3169
  %v3171 = vpop.f32.mrf.mxu0
  %3172 = vmatprep.mubr.f32.mxu0 %v2924
  %3173 = vmatmul.mubr.f32.gmra.mxu0 %v2806
  %v3174 = vpop.f32.mrf.mxu0
  %v3175 = vadd.f32 0.0, %v3174
  %v3176 = vpop.f32.mrf.mxu0
  %3177 = vmatprep.mubr.f32.mxu0 %v2927
  %3178 = vmatmul.mubr.f32.gmra.mxu0 %v2808
  %v3179 = vpop.f32.mrf.mxu0
  %v3180 = vadd.f32 0.0, %v3179
  %v3181 = vpop.f32.mrf.mxu0
  %3182 = vmatprep.mubr.f32.mxu0 %v2930
  %3183 = vmatmul.mubr.f32.gmra.mxu0 %v2810
  %v3184 = vpop.f32.mrf.mxu0
  %v3185 = vadd.f32 0.0, %v3184
  %v3186 = vpop.f32.mrf.mxu0
  %3187 = vmatprep.mubr.f32.mxu0 %v2933
  %3188 = vmatmul.mubr.f32.gmra.mxu0 %v2812
  %v3189 = vpop.f32.mrf.mxu0
  %v3190 = vadd.f32 0.0, %v3189
  %v3191 = vpop.f32.mrf.mxu0
  %3192 = vmatprep.mubr.f32.mxu0 %v2936
  %3193 = vmatmul.mubr.f32.gmra.mxu0 %v2814
  %v3194 = vpop.f32.mrf.mxu0
  %v3195 = vadd.f32 0.0, %v3194
  %v3196 = vpop.f32.mrf.mxu0
  %3197 = vmatprep.mubr.f32.mxu0 %v2939
  %3198 = vmatmul.mubr.f32.gmra.mxu0 %v2816
  %v3199 = vpop.f32.mrf.mxu0
  %v3200 = vadd.f32 0.0, %v3199
  %v3201 = vpop.f32.mrf.mxu0
  %3202 = vmatprep.mubr.f32.mxu0 %v2942
  %3203 = vmatmul.mubr.f32.gmra.mxu0 %v2818
  %v3204 = vpop.f32.mrf.mxu0
  %v3205 = vadd.f32 0.0, %v3204
  %v3206 = vpop.f32.mrf.mxu0
  %3207 = vmatprep.mubr.f32.mxu0 %v2945
  %3208 = vmatmul.mubr.f32.gmra.mxu0 %v2820
  %v3209 = vpop.f32.mrf.mxu0
  %v3210 = vadd.f32 0.0, %v3209
  %v3211 = vpop.f32.mrf.mxu0
  %3212 = vmatprep.mubr.f32.mxu0 %v2948
  %3213 = vmatmul.mubr.f32.gmra.mxu0 %v2822
  %v3214 = vpop.f32.mrf.mxu0
  %v3215 = vadd.f32 0.0, %v3214
  %v3216 = vpop.f32.mrf.mxu0
  %3217 = vmatprep.mubr.f32.mxu0 %v2951
  %3218 = vmatmul.mubr.f32.gmra.mxu0 %v2824
  %v3219 = vpop.f32.mrf.mxu0
  %v3220 = vadd.f32 0.0, %v3219
  %v3221 = vpop.f32.mrf.mxu0
  %3222 = vmatprep.mubr.f32.mxu0 %v2954
  %3223 = vmatmul.mubr.f32.gmra.mxu0 %v2826
  %v3224 = vpop.f32.mrf.mxu0
  %v3225 = vadd.f32 0.0, %v3224
  %v3226 = vpop.f32.mrf.mxu0
  %3227 = vmatprep.mubr.f32.mxu0 %v2957
  %3228 = vmatmul.mubr.f32.gmra.mxu0 %v2828
  %v3229 = vpop.f32.mrf.mxu0
  %v3230 = vadd.f32 0.0, %v3229
  %v3231 = vpop.f32.mrf.mxu0
  %3232 = vmatprep.mubr.f32.mxu0 %v2960
  %3233 = vmatmul.mubr.f32.gmra.mxu0 %v2830
  %v3234 = vpop.f32.mrf.mxu0
  %v3235 = vadd.f32 0.0, %v3234
  %v3236 = vpop.f32.mrf.mxu0
  %3237 = vmatprep.mubr.f32.mxu0 %v2963
  %3238 = vmatmul.mubr.f32.gmra.mxu0 %v2832
  %v3239 = vpop.f32.mrf.mxu0
  %v3240 = vadd.f32 0.0, %v3239
  %v3241 = vpop.f32.mrf.mxu0
  %3242 = vmatprep.mubr.f32.mxu0 %v2966
  %3243 = vmatmul.mubr.f32.gmra.mxu0 %v2834
  %v3244 = vpop.f32.mrf.mxu0
  %v3245 = vadd.f32 0.0, %v3244
  %v3246 = vpop.f32.mrf.mxu0
  %3247 = vmatprep.mubr.f32.mxu0 %v2969
  %3248 = vmatmul.mubr.f32.gmra.mxu0 %v2836
  %v3249 = vpop.f32.mrf.mxu0
  %v3250 = vadd.f32 0.0, %v3249
  %v3251 = vpop.f32.mrf.mxu0
  %3252 = vmatprep.mubr.f32.mxu0 %v2972
  %3253 = vmatmul.mubr.f32.gmra.mxu0 %v2838
  %v3254 = vpop.f32.mrf.mxu0
  %v3255 = vadd.f32 0.0, %v3254
  %v3256 = vpop.f32.mrf.mxu0
  %3257 = vmatprep.mubr.f32.mxu0 %v2975
  %3258 = vmatmul.mubr.f32.gmra.mxu0 %v2840
  %v3259 = vpop.f32.mrf.mxu0
  %v3260 = vadd.f32 0.0, %v3259
  %v3261 = vpop.f32.mrf.mxu0
  %3262 = vmatprep.mubr.f32.mxu0 %v2978
  %3263 = vmatmul.mubr.f32.gmra.mxu0 %v2842
  %v3264 = vpop.f32.mrf.mxu0
  %v3265 = vadd.f32 0.0, %v3264
  %v3266 = vpop.f32.mrf.mxu0
  %3267 = vmatprep.mubr.f32.mxu0 %v2981
  %3268 = vmatmul.mubr.f32.gmra.mxu0 %v2844
  %v3269 = vpop.f32.mrf.mxu0
  %v3270 = vadd.f32 0.0, %v3269
  %v3271 = vpop.f32.mrf.mxu0
  %3272 = vmatprep.mubr.f32.mxu0 %v2984
  %3273 = vmatmul.mubr.f32.gmra.mxu0 %v2846
  %v3274 = vpop.f32.mrf.mxu0
  %v3275 = vadd.f32 0.0, %v3274
  %v3276 = vpop.f32.mrf.mxu0
  %3277 = vmatprep.mubr.f32.mxu0 %v2987
  %3278 = vmatmul.mubr.f32.gmra.mxu0 %v2848
  %v3279 = vpop.f32.mrf.mxu0
  %v3280 = vadd.f32 0.0, %v3279
  %v3281 = vpop.f32.mrf.mxu0
  %3282 = vmatprep.mubr.f32.mxu0 %v2990
  %3283 = vmatmul.mubr.f32.gmra.mxu0 %v2850
  %v3284 = vpop.f32.mrf.mxu0
  %v3285 = vadd.f32 0.0, %v3284
  %v3286 = vpop.f32.mrf.mxu0
  %3287 = vmatprep.mubr.f32.mxu0 %v2993
  %3288 = vmatmul.mubr.f32.gmra.mxu0 %v2852
  %v3289 = vpop.f32.mrf.mxu0
  %v3290 = vadd.f32 0.0, %v3289
  %v3291 = vpop.f32.mrf.mxu0
  %3292 = vmatprep.mubr.f32.mxu0 %v2996
  %3293 = vmatmul.mubr.f32.gmra.mxu0 %v2854
  %v3294 = vpop.f32.mrf.mxu0
  %v3295 = vadd.f32 0.0, %v3294
  %v3296 = vpop.f32.mrf.mxu0
  %3297 = vmatprep.mubr.f32.mxu0 %v2999
  %3298 = vmatmul.mubr.f32.gmra.mxu0 %v2856
  %v3299 = vpop.f32.mrf.mxu0
  %v3300 = vadd.f32 0.0, %v3299
  %v3301 = vpop.f32.mrf.mxu0
  %3302 = vmatprep.mubr.f32.mxu0 %v3002
  %3303 = vmatmul.mubr.f32.gmra.mxu0 %v2858
  %v3304 = vpop.f32.mrf.mxu0
  %v3305 = vadd.f32 0.0, %v3304
  %v3306 = vpop.f32.mrf.mxu0
  %3307 = vmatprep.mubr.f32.mxu0 %v3005
  %3308 = vmatmul.mubr.f32.gmra.mxu0 %v2860
  %v3309 = vpop.f32.mrf.mxu0
  %v3310 = vadd.f32 0.0, %v3309
  %v3311 = vpop.f32.mrf.mxu0
  %3312 = vmatprep.mubr.f32.mxu0 %v3008
  %3313 = vmatmul.mubr.f32.gmra.mxu0 %v2862
  %v3314 = vpop.f32.mrf.mxu0
  %v3315 = vadd.f32 0.0, %v3314
  %v3316 = vpop.f32.mrf.mxu0
  %3317 = vmatprep.mubr.f32.mxu0 %v3011
  %3318 = vmatmul.mubr.f32.gmra.mxu0 %v2864
  %v3319 = vpop.f32.mrf.mxu0
  %v3320 = vadd.f32 0.0, %v3319
  %v3321 = vpop.f32.mrf.mxu0
  %3322 = vdwg.mxu0
  %v3323 = vadd.f32 %v2718, %v3080
  %v3324 = vadd.f32 %v2719, %v3085
  %v3325 = vadd.f32 %v2720, %v3090
  %v3326 = vadd.f32 %v2721, %v3095
  %v3327 = vadd.f32 %v2722, %v3100
  %v3328 = vadd.f32 %v2723, %v3105
  %v3329 = vadd.f32 %v2724, %v3110
  %v3330 = vadd.f32 %v2725, %v3115
  %v3331 = vadd.f32 %v2726, %v3120
  %v3332 = vadd.f32 %v2727, %v3125
  %v3333 = vadd.f32 %v2728, %v3130
  %v3334 = vadd.f32 %v2729, %v3135
  %v3335 = vadd.f32 %v2730, %v3140
  %v3336 = vadd.f32 %v2731, %v3145
  %v3337 = vadd.f32 %v2732, %v3150
  %v3338 = vadd.f32 %v2733, %v3155
  %v3339 = vadd.f32 %v2734, %v3160
  %v3340 = vadd.f32 %v2735, %v3165
  %v3341 = vadd.f32 %v2736, %v3170
  %v3342 = vadd.f32 %v2737, %v3175
  %v3343 = vadd.f32 %v2738, %v3180
  %v3344 = vadd.f32 %v2739, %v3185
  %v3345 = vadd.f32 %v2740, %v3190
  %v3346 = vadd.f32 %v2741, %v3195
  %v3347 = vadd.f32 %v2742, %v3200
  %v3348 = vadd.f32 %v2743, %v3205
  %v3349 = vadd.f32 %v2744, %v3210
  %v3350 = vadd.f32 %v2745, %v3215
  %v3351 = vadd.f32 %v2746, %v3220
  %v3352 = vadd.f32 %v2747, %v3225
  %v3353 = vadd.f32 %v2748, %v3230
  %v3354 = vadd.f32 %v2749, %v3235
  %v3355 = vadd.f32 %v2750, %v3240
  %v3356 = vadd.f32 %v2751, %v3245
  %v3357 = vadd.f32 %v2752, %v3250
  %v3358 = vadd.f32 %v2753, %v3255
  %v3359 = vadd.f32 %v2754, %v3260
  %v3360 = vadd.f32 %v2755, %v3265
  %v3361 = vadd.f32 %v2756, %v3270
  %v3362 = vadd.f32 %v2757, %v3275
  %v3363 = vadd.f32 %v2758, %v3280
  %v3364 = vadd.f32 %v2759, %v3285
  %v3365 = vadd.f32 %v2760, %v3290
  %v3366 = vadd.f32 %v2761, %v3295
  %v3367 = vadd.f32 %v2762, %v3300
  %v3368 = vadd.f32 %v2763, %v3305
  %v3369 = vadd.f32 %v2764, %v3310
  %v3370 = vadd.f32 %v2765, %v3315
  %v3371 = vadd.f32 %v2766, %v3320
  %3372 = vst.msk [vmem:[#allocation3] sm:$0xff] %vm69, %v3323
  %3373 = vst.msk [vmem:[#allocation3 + $0x8] sm:$0xff] %vm69, %v3324
  %3374 = vst.msk [vmem:[#allocation3 + $0x10] sm:$0xff] %vm69, %v3325
  %3375 = vst.msk [vmem:[#allocation3 + $0x18] sm:$0xff] %vm69, %v3326
  %3376 = vst.msk [vmem:[#allocation3 + $0x20] sm:$0xff] %vm69, %v3327
  %3377 = vst.msk [vmem:[#allocation3 + $0x28] sm:$0xff] %vm69, %v3328
  %3378 = vst.msk [vmem:[#allocation3 + $0x30] sm:$0xff] %vm69, %v3329
  %3379 = vst.msk [vmem:[#allocation3 + $0x38] sm:$0xff] %vm69, %v3330
  %3380 = vst.msk [vmem:[#allocation3 + $0x40] sm:$0xff] %vm69, %v3331
  %3381 = vst.msk [vmem:[#allocation3 + $0x48] sm:$0xff] %vm69, %v3332
  %3382 = vst.msk [vmem:[#allocation3 + $0x50] sm:$0xff] %vm69, %v3333
  %3383 = vst.msk [vmem:[#allocation3 + $0x58] sm:$0xff] %vm69, %v3334
  %3384 = vst.msk [vmem:[#allocation3 + $0x60] sm:$0xff] %vm69, %v3335
  %3385 = vst.msk [vmem:[#allocation3 + $0x68] sm:$0xff] %vm69, %v3336
  %3386 = vst.msk [vmem:[#allocation3 + $0x70] sm:$0xff] %vm69, %v3337
  %3387 = vst.msk [vmem:[#allocation3 + $0x78] sm:$0xff] %vm69, %v3338
  %3388 = vst.msk [vmem:[#allocation3 + $0x80] sm:$0xff] %vm69, %v3339
  %3389 = vst.msk [vmem:[#allocation3 + $0x88] sm:$0xff] %vm69, %v3340
  %3390 = vst.msk [vmem:[#allocation3 + $0x90] sm:$0xff] %vm69, %v3341
  %3391 = vst.msk [vmem:[#allocation3 + $0x98] sm:$0xff] %vm69, %v3342
  %3392 = vst.msk [vmem:[#allocation3 + $0xa0] sm:$0xff] %vm69, %v3343
  %3393 = vst.msk [vmem:[#allocation3 + $0xa8] sm:$0xff] %vm69, %v3344
  %3394 = vst.msk [vmem:[#allocation3 + $0xb0] sm:$0xff] %vm69, %v3345
  %3395 = vst.msk [vmem:[#allocation3 + $0xb8] sm:$0xff] %vm69, %v3346
  %3396 = vst.msk [vmem:[#allocation3 + $0xc0] sm:$0xff] %vm69, %v3347
  %3397 = vst.msk [vmem:[#allocation3 + $0xc8] sm:$0xff] %vm69, %v3348
  %3398 = vst.msk [vmem:[#allocation3 + $0xd0] sm:$0xff] %vm69, %v3349
  %3399 = vst.msk [vmem:[#allocation3 + $0xd8] sm:$0xff] %vm69, %v3350
  %3400 = vst.msk [vmem:[#allocation3 + $0xe0] sm:$0xff] %vm69, %v3351
  %3401 = vst.msk [vmem:[#allocation3 + $0xe8] sm:$0xff] %vm69, %v3352
  %3402 = vst.msk [vmem:[#allocation3 + $0xf0] sm:$0xff] %vm69, %v3353
  %3403 = vst.msk [vmem:[#allocation3 + $0xf8] sm:$0xff] %vm69, %v3354
  %3404 = vst.msk [vmem:[#allocation3 + $0x100] sm:$0xff] %vm69, %v3355
  %3405 = vst.msk [vmem:[#allocation3 + $0x108] sm:$0xff] %vm69, %v3356
  %3406 = vst.msk [vmem:[#allocation3 + $0x110] sm:$0xff] %vm69, %v3357
  %3407 = vst.msk [vmem:[#allocation3 + $0x118] sm:$0xff] %vm69, %v3358
  %3408 = vst.msk [vmem:[#allocation3 + $0x120] sm:$0xff] %vm69, %v3359
  %3409 = vst.msk [vmem:[#allocation3 + $0x128] sm:$0xff] %vm69, %v3360
  %3410 = vst.msk [vmem:[#allocation3 + $0x130] sm:$0xff] %vm69, %v3361
  %3411 = vst.msk [vmem:[#allocation3 + $0x138] sm:$0xff] %vm69, %v3362
  %3412 = vst.msk [vmem:[#allocation3 + $0x140] sm:$0xff] %vm69, %v3363
  %3413 = vst.msk [vmem:[#allocation3 + $0x148] sm:$0xff] %vm69, %v3364
  %3414 = vst.msk [vmem:[#allocation3 + $0x150] sm:$0xff] %vm69, %v3365
  %3415 = vst.msk [vmem:[#allocation3 + $0x158] sm:$0xff] %vm69, %v3366
  %3416 = vst.msk [vmem:[#allocation3 + $0x160] sm:$0xff] %vm69, %v3367
  %3417 = vst.msk [vmem:[#allocation3 + $0x168] sm:$0xff] %vm69, %v3368
  %3418 = vst.msk [vmem:[#allocation3 + $0x170] sm:$0xff] %vm69, %v3369
  %3419 = vst.msk [vmem:[#allocation3 + $0x178] sm:$0xff] %vm69, %v3370
  %3420 = vst.msk [vmem:[#allocation3 + $0x180] sm:$0xff] %vm69, %v3371
  %v3421 = vld [vmem:[#allocation2] sm:$0xff]
  %v3422 = vld [vmem:[#allocation2 + $0x8] sm:$0xff]
  %v3423 = vld [vmem:[#allocation2 + $0x10] sm:$0xff]
  %v3424 = vld [vmem:[#allocation2 + $0x18] sm:$0xff]
  %v3425 = vld [vmem:[#allocation2 + $0x20] sm:$0xff]
  %v3426 = vld [vmem:[#allocation2 + $0x28] sm:$0xff]
  %v3427 = vld [vmem:[#allocation2 + $0x30] sm:$0xff]
  %v3428 = vld [vmem:[#allocation2 + $0x38] sm:$0xff]
  %v3429 = vld [vmem:[#allocation2 + $0x40] sm:$0xff]
  %v3430 = vld [vmem:[#allocation2 + $0x48] sm:$0xff]
  %v3431 = vld [vmem:[#allocation2 + $0x50] sm:$0xff]
  %v3432 = vld [vmem:[#allocation2 + $0x58] sm:$0xff]
  %v3433 = vld [vmem:[#allocation2 + $0x60] sm:$0xff]
  %v3434 = vld [vmem:[#allocation2 + $0x68] sm:$0xff]
  %v3435 = vld [vmem:[#allocation2 + $0x70] sm:$0xff]
  %v3436 = vld [vmem:[#allocation2 + $0x78] sm:$0xff]
  %v3437 = vld [vmem:[#allocation2 + $0x80] sm:$0xff]
  %v3438 = vld [vmem:[#allocation2 + $0x88] sm:$0xff]
  %v3439 = vld [vmem:[#allocation2 + $0x90] sm:$0xff]
  %v3440 = vld [vmem:[#allocation2 + $0x98] sm:$0xff]
  %v3441 = vld [vmem:[#allocation2 + $0xa0] sm:$0xff]
  %v3442 = vld [vmem:[#allocation2 + $0xa8] sm:$0xff]
  %v3443 = vld [vmem:[#allocation2 + $0xb0] sm:$0xff]
  %v3444 = vld [vmem:[#allocation2 + $0xb8] sm:$0xff]
  %v3445 = vld [vmem:[#allocation2 + $0xc0] sm:$0xff]
  %s3446 = scalar_lea.vmem %s4, 48
  %v3447 = vld [vmem:[%s3446] sm:$0xff]
  %v3448 = vld [vmem:[%s3446 + $0x8] sm:$0xff]
  %v3450 = vsel %vm69, %v3421, 0
  %v3453 = vsel %vm69, %v3422, 0
  %v3456 = vsel %vm69, %v3423, 0
  %v3459 = vsel %vm69, %v3424, 0
  %v3462 = vsel %vm69, %v3425, 0
  %v3465 = vsel %vm69, %v3426, 0
  %v3468 = vsel %vm69, %v3427, 0
  %v3471 = vsel %vm69, %v3428, 0
  %v3474 = vsel %vm69, %v3429, 0
  %v3477 = vsel %vm69, %v3430, 0
  %v3480 = vsel %vm69, %v3431, 0
  %v3483 = vsel %vm69, %v3432, 0
  %v3486 = vsel %vm69, %v3433, 0
  %v3489 = vsel %vm69, %v3434, 0
  %v3492 = vsel %vm69, %v3435, 0
  %v3495 = vsel %vm69, %v3436, 0
  %v3498 = vsel %vm69, %v3437, 0
  %v3501 = vsel %vm69, %v3438, 0
  %v3504 = vsel %vm69, %v3439, 0
  %v3507 = vsel %vm69, %v3440, 0
  %v3510 = vsel %vm69, %v3441, 0
  %v3513 = vsel %vm69, %v3442, 0
  %v3516 = vsel %vm69, %v3443, 0
  %v3519 = vsel %vm69, %v3444, 0
  %v3522 = vsel %vm69, %v3445, 0
  %3524 = vmatprep.subr.mxu0 0.0
  %3525 = vmatpush1.msra.mxu0 0.0
  %3526 = vmatprep.subr.mxu0 0.0
  %3527 = vmatpush1.msra.mxu0 0.0
  %3528 = vmatprep.subr.mxu0 0.0
  %3529 = vmatpush1.msra.mxu0 0.0
  %3530 = vmatprep.subr.mxu0 0.0
  %3531 = vmatpush1.msra.mxu0 0.0
  %3532 = vmatprep.subr.mxu0 0.0
  %3533 = vmatpush1.msra.mxu0 0.0
  %3534 = vmatprep.subr.mxu0 0.0
  %3535 = vmatpush1.msra.mxu0 0.0
  %3536 = vmatprep.subr.mxu0 0.0
  %3537 = vmatpush1.msra.mxu0 0.0
  %3538 = vmatprep.subr.mxu0 0.0
  %3539 = vmatpush1.msra.mxu0 0.0
  %3540 = vmatprep.subr.mxu0 0.0
  %3541 = vmatpush1.msra.mxu0 0.0
  %3542 = vmatprep.subr.mxu0 0.0
  %3543 = vmatpush1.msra.mxu0 0.0
  %3544 = vmatprep.subr.mxu0 0.0
  %3545 = vmatpush1.msra.mxu0 0.0
  %3546 = vmatprep.subr.mxu0 0.0
  %3547 = vmatpush1.msra.mxu0 0.0
  %3548 = vmatprep.subr.mxu0 0.0
  %3549 = vmatpush1.msra.mxu0 0.0
  %3550 = vmatprep.subr.mxu0 0.0
  %3551 = vmatpush1.msra.mxu0 0.0
  %3552 = vmatprep.subr.mxu0 0.0
  %3553 = vmatpush1.msra.mxu0 %v3448
  %3554 = vmatprep.subr.mxu0 0.0
  %3555 = vmatpush1.msra.mxu0 %v3447
  %3556 = vmatprep.subr.mxu0 0.0
  %3557 = vmatpush2.msra.mxu0 0.0
  %3558 = vmatprep.subr.mxu0 0.0
  %3559 = vmatpush2.msra.mxu0 0.0
  %3560 = vmatprep.subr.mxu0 0.0
  %3561 = vmatpush2.msra.mxu0 0.0
  %3562 = vmatprep.subr.mxu0 0.0
  %3563 = vmatpush2.msra.mxu0 0.0
  %3564 = vmatprep.subr.mxu0 0.0
  %3565 = vmatpush2.msra.mxu0 0.0
  %3566 = vmatprep.subr.mxu0 0.0
  %3567 = vmatpush2.msra.mxu0 0.0
  %3568 = vmatprep.subr.mxu0 0.0
  %3569 = vmatpush2.msra.mxu0 0.0
  %3570 = vmatprep.subr.mxu0 0.0
  %3571 = vmatpush2.msra.mxu0 0.0
  %3572 = vmatprep.subr.mxu0 0.0
  %3573 = vmatpush2.msra.mxu0 0.0
  %3574 = vmatprep.subr.mxu0 0.0
  %3575 = vmatpush2.msra.mxu0 0.0
  %3576 = vmatprep.subr.mxu0 0.0
  %3577 = vmatpush2.msra.mxu0 0.0
  %3578 = vmatprep.subr.mxu0 0.0
  %3579 = vmatpush2.msra.mxu0 0.0
  %3580 = vmatprep.subr.mxu0 0.0
  %3581 = vmatpush2.msra.mxu0 0.0
  %3582 = vmatprep.subr.mxu0 0.0
  %3583 = vmatpush2.msra.mxu0 0.0
  %3584 = vmatprep.subr.mxu0 0.0
  %3585 = vmatpush2.msra.mxu0 0.0
  %3586 = vmatprep.subr.mxu0 0.0
  %3587 = vmatpush2.msra.mxu0 0.0
  %3588 = vmatprep.mubr.f32.mxu0 0.0
  %3589 = vmatmul.mubr.f32.gmra.mxu0 %v3450
  %v3590 = vpop.f32.mrf.mxu0
  %v3591 = vadd.f32 0.0, %v3590
  %v3592 = vpop.f32.mrf.mxu0
  %3593 = vmatprep.mubr.f32.mxu0 0.0
  %3594 = vmatmul.mubr.f32.gmra.mxu0 %v3453
  %v3595 = vpop.f32.mrf.mxu0
  %v3596 = vadd.f32 0.0, %v3595
  %v3597 = vpop.f32.mrf.mxu0
  %3598 = vmatprep.mubr.f32.mxu0 0.0
  %3599 = vmatmul.mubr.f32.gmra.mxu0 %v3456
  %v3600 = vpop.f32.mrf.mxu0
  %v3601 = vadd.f32 0.0, %v3600
  %v3602 = vpop.f32.mrf.mxu0
  %3603 = vmatprep.mubr.f32.mxu0 0.0
  %3604 = vmatmul.mubr.f32.gmra.mxu0 %v3459
  %v3605 = vpop.f32.mrf.mxu0
  %v3606 = vadd.f32 0.0, %v3605
  %v3607 = vpop.f32.mrf.mxu0
  %3608 = vmatprep.mubr.f32.mxu0 0.0
  %3609 = vmatmul.mubr.f32.gmra.mxu0 %v3462
  %v3610 = vpop.f32.mrf.mxu0
  %v3611 = vadd.f32 0.0, %v3610
  %v3612 = vpop.f32.mrf.mxu0
  %3613 = vmatprep.mubr.f32.mxu0 0.0
  %3614 = vmatmul.mubr.f32.gmra.mxu0 %v3465
  %v3615 = vpop.f32.mrf.mxu0
  %v3616 = vadd.f32 0.0, %v3615
  %v3617 = vpop.f32.mrf.mxu0
  %3618 = vmatprep.mubr.f32.mxu0 0.0
  %3619 = vmatmul.mubr.f32.gmra.mxu0 %v3468
  %v3620 = vpop.f32.mrf.mxu0
  %v3621 = vadd.f32 0.0, %v3620
  %v3622 = vpop.f32.mrf.mxu0
  %3623 = vmatprep.mubr.f32.mxu0 0.0
  %3624 = vmatmul.mubr.f32.gmra.mxu0 %v3471
  %v3625 = vpop.f32.mrf.mxu0
  %v3626 = vadd.f32 0.0, %v3625
  %v3627 = vpop.f32.mrf.mxu0
  %3628 = vmatprep.mubr.f32.mxu0 0.0
  %3629 = vmatmul.mubr.f32.gmra.mxu0 %v3474
  %v3630 = vpop.f32.mrf.mxu0
  %v3631 = vadd.f32 0.0, %v3630
  %v3632 = vpop.f32.mrf.mxu0
  %3633 = vmatprep.mubr.f32.mxu0 0.0
  %3634 = vmatmul.mubr.f32.gmra.mxu0 %v3477
  %v3635 = vpop.f32.mrf.mxu0
  %v3636 = vadd.f32 0.0, %v3635
  %v3637 = vpop.f32.mrf.mxu0
  %3638 = vmatprep.mubr.f32.mxu0 0.0
  %3639 = vmatmul.mubr.f32.gmra.mxu0 %v3480
  %v3640 = vpop.f32.mrf.mxu0
  %v3641 = vadd.f32 0.0, %v3640
  %v3642 = vpop.f32.mrf.mxu0
  %3643 = vmatprep.mubr.f32.mxu0 0.0
  %3644 = vmatmul.mubr.f32.gmra.mxu0 %v3483
  %v3645 = vpop.f32.mrf.mxu0
  %v3646 = vadd.f32 0.0, %v3645
  %v3647 = vpop.f32.mrf.mxu0
  %3648 = vmatprep.mubr.f32.mxu0 0.0
  %3649 = vmatmul.mubr.f32.gmra.mxu0 %v3486
  %v3650 = vpop.f32.mrf.mxu0
  %v3651 = vadd.f32 0.0, %v3650
  %v3652 = vpop.f32.mrf.mxu0
  %3653 = vmatprep.mubr.f32.mxu0 0.0
  %3654 = vmatmul.mubr.f32.gmra.mxu0 %v3489
  %v3655 = vpop.f32.mrf.mxu0
  %v3656 = vadd.f32 0.0, %v3655
  %v3657 = vpop.f32.mrf.mxu0
  %3658 = vmatprep.mubr.f32.mxu0 0.0
  %3659 = vmatmul.mubr.f32.gmra.mxu0 %v3492
  %v3660 = vpop.f32.mrf.mxu0
  %v3661 = vadd.f32 0.0, %v3660
  %v3662 = vpop.f32.mrf.mxu0
  %3663 = vmatprep.mubr.f32.mxu0 0.0
  %3664 = vmatmul.mubr.f32.gmra.mxu0 %v3495
  %v3665 = vpop.f32.mrf.mxu0
  %v3666 = vadd.f32 0.0, %v3665
  %v3667 = vpop.f32.mrf.mxu0
  %3668 = vmatprep.mubr.f32.mxu0 0.0
  %3669 = vmatmul.mubr.f32.gmra.mxu0 %v3498
  %v3670 = vpop.f32.mrf.mxu0
  %v3671 = vadd.f32 0.0, %v3670
  %v3672 = vpop.f32.mrf.mxu0
  %3673 = vmatprep.mubr.f32.mxu0 0.0
  %3674 = vmatmul.mubr.f32.gmra.mxu0 %v3501
  %v3675 = vpop.f32.mrf.mxu0
  %v3676 = vadd.f32 0.0, %v3675
  %v3677 = vpop.f32.mrf.mxu0
  %3678 = vmatprep.mubr.f32.mxu0 0.0
  %3679 = vmatmul.mubr.f32.gmra.mxu0 %v3504
  %v3680 = vpop.f32.mrf.mxu0
  %v3681 = vadd.f32 0.0, %v3680
  %v3682 = vpop.f32.mrf.mxu0
  %3683 = vmatprep.mubr.f32.mxu0 0.0
  %3684 = vmatmul.mubr.f32.gmra.mxu0 %v3507
  %v3685 = vpop.f32.mrf.mxu0
  %v3686 = vadd.f32 0.0, %v3685
  %v3687 = vpop.f32.mrf.mxu0
  %3688 = vmatprep.mubr.f32.mxu0 0.0
  %3689 = vmatmul.mubr.f32.gmra.mxu0 %v3510
  %v3690 = vpop.f32.mrf.mxu0
  %v3691 = vadd.f32 0.0, %v3690
  %v3692 = vpop.f32.mrf.mxu0
  %3693 = vmatprep.mubr.f32.mxu0 0.0
  %3694 = vmatmul.mubr.f32.gmra.mxu0 %v3513
  %v3695 = vpop.f32.mrf.mxu0
  %v3696 = vadd.f32 0.0, %v3695
  %v3697 = vpop.f32.mrf.mxu0
  %3698 = vmatprep.mubr.f32.mxu0 0.0
  %3699 = vmatmul.mubr.f32.gmra.mxu0 %v3516
  %v3700 = vpop.f32.mrf.mxu0
  %v3701 = vadd.f32 0.0, %v3700
  %v3702 = vpop.f32.mrf.mxu0
  %3703 = vmatprep.mubr.f32.mxu0 0.0
  %3704 = vmatmul.mubr.f32.gmra.mxu0 %v3519
  %v3705 = vpop.f32.mrf.mxu0
  %v3706 = vadd.f32 0.0, %v3705
  %v3707 = vpop.f32.mrf.mxu0
  %3708 = vmatprep.mubr.f32.mxu0 0.0
  %3709 = vmatmul.mubr.f32.gmra.mxu0 %v3522
  %v3710 = vpop.f32.mrf.mxu0
  %v3711 = vadd.f32 0.0, %v3710
  %v3712 = vpop.f32.mrf.mxu0
  %3713 = vdwg.mxu0
  %v3714 = vld [vmem:[#allocation3] sm:$0xff]
  %v3715 = vld [vmem:[#allocation3 + $0x8] sm:$0xff]
  %v3716 = vld [vmem:[#allocation3 + $0x10] sm:$0xff]
  %v3717 = vld [vmem:[#allocation3 + $0x18] sm:$0xff]
  %v3718 = vld [vmem:[#allocation3 + $0x20] sm:$0xff]
  %v3719 = vld [vmem:[#allocation3 + $0x28] sm:$0xff]
  %v3720 = vld [vmem:[#allocation3 + $0x30] sm:$0xff]
  %v3721 = vld [vmem:[#allocation3 + $0x38] sm:$0xff]
  %v3722 = vld [vmem:[#allocation3 + $0x40] sm:$0xff]
  %v3723 = vld [vmem:[#allocation3 + $0x48] sm:$0xff]
  %v3724 = vld [vmem:[#allocation3 + $0x50] sm:$0xff]
  %v3725 = vld [vmem:[#allocation3 + $0x58] sm:$0xff]
  %v3726 = vld [vmem:[#allocation3 + $0x60] sm:$0xff]
  %v3727 = vld [vmem:[#allocation3 + $0x68] sm:$0xff]
  %v3728 = vld [vmem:[#allocation3 + $0x70] sm:$0xff]
  %v3729 = vld [vmem:[#allocation3 + $0x78] sm:$0xff]
  %v3730 = vld [vmem:[#allocation3 + $0x80] sm:$0xff]
  %v3731 = vld [vmem:[#allocation3 + $0x88] sm:$0xff]
  %v3732 = vld [vmem:[#allocation3 + $0x90] sm:$0xff]
  %v3733 = vld [vmem:[#allocation3 + $0x98] sm:$0xff]
  %v3734 = vld [vmem:[#allocation3 + $0xa0] sm:$0xff]
  %v3735 = vld [vmem:[#allocation3 + $0xa8] sm:$0xff]
  %v3736 = vld [vmem:[#allocation3 + $0xb0] sm:$0xff]
  %v3737 = vld [vmem:[#allocation3 + $0xb8] sm:$0xff]
  %v3738 = vld [vmem:[#allocation3 + $0xc0] sm:$0xff]
  %v3739 = vld [vmem:[#allocation3 + $0xc8] sm:$0xff]
  %v3740 = vld [vmem:[#allocation3 + $0xd0] sm:$0xff]
  %v3741 = vld [vmem:[#allocation3 + $0xd8] sm:$0xff]
  %v3742 = vld [vmem:[#allocation3 + $0xe0] sm:$0xff]
  %v3743 = vld [vmem:[#allocation3 + $0xe8] sm:$0xff]
  %v3744 = vld [vmem:[#allocation3 + $0xf0] sm:$0xff]
  %v3745 = vld [vmem:[#allocation3 + $0xf8] sm:$0xff]
  %v3746 = vld [vmem:[#allocation3 + $0x100] sm:$0xff]
  %v3747 = vld [vmem:[#allocation3 + $0x108] sm:$0xff]
  %v3748 = vld [vmem:[#allocation3 + $0x110] sm:$0xff]
  %v3749 = vld [vmem:[#allocation3 + $0x118] sm:$0xff]
  %v3750 = vld [vmem:[#allocation3 + $0x120] sm:$0xff]
  %v3751 = vld [vmem:[#allocation3 + $0x128] sm:$0xff]
  %v3752 = vld [vmem:[#allocation3 + $0x130] sm:$0xff]
  %v3753 = vld [vmem:[#allocation3 + $0x138] sm:$0xff]
  %v3754 = vld [vmem:[#allocation3 + $0x140] sm:$0xff]
  %v3755 = vld [vmem:[#allocation3 + $0x148] sm:$0xff]
  %v3756 = vld [vmem:[#allocation3 + $0x150] sm:$0xff]
  %v3757 = vld [vmem:[#allocation3 + $0x158] sm:$0xff]
  %v3758 = vld [vmem:[#allocation3 + $0x160] sm:$0xff]
  %v3759 = vld [vmem:[#allocation3 + $0x168] sm:$0xff]
  %v3760 = vld [vmem:[#allocation3 + $0x170] sm:$0xff]
  %v3761 = vld [vmem:[#allocation3 + $0x178] sm:$0xff]
  %v3762 = vld [vmem:[#allocation3 + $0x180] sm:$0xff]
  %s3763 = scalar_lea.vmem %s3, 2352
  %v3764 = vld [vmem:[%s3763] sm:$0xff]
  %v3765 = vld [vmem:[%s3763 + $0x8] sm:$0xff]
  %v3766 = vld [vmem:[%s3763 + $0x10] sm:$0xff]
  %v3767 = vld [vmem:[%s3763 + $0x18] sm:$0xff]
  %v3768 = vld [vmem:[%s3763 + $0x20] sm:$0xff]
  %v3769 = vld [vmem:[%s3763 + $0x28] sm:$0xff]
  %v3770 = vld [vmem:[%s3763 + $0x30] sm:$0xff]
  %v3771 = vld [vmem:[%s3763 + $0x38] sm:$0xff]
  %v3772 = vld [vmem:[%s3763 + $0x40] sm:$0xff]
  %v3773 = vld [vmem:[%s3763 + $0x48] sm:$0xff]
  %v3774 = vld [vmem:[%s3763 + $0x50] sm:$0xff]
  %v3775 = vld [vmem:[%s3763 + $0x58] sm:$0xff]
  %v3776 = vld [vmem:[%s3763 + $0x60] sm:$0xff]
  %v3777 = vld [vmem:[%s3763 + $0x68] sm:$0xff]
  %v3778 = vld [vmem:[%s3763 + $0x70] sm:$0xff]
  %v3779 = vld [vmem:[%s3763 + $0x78] sm:$0xff]
  %v3780 = vld [vmem:[%s3763 + $0x80] sm:$0xff]
  %v3781 = vld [vmem:[%s3763 + $0x88] sm:$0xff]
  %v3782 = vld [vmem:[%s3763 + $0x90] sm:$0xff]
  %v3783 = vld [vmem:[%s3763 + $0x98] sm:$0xff]
  %v3784 = vld [vmem:[%s3763 + $0xa0] sm:$0xff]
  %v3785 = vld [vmem:[%s3763 + $0xa8] sm:$0xff]
  %v3786 = vld [vmem:[%s3763 + $0xb0] sm:$0xff]
  %v3787 = vld [vmem:[%s3763 + $0xb8] sm:$0xff]
  %v3788 = vld [vmem:[%s3763 + $0xc0] sm:$0xff]
  %v3789 = vld [vmem:[%s3763 + $0xc8] sm:$0xff]
  %v3790 = vld [vmem:[%s3763 + $0xd0] sm:$0xff]
  %v3791 = vld [vmem:[%s3763 + $0xd8] sm:$0xff]
  %v3792 = vld [vmem:[%s3763 + $0xe0] sm:$0xff]
  %v3793 = vld [vmem:[%s3763 + $0xe8] sm:$0xff]
  %v3794 = vld [vmem:[%s3763 + $0xf0] sm:$0xff]
  %v3795 = vld [vmem:[%s3763 + $0xf8] sm:$0xff]
  %v3796 = vld [vmem:[%s3763 + $0x100] sm:$0xff]
  %v3797 = vld [vmem:[%s3763 + $0x108] sm:$0xff]
  %v3798 = vld [vmem:[%s3763 + $0x110] sm:$0xff]
  %v3799 = vld [vmem:[%s3763 + $0x118] sm:$0xff]
  %v3800 = vld [vmem:[%s3763 + $0x120] sm:$0xff]
  %v3801 = vld [vmem:[%s3763 + $0x128] sm:$0xff]
  %v3802 = vld [vmem:[%s3763 + $0x130] sm:$0xff]
  %v3803 = vld [vmem:[%s3763 + $0x138] sm:$0xff]
  %v3804 = vld [vmem:[%s3763 + $0x140] sm:$0xff]
  %v3805 = vld [vmem:[%s3763 + $0x148] sm:$0xff]
  %v3806 = vld [vmem:[%s3763 + $0x150] sm:$0xff]
  %v3807 = vld [vmem:[%s3763 + $0x158] sm:$0xff]
  %v3808 = vld [vmem:[%s3763 + $0x160] sm:$0xff]
  %v3809 = vld [vmem:[%s3763 + $0x168] sm:$0xff]
  %v3810 = vld [vmem:[%s3763 + $0x170] sm:$0xff]
  %v3811 = vld [vmem:[%s3763 + $0x178] sm:$0xff]
  %v3812 = vld [vmem:[%s3763 + $0x180] sm:$0xff]
  %v3813 = vld [vmem:[%s3763 + $0x188] sm:$0xff]
  %v3814 = vld [vmem:[%s3763 + $0x190] sm:$0xff]
  %v3815 = vld [vmem:[%s3763 + $0x198] sm:$0xff]
  %v3816 = vld [vmem:[%s3763 + $0x1a0] sm:$0xff]
  %v3817 = vld [vmem:[%s3763 + $0x1a8] sm:$0xff]
  %v3818 = vld [vmem:[%s3763 + $0x1b0] sm:$0xff]
  %v3819 = vld [vmem:[%s3763 + $0x1b8] sm:$0xff]
  %v3820 = vld [vmem:[%s3763 + $0x1c0] sm:$0xff]
  %v3821 = vld [vmem:[%s3763 + $0x1c8] sm:$0xff]
  %v3822 = vld [vmem:[%s3763 + $0x1d0] sm:$0xff]
  %v3823 = vld [vmem:[%s3763 + $0x1d8] sm:$0xff]
  %v3824 = vld [vmem:[%s3763 + $0x1e0] sm:$0xff]
  %v3825 = vld [vmem:[%s3763 + $0x1e8] sm:$0xff]
  %v3826 = vld [vmem:[%s3763 + $0x1f0] sm:$0xff]
  %v3827 = vld [vmem:[%s3763 + $0x1f8] sm:$0xff]
  %v3828 = vld [vmem:[%s3763 + $0x200] sm:$0xff]
  %v3829 = vld [vmem:[%s3763 + $0x208] sm:$0xff]
  %v3830 = vld [vmem:[%s3763 + $0x210] sm:$0xff]
  %v3831 = vld [vmem:[%s3763 + $0x218] sm:$0xff]
  %v3832 = vld [vmem:[%s3763 + $0x220] sm:$0xff]
  %v3833 = vld [vmem:[%s3763 + $0x228] sm:$0xff]
  %v3834 = vld [vmem:[%s3763 + $0x230] sm:$0xff]
  %v3835 = vld [vmem:[%s3763 + $0x238] sm:$0xff]
  %v3836 = vld [vmem:[%s3763 + $0x240] sm:$0xff]
  %v3837 = vld [vmem:[%s3763 + $0x248] sm:$0xff]
  %v3838 = vld [vmem:[%s3763 + $0x250] sm:$0xff]
  %v3839 = vld [vmem:[%s3763 + $0x258] sm:$0xff]
  %v3840 = vld [vmem:[%s3763 + $0x260] sm:$0xff]
  %v3841 = vld [vmem:[%s3763 + $0x268] sm:$0xff]
  %v3842 = vld [vmem:[%s3763 + $0x270] sm:$0xff]
  %v3843 = vld [vmem:[%s3763 + $0x278] sm:$0xff]
  %v3844 = vld [vmem:[%s3763 + $0x280] sm:$0xff]
  %v3845 = vld [vmem:[%s3763 + $0x288] sm:$0xff]
  %v3846 = vld [vmem:[%s3763 + $0x290] sm:$0xff]
  %v3847 = vld [vmem:[%s3763 + $0x298] sm:$0xff]
  %v3848 = vld [vmem:[%s3763 + $0x2a0] sm:$0xff]
  %v3849 = vld [vmem:[%s3763 + $0x2a8] sm:$0xff]
  %v3850 = vld [vmem:[%s3763 + $0x2b0] sm:$0xff]
  %v3851 = vld [vmem:[%s3763 + $0x2b8] sm:$0xff]
  %v3852 = vld [vmem:[%s3763 + $0x2c0] sm:$0xff]
  %v3853 = vld [vmem:[%s3763 + $0x2c8] sm:$0xff]
  %v3854 = vld [vmem:[%s3763 + $0x2d0] sm:$0xff]
  %v3855 = vld [vmem:[%s3763 + $0x2d8] sm:$0xff]
  %v3856 = vld [vmem:[%s3763 + $0x2e0] sm:$0xff]
  %v3857 = vld [vmem:[%s3763 + $0x2e8] sm:$0xff]
  %v3858 = vld [vmem:[%s3763 + $0x2f0] sm:$0xff]
  %v3859 = vld [vmem:[%s3763 + $0x2f8] sm:$0xff]
  %v3860 = vld [vmem:[%s3763 + $0x300] sm:$0xff]
  %v3861 = vld [vmem:[%s3763 + $0x308] sm:$0xff]
  %v3863 = vsel %vm873, %v3765, 0
  %v3866 = vsel %vm873, %v3767, 0
  %v3869 = vsel %vm873, %v3769, 0
  %v3872 = vsel %vm873, %v3771, 0
  %v3875 = vsel %vm873, %v3773, 0
  %v3878 = vsel %vm873, %v3775, 0
  %v3881 = vsel %vm873, %v3777, 0
  %v3884 = vsel %vm873, %v3779, 0
  %v3887 = vsel %vm873, %v3781, 0
  %v3890 = vsel %vm873, %v3783, 0
  %v3893 = vsel %vm873, %v3785, 0
  %v3896 = vsel %vm873, %v3787, 0
  %v3899 = vsel %vm873, %v3789, 0
  %v3902 = vsel %vm873, %v3791, 0
  %v3905 = vsel %vm873, %v3793, 0
  %v3908 = vsel %vm873, %v3795, 0
  %v3911 = vsel %vm873, %v3797, 0
  %v3914 = vsel %vm873, %v3799, 0
  %v3917 = vsel %vm873, %v3801, 0
  %v3920 = vsel %vm873, %v3803, 0
  %v3923 = vsel %vm873, %v3805, 0
  %v3926 = vsel %vm873, %v3807, 0
  %v3929 = vsel %vm873, %v3809, 0
  %v3932 = vsel %vm873, %v3811, 0
  %v3935 = vsel %vm873, %v3813, 0
  %v3938 = vsel %vm873, %v3815, 0
  %v3941 = vsel %vm873, %v3817, 0
  %v3944 = vsel %vm873, %v3819, 0
  %v3947 = vsel %vm873, %v3821, 0
  %v3950 = vsel %vm873, %v3823, 0
  %v3953 = vsel %vm873, %v3825, 0
  %v3956 = vsel %vm873, %v3827, 0
  %v3959 = vsel %vm873, %v3829, 0
  %v3962 = vsel %vm873, %v3831, 0
  %v3965 = vsel %vm873, %v3833, 0
  %v3968 = vsel %vm873, %v3835, 0
  %v3971 = vsel %vm873, %v3837, 0
  %v3974 = vsel %vm873, %v3839, 0
  %v3977 = vsel %vm873, %v3841, 0
  %v3980 = vsel %vm873, %v3843, 0
  %v3983 = vsel %vm873, %v3845, 0
  %v3986 = vsel %vm873, %v3847, 0
  %v3989 = vsel %vm873, %v3849, 0
  %v3992 = vsel %vm873, %v3851, 0
  %v3995 = vsel %vm873, %v3853, 0
  %v3998 = vsel %vm873, %v3855, 0
  %v4001 = vsel %vm873, %v3857, 0
  %v4004 = vsel %vm873, %v3859, 0
  %v4007 = vsel %vm873, %v3861, 0
  %4009 = vmatprep.subr.mxu0 0.0
  %4010 = vmatpush1.msra.mxu0 %v3666
  %4011 = vmatprep.subr.mxu0 0.0
  %4012 = vmatpush1.msra.mxu0 %v3661
  %4013 = vmatprep.subr.mxu0 0.0
  %4014 = vmatpush1.msra.mxu0 %v3656
  %4015 = vmatprep.subr.mxu0 0.0
  %4016 = vmatpush1.msra.mxu0 %v3651
  %4017 = vmatprep.subr.mxu0 0.0
  %4018 = vmatpush1.msra.mxu0 %v3646
  %4019 = vmatprep.subr.mxu0 0.0
  %4020 = vmatpush1.msra.mxu0 %v3641
  %4021 = vmatprep.subr.mxu0 0.0
  %4022 = vmatpush1.msra.mxu0 %v3636
  %4023 = vmatprep.subr.mxu0 0.0
  %4024 = vmatpush1.msra.mxu0 %v3631
  %4025 = vmatprep.subr.mxu0 0.0
  %4026 = vmatpush1.msra.mxu0 %v3626
  %4027 = vmatprep.subr.mxu0 0.0
  %4028 = vmatpush1.msra.mxu0 %v3621
  %4029 = vmatprep.subr.mxu0 0.0
  %4030 = vmatpush1.msra.mxu0 %v3616
  %4031 = vmatprep.subr.mxu0 0.0
  %4032 = vmatpush1.msra.mxu0 %v3611
  %4033 = vmatprep.subr.mxu0 0.0
  %4034 = vmatpush1.msra.mxu0 %v3606
  %4035 = vmatprep.subr.mxu0 0.0
  %4036 = vmatpush1.msra.mxu0 %v3601
  %4037 = vmatprep.subr.mxu0 0.0
  %4038 = vmatpush1.msra.mxu0 %v3596
  %4039 = vmatprep.subr.mxu0 0.0
  %4040 = vmatpush1.msra.mxu0 %v3591
  %4041 = vmatprep.subr.mxu0 0.0
  %4042 = vmatpush2.msra.mxu0 0.0
  %4043 = vmatprep.subr.mxu0 0.0
  %4044 = vmatpush2.msra.mxu0 0.0
  %4045 = vmatprep.subr.mxu0 0.0
  %4046 = vmatpush2.msra.mxu0 0.0
  %4047 = vmatprep.subr.mxu0 0.0
  %4048 = vmatpush2.msra.mxu0 0.0
  %4049 = vmatprep.subr.mxu0 0.0
  %4050 = vmatpush2.msra.mxu0 0.0
  %4051 = vmatprep.subr.mxu0 0.0
  %4052 = vmatpush2.msra.mxu0 0.0
  %4053 = vmatprep.subr.mxu0 0.0
  %4054 = vmatpush2.msra.mxu0 0.0
  %4055 = vmatprep.subr.mxu0 0.0
  %4056 = vmatpush2.msra.mxu0 %v3711
  %4057 = vmatprep.subr.mxu0 0.0
  %4058 = vmatpush2.msra.mxu0 %v3706
  %4059 = vmatprep.subr.mxu0 0.0
  %4060 = vmatpush2.msra.mxu0 %v3701
  %4061 = vmatprep.subr.mxu0 0.0
  %4062 = vmatpush2.msra.mxu0 %v3696
  %4063 = vmatprep.subr.mxu0 0.0
  %4064 = vmatpush2.msra.mxu0 %v3691
  %4065 = vmatprep.subr.mxu0 0.0
  %4066 = vmatpush2.msra.mxu0 %v3686
  %4067 = vmatprep.subr.mxu0 0.0
  %4068 = vmatpush2.msra.mxu0 %v3681
  %4069 = vmatprep.subr.mxu0 0.0
  %4070 = vmatpush2.msra.mxu0 %v3676
  %4071 = vmatprep.subr.mxu0 0.0
  %4072 = vmatpush2.msra.mxu0 %v3671
  %4073 = vmatprep.mubr.f32.mxu0 %v3863
  %4074 = vmatmul.mubr.f32.gmra.mxu0 %v3764
  %v4075 = vpop.f32.mrf.mxu0
  %v4076 = vadd.f32 0.0, %v4075
  %v4077 = vpop.f32.mrf.mxu0
  %4078 = vmatprep.mubr.f32.mxu0 %v3866
  %4079 = vmatmul.mubr.f32.gmra.mxu0 %v3766
  %v4080 = vpop.f32.mrf.mxu0
  %v4081 = vadd.f32 0.0, %v4080
  %v4082 = vpop.f32.mrf.mxu0
  %4083 = vmatprep.mubr.f32.mxu0 %v3869
  %4084 = vmatmul.mubr.f32.gmra.mxu0 %v3768
  %v4085 = vpop.f32.mrf.mxu0
  %v4086 = vadd.f32 0.0, %v4085
  %v4087 = vpop.f32.mrf.mxu0
  %4088 = vmatprep.mubr.f32.mxu0 %v3872
  %4089 = vmatmul.mubr.f32.gmra.mxu0 %v3770
  %v4090 = vpop.f32.mrf.mxu0
  %v4091 = vadd.f32 0.0, %v4090
  %v4092 = vpop.f32.mrf.mxu0
  %4093 = vmatprep.mubr.f32.mxu0 %v3875
  %4094 = vmatmul.mubr.f32.gmra.mxu0 %v3772
  %v4095 = vpop.f32.mrf.mxu0
  %v4096 = vadd.f32 0.0, %v4095
  %v4097 = vpop.f32.mrf.mxu0
  %4098 = vmatprep.mubr.f32.mxu0 %v3878
  %4099 = vmatmul.mubr.f32.gmra.mxu0 %v3774
  %v4100 = vpop.f32.mrf.mxu0
  %v4101 = vadd.f32 0.0, %v4100
  %v4102 = vpop.f32.mrf.mxu0
  %4103 = vmatprep.mubr.f32.mxu0 %v3881
  %4104 = vmatmul.mubr.f32.gmra.mxu0 %v3776
  %v4105 = vpop.f32.mrf.mxu0
  %v4106 = vadd.f32 0.0, %v4105
  %v4107 = vpop.f32.mrf.mxu0
  %4108 = vmatprep.mubr.f32.mxu0 %v3884
  %4109 = vmatmul.mubr.f32.gmra.mxu0 %v3778
  %v4110 = vpop.f32.mrf.mxu0
  %v4111 = vadd.f32 0.0, %v4110
  %v4112 = vpop.f32.mrf.mxu0
  %4113 = vmatprep.mubr.f32.mxu0 %v3887
  %4114 = vmatmul.mubr.f32.gmra.mxu0 %v3780
  %v4115 = vpop.f32.mrf.mxu0
  %v4116 = vadd.f32 0.0, %v4115
  %v4117 = vpop.f32.mrf.mxu0
  %4118 = vmatprep.mubr.f32.mxu0 %v3890
  %4119 = vmatmul.mubr.f32.gmra.mxu0 %v3782
  %v4120 = vpop.f32.mrf.mxu0
  %v4121 = vadd.f32 0.0, %v4120
  %v4122 = vpop.f32.mrf.mxu0
  %4123 = vmatprep.mubr.f32.mxu0 %v3893
  %4124 = vmatmul.mubr.f32.gmra.mxu0 %v3784
  %v4125 = vpop.f32.mrf.mxu0
  %v4126 = vadd.f32 0.0, %v4125
  %v4127 = vpop.f32.mrf.mxu0
  %4128 = vmatprep.mubr.f32.mxu0 %v3896
  %4129 = vmatmul.mubr.f32.gmra.mxu0 %v3786
  %v4130 = vpop.f32.mrf.mxu0
  %v4131 = vadd.f32 0.0, %v4130
  %v4132 = vpop.f32.mrf.mxu0
  %4133 = vmatprep.mubr.f32.mxu0 %v3899
  %4134 = vmatmul.mubr.f32.gmra.mxu0 %v3788
  %v4135 = vpop.f32.mrf.mxu0
  %v4136 = vadd.f32 0.0, %v4135
  %v4137 = vpop.f32.mrf.mxu0
  %4138 = vmatprep.mubr.f32.mxu0 %v3902
  %4139 = vmatmul.mubr.f32.gmra.mxu0 %v3790
  %v4140 = vpop.f32.mrf.mxu0
  %v4141 = vadd.f32 0.0, %v4140
  %v4142 = vpop.f32.mrf.mxu0
  %4143 = vmatprep.mubr.f32.mxu0 %v3905
  %4144 = vmatmul.mubr.f32.gmra.mxu0 %v3792
  %v4145 = vpop.f32.mrf.mxu0
  %v4146 = vadd.f32 0.0, %v4145
  %v4147 = vpop.f32.mrf.mxu0
  %4148 = vmatprep.mubr.f32.mxu0 %v3908
  %4149 = vmatmul.mubr.f32.gmra.mxu0 %v3794
  %v4150 = vpop.f32.mrf.mxu0
  %v4151 = vadd.f32 0.0, %v4150
  %v4152 = vpop.f32.mrf.mxu0
  %4153 = vmatprep.mubr.f32.mxu0 %v3911
  %4154 = vmatmul.mubr.f32.gmra.mxu0 %v3796
  %v4155 = vpop.f32.mrf.mxu0
  %v4156 = vadd.f32 0.0, %v4155
  %v4157 = vpop.f32.mrf.mxu0
  %4158 = vmatprep.mubr.f32.mxu0 %v3914
  %4159 = vmatmul.mubr.f32.gmra.mxu0 %v3798
  %v4160 = vpop.f32.mrf.mxu0
  %v4161 = vadd.f32 0.0, %v4160
  %v4162 = vpop.f32.mrf.mxu0
  %4163 = vmatprep.mubr.f32.mxu0 %v3917
  %4164 = vmatmul.mubr.f32.gmra.mxu0 %v3800
  %v4165 = vpop.f32.mrf.mxu0
  %v4166 = vadd.f32 0.0, %v4165
  %v4167 = vpop.f32.mrf.mxu0
  %4168 = vmatprep.mubr.f32.mxu0 %v3920
  %4169 = vmatmul.mubr.f32.gmra.mxu0 %v3802
  %v4170 = vpop.f32.mrf.mxu0
  %v4171 = vadd.f32 0.0, %v4170
  %v4172 = vpop.f32.mrf.mxu0
  %4173 = vmatprep.mubr.f32.mxu0 %v3923
  %4174 = vmatmul.mubr.f32.gmra.mxu0 %v3804
  %v4175 = vpop.f32.mrf.mxu0
  %v4176 = vadd.f32 0.0, %v4175
  %v4177 = vpop.f32.mrf.mxu0
  %4178 = vmatprep.mubr.f32.mxu0 %v3926
  %4179 = vmatmul.mubr.f32.gmra.mxu0 %v3806
  %v4180 = vpop.f32.mrf.mxu0
  %v4181 = vadd.f32 0.0, %v4180
  %v4182 = vpop.f32.mrf.mxu0
  %4183 = vmatprep.mubr.f32.mxu0 %v3929
  %4184 = vmatmul.mubr.f32.gmra.mxu0 %v3808
  %v4185 = vpop.f32.mrf.mxu0
  %v4186 = vadd.f32 0.0, %v4185
  %v4187 = vpop.f32.mrf.mxu0
  %4188 = vmatprep.mubr.f32.mxu0 %v3932
  %4189 = vmatmul.mubr.f32.gmra.mxu0 %v3810
  %v4190 = vpop.f32.mrf.mxu0
  %v4191 = vadd.f32 0.0, %v4190
  %v4192 = vpop.f32.mrf.mxu0
  %4193 = vmatprep.mubr.f32.mxu0 %v3935
  %4194 = vmatmul.mubr.f32.gmra.mxu0 %v3812
  %v4195 = vpop.f32.mrf.mxu0
  %v4196 = vadd.f32 0.0, %v4195
  %v4197 = vpop.f32.mrf.mxu0
  %4198 = vmatprep.mubr.f32.mxu0 %v3938
  %4199 = vmatmul.mubr.f32.gmra.mxu0 %v3814
  %v4200 = vpop.f32.mrf.mxu0
  %v4201 = vadd.f32 0.0, %v4200
  %v4202 = vpop.f32.mrf.mxu0
  %4203 = vmatprep.mubr.f32.mxu0 %v3941
  %4204 = vmatmul.mubr.f32.gmra.mxu0 %v3816
  %v4205 = vpop.f32.mrf.mxu0
  %v4206 = vadd.f32 0.0, %v4205
  %v4207 = vpop.f32.mrf.mxu0
  %4208 = vmatprep.mubr.f32.mxu0 %v3944
  %4209 = vmatmul.mubr.f32.gmra.mxu0 %v3818
  %v4210 = vpop.f32.mrf.mxu0
  %v4211 = vadd.f32 0.0, %v4210
  %v4212 = vpop.f32.mrf.mxu0
  %4213 = vmatprep.mubr.f32.mxu0 %v3947
  %4214 = vmatmul.mubr.f32.gmra.mxu0 %v3820
  %v4215 = vpop.f32.mrf.mxu0
  %v4216 = vadd.f32 0.0, %v4215
  %v4217 = vpop.f32.mrf.mxu0
  %4218 = vmatprep.mubr.f32.mxu0 %v3950
  %4219 = vmatmul.mubr.f32.gmra.mxu0 %v3822
  %v4220 = vpop.f32.mrf.mxu0
  %v4221 = vadd.f32 0.0, %v4220
  %v4222 = vpop.f32.mrf.mxu0
  %4223 = vmatprep.mubr.f32.mxu0 %v3953
  %4224 = vmatmul.mubr.f32.gmra.mxu0 %v3824
  %v4225 = vpop.f32.mrf.mxu0
  %v4226 = vadd.f32 0.0, %v4225
  %v4227 = vpop.f32.mrf.mxu0
  %4228 = vmatprep.mubr.f32.mxu0 %v3956
  %4229 = vmatmul.mubr.f32.gmra.mxu0 %v3826
  %v4230 = vpop.f32.mrf.mxu0
  %v4231 = vadd.f32 0.0, %v4230
  %v4232 = vpop.f32.mrf.mxu0
  %4233 = vmatprep.mubr.f32.mxu0 %v3959
  %4234 = vmatmul.mubr.f32.gmra.mxu0 %v3828
  %v4235 = vpop.f32.mrf.mxu0
  %v4236 = vadd.f32 0.0, %v4235
  %v4237 = vpop.f32.mrf.mxu0
  %4238 = vmatprep.mubr.f32.mxu0 %v3962
  %4239 = vmatmul.mubr.f32.gmra.mxu0 %v3830
  %v4240 = vpop.f32.mrf.mxu0
  %v4241 = vadd.f32 0.0, %v4240
  %v4242 = vpop.f32.mrf.mxu0
  %4243 = vmatprep.mubr.f32.mxu0 %v3965
  %4244 = vmatmul.mubr.f32.gmra.mxu0 %v3832
  %v4245 = vpop.f32.mrf.mxu0
  %v4246 = vadd.f32 0.0, %v4245
  %v4247 = vpop.f32.mrf.mxu0
  %4248 = vmatprep.mubr.f32.mxu0 %v3968
  %4249 = vmatmul.mubr.f32.gmra.mxu0 %v3834
  %v4250 = vpop.f32.mrf.mxu0
  %v4251 = vadd.f32 0.0, %v4250
  %v4252 = vpop.f32.mrf.mxu0
  %4253 = vmatprep.mubr.f32.mxu0 %v3971
  %4254 = vmatmul.mubr.f32.gmra.mxu0 %v3836
  %v4255 = vpop.f32.mrf.mxu0
  %v4256 = vadd.f32 0.0, %v4255
  %v4257 = vpop.f32.mrf.mxu0
  %4258 = vmatprep.mubr.f32.mxu0 %v3974
  %4259 = vmatmul.mubr.f32.gmra.mxu0 %v3838
  %v4260 = vpop.f32.mrf.mxu0
  %v4261 = vadd.f32 0.0, %v4260
  %v4262 = vpop.f32.mrf.mxu0
  %4263 = vmatprep.mubr.f32.mxu0 %v3977
  %4264 = vmatmul.mubr.f32.gmra.mxu0 %v3840
  %v4265 = vpop.f32.mrf.mxu0
  %v4266 = vadd.f32 0.0, %v4265
  %v4267 = vpop.f32.mrf.mxu0
  %4268 = vmatprep.mubr.f32.mxu0 %v3980
  %4269 = vmatmul.mubr.f32.gmra.mxu0 %v3842
  %v4270 = vpop.f32.mrf.mxu0
  %v4271 = vadd.f32 0.0, %v4270
  %v4272 = vpop.f32.mrf.mxu0
  %4273 = vmatprep.mubr.f32.mxu0 %v3983
  %4274 = vmatmul.mubr.f32.gmra.mxu0 %v3844
  %v4275 = vpop.f32.mrf.mxu0
  %v4276 = vadd.f32 0.0, %v4275
  %v4277 = vpop.f32.mrf.mxu0
  %4278 = vmatprep.mubr.f32.mxu0 %v3986
  %4279 = vmatmul.mubr.f32.gmra.mxu0 %v3846
  %v4280 = vpop.f32.mrf.mxu0
  %v4281 = vadd.f32 0.0, %v4280
  %v4282 = vpop.f32.mrf.mxu0
  %4283 = vmatprep.mubr.f32.mxu0 %v3989
  %4284 = vmatmul.mubr.f32.gmra.mxu0 %v3848
  %v4285 = vpop.f32.mrf.mxu0
  %v4286 = vadd.f32 0.0, %v4285
  %v4287 = vpop.f32.mrf.mxu0
  %4288 = vmatprep.mubr.f32.mxu0 %v3992
  %4289 = vmatmul.mubr.f32.gmra.mxu0 %v3850
  %v4290 = vpop.f32.mrf.mxu0
  %v4291 = vadd.f32 0.0, %v4290
  %v4292 = vpop.f32.mrf.mxu0
  %4293 = vmatprep.mubr.f32.mxu0 %v3995
  %4294 = vmatmul.mubr.f32.gmra.mxu0 %v3852
  %v4295 = vpop.f32.mrf.mxu0
  %v4296 = vadd.f32 0.0, %v4295
  %v4297 = vpop.f32.mrf.mxu0
  %4298 = vmatprep.mubr.f32.mxu0 %v3998
  %4299 = vmatmul.mubr.f32.gmra.mxu0 %v3854
  %v4300 = vpop.f32.mrf.mxu0
  %v4301 = vadd.f32 0.0, %v4300
  %v4302 = vpop.f32.mrf.mxu0
  %4303 = vmatprep.mubr.f32.mxu0 %v4001
  %4304 = vmatmul.mubr.f32.gmra.mxu0 %v3856
  %v4305 = vpop.f32.mrf.mxu0
  %v4306 = vadd.f32 0.0, %v4305
  %v4307 = vpop.f32.mrf.mxu0
  %4308 = vmatprep.mubr.f32.mxu0 %v4004
  %4309 = vmatmul.mubr.f32.gmra.mxu0 %v3858
  %v4310 = vpop.f32.mrf.mxu0
  %v4311 = vadd.f32 0.0, %v4310
  %v4312 = vpop.f32.mrf.mxu0
  %4313 = vmatprep.mubr.f32.mxu0 %v4007
  %4314 = vmatmul.mubr.f32.gmra.mxu0 %v3860
  %v4315 = vpop.f32.mrf.mxu0
  %v4316 = vadd.f32 0.0, %v4315
  %v4317 = vpop.f32.mrf.mxu0
  %4318 = vdwg.mxu0
  %v4319 = vadd.f32 %v3714, %v4076
  %v4320 = vadd.f32 %v3715, %v4081
  %v4321 = vadd.f32 %v3716, %v4086
  %v4322 = vadd.f32 %v3717, %v4091
  %v4323 = vadd.f32 %v3718, %v4096
  %v4324 = vadd.f32 %v3719, %v4101
  %v4325 = vadd.f32 %v3720, %v4106
  %v4326 = vadd.f32 %v3721, %v4111
  %v4327 = vadd.f32 %v3722, %v4116
  %v4328 = vadd.f32 %v3723, %v4121
  %v4329 = vadd.f32 %v3724, %v4126
  %v4330 = vadd.f32 %v3725, %v4131
  %v4331 = vadd.f32 %v3726, %v4136
  %v4332 = vadd.f32 %v3727, %v4141
  %v4333 = vadd.f32 %v3728, %v4146
  %v4334 = vadd.f32 %v3729, %v4151
  %v4335 = vadd.f32 %v3730, %v4156
  %v4336 = vadd.f32 %v3731, %v4161
  %v4337 = vadd.f32 %v3732, %v4166
  %v4338 = vadd.f32 %v3733, %v4171
  %v4339 = vadd.f32 %v3734, %v4176
  %v4340 = vadd.f32 %v3735, %v4181
  %v4341 = vadd.f32 %v3736, %v4186
  %v4342 = vadd.f32 %v3737, %v4191
  %v4343 = vadd.f32 %v3738, %v4196
  %v4344 = vadd.f32 %v3739, %v4201
  %v4345 = vadd.f32 %v3740, %v4206
  %v4346 = vadd.f32 %v3741, %v4211
  %v4347 = vadd.f32 %v3742, %v4216
  %v4348 = vadd.f32 %v3743, %v4221
  %v4349 = vadd.f32 %v3744, %v4226
  %v4350 = vadd.f32 %v3745, %v4231
  %v4351 = vadd.f32 %v3746, %v4236
  %v4352 = vadd.f32 %v3747, %v4241
  %v4353 = vadd.f32 %v3748, %v4246
  %v4354 = vadd.f32 %v3749, %v4251
  %v4355 = vadd.f32 %v3750, %v4256
  %v4356 = vadd.f32 %v3751, %v4261
  %v4357 = vadd.f32 %v3752, %v4266
  %v4358 = vadd.f32 %v3753, %v4271
  %v4359 = vadd.f32 %v3754, %v4276
  %v4360 = vadd.f32 %v3755, %v4281
  %v4361 = vadd.f32 %v3756, %v4286
  %v4362 = vadd.f32 %v3757, %v4291
  %v4363 = vadd.f32 %v3758, %v4296
  %v4364 = vadd.f32 %v3759, %v4301
  %v4365 = vadd.f32 %v3760, %v4306
  %v4366 = vadd.f32 %v3761, %v4311
  %v4367 = vadd.f32 %v3762, %v4316
  %4368 = vst.msk [vmem:[#allocation3] sm:$0xff] %vm69, %v4319
  %4369 = vst.msk [vmem:[#allocation3 + $0x8] sm:$0xff] %vm69, %v4320
  %4370 = vst.msk [vmem:[#allocation3 + $0x10] sm:$0xff] %vm69, %v4321
  %4371 = vst.msk [vmem:[#allocation3 + $0x18] sm:$0xff] %vm69, %v4322
  %4372 = vst.msk [vmem:[#allocation3 + $0x20] sm:$0xff] %vm69, %v4323
  %4373 = vst.msk [vmem:[#allocation3 + $0x28] sm:$0xff] %vm69, %v4324
  %4374 = vst.msk [vmem:[#allocation3 + $0x30] sm:$0xff] %vm69, %v4325
  %4375 = vst.msk [vmem:[#allocation3 + $0x38] sm:$0xff] %vm69, %v4326
  %4376 = vst.msk [vmem:[#allocation3 + $0x40] sm:$0xff] %vm69, %v4327
  %4377 = vst.msk [vmem:[#allocation3 + $0x48] sm:$0xff] %vm69, %v4328
  %4378 = vst.msk [vmem:[#allocation3 + $0x50] sm:$0xff] %vm69, %v4329
  %4379 = vst.msk [vmem:[#allocation3 + $0x58] sm:$0xff] %vm69, %v4330
  %4380 = vst.msk [vmem:[#allocation3 + $0x60] sm:$0xff] %vm69, %v4331
  %4381 = vst.msk [vmem:[#allocation3 + $0x68] sm:$0xff] %vm69, %v4332
  %4382 = vst.msk [vmem:[#allocation3 + $0x70] sm:$0xff] %vm69, %v4333
  %4383 = vst.msk [vmem:[#allocation3 + $0x78] sm:$0xff] %vm69, %v4334
  %4384 = vst.msk [vmem:[#allocation3 + $0x80] sm:$0xff] %vm69, %v4335
  %4385 = vst.msk [vmem:[#allocation3 + $0x88] sm:$0xff] %vm69, %v4336
  %4386 = vst.msk [vmem:[#allocation3 + $0x90] sm:$0xff] %vm69, %v4337
  %4387 = vst.msk [vmem:[#allocation3 + $0x98] sm:$0xff] %vm69, %v4338
  %4388 = vst.msk [vmem:[#allocation3 + $0xa0] sm:$0xff] %vm69, %v4339
  %4389 = vst.msk [vmem:[#allocation3 + $0xa8] sm:$0xff] %vm69, %v4340
  %4390 = vst.msk [vmem:[#allocation3 + $0xb0] sm:$0xff] %vm69, %v4341
  %4391 = vst.msk [vmem:[#allocation3 + $0xb8] sm:$0xff] %vm69, %v4342
  %4392 = vst.msk [vmem:[#allocation3 + $0xc0] sm:$0xff] %vm69, %v4343
  %4393 = vst.msk [vmem:[#allocation3 + $0xc8] sm:$0xff] %vm69, %v4344
  %4394 = vst.msk [vmem:[#allocation3 + $0xd0] sm:$0xff] %vm69, %v4345
  %4395 = vst.msk [vmem:[#allocation3 + $0xd8] sm:$0xff] %vm69, %v4346
  %4396 = vst.msk [vmem:[#allocation3 + $0xe0] sm:$0xff] %vm69, %v4347
  %4397 = vst.msk [vmem:[#allocation3 + $0xe8] sm:$0xff] %vm69, %v4348
  %4398 = vst.msk [vmem:[#allocation3 + $0xf0] sm:$0xff] %vm69, %v4349
  %4399 = vst.msk [vmem:[#allocation3 + $0xf8] sm:$0xff] %vm69, %v4350
  %4400 = vst.msk [vmem:[#allocation3 + $0x100] sm:$0xff] %vm69, %v4351
  %4401 = vst.msk [vmem:[#allocation3 + $0x108] sm:$0xff] %vm69, %v4352
  %4402 = vst.msk [vmem:[#allocation3 + $0x110] sm:$0xff] %vm69, %v4353
  %4403 = vst.msk [vmem:[#allocation3 + $0x118] sm:$0xff] %vm69, %v4354
  %4404 = vst.msk [vmem:[#allocation3 + $0x120] sm:$0xff] %vm69, %v4355
  %4405 = vst.msk [vmem:[#allocation3 + $0x128] sm:$0xff] %vm69, %v4356
  %4406 = vst.msk [vmem:[#allocation3 + $0x130] sm:$0xff] %vm69, %v4357
  %4407 = vst.msk [vmem:[#allocation3 + $0x138] sm:$0xff] %vm69, %v4358
  %4408 = vst.msk [vmem:[#allocation3 + $0x140] sm:$0xff] %vm69, %v4359
  %4409 = vst.msk [vmem:[#allocation3 + $0x148] sm:$0xff] %vm69, %v4360
  %4410 = vst.msk [vmem:[#allocation3 + $0x150] sm:$0xff] %vm69, %v4361
  %4411 = vst.msk [vmem:[#allocation3 + $0x158] sm:$0xff] %vm69, %v4362
  %4412 = vst.msk [vmem:[#allocation3 + $0x160] sm:$0xff] %vm69, %v4363
  %4413 = vst.msk [vmem:[#allocation3 + $0x168] sm:$0xff] %vm69, %v4364
  %4414 = vst.msk [vmem:[#allocation3 + $0x170] sm:$0xff] %vm69, %v4365
  %4415 = vst.msk [vmem:[#allocation3 + $0x178] sm:$0xff] %vm69, %v4366
  %4416 = vst.msk [vmem:[#allocation3 + $0x180] sm:$0xff] %vm69, %v4367
  %v4417 = vld [vmem:[#allocation3] sm:$0xff]
  %v4418 = vld [vmem:[#allocation3 + $0x8] sm:$0xff]
  %v4419 = vld [vmem:[#allocation3 + $0x10] sm:$0xff]
  %v4420 = vld [vmem:[#allocation3 + $0x18] sm:$0xff]
  %v4421 = vld [vmem:[#allocation3 + $0x20] sm:$0xff]
  %v4422 = vld [vmem:[#allocation3 + $0x28] sm:$0xff]
  %v4423 = vld [vmem:[#allocation3 + $0x30] sm:$0xff]
  %v4424 = vld [vmem:[#allocation3 + $0x38] sm:$0xff]
  %v4425 = vld [vmem:[#allocation3 + $0x40] sm:$0xff]
  %v4426 = vld [vmem:[#allocation3 + $0x48] sm:$0xff]
  %v4427 = vld [vmem:[#allocation3 + $0x50] sm:$0xff]
  %v4428 = vld [vmem:[#allocation3 + $0x58] sm:$0xff]
  %v4429 = vld [vmem:[#allocation3 + $0x60] sm:$0xff]
  %v4430 = vld [vmem:[#allocation3 + $0x68] sm:$0xff]
  %v4431 = vld [vmem:[#allocation3 + $0x70] sm:$0xff]
  %v4432 = vld [vmem:[#allocation3 + $0x78] sm:$0xff]
  %v4433 = vld [vmem:[#allocation3 + $0x80] sm:$0xff]
  %v4434 = vld [vmem:[#allocation3 + $0x88] sm:$0xff]
  %v4435 = vld [vmem:[#allocation3 + $0x90] sm:$0xff]
  %v4436 = vld [vmem:[#allocation3 + $0x98] sm:$0xff]
  %v4437 = vld [vmem:[#allocation3 + $0xa0] sm:$0xff]
  %v4438 = vld [vmem:[#allocation3 + $0xa8] sm:$0xff]
  %v4439 = vld [vmem:[#allocation3 + $0xb0] sm:$0xff]
  %v4440 = vld [vmem:[#allocation3 + $0xb8] sm:$0xff]
  %v4441 = vld [vmem:[#allocation3 + $0xc0] sm:$0xff]
  %v4442 = vld [vmem:[#allocation3 + $0xc8] sm:$0xff]
  %v4443 = vld [vmem:[#allocation3 + $0xd0] sm:$0xff]
  %v4444 = vld [vmem:[#allocation3 + $0xd8] sm:$0xff]
  %v4445 = vld [vmem:[#allocation3 + $0xe0] sm:$0xff]
  %v4446 = vld [vmem:[#allocation3 + $0xe8] sm:$0xff]
  %v4447 = vld [vmem:[#allocation3 + $0xf0] sm:$0xff]
  %v4448 = vld [vmem:[#allocation3 + $0xf8] sm:$0xff]
  %v4449 = vld [vmem:[#allocation3 + $0x100] sm:$0xff]
  %v4450 = vld [vmem:[#allocation3 + $0x108] sm:$0xff]
  %v4451 = vld [vmem:[#allocation3 + $0x110] sm:$0xff]
  %v4452 = vld [vmem:[#allocation3 + $0x118] sm:$0xff]
  %v4453 = vld [vmem:[#allocation3 + $0x120] sm:$0xff]
  %v4454 = vld [vmem:[#allocation3 + $0x128] sm:$0xff]
  %v4455 = vld [vmem:[#allocation3 + $0x130] sm:$0xff]
  %v4456 = vld [vmem:[#allocation3 + $0x138] sm:$0xff]
  %v4457 = vld [vmem:[#allocation3 + $0x140] sm:$0xff]
  %v4458 = vld [vmem:[#allocation3 + $0x148] sm:$0xff]
  %v4459 = vld [vmem:[#allocation3 + $0x150] sm:$0xff]
  %v4460 = vld [vmem:[#allocation3 + $0x158] sm:$0xff]
  %v4461 = vld [vmem:[#allocation3 + $0x160] sm:$0xff]
  %v4462 = vld [vmem:[#allocation3 + $0x168] sm:$0xff]
  %v4463 = vld [vmem:[#allocation3 + $0x170] sm:$0xff]
  %v4464 = vld [vmem:[#allocation3 + $0x178] sm:$0xff]
  %v4465 = vld [vmem:[#allocation3 + $0x180] sm:$0xff]
  %v4466 = vld [vmem:[%s5] sm:$0x1]
  %v4468 = vlaneseq
  %v4469 = vshrl.u32 %v4468, 7
  %v4470 = vsub.s32 0, %v4469
  %v4471 = vrot.slane %v4466, %v4470
  %v4473 = vadd.f32 %v4417, %v4471
  %v4474 = vadd.f32 %v4418, %v4471
  %v4475 = vadd.f32 %v4419, %v4471
  %v4476 = vadd.f32 %v4420, %v4471
  %v4477 = vadd.f32 %v4421, %v4471
  %v4478 = vadd.f32 %v4422, %v4471
  %v4479 = vadd.f32 %v4423, %v4471
  %v4480 = vadd.f32 %v4424, %v4471
  %v4481 = vadd.f32 %v4425, %v4471
  %v4482 = vadd.f32 %v4426, %v4471
  %v4483 = vadd.f32 %v4427, %v4471
  %v4484 = vadd.f32 %v4428, %v4471
  %v4485 = vadd.f32 %v4429, %v4471
  %v4486 = vadd.f32 %v4430, %v4471
  %v4487 = vadd.f32 %v4431, %v4471
  %v4488 = vadd.f32 %v4432, %v4471
  %v4489 = vadd.f32 %v4433, %v4471
  %v4490 = vadd.f32 %v4434, %v4471
  %v4491 = vadd.f32 %v4435, %v4471
  %v4492 = vadd.f32 %v4436, %v4471
  %v4493 = vadd.f32 %v4437, %v4471
  %v4494 = vadd.f32 %v4438, %v4471
  %v4495 = vadd.f32 %v4439, %v4471
  %v4496 = vadd.f32 %v4440, %v4471
  %v4497 = vadd.f32 %v4441, %v4471
  %v4498 = vadd.f32 %v4442, %v4471
  %v4499 = vadd.f32 %v4443, %v4471
  %v4500 = vadd.f32 %v4444, %v4471
  %v4501 = vadd.f32 %v4445, %v4471
  %v4502 = vadd.f32 %v4446, %v4471
  %v4503 = vadd.f32 %v4447, %v4471
  %v4504 = vadd.f32 %v4448, %v4471
  %v4505 = vadd.f32 %v4449, %v4471
  %v4506 = vadd.f32 %v4450, %v4471
  %v4507 = vadd.f32 %v4451, %v4471
  %v4508 = vadd.f32 %v4452, %v4471
  %v4509 = vadd.f32 %v4453, %v4471
  %v4510 = vadd.f32 %v4454, %v4471
  %v4511 = vadd.f32 %v4455, %v4471
  %v4512 = vadd.f32 %v4456, %v4471
  %v4513 = vadd.f32 %v4457, %v4471
  %v4514 = vadd.f32 %v4458, %v4471
  %v4515 = vadd.f32 %v4459, %v4471
  %v4516 = vadd.f32 %v4460, %v4471
  %v4517 = vadd.f32 %v4461, %v4471
  %v4518 = vadd.f32 %v4462, %v4471
  %v4519 = vadd.f32 %v4463, %v4471
  %v4520 = vadd.f32 %v4464, %v4471
  %v4521 = vadd.f32 %v4465, %v4471
  %v4522 = vmax.f32 %v4473, 0.0
  %v4523 = vmax.f32 %v4474, 0.0
  %v4524 = vmax.f32 %v4475, 0.0
  %v4525 = vmax.f32 %v4476, 0.0
  %v4526 = vmax.f32 %v4477, 0.0
  %v4527 = vmax.f32 %v4478, 0.0
  %v4528 = vmax.f32 %v4479, 0.0
  %v4529 = vmax.f32 %v4480, 0.0
  %v4530 = vmax.f32 %v4481, 0.0
  %v4531 = vmax.f32 %v4482, 0.0
  %v4532 = vmax.f32 %v4483, 0.0
  %v4533 = vmax.f32 %v4484, 0.0
  %v4534 = vmax.f32 %v4485, 0.0
  %v4535 = vmax.f32 %v4486, 0.0
  %v4536 = vmax.f32 %v4487, 0.0
  %v4537 = vmax.f32 %v4488, 0.0
  %v4538 = vmax.f32 %v4489, 0.0
  %v4539 = vmax.f32 %v4490, 0.0
  %v4540 = vmax.f32 %v4491, 0.0
  %v4541 = vmax.f32 %v4492, 0.0
  %v4542 = vmax.f32 %v4493, 0.0
  %v4543 = vmax.f32 %v4494, 0.0
  %v4544 = vmax.f32 %v4495, 0.0
  %v4545 = vmax.f32 %v4496, 0.0
  %v4546 = vmax.f32 %v4497, 0.0
  %v4547 = vmax.f32 %v4498, 0.0
  %v4548 = vmax.f32 %v4499, 0.0
  %v4549 = vmax.f32 %v4500, 0.0
  %v4550 = vmax.f32 %v4501, 0.0
  %v4551 = vmax.f32 %v4502, 0.0
  %v4552 = vmax.f32 %v4503, 0.0
  %v4553 = vmax.f32 %v4504, 0.0
  %v4554 = vmax.f32 %v4505, 0.0
  %v4555 = vmax.f32 %v4506, 0.0
  %v4556 = vmax.f32 %v4507, 0.0
  %v4557 = vmax.f32 %v4508, 0.0
  %v4558 = vmax.f32 %v4509, 0.0
  %v4559 = vmax.f32 %v4510, 0.0
  %v4560 = vmax.f32 %v4511, 0.0
  %v4561 = vmax.f32 %v4512, 0.0
  %v4562 = vmax.f32 %v4513, 0.0
  %v4563 = vmax.f32 %v4514, 0.0
  %v4564 = vmax.f32 %v4515, 0.0
  %v4565 = vmax.f32 %v4516, 0.0
  %v4566 = vmax.f32 %v4517, 0.0
  %v4567 = vmax.f32 %v4518, 0.0
  %v4568 = vmax.f32 %v4519, 0.0
  %v4569 = vmax.f32 %v4520, 0.0
  %v4570 = vmax.f32 %v4521, 0.0
  %4571 = vst.msk [vmem:[#allocation3] sm:$0xff] %vm69, %v4522
  %4572 = vst.msk [vmem:[#allocation3 + $0x8] sm:$0xff] %vm69, %v4523
  %4573 = vst.msk [vmem:[#allocation3 + $0x10] sm:$0xff] %vm69, %v4524
  %4574 = vst.msk [vmem:[#allocation3 + $0x18] sm:$0xff] %vm69, %v4525
  %4575 = vst.msk [vmem:[#allocation3 + $0x20] sm:$0xff] %vm69, %v4526
  %4576 = vst.msk [vmem:[#allocation3 + $0x28] sm:$0xff] %vm69, %v4527
  %4577 = vst.msk [vmem:[#allocation3 + $0x30] sm:$0xff] %vm69, %v4528
  %4578 = vst.msk [vmem:[#allocation3 + $0x38] sm:$0xff] %vm69, %v4529
  %4579 = vst.msk [vmem:[#allocation3 + $0x40] sm:$0xff] %vm69, %v4530
  %4580 = vst.msk [vmem:[#allocation3 + $0x48] sm:$0xff] %vm69, %v4531
  %4581 = vst.msk [vmem:[#allocation3 + $0x50] sm:$0xff] %vm69, %v4532
  %4582 = vst.msk [vmem:[#allocation3 + $0x58] sm:$0xff] %vm69, %v4533
  %4583 = vst.msk [vmem:[#allocation3 + $0x60] sm:$0xff] %vm69, %v4534
  %4584 = vst.msk [vmem:[#allocation3 + $0x68] sm:$0xff] %vm69, %v4535
  %4585 = vst.msk [vmem:[#allocation3 + $0x70] sm:$0xff] %vm69, %v4536
  %4586 = vst.msk [vmem:[#allocation3 + $0x78] sm:$0xff] %vm69, %v4537
  %4587 = vst.msk [vmem:[#allocation3 + $0x80] sm:$0xff] %vm69, %v4538
  %4588 = vst.msk [vmem:[#allocation3 + $0x88] sm:$0xff] %vm69, %v4539
  %4589 = vst.msk [vmem:[#allocation3 + $0x90] sm:$0xff] %vm69, %v4540
  %4590 = vst.msk [vmem:[#allocation3 + $0x98] sm:$0xff] %vm69, %v4541
  %4591 = vst.msk [vmem:[#allocation3 + $0xa0] sm:$0xff] %vm69, %v4542
  %4592 = vst.msk [vmem:[#allocation3 + $0xa8] sm:$0xff] %vm69, %v4543
  %4593 = vst.msk [vmem:[#allocation3 + $0xb0] sm:$0xff] %vm69, %v4544
  %4594 = vst.msk [vmem:[#allocation3 + $0xb8] sm:$0xff] %vm69, %v4545
  %4595 = vst.msk [vmem:[#allocation3 + $0xc0] sm:$0xff] %vm69, %v4546
  %4596 = vst.msk [vmem:[#allocation3 + $0xc8] sm:$0xff] %vm69, %v4547
  %4597 = vst.msk [vmem:[#allocation3 + $0xd0] sm:$0xff] %vm69, %v4548
  %4598 = vst.msk [vmem:[#allocation3 + $0xd8] sm:$0xff] %vm69, %v4549
  %4599 = vst.msk [vmem:[#allocation3 + $0xe0] sm:$0xff] %vm69, %v4550
  %4600 = vst.msk [vmem:[#allocation3 + $0xe8] sm:$0xff] %vm69, %v4551
  %4601 = vst.msk [vmem:[#allocation3 + $0xf0] sm:$0xff] %vm69, %v4552
  %4602 = vst.msk [vmem:[#allocation3 + $0xf8] sm:$0xff] %vm69, %v4553
  %4603 = vst.msk [vmem:[#allocation3 + $0x100] sm:$0xff] %vm69, %v4554
  %4604 = vst.msk [vmem:[#allocation3 + $0x108] sm:$0xff] %vm69, %v4555
  %4605 = vst.msk [vmem:[#allocation3 + $0x110] sm:$0xff] %vm69, %v4556
  %4606 = vst.msk [vmem:[#allocation3 + $0x118] sm:$0xff] %vm69, %v4557
  %4607 = vst.msk [vmem:[#allocation3 + $0x120] sm:$0xff] %vm69, %v4558
  %4608 = vst.msk [vmem:[#allocation3 + $0x128] sm:$0xff] %vm69, %v4559
  %4609 = vst.msk [vmem:[#allocation3 + $0x130] sm:$0xff] %vm69, %v4560
  %4610 = vst.msk [vmem:[#allocation3 + $0x138] sm:$0xff] %vm69, %v4561
  %4611 = vst.msk [vmem:[#allocation3 + $0x140] sm:$0xff] %vm69, %v4562
  %4612 = vst.msk [vmem:[#allocation3 + $0x148] sm:$0xff] %vm69, %v4563
  %4613 = vst.msk [vmem:[#allocation3 + $0x150] sm:$0xff] %vm69, %v4564
  %4614 = vst.msk [vmem:[#allocation3 + $0x158] sm:$0xff] %vm69, %v4565
  %4615 = vst.msk [vmem:[#allocation3 + $0x160] sm:$0xff] %vm69, %v4566
  %4616 = vst.msk [vmem:[#allocation3 + $0x168] sm:$0xff] %vm69, %v4567
  %4617 = vst.msk [vmem:[#allocation3 + $0x170] sm:$0xff] %vm69, %v4568
  %4618 = vst.msk [vmem:[#allocation3 + $0x178] sm:$0xff] %vm69, %v4569
  %4619 = vst.msk [vmem:[#allocation3 + $0x180] sm:$0xff] %vm69, %v4570
  %v4620 = vld [vmem:[#allocation3] sm:$0xff]
  %v4621 = vld [vmem:[%s6] sm:$0xff]
  %v4622 = vld [vmem:[%s6 + $0x8] sm:$0xff]
  %v4623 = vld [vmem:[#allocation3 + $0x8] sm:$0xff]
  %v4624 = vld [vmem:[%s6 + $0x10] sm:$0xff]
  %v4625 = vld [vmem:[%s6 + $0x18] sm:$0xff]
  %v4627 = vsel %vm69, %v4623, 0
  %4629 = vmatprep.subr.mxu0 0.0
  %4630 = vmatpush1.msra.mxu0 0.0
  %4631 = vmatprep.subr.mxu0 0.0
  %4632 = vmatpush1.msra.mxu0 0.0
  %4633 = vmatprep.subr.mxu0 0.0
  %4634 = vmatpush1.msra.mxu0 0.0
  %4635 = vmatprep.subr.mxu0 0.0
  %4636 = vmatpush1.msra.mxu0 0.0
  %4637 = vmatprep.subr.mxu0 0.0
  %4638 = vmatpush1.msra.mxu0 0.0
  %4639 = vmatprep.subr.mxu0 0.0
  %4640 = vmatpush1.msra.mxu0 0.0
  %4641 = vmatprep.subr.mxu0 0.0
  %4642 = vmatpush1.msra.mxu0 0.0
  %4643 = vmatprep.subr.mxu0 0.0
  %4644 = vmatpush1.msra.mxu0 0.0
  %4645 = vmatprep.subr.mxu0 0.0
  %4646 = vmatpush1.msra.mxu0 0.0
  %4647 = vmatprep.subr.mxu0 0.0
  %4648 = vmatpush1.msra.mxu0 0.0
  %4649 = vmatprep.subr.mxu0 0.0
  %4650 = vmatpush1.msra.mxu0 0.0
  %4651 = vmatprep.subr.mxu0 0.0
  %4652 = vmatpush1.msra.mxu0 0.0
  %4653 = vmatprep.subr.mxu0 0.0
  %4654 = vmatpush1.msra.mxu0 0.0
  %4655 = vmatprep.subr.mxu0 0.0
  %4656 = vmatpush1.msra.mxu0 0.0
  %4657 = vmatprep.subr.mxu0 0.0
  %4658 = vmatpush1.msra.mxu0 %v4625
  %4659 = vmatprep.subr.mxu0 0.0
  %4660 = vmatpush1.msra.mxu0 %v4624
  %4661 = vmatprep.subr.mxu0 0.0
  %4662 = vmatpush2.msra.mxu0 0.0
  %4663 = vmatprep.subr.mxu0 0.0
  %4664 = vmatpush2.msra.mxu0 0.0
  %4665 = vmatprep.subr.mxu0 0.0
  %4666 = vmatpush2.msra.mxu0 0.0
  %4667 = vmatprep.subr.mxu0 0.0
  %4668 = vmatpush2.msra.mxu0 0.0
  %4669 = vmatprep.subr.mxu0 0.0
  %4670 = vmatpush2.msra.mxu0 0.0
  %4671 = vmatprep.subr.mxu0 0.0
  %4672 = vmatpush2.msra.mxu0 0.0
  %4673 = vmatprep.subr.mxu0 0.0
  %4674 = vmatpush2.msra.mxu0 0.0
  %4675 = vmatprep.subr.mxu0 0.0
  %4676 = vmatpush2.msra.mxu0 0.0
  %4677 = vmatprep.subr.mxu0 0.0
  %4678 = vmatpush2.msra.mxu0 0.0
  %4679 = vmatprep.subr.mxu0 0.0
  %4680 = vmatpush2.msra.mxu0 0.0
  %4681 = vmatprep.subr.mxu0 0.0
  %4682 = vmatpush2.msra.mxu0 0.0
  %4683 = vmatprep.subr.mxu0 0.0
  %4684 = vmatpush2.msra.mxu0 0.0
  %4685 = vmatprep.subr.mxu0 0.0
  %4686 = vmatpush2.msra.mxu0 0.0
  %4687 = vmatprep.subr.mxu0 0.0
  %4688 = vmatpush2.msra.mxu0 0.0
  %4689 = vmatprep.subr.mxu0 0.0
  %4690 = vmatpush2.msra.mxu0 0.0
  %4691 = vmatprep.subr.mxu0 0.0
  %4692 = vmatpush2.msra.mxu0 0.0
  %4693 = vmatprep.mubr.f32.mxu0 0.0
  %4694 = vmatmul.mubr.f32.gmra.mxu0 %v4627
  %v4695 = vpop.f32.mrf.mxu0
  %v4696 = vadd.f32 0.0, %v4695
  %v4697 = vpop.f32.mrf.mxu0
  %4698 = vdwg.mxu0
  %v4700 = vsel %vm69, %v4620, 0
  %4702 = vmatprep.subr.mxu0 0.0
  %4703 = vmatpush1.msra.mxu0 0.0
  %4704 = vmatprep.subr.mxu0 0.0
  %4705 = vmatpush1.msra.mxu0 0.0
  %4706 = vmatprep.subr.mxu0 0.0
  %4707 = vmatpush1.msra.mxu0 0.0
  %4708 = vmatprep.subr.mxu0 0.0
  %4709 = vmatpush1.msra.mxu0 0.0
  %4710 = vmatprep.subr.mxu0 0.0
  %4711 = vmatpush1.msra.mxu0 0.0
  %4712 = vmatprep.subr.mxu0 0.0
  %4713 = vmatpush1.msra.mxu0 0.0
  %4714 = vmatprep.subr.mxu0 0.0
  %4715 = vmatpush1.msra.mxu0 0.0
  %4716 = vmatprep.subr.mxu0 0.0
  %4717 = vmatpush1.msra.mxu0 0.0
  %4718 = vmatprep.subr.mxu0 0.0
  %4719 = vmatpush1.msra.mxu0 0.0
  %4720 = vmatprep.subr.mxu0 0.0
  %4721 = vmatpush1.msra.mxu0 0.0
  %4722 = vmatprep.subr.mxu0 0.0
  %4723 = vmatpush1.msra.mxu0 0.0
  %4724 = vmatprep.subr.mxu0 0.0
  %4725 = vmatpush1.msra.mxu0 0.0
  %4726 = vmatprep.subr.mxu0 0.0
  %4727 = vmatpush1.msra.mxu0 0.0
  %4728 = vmatprep.subr.mxu0 0.0
  %4729 = vmatpush1.msra.mxu0 0.0
  %4730 = vmatprep.subr.mxu0 0.0
  %4731 = vmatpush1.msra.mxu0 %v4622
  %4732 = vmatprep.subr.mxu0 0.0
  %4733 = vmatpush1.msra.mxu0 %v4621
  %4734 = vmatprep.subr.mxu0 0.0
  %4735 = vmatpush2.msra.mxu0 0.0
  %4736 = vmatprep.subr.mxu0 0.0
  %4737 = vmatpush2.msra.mxu0 0.0
  %4738 = vmatprep.subr.mxu0 0.0
  %4739 = vmatpush2.msra.mxu0 0.0
  %4740 = vmatprep.subr.mxu0 0.0
  %4741 = vmatpush2.msra.mxu0 0.0
  %4742 = vmatprep.subr.mxu0 0.0
  %4743 = vmatpush2.msra.mxu0 0.0
  %4744 = vmatprep.subr.mxu0 0.0
  %4745 = vmatpush2.msra.mxu0 0.0
  %4746 = vmatprep.subr.mxu0 0.0
  %4747 = vmatpush2.msra.mxu0 0.0
  %4748 = vmatprep.subr.mxu0 0.0
  %4749 = vmatpush2.msra.mxu0 0.0
  %4750 = vmatprep.subr.mxu0 0.0
  %4751 = vmatpush2.msra.mxu0 0.0
  %4752 = vmatprep.subr.mxu0 0.0
  %4753 = vmatpush2.msra.mxu0 0.0
  %4754 = vmatprep.subr.mxu0 0.0
  %4755 = vmatpush2.msra.mxu0 0.0
  %4756 = vmatprep.subr.mxu0 0.0
  %4757 = vmatpush2.msra.mxu0 0.0
  %4758 = vmatprep.subr.mxu0 0.0
  %4759 = vmatpush2.msra.mxu0 0.0
  %4760 = vmatprep.subr.mxu0 0.0
  %4761 = vmatpush2.msra.mxu0 0.0
  %4762 = vmatprep.subr.mxu0 0.0
  %4763 = vmatpush2.msra.mxu0 0.0
  %4764 = vmatprep.subr.mxu0 0.0
  %4765 = vmatpush2.msra.mxu0 0.0
  %4766 = vmatprep.mubr.f32.mxu0 0.0
  %4767 = vmatmul.mubr.f32.gmra.mxu0 %v4700
  %v4768 = vpop.f32.mrf.mxu0
  %v4769 = vadd.f32 %v4696, %v4768
  %v4770 = vpop.f32.mrf.mxu0
  %4771 = vdwg.mxu0
  %v4772 = vld [vmem:[#allocation3 + $0x10] sm:$0xff]
  %v4773 = vld [vmem:[%s6 + $0x20] sm:$0xff]
  %v4774 = vld [vmem:[%s6 + $0x28] sm:$0xff]
  %v4776 = vsel %vm69, %v4772, 0
  %4778 = vmatprep.subr.mxu0 0.0
  %4779 = vmatpush1.msra.mxu0 0.0
  %4780 = vmatprep.subr.mxu0 0.0
  %4781 = vmatpush1.msra.mxu0 0.0
  %4782 = vmatprep.subr.mxu0 0.0
  %4783 = vmatpush1.msra.mxu0 0.0
  %4784 = vmatprep.subr.mxu0 0.0
  %4785 = vmatpush1.msra.mxu0 0.0
  %4786 = vmatprep.subr.mxu0 0.0
  %4787 = vmatpush1.msra.mxu0 0.0
  %4788 = vmatprep.subr.mxu0 0.0
  %4789 = vmatpush1.msra.mxu0 0.0
  %4790 = vmatprep.subr.mxu0 0.0
  %4791 = vmatpush1.msra.mxu0 0.0
  %4792 = vmatprep.subr.mxu0 0.0
  %4793 = vmatpush1.msra.mxu0 0.0
  %4794 = vmatprep.subr.mxu0 0.0
  %4795 = vmatpush1.msra.mxu0 0.0
  %4796 = vmatprep.subr.mxu0 0.0
  %4797 = vmatpush1.msra.mxu0 0.0
  %4798 = vmatprep.subr.mxu0 0.0
  %4799 = vmatpush1.msra.mxu0 0.0
  %4800 = vmatprep.subr.mxu0 0.0
  %4801 = vmatpush1.msra.mxu0 0.0
  %4802 = vmatprep.subr.mxu0 0.0
  %4803 = vmatpush1.msra.mxu0 0.0
  %4804 = vmatprep.subr.mxu0 0.0
  %4805 = vmatpush1.msra.mxu0 0.0
  %4806 = vmatprep.subr.mxu0 0.0
  %4807 = vmatpush1.msra.mxu0 %v4774
  %4808 = vmatprep.subr.mxu0 0.0
  %4809 = vmatpush1.msra.mxu0 %v4773
  %4810 = vmatprep.subr.mxu0 0.0
  %4811 = vmatpush2.msra.mxu0 0.0
  %4812 = vmatprep.subr.mxu0 0.0
  %4813 = vmatpush2.msra.mxu0 0.0
  %4814 = vmatprep.subr.mxu0 0.0
  %4815 = vmatpush2.msra.mxu0 0.0
  %4816 = vmatprep.subr.mxu0 0.0
  %4817 = vmatpush2.msra.mxu0 0.0
  %4818 = vmatprep.subr.mxu0 0.0
  %4819 = vmatpush2.msra.mxu0 0.0
  %4820 = vmatprep.subr.mxu0 0.0
  %4821 = vmatpush2.msra.mxu0 0.0
  %4822 = vmatprep.subr.mxu0 0.0
  %4823 = vmatpush2.msra.mxu0 0.0
  %4824 = vmatprep.subr.mxu0 0.0
  %4825 = vmatpush2.msra.mxu0 0.0
  %4826 = vmatprep.subr.mxu0 0.0
  %4827 = vmatpush2.msra.mxu0 0.0
  %4828 = vmatprep.subr.mxu0 0.0
  %4829 = vmatpush2.msra.mxu0 0.0
  %4830 = vmatprep.subr.mxu0 0.0
  %4831 = vmatpush2.msra.mxu0 0.0
  %4832 = vmatprep.subr.mxu0 0.0
  %4833 = vmatpush2.msra.mxu0 0.0
  %4834 = vmatprep.subr.mxu0 0.0
  %4835 = vmatpush2.msra.mxu0 0.0
  %4836 = vmatprep.subr.mxu0 0.0
  %4837 = vmatpush2.msra.mxu0 0.0
  %4838 = vmatprep.subr.mxu0 0.0
  %4839 = vmatpush2.msra.mxu0 0.0
  %4840 = vmatprep.subr.mxu0 0.0
  %4841 = vmatpush2.msra.mxu0 0.0
  %4842 = vmatprep.mubr.f32.mxu0 0.0
  %4843 = vmatmul.mubr.f32.gmra.mxu0 %v4776
  %v4844 = vpop.f32.mrf.mxu0
  %v4845 = vadd.f32 0.0, %v4844
  %v4846 = vpop.f32.mrf.mxu0
  %4847 = vdwg.mxu0
  %v4848 = vadd.f32 %v4769, %v4845
  %v4849 = vld [vmem:[#allocation3 + $0x18] sm:$0xff]
  %v4850 = vld [vmem:[%s6 + $0x30] sm:$0xff]
  %v4851 = vld [vmem:[%s6 + $0x38] sm:$0xff]
  %v4853 = vsel %vm69, %v4849, 0
  %4855 = vmatprep.subr.mxu0 0.0
  %4856 = vmatpush1.msra.mxu0 0.0
  %4857 = vmatprep.subr.mxu0 0.0
  %4858 = vmatpush1.msra.mxu0 0.0
  %4859 = vmatprep.subr.mxu0 0.0
  %4860 = vmatpush1.msra.mxu0 0.0
  %4861 = vmatprep.subr.mxu0 0.0
  %4862 = vmatpush1.msra.mxu0 0.0
  %4863 = vmatprep.subr.mxu0 0.0
  %4864 = vmatpush1.msra.mxu0 0.0
  %4865 = vmatprep.subr.mxu0 0.0
  %4866 = vmatpush1.msra.mxu0 0.0
  %4867 = vmatprep.subr.mxu0 0.0
  %4868 = vmatpush1.msra.mxu0 0.0
  %4869 = vmatprep.subr.mxu0 0.0
  %4870 = vmatpush1.msra.mxu0 0.0
  %4871 = vmatprep.subr.mxu0 0.0
  %4872 = vmatpush1.msra.mxu0 0.0
  %4873 = vmatprep.subr.mxu0 0.0
  %4874 = vmatpush1.msra.mxu0 0.0
  %4875 = vmatprep.subr.mxu0 0.0
  %4876 = vmatpush1.msra.mxu0 0.0
  %4877 = vmatprep.subr.mxu0 0.0
  %4878 = vmatpush1.msra.mxu0 0.0
  %4879 = vmatprep.subr.mxu0 0.0
  %4880 = vmatpush1.msra.mxu0 0.0
  %4881 = vmatprep.subr.mxu0 0.0
  %4882 = vmatpush1.msra.mxu0 0.0
  %4883 = vmatprep.subr.mxu0 0.0
  %4884 = vmatpush1.msra.mxu0 %v4851
  %4885 = vmatprep.subr.mxu0 0.0
  %4886 = vmatpush1.msra.mxu0 %v4850
  %4887 = vmatprep.subr.mxu0 0.0
  %4888 = vmatpush2.msra.mxu0 0.0
  %4889 = vmatprep.subr.mxu0 0.0
  %4890 = vmatpush2.msra.mxu0 0.0
  %4891 = vmatprep.subr.mxu0 0.0
  %4892 = vmatpush2.msra.mxu0 0.0
  %4893 = vmatprep.subr.mxu0 0.0
  %4894 = vmatpush2.msra.mxu0 0.0
  %4895 = vmatprep.subr.mxu0 0.0
  %4896 = vmatpush2.msra.mxu0 0.0
  %4897 = vmatprep.subr.mxu0 0.0
  %4898 = vmatpush2.msra.mxu0 0.0
  %4899 = vmatprep.subr.mxu0 0.0
  %4900 = vmatpush2.msra.mxu0 0.0
  %4901 = vmatprep.subr.mxu0 0.0
  %4902 = vmatpush2.msra.mxu0 0.0
  %4903 = vmatprep.subr.mxu0 0.0
  %4904 = vmatpush2.msra.mxu0 0.0
  %4905 = vmatprep.subr.mxu0 0.0
  %4906 = vmatpush2.msra.mxu0 0.0
  %4907 = vmatprep.subr.mxu0 0.0
  %4908 = vmatpush2.msra.mxu0 0.0
  %4909 = vmatprep.subr.mxu0 0.0
  %4910 = vmatpush2.msra.mxu0 0.0
  %4911 = vmatprep.subr.mxu0 0.0
  %4912 = vmatpush2.msra.mxu0 0.0
  %4913 = vmatprep.subr.mxu0 0.0
  %4914 = vmatpush2.msra.mxu0 0.0
  %4915 = vmatprep.subr.mxu0 0.0
  %4916 = vmatpush2.msra.mxu0 0.0
  %4917 = vmatprep.subr.mxu0 0.0
  %4918 = vmatpush2.msra.mxu0 0.0
  %4919 = vmatprep.mubr.f32.mxu0 0.0
  %4920 = vmatmul.mubr.f32.gmra.mxu0 %v4853
  %v4921 = vpop.f32.mrf.mxu0
  %v4922 = vadd.f32 0.0, %v4921
  %v4923 = vpop.f32.mrf.mxu0
  %4924 = vdwg.mxu0
  %v4925 = vadd.f32 %v4848, %v4922
  %v4926 = vld [vmem:[#allocation3 + $0x20] sm:$0xff]
  %v4927 = vld [vmem:[%s6 + $0x40] sm:$0xff]
  %v4928 = vld [vmem:[%s6 + $0x48] sm:$0xff]
  %v4930 = vsel %vm69, %v4926, 0
  %4932 = vmatprep.subr.mxu0 0.0
  %4933 = vmatpush1.msra.mxu0 0.0
  %4934 = vmatprep.subr.mxu0 0.0
  %4935 = vmatpush1.msra.mxu0 0.0
  %4936 = vmatprep.subr.mxu0 0.0
  %4937 = vmatpush1.msra.mxu0 0.0
  %4938 = vmatprep.subr.mxu0 0.0
  %4939 = vmatpush1.msra.mxu0 0.0
  %4940 = vmatprep.subr.mxu0 0.0
  %4941 = vmatpush1.msra.mxu0 0.0
  %4942 = vmatprep.subr.mxu0 0.0
  %4943 = vmatpush1.msra.mxu0 0.0
  %4944 = vmatprep.subr.mxu0 0.0
  %4945 = vmatpush1.msra.mxu0 0.0
  %4946 = vmatprep.subr.mxu0 0.0
  %4947 = vmatpush1.msra.mxu0 0.0
  %4948 = vmatprep.subr.mxu0 0.0
  %4949 = vmatpush1.msra.mxu0 0.0
  %4950 = vmatprep.subr.mxu0 0.0
  %4951 = vmatpush1.msra.mxu0 0.0
  %4952 = vmatprep.subr.mxu0 0.0
  %4953 = vmatpush1.msra.mxu0 0.0
  %4954 = vmatprep.subr.mxu0 0.0
  %4955 = vmatpush1.msra.mxu0 0.0
  %4956 = vmatprep.subr.mxu0 0.0
  %4957 = vmatpush1.msra.mxu0 0.0
  %4958 = vmatprep.subr.mxu0 0.0
  %4959 = vmatpush1.msra.mxu0 0.0
  %4960 = vmatprep.subr.mxu0 0.0
  %4961 = vmatpush1.msra.mxu0 %v4928
  %4962 = vmatprep.subr.mxu0 0.0
  %4963 = vmatpush1.msra.mxu0 %v4927
  %4964 = vmatprep.subr.mxu0 0.0
  %4965 = vmatpush2.msra.mxu0 0.0
  %4966 = vmatprep.subr.mxu0 0.0
  %4967 = vmatpush2.msra.mxu0 0.0
  %4968 = vmatprep.subr.mxu0 0.0
  %4969 = vmatpush2.msra.mxu0 0.0
  %4970 = vmatprep.subr.mxu0 0.0
  %4971 = vmatpush2.msra.mxu0 0.0
  %4972 = vmatprep.subr.mxu0 0.0
  %4973 = vmatpush2.msra.mxu0 0.0
  %4974 = vmatprep.subr.mxu0 0.0
  %4975 = vmatpush2.msra.mxu0 0.0
  %4976 = vmatprep.subr.mxu0 0.0
  %4977 = vmatpush2.msra.mxu0 0.0
  %4978 = vmatprep.subr.mxu0 0.0
  %4979 = vmatpush2.msra.mxu0 0.0
  %4980 = vmatprep.subr.mxu0 0.0
  %4981 = vmatpush2.msra.mxu0 0.0
  %4982 = vmatprep.subr.mxu0 0.0
  %4983 = vmatpush2.msra.mxu0 0.0
  %4984 = vmatprep.subr.mxu0 0.0
  %4985 = vmatpush2.msra.mxu0 0.0
  %4986 = vmatprep.subr.mxu0 0.0
  %4987 = vmatpush2.msra.mxu0 0.0
  %4988 = vmatprep.subr.mxu0 0.0
  %4989 = vmatpush2.msra.mxu0 0.0
  %4990 = vmatprep.subr.mxu0 0.0
  %4991 = vmatpush2.msra.mxu0 0.0
  %4992 = vmatprep.subr.mxu0 0.0
  %4993 = vmatpush2.msra.mxu0 0.0
  %4994 = vmatprep.subr.mxu0 0.0
  %4995 = vmatpush2.msra.mxu0 0.0
  %4996 = vmatprep.mubr.f32.mxu0 0.0
  %4997 = vmatmul.mubr.f32.gmra.mxu0 %v4930
  %v4998 = vpop.f32.mrf.mxu0
  %v4999 = vadd.f32 0.0, %v4998
  %v5000 = vpop.f32.mrf.mxu0
  %5001 = vdwg.mxu0
  %v5002 = vadd.f32 %v4925, %v4999
  %v5003 = vld [vmem:[#allocation3 + $0x28] sm:$0xff]
  %v5004 = vld [vmem:[%s6 + $0x50] sm:$0xff]
  %v5005 = vld [vmem:[%s6 + $0x58] sm:$0xff]
  %v5007 = vsel %vm69, %v5003, 0
  %5009 = vmatprep.subr.mxu0 0.0
  %5010 = vmatpush1.msra.mxu0 0.0
  %5011 = vmatprep.subr.mxu0 0.0
  %5012 = vmatpush1.msra.mxu0 0.0
  %5013 = vmatprep.subr.mxu0 0.0
  %5014 = vmatpush1.msra.mxu0 0.0
  %5015 = vmatprep.subr.mxu0 0.0
  %5016 = vmatpush1.msra.mxu0 0.0
  %5017 = vmatprep.subr.mxu0 0.0
  %5018 = vmatpush1.msra.mxu0 0.0
  %5019 = vmatprep.subr.mxu0 0.0
  %5020 = vmatpush1.msra.mxu0 0.0
  %5021 = vmatprep.subr.mxu0 0.0
  %5022 = vmatpush1.msra.mxu0 0.0
  %5023 = vmatprep.subr.mxu0 0.0
  %5024 = vmatpush1.msra.mxu0 0.0
  %5025 = vmatprep.subr.mxu0 0.0
  %5026 = vmatpush1.msra.mxu0 0.0
  %5027 = vmatprep.subr.mxu0 0.0
  %5028 = vmatpush1.msra.mxu0 0.0
  %5029 = vmatprep.subr.mxu0 0.0
  %5030 = vmatpush1.msra.mxu0 0.0
  %5031 = vmatprep.subr.mxu0 0.0
  %5032 = vmatpush1.msra.mxu0 0.0
  %5033 = vmatprep.subr.mxu0 0.0
  %5034 = vmatpush1.msra.mxu0 0.0
  %5035 = vmatprep.subr.mxu0 0.0
  %5036 = vmatpush1.msra.mxu0 0.0
  %5037 = vmatprep.subr.mxu0 0.0
  %5038 = vmatpush1.msra.mxu0 %v5005
  %5039 = vmatprep.subr.mxu0 0.0
  %5040 = vmatpush1.msra.mxu0 %v5004
  %5041 = vmatprep.subr.mxu0 0.0
  %5042 = vmatpush2.msra.mxu0 0.0
  %5043 = vmatprep.subr.mxu0 0.0
  %5044 = vmatpush2.msra.mxu0 0.0
  %5045 = vmatprep.subr.mxu0 0.0
  %5046 = vmatpush2.msra.mxu0 0.0
  %5047 = vmatprep.subr.mxu0 0.0
  %5048 = vmatpush2.msra.mxu0 0.0
  %5049 = vmatprep.subr.mxu0 0.0
  %5050 = vmatpush2.msra.mxu0 0.0
  %5051 = vmatprep.subr.mxu0 0.0
  %5052 = vmatpush2.msra.mxu0 0.0
  %5053 = vmatprep.subr.mxu0 0.0
  %5054 = vmatpush2.msra.mxu0 0.0
  %5055 = vmatprep.subr.mxu0 0.0
  %5056 = vmatpush2.msra.mxu0 0.0
  %5057 = vmatprep.subr.mxu0 0.0
  %5058 = vmatpush2.msra.mxu0 0.0
  %5059 = vmatprep.subr.mxu0 0.0
  %5060 = vmatpush2.msra.mxu0 0.0
  %5061 = vmatprep.subr.mxu0 0.0
  %5062 = vmatpush2.msra.mxu0 0.0
  %5063 = vmatprep.subr.mxu0 0.0
  %5064 = vmatpush2.msra.mxu0 0.0
  %5065 = vmatprep.subr.mxu0 0.0
  %5066 = vmatpush2.msra.mxu0 0.0
  %5067 = vmatprep.subr.mxu0 0.0
  %5068 = vmatpush2.msra.mxu0 0.0
  %5069 = vmatprep.subr.mxu0 0.0
  %5070 = vmatpush2.msra.mxu0 0.0
  %5071 = vmatprep.subr.mxu0 0.0
  %5072 = vmatpush2.msra.mxu0 0.0
  %5073 = vmatprep.mubr.f32.mxu0 0.0
  %5074 = vmatmul.mubr.f32.gmra.mxu0 %v5007
  %v5075 = vpop.f32.mrf.mxu0
  %v5076 = vadd.f32 0.0, %v5075
  %v5077 = vpop.f32.mrf.mxu0
  %5078 = vdwg.mxu0
  %v5079 = vadd.f32 %v5002, %v5076
  %v5080 = vld [vmem:[#allocation3 + $0x30] sm:$0xff]
  %v5081 = vld [vmem:[%s6 + $0x60] sm:$0xff]
  %v5082 = vld [vmem:[%s6 + $0x68] sm:$0xff]
  %v5084 = vsel %vm69, %v5080, 0
  %5086 = vmatprep.subr.mxu0 0.0
  %5087 = vmatpush1.msra.mxu0 0.0
  %5088 = vmatprep.subr.mxu0 0.0
  %5089 = vmatpush1.msra.mxu0 0.0
  %5090 = vmatprep.subr.mxu0 0.0
  %5091 = vmatpush1.msra.mxu0 0.0
  %5092 = vmatprep.subr.mxu0 0.0
  %5093 = vmatpush1.msra.mxu0 0.0
  %5094 = vmatprep.subr.mxu0 0.0
  %5095 = vmatpush1.msra.mxu0 0.0
  %5096 = vmatprep.subr.mxu0 0.0
  %5097 = vmatpush1.msra.mxu0 0.0
  %5098 = vmatprep.subr.mxu0 0.0
  %5099 = vmatpush1.msra.mxu0 0.0
  %5100 = vmatprep.subr.mxu0 0.0
  %5101 = vmatpush1.msra.mxu0 0.0
  %5102 = vmatprep.subr.mxu0 0.0
  %5103 = vmatpush1.msra.mxu0 0.0
  %5104 = vmatprep.subr.mxu0 0.0
  %5105 = vmatpush1.msra.mxu0 0.0
  %5106 = vmatprep.subr.mxu0 0.0
  %5107 = vmatpush1.msra.mxu0 0.0
  %5108 = vmatprep.subr.mxu0 0.0
  %5109 = vmatpush1.msra.mxu0 0.0
  %5110 = vmatprep.subr.mxu0 0.0
  %5111 = vmatpush1.msra.mxu0 0.0
  %5112 = vmatprep.subr.mxu0 0.0
  %5113 = vmatpush1.msra.mxu0 0.0
  %5114 = vmatprep.subr.mxu0 0.0
  %5115 = vmatpush1.msra.mxu0 %v5082
  %5116 = vmatprep.subr.mxu0 0.0
  %5117 = vmatpush1.msra.mxu0 %v5081
  %5118 = vmatprep.subr.mxu0 0.0
  %5119 = vmatpush2.msra.mxu0 0.0
  %5120 = vmatprep.subr.mxu0 0.0
  %5121 = vmatpush2.msra.mxu0 0.0
  %5122 = vmatprep.subr.mxu0 0.0
  %5123 = vmatpush2.msra.mxu0 0.0
  %5124 = vmatprep.subr.mxu0 0.0
  %5125 = vmatpush2.msra.mxu0 0.0
  %5126 = vmatprep.subr.mxu0 0.0
  %5127 = vmatpush2.msra.mxu0 0.0
  %5128 = vmatprep.subr.mxu0 0.0
  %5129 = vmatpush2.msra.mxu0 0.0
  %5130 = vmatprep.subr.mxu0 0.0
  %5131 = vmatpush2.msra.mxu0 0.0
  %5132 = vmatprep.subr.mxu0 0.0
  %5133 = vmatpush2.msra.mxu0 0.0
  %5134 = vmatprep.subr.mxu0 0.0
  %5135 = vmatpush2.msra.mxu0 0.0
  %5136 = vmatprep.subr.mxu0 0.0
  %5137 = vmatpush2.msra.mxu0 0.0
  %5138 = vmatprep.subr.mxu0 0.0
  %5139 = vmatpush2.msra.mxu0 0.0
  %5140 = vmatprep.subr.mxu0 0.0
  %5141 = vmatpush2.msra.mxu0 0.0
  %5142 = vmatprep.subr.mxu0 0.0
  %5143 = vmatpush2.msra.mxu0 0.0
  %5144 = vmatprep.subr.mxu0 0.0
  %5145 = vmatpush2.msra.mxu0 0.0
  %5146 = vmatprep.subr.mxu0 0.0
  %5147 = vmatpush2.msra.mxu0 0.0
  %5148 = vmatprep.subr.mxu0 0.0
  %5149 = vmatpush2.msra.mxu0 0.0
  %5150 = vmatprep.mubr.f32.mxu0 0.0
  %5151 = vmatmul.mubr.f32.gmra.mxu0 %v5084
  %v5152 = vpop.f32.mrf.mxu0
  %v5153 = vadd.f32 0.0, %v5152
  %v5154 = vpop.f32.mrf.mxu0
  %5155 = vdwg.mxu0
  %v5156 = vadd.f32 %v5079, %v5153
  %v5157 = vld [vmem:[#allocation3 + $0x38] sm:$0xff]
  %v5158 = vld [vmem:[%s6 + $0x70] sm:$0xff]
  %v5159 = vld [vmem:[%s6 + $0x78] sm:$0xff]
  %v5161 = vsel %vm69, %v5157, 0
  %5163 = vmatprep.subr.mxu0 0.0
  %5164 = vmatpush1.msra.mxu0 0.0
  %5165 = vmatprep.subr.mxu0 0.0
  %5166 = vmatpush1.msra.mxu0 0.0
  %5167 = vmatprep.subr.mxu0 0.0
  %5168 = vmatpush1.msra.mxu0 0.0
  %5169 = vmatprep.subr.mxu0 0.0
  %5170 = vmatpush1.msra.mxu0 0.0
  %5171 = vmatprep.subr.mxu0 0.0
  %5172 = vmatpush1.msra.mxu0 0.0
  %5173 = vmatprep.subr.mxu0 0.0
  %5174 = vmatpush1.msra.mxu0 0.0
  %5175 = vmatprep.subr.mxu0 0.0
  %5176 = vmatpush1.msra.mxu0 0.0
  %5177 = vmatprep.subr.mxu0 0.0
  %5178 = vmatpush1.msra.mxu0 0.0
  %5179 = vmatprep.subr.mxu0 0.0
  %5180 = vmatpush1.msra.mxu0 0.0
  %5181 = vmatprep.subr.mxu0 0.0
  %5182 = vmatpush1.msra.mxu0 0.0
  %5183 = vmatprep.subr.mxu0 0.0
  %5184 = vmatpush1.msra.mxu0 0.0
  %5185 = vmatprep.subr.mxu0 0.0
  %5186 = vmatpush1.msra.mxu0 0.0
  %5187 = vmatprep.subr.mxu0 0.0
  %5188 = vmatpush1.msra.mxu0 0.0
  %5189 = vmatprep.subr.mxu0 0.0
  %5190 = vmatpush1.msra.mxu0 0.0
  %5191 = vmatprep.subr.mxu0 0.0
  %5192 = vmatpush1.msra.mxu0 %v5159
  %5193 = vmatprep.subr.mxu0 0.0
  %5194 = vmatpush1.msra.mxu0 %v5158
  %5195 = vmatprep.subr.mxu0 0.0
  %5196 = vmatpush2.msra.mxu0 0.0
  %5197 = vmatprep.subr.mxu0 0.0
  %5198 = vmatpush2.msra.mxu0 0.0
  %5199 = vmatprep.subr.mxu0 0.0
  %5200 = vmatpush2.msra.mxu0 0.0
  %5201 = vmatprep.subr.mxu0 0.0
  %5202 = vmatpush2.msra.mxu0 0.0
  %5203 = vmatprep.subr.mxu0 0.0
  %5204 = vmatpush2.msra.mxu0 0.0
  %5205 = vmatprep.subr.mxu0 0.0
  %5206 = vmatpush2.msra.mxu0 0.0
  %5207 = vmatprep.subr.mxu0 0.0
  %5208 = vmatpush2.msra.mxu0 0.0
  %5209 = vmatprep.subr.mxu0 0.0
  %5210 = vmatpush2.msra.mxu0 0.0
  %5211 = vmatprep.subr.mxu0 0.0
  %5212 = vmatpush2.msra.mxu0 0.0
  %5213 = vmatprep.subr.mxu0 0.0
  %5214 = vmatpush2.msra.mxu0 0.0
  %5215 = vmatprep.subr.mxu0 0.0
  %5216 = vmatpush2.msra.mxu0 0.0
  %5217 = vmatprep.subr.mxu0 0.0
  %5218 = vmatpush2.msra.mxu0 0.0
  %5219 = vmatprep.subr.mxu0 0.0
  %5220 = vmatpush2.msra.mxu0 0.0
  %5221 = vmatprep.subr.mxu0 0.0
  %5222 = vmatpush2.msra.mxu0 0.0
  %5223 = vmatprep.subr.mxu0 0.0
  %5224 = vmatpush2.msra.mxu0 0.0
  %5225 = vmatprep.subr.mxu0 0.0
  %5226 = vmatpush2.msra.mxu0 0.0
  %5227 = vmatprep.mubr.f32.mxu0 0.0
  %5228 = vmatmul.mubr.f32.gmra.mxu0 %v5161
  %v5229 = vpop.f32.mrf.mxu0
  %v5230 = vadd.f32 0.0, %v5229
  %v5231 = vpop.f32.mrf.mxu0
  %5232 = vdwg.mxu0
  %v5233 = vadd.f32 %v5156, %v5230
  %v5234 = vld [vmem:[#allocation3 + $0x40] sm:$0xff]
  %v5235 = vld [vmem:[%s6 + $0x80] sm:$0xff]
  %v5236 = vld [vmem:[%s6 + $0x88] sm:$0xff]
  %v5238 = vsel %vm69, %v5234, 0
  %5240 = vmatprep.subr.mxu0 0.0
  %5241 = vmatpush1.msra.mxu0 0.0
  %5242 = vmatprep.subr.mxu0 0.0
  %5243 = vmatpush1.msra.mxu0 0.0
  %5244 = vmatprep.subr.mxu0 0.0
  %5245 = vmatpush1.msra.mxu0 0.0
  %5246 = vmatprep.subr.mxu0 0.0
  %5247 = vmatpush1.msra.mxu0 0.0
  %5248 = vmatprep.subr.mxu0 0.0
  %5249 = vmatpush1.msra.mxu0 0.0
  %5250 = vmatprep.subr.mxu0 0.0
  %5251 = vmatpush1.msra.mxu0 0.0
  %5252 = vmatprep.subr.mxu0 0.0
  %5253 = vmatpush1.msra.mxu0 0.0
  %5254 = vmatprep.subr.mxu0 0.0
  %5255 = vmatpush1.msra.mxu0 0.0
  %5256 = vmatprep.subr.mxu0 0.0
  %5257 = vmatpush1.msra.mxu0 0.0
  %5258 = vmatprep.subr.mxu0 0.0
  %5259 = vmatpush1.msra.mxu0 0.0
  %5260 = vmatprep.subr.mxu0 0.0
  %5261 = vmatpush1.msra.mxu0 0.0
  %5262 = vmatprep.subr.mxu0 0.0
  %5263 = vmatpush1.msra.mxu0 0.0
  %5264 = vmatprep.subr.mxu0 0.0
  %5265 = vmatpush1.msra.mxu0 0.0
  %5266 = vmatprep.subr.mxu0 0.0
  %5267 = vmatpush1.msra.mxu0 0.0
  %5268 = vmatprep.subr.mxu0 0.0
  %5269 = vmatpush1.msra.mxu0 %v5236
  %5270 = vmatprep.subr.mxu0 0.0
  %5271 = vmatpush1.msra.mxu0 %v5235
  %5272 = vmatprep.subr.mxu0 0.0
  %5273 = vmatpush2.msra.mxu0 0.0
  %5274 = vmatprep.subr.mxu0 0.0
  %5275 = vmatpush2.msra.mxu0 0.0
  %5276 = vmatprep.subr.mxu0 0.0
  %5277 = vmatpush2.msra.mxu0 0.0
  %5278 = vmatprep.subr.mxu0 0.0
  %5279 = vmatpush2.msra.mxu0 0.0
  %5280 = vmatprep.subr.mxu0 0.0
  %5281 = vmatpush2.msra.mxu0 0.0
  %5282 = vmatprep.subr.mxu0 0.0
  %5283 = vmatpush2.msra.mxu0 0.0
  %5284 = vmatprep.subr.mxu0 0.0
  %5285 = vmatpush2.msra.mxu0 0.0
  %5286 = vmatprep.subr.mxu0 0.0
  %5287 = vmatpush2.msra.mxu0 0.0
  %5288 = vmatprep.subr.mxu0 0.0
  %5289 = vmatpush2.msra.mxu0 0.0
  %5290 = vmatprep.subr.mxu0 0.0
  %5291 = vmatpush2.msra.mxu0 0.0
  %5292 = vmatprep.subr.mxu0 0.0
  %5293 = vmatpush2.msra.mxu0 0.0
  %5294 = vmatprep.subr.mxu0 0.0
  %5295 = vmatpush2.msra.mxu0 0.0
  %5296 = vmatprep.subr.mxu0 0.0
  %5297 = vmatpush2.msra.mxu0 0.0
  %5298 = vmatprep.subr.mxu0 0.0
  %5299 = vmatpush2.msra.mxu0 0.0
  %5300 = vmatprep.subr.mxu0 0.0
  %5301 = vmatpush2.msra.mxu0 0.0
  %5302 = vmatprep.subr.mxu0 0.0
  %5303 = vmatpush2.msra.mxu0 0.0
  %5304 = vmatprep.mubr.f32.mxu0 0.0
  %5305 = vmatmul.mubr.f32.gmra.mxu0 %v5238
  %v5306 = vpop.f32.mrf.mxu0
  %v5307 = vadd.f32 0.0, %v5306
  %v5308 = vpop.f32.mrf.mxu0
  %5309 = vdwg.mxu0
  %v5310 = vadd.f32 %v5233, %v5307
  %v5311 = vld [vmem:[#allocation3 + $0x48] sm:$0xff]
  %v5312 = vld [vmem:[%s6 + $0x90] sm:$0xff]
  %v5313 = vld [vmem:[%s6 + $0x98] sm:$0xff]
  %v5315 = vsel %vm69, %v5311, 0
  %5317 = vmatprep.subr.mxu0 0.0
  %5318 = vmatpush1.msra.mxu0 0.0
  %5319 = vmatprep.subr.mxu0 0.0
  %5320 = vmatpush1.msra.mxu0 0.0
  %5321 = vmatprep.subr.mxu0 0.0
  %5322 = vmatpush1.msra.mxu0 0.0
  %5323 = vmatprep.subr.mxu0 0.0
  %5324 = vmatpush1.msra.mxu0 0.0
  %5325 = vmatprep.subr.mxu0 0.0
  %5326 = vmatpush1.msra.mxu0 0.0
  %5327 = vmatprep.subr.mxu0 0.0
  %5328 = vmatpush1.msra.mxu0 0.0
  %5329 = vmatprep.subr.mxu0 0.0
  %5330 = vmatpush1.msra.mxu0 0.0
  %5331 = vmatprep.subr.mxu0 0.0
  %5332 = vmatpush1.msra.mxu0 0.0
  %5333 = vmatprep.subr.mxu0 0.0
  %5334 = vmatpush1.msra.mxu0 0.0
  %5335 = vmatprep.subr.mxu0 0.0
  %5336 = vmatpush1.msra.mxu0 0.0
  %5337 = vmatprep.subr.mxu0 0.0
  %5338 = vmatpush1.msra.mxu0 0.0
  %5339 = vmatprep.subr.mxu0 0.0
  %5340 = vmatpush1.msra.mxu0 0.0
  %5341 = vmatprep.subr.mxu0 0.0
  %5342 = vmatpush1.msra.mxu0 0.0
  %5343 = vmatprep.subr.mxu0 0.0
  %5344 = vmatpush1.msra.mxu0 0.0
  %5345 = vmatprep.subr.mxu0 0.0
  %5346 = vmatpush1.msra.mxu0 %v5313
  %5347 = vmatprep.subr.mxu0 0.0
  %5348 = vmatpush1.msra.mxu0 %v5312
  %5349 = vmatprep.subr.mxu0 0.0
  %5350 = vmatpush2.msra.mxu0 0.0
  %5351 = vmatprep.subr.mxu0 0.0
  %5352 = vmatpush2.msra.mxu0 0.0
  %5353 = vmatprep.subr.mxu0 0.0
  %5354 = vmatpush2.msra.mxu0 0.0
  %5355 = vmatprep.subr.mxu0 0.0
  %5356 = vmatpush2.msra.mxu0 0.0
  %5357 = vmatprep.subr.mxu0 0.0
  %5358 = vmatpush2.msra.mxu0 0.0
  %5359 = vmatprep.subr.mxu0 0.0
  %5360 = vmatpush2.msra.mxu0 0.0
  %5361 = vmatprep.subr.mxu0 0.0
  %5362 = vmatpush2.msra.mxu0 0.0
  %5363 = vmatprep.subr.mxu0 0.0
  %5364 = vmatpush2.msra.mxu0 0.0
  %5365 = vmatprep.subr.mxu0 0.0
  %5366 = vmatpush2.msra.mxu0 0.0
  %5367 = vmatprep.subr.mxu0 0.0
  %5368 = vmatpush2.msra.mxu0 0.0
  %5369 = vmatprep.subr.mxu0 0.0
  %5370 = vmatpush2.msra.mxu0 0.0
  %5371 = vmatprep.subr.mxu0 0.0
  %5372 = vmatpush2.msra.mxu0 0.0
  %5373 = vmatprep.subr.mxu0 0.0
  %5374 = vmatpush2.msra.mxu0 0.0
  %5375 = vmatprep.subr.mxu0 0.0
  %5376 = vmatpush2.msra.mxu0 0.0
  %5377 = vmatprep.subr.mxu0 0.0
  %5378 = vmatpush2.msra.mxu0 0.0
  %5379 = vmatprep.subr.mxu0 0.0
  %5380 = vmatpush2.msra.mxu0 0.0
  %5381 = vmatprep.mubr.f32.mxu0 0.0
  %5382 = vmatmul.mubr.f32.gmra.mxu0 %v5315
  %v5383 = vpop.f32.mrf.mxu0
  %v5384 = vadd.f32 0.0, %v5383
  %v5385 = vpop.f32.mrf.mxu0
  %5386 = vdwg.mxu0
  %v5387 = vadd.f32 %v5310, %v5384
  %v5388 = vld [vmem:[#allocation3 + $0x50] sm:$0xff]
  %v5389 = vld [vmem:[%s6 + $0xa0] sm:$0xff]
  %v5390 = vld [vmem:[%s6 + $0xa8] sm:$0xff]
  %v5392 = vsel %vm69, %v5388, 0
  %5394 = vmatprep.subr.mxu0 0.0
  %5395 = vmatpush1.msra.mxu0 0.0
  %5396 = vmatprep.subr.mxu0 0.0
  %5397 = vmatpush1.msra.mxu0 0.0
  %5398 = vmatprep.subr.mxu0 0.0
  %5399 = vmatpush1.msra.mxu0 0.0
  %5400 = vmatprep.subr.mxu0 0.0
  %5401 = vmatpush1.msra.mxu0 0.0
  %5402 = vmatprep.subr.mxu0 0.0
  %5403 = vmatpush1.msra.mxu0 0.0
  %5404 = vmatprep.subr.mxu0 0.0
  %5405 = vmatpush1.msra.mxu0 0.0
  %5406 = vmatprep.subr.mxu0 0.0
  %5407 = vmatpush1.msra.mxu0 0.0
  %5408 = vmatprep.subr.mxu0 0.0
  %5409 = vmatpush1.msra.mxu0 0.0
  %5410 = vmatprep.subr.mxu0 0.0
  %5411 = vmatpush1.msra.mxu0 0.0
  %5412 = vmatprep.subr.mxu0 0.0
  %5413 = vmatpush1.msra.mxu0 0.0
  %5414 = vmatprep.subr.mxu0 0.0
  %5415 = vmatpush1.msra.mxu0 0.0
  %5416 = vmatprep.subr.mxu0 0.0
  %5417 = vmatpush1.msra.mxu0 0.0
  %5418 = vmatprep.subr.mxu0 0.0
  %5419 = vmatpush1.msra.mxu0 0.0
  %5420 = vmatprep.subr.mxu0 0.0
  %5421 = vmatpush1.msra.mxu0 0.0
  %5422 = vmatprep.subr.mxu0 0.0
  %5423 = vmatpush1.msra.mxu0 %v5390
  %5424 = vmatprep.subr.mxu0 0.0
  %5425 = vmatpush1.msra.mxu0 %v5389
  %5426 = vmatprep.subr.mxu0 0.0
  %5427 = vmatpush2.msra.mxu0 0.0
  %5428 = vmatprep.subr.mxu0 0.0
  %5429 = vmatpush2.msra.mxu0 0.0
  %5430 = vmatprep.subr.mxu0 0.0
  %5431 = vmatpush2.msra.mxu0 0.0
  %5432 = vmatprep.subr.mxu0 0.0
  %5433 = vmatpush2.msra.mxu0 0.0
  %5434 = vmatprep.subr.mxu0 0.0
  %5435 = vmatpush2.msra.mxu0 0.0
  %5436 = vmatprep.subr.mxu0 0.0
  %5437 = vmatpush2.msra.mxu0 0.0
  %5438 = vmatprep.subr.mxu0 0.0
  %5439 = vmatpush2.msra.mxu0 0.0
  %5440 = vmatprep.subr.mxu0 0.0
  %5441 = vmatpush2.msra.mxu0 0.0
  %5442 = vmatprep.subr.mxu0 0.0
  %5443 = vmatpush2.msra.mxu0 0.0
  %5444 = vmatprep.subr.mxu0 0.0
  %5445 = vmatpush2.msra.mxu0 0.0
  %5446 = vmatprep.subr.mxu0 0.0
  %5447 = vmatpush2.msra.mxu0 0.0
  %5448 = vmatprep.subr.mxu0 0.0
  %5449 = vmatpush2.msra.mxu0 0.0
  %5450 = vmatprep.subr.mxu0 0.0
  %5451 = vmatpush2.msra.mxu0 0.0
  %5452 = vmatprep.subr.mxu0 0.0
  %5453 = vmatpush2.msra.mxu0 0.0
  %5454 = vmatprep.subr.mxu0 0.0
  %5455 = vmatpush2.msra.mxu0 0.0
  %5456 = vmatprep.subr.mxu0 0.0
  %5457 = vmatpush2.msra.mxu0 0.0
  %5458 = vmatprep.mubr.f32.mxu0 0.0
  %5459 = vmatmul.mubr.f32.gmra.mxu0 %v5392
  %v5460 = vpop.f32.mrf.mxu0
  %v5461 = vadd.f32 0.0, %v5460
  %v5462 = vpop.f32.mrf.mxu0
  %5463 = vdwg.mxu0
  %v5464 = vadd.f32 %v5387, %v5461
  %v5465 = vld [vmem:[#allocation3 + $0x58] sm:$0xff]
  %v5466 = vld [vmem:[%s6 + $0xb0] sm:$0xff]
  %v5467 = vld [vmem:[%s6 + $0xb8] sm:$0xff]
  %v5469 = vsel %vm69, %v5465, 0
  %5471 = vmatprep.subr.mxu0 0.0
  %5472 = vmatpush1.msra.mxu0 0.0
  %5473 = vmatprep.subr.mxu0 0.0
  %5474 = vmatpush1.msra.mxu0 0.0
  %5475 = vmatprep.subr.mxu0 0.0
  %5476 = vmatpush1.msra.mxu0 0.0
  %5477 = vmatprep.subr.mxu0 0.0
  %5478 = vmatpush1.msra.mxu0 0.0
  %5479 = vmatprep.subr.mxu0 0.0
  %5480 = vmatpush1.msra.mxu0 0.0
  %5481 = vmatprep.subr.mxu0 0.0
  %5482 = vmatpush1.msra.mxu0 0.0
  %5483 = vmatprep.subr.mxu0 0.0
  %5484 = vmatpush1.msra.mxu0 0.0
  %5485 = vmatprep.subr.mxu0 0.0
  %5486 = vmatpush1.msra.mxu0 0.0
  %5487 = vmatprep.subr.mxu0 0.0
  %5488 = vmatpush1.msra.mxu0 0.0
  %5489 = vmatprep.subr.mxu0 0.0
  %5490 = vmatpush1.msra.mxu0 0.0
  %5491 = vmatprep.subr.mxu0 0.0
  %5492 = vmatpush1.msra.mxu0 0.0
  %5493 = vmatprep.subr.mxu0 0.0
  %5494 = vmatpush1.msra.mxu0 0.0
  %5495 = vmatprep.subr.mxu0 0.0
  %5496 = vmatpush1.msra.mxu0 0.0
  %5497 = vmatprep.subr.mxu0 0.0
  %5498 = vmatpush1.msra.mxu0 0.0
  %5499 = vmatprep.subr.mxu0 0.0
  %5500 = vmatpush1.msra.mxu0 %v5467
  %5501 = vmatprep.subr.mxu0 0.0
  %5502 = vmatpush1.msra.mxu0 %v5466
  %5503 = vmatprep.subr.mxu0 0.0
  %5504 = vmatpush2.msra.mxu0 0.0
  %5505 = vmatprep.subr.mxu0 0.0
  %5506 = vmatpush2.msra.mxu0 0.0
  %5507 = vmatprep.subr.mxu0 0.0
  %5508 = vmatpush2.msra.mxu0 0.0
  %5509 = vmatprep.subr.mxu0 0.0
  %5510 = vmatpush2.msra.mxu0 0.0
  %5511 = vmatprep.subr.mxu0 0.0
  %5512 = vmatpush2.msra.mxu0 0.0
  %5513 = vmatprep.subr.mxu0 0.0
  %5514 = vmatpush2.msra.mxu0 0.0
  %5515 = vmatprep.subr.mxu0 0.0
  %5516 = vmatpush2.msra.mxu0 0.0
  %5517 = vmatprep.subr.mxu0 0.0
  %5518 = vmatpush2.msra.mxu0 0.0
  %5519 = vmatprep.subr.mxu0 0.0
  %5520 = vmatpush2.msra.mxu0 0.0
  %5521 = vmatprep.subr.mxu0 0.0
  %5522 = vmatpush2.msra.mxu0 0.0
  %5523 = vmatprep.subr.mxu0 0.0
  %5524 = vmatpush2.msra.mxu0 0.0
  %5525 = vmatprep.subr.mxu0 0.0
  %5526 = vmatpush2.msra.mxu0 0.0
  %5527 = vmatprep.subr.mxu0 0.0
  %5528 = vmatpush2.msra.mxu0 0.0
  %5529 = vmatprep.subr.mxu0 0.0
  %5530 = vmatpush2.msra.mxu0 0.0
  %5531 = vmatprep.subr.mxu0 0.0
  %5532 = vmatpush2.msra.mxu0 0.0
  %5533 = vmatprep.subr.mxu0 0.0
  %5534 = vmatpush2.msra.mxu0 0.0
  %5535 = vmatprep.mubr.f32.mxu0 0.0
  %5536 = vmatmul.mubr.f32.gmra.mxu0 %v5469
  %v5537 = vpop.f32.mrf.mxu0
  %v5538 = vadd.f32 0.0, %v5537
  %v5539 = vpop.f32.mrf.mxu0
  %5540 = vdwg.mxu0
  %v5541 = vadd.f32 %v5464, %v5538
  %v5542 = vld [vmem:[#allocation3 + $0x60] sm:$0xff]
  %v5543 = vld [vmem:[%s6 + $0xc0] sm:$0xff]
  %v5544 = vld [vmem:[%s6 + $0xc8] sm:$0xff]
  %v5546 = vsel %vm69, %v5542, 0
  %5548 = vmatprep.subr.mxu0 0.0
  %5549 = vmatpush1.msra.mxu0 0.0
  %5550 = vmatprep.subr.mxu0 0.0
  %5551 = vmatpush1.msra.mxu0 0.0
  %5552 = vmatprep.subr.mxu0 0.0
  %5553 = vmatpush1.msra.mxu0 0.0
  %5554 = vmatprep.subr.mxu0 0.0
  %5555 = vmatpush1.msra.mxu0 0.0
  %5556 = vmatprep.subr.mxu0 0.0
  %5557 = vmatpush1.msra.mxu0 0.0
  %5558 = vmatprep.subr.mxu0 0.0
  %5559 = vmatpush1.msra.mxu0 0.0
  %5560 = vmatprep.subr.mxu0 0.0
  %5561 = vmatpush1.msra.mxu0 0.0
  %5562 = vmatprep.subr.mxu0 0.0
  %5563 = vmatpush1.msra.mxu0 0.0
  %5564 = vmatprep.subr.mxu0 0.0
  %5565 = vmatpush1.msra.mxu0 0.0
  %5566 = vmatprep.subr.mxu0 0.0
  %5567 = vmatpush1.msra.mxu0 0.0
  %5568 = vmatprep.subr.mxu0 0.0
  %5569 = vmatpush1.msra.mxu0 0.0
  %5570 = vmatprep.subr.mxu0 0.0
  %5571 = vmatpush1.msra.mxu0 0.0
  %5572 = vmatprep.subr.mxu0 0.0
  %5573 = vmatpush1.msra.mxu0 0.0
  %5574 = vmatprep.subr.mxu0 0.0
  %5575 = vmatpush1.msra.mxu0 0.0
  %5576 = vmatprep.subr.mxu0 0.0
  %5577 = vmatpush1.msra.mxu0 %v5544
  %5578 = vmatprep.subr.mxu0 0.0
  %5579 = vmatpush1.msra.mxu0 %v5543
  %5580 = vmatprep.subr.mxu0 0.0
  %5581 = vmatpush2.msra.mxu0 0.0
  %5582 = vmatprep.subr.mxu0 0.0
  %5583 = vmatpush2.msra.mxu0 0.0
  %5584 = vmatprep.subr.mxu0 0.0
  %5585 = vmatpush2.msra.mxu0 0.0
  %5586 = vmatprep.subr.mxu0 0.0
  %5587 = vmatpush2.msra.mxu0 0.0
  %5588 = vmatprep.subr.mxu0 0.0
  %5589 = vmatpush2.msra.mxu0 0.0
  %5590 = vmatprep.subr.mxu0 0.0
  %5591 = vmatpush2.msra.mxu0 0.0
  %5592 = vmatprep.subr.mxu0 0.0
  %5593 = vmatpush2.msra.mxu0 0.0
  %5594 = vmatprep.subr.mxu0 0.0
  %5595 = vmatpush2.msra.mxu0 0.0
  %5596 = vmatprep.subr.mxu0 0.0
  %5597 = vmatpush2.msra.mxu0 0.0
  %5598 = vmatprep.subr.mxu0 0.0
  %5599 = vmatpush2.msra.mxu0 0.0
  %5600 = vmatprep.subr.mxu0 0.0
  %5601 = vmatpush2.msra.mxu0 0.0
  %5602 = vmatprep.subr.mxu0 0.0
  %5603 = vmatpush2.msra.mxu0 0.0
  %5604 = vmatprep.subr.mxu0 0.0
  %5605 = vmatpush2.msra.mxu0 0.0
  %5606 = vmatprep.subr.mxu0 0.0
  %5607 = vmatpush2.msra.mxu0 0.0
  %5608 = vmatprep.subr.mxu0 0.0
  %5609 = vmatpush2.msra.mxu0 0.0
  %5610 = vmatprep.subr.mxu0 0.0
  %5611 = vmatpush2.msra.mxu0 0.0
  %5612 = vmatprep.mubr.f32.mxu0 0.0
  %5613 = vmatmul.mubr.f32.gmra.mxu0 %v5546
  %v5614 = vpop.f32.mrf.mxu0
  %v5615 = vadd.f32 0.0, %v5614
  %v5616 = vpop.f32.mrf.mxu0
  %5617 = vdwg.mxu0
  %v5618 = vadd.f32 %v5541, %v5615
  %v5619 = vld [vmem:[#allocation3 + $0x68] sm:$0xff]
  %v5620 = vld [vmem:[%s6 + $0xd0] sm:$0xff]
  %v5621 = vld [vmem:[%s6 + $0xd8] sm:$0xff]
  %v5623 = vsel %vm69, %v5619, 0
  %5625 = vmatprep.subr.mxu0 0.0
  %5626 = vmatpush1.msra.mxu0 0.0
  %5627 = vmatprep.subr.mxu0 0.0
  %5628 = vmatpush1.msra.mxu0 0.0
  %5629 = vmatprep.subr.mxu0 0.0
  %5630 = vmatpush1.msra.mxu0 0.0
  %5631 = vmatprep.subr.mxu0 0.0
  %5632 = vmatpush1.msra.mxu0 0.0
  %5633 = vmatprep.subr.mxu0 0.0
  %5634 = vmatpush1.msra.mxu0 0.0
  %5635 = vmatprep.subr.mxu0 0.0
  %5636 = vmatpush1.msra.mxu0 0.0
  %5637 = vmatprep.subr.mxu0 0.0
  %5638 = vmatpush1.msra.mxu0 0.0
  %5639 = vmatprep.subr.mxu0 0.0
  %5640 = vmatpush1.msra.mxu0 0.0
  %5641 = vmatprep.subr.mxu0 0.0
  %5642 = vmatpush1.msra.mxu0 0.0
  %5643 = vmatprep.subr.mxu0 0.0
  %5644 = vmatpush1.msra.mxu0 0.0
  %5645 = vmatprep.subr.mxu0 0.0
  %5646 = vmatpush1.msra.mxu0 0.0
  %5647 = vmatprep.subr.mxu0 0.0
  %5648 = vmatpush1.msra.mxu0 0.0
  %5649 = vmatprep.subr.mxu0 0.0
  %5650 = vmatpush1.msra.mxu0 0.0
  %5651 = vmatprep.subr.mxu0 0.0
  %5652 = vmatpush1.msra.mxu0 0.0
  %5653 = vmatprep.subr.mxu0 0.0
  %5654 = vmatpush1.msra.mxu0 %v5621
  %5655 = vmatprep.subr.mxu0 0.0
  %5656 = vmatpush1.msra.mxu0 %v5620
  %5657 = vmatprep.subr.mxu0 0.0
  %5658 = vmatpush2.msra.mxu0 0.0
  %5659 = vmatprep.subr.mxu0 0.0
  %5660 = vmatpush2.msra.mxu0 0.0
  %5661 = vmatprep.subr.mxu0 0.0
  %5662 = vmatpush2.msra.mxu0 0.0
  %5663 = vmatprep.subr.mxu0 0.0
  %5664 = vmatpush2.msra.mxu0 0.0
  %5665 = vmatprep.subr.mxu0 0.0
  %5666 = vmatpush2.msra.mxu0 0.0
  %5667 = vmatprep.subr.mxu0 0.0
  %5668 = vmatpush2.msra.mxu0 0.0
  %5669 = vmatprep.subr.mxu0 0.0
  %5670 = vmatpush2.msra.mxu0 0.0
  %5671 = vmatprep.subr.mxu0 0.0
  %5672 = vmatpush2.msra.mxu0 0.0
  %5673 = vmatprep.subr.mxu0 0.0
  %5674 = vmatpush2.msra.mxu0 0.0
  %5675 = vmatprep.subr.mxu0 0.0
  %5676 = vmatpush2.msra.mxu0 0.0
  %5677 = vmatprep.subr.mxu0 0.0
  %5678 = vmatpush2.msra.mxu0 0.0
  %5679 = vmatprep.subr.mxu0 0.0
  %5680 = vmatpush2.msra.mxu0 0.0
  %5681 = vmatprep.subr.mxu0 0.0
  %5682 = vmatpush2.msra.mxu0 0.0
  %5683 = vmatprep.subr.mxu0 0.0
  %5684 = vmatpush2.msra.mxu0 0.0
  %5685 = vmatprep.subr.mxu0 0.0
  %5686 = vmatpush2.msra.mxu0 0.0
  %5687 = vmatprep.subr.mxu0 0.0
  %5688 = vmatpush2.msra.mxu0 0.0
  %5689 = vmatprep.mubr.f32.mxu0 0.0
  %5690 = vmatmul.mubr.f32.gmra.mxu0 %v5623
  %v5691 = vpop.f32.mrf.mxu0
  %v5692 = vadd.f32 0.0, %v5691
  %v5693 = vpop.f32.mrf.mxu0
  %5694 = vdwg.mxu0
  %v5695 = vadd.f32 %v5618, %v5692
  %v5696 = vld [vmem:[#allocation3 + $0x70] sm:$0xff]
  %v5697 = vld [vmem:[%s6 + $0xe0] sm:$0xff]
  %v5698 = vld [vmem:[%s6 + $0xe8] sm:$0xff]
  %v5700 = vsel %vm69, %v5696, 0
  %5702 = vmatprep.subr.mxu0 0.0
  %5703 = vmatpush1.msra.mxu0 0.0
  %5704 = vmatprep.subr.mxu0 0.0
  %5705 = vmatpush1.msra.mxu0 0.0
  %5706 = vmatprep.subr.mxu0 0.0
  %5707 = vmatpush1.msra.mxu0 0.0
  %5708 = vmatprep.subr.mxu0 0.0
  %5709 = vmatpush1.msra.mxu0 0.0
  %5710 = vmatprep.subr.mxu0 0.0
  %5711 = vmatpush1.msra.mxu0 0.0
  %5712 = vmatprep.subr.mxu0 0.0
  %5713 = vmatpush1.msra.mxu0 0.0
  %5714 = vmatprep.subr.mxu0 0.0
  %5715 = vmatpush1.msra.mxu0 0.0
  %5716 = vmatprep.subr.mxu0 0.0
  %5717 = vmatpush1.msra.mxu0 0.0
  %5718 = vmatprep.subr.mxu0 0.0
  %5719 = vmatpush1.msra.mxu0 0.0
  %5720 = vmatprep.subr.mxu0 0.0
  %5721 = vmatpush1.msra.mxu0 0.0
  %5722 = vmatprep.subr.mxu0 0.0
  %5723 = vmatpush1.msra.mxu0 0.0
  %5724 = vmatprep.subr.mxu0 0.0
  %5725 = vmatpush1.msra.mxu0 0.0
  %5726 = vmatprep.subr.mxu0 0.0
  %5727 = vmatpush1.msra.mxu0 0.0
  %5728 = vmatprep.subr.mxu0 0.0
  %5729 = vmatpush1.msra.mxu0 0.0
  %5730 = vmatprep.subr.mxu0 0.0
  %5731 = vmatpush1.msra.mxu0 %v5698
  %5732 = vmatprep.subr.mxu0 0.0
  %5733 = vmatpush1.msra.mxu0 %v5697
  %5734 = vmatprep.subr.mxu0 0.0
  %5735 = vmatpush2.msra.mxu0 0.0
  %5736 = vmatprep.subr.mxu0 0.0
  %5737 = vmatpush2.msra.mxu0 0.0
  %5738 = vmatprep.subr.mxu0 0.0
  %5739 = vmatpush2.msra.mxu0 0.0
  %5740 = vmatprep.subr.mxu0 0.0
  %5741 = vmatpush2.msra.mxu0 0.0
  %5742 = vmatprep.subr.mxu0 0.0
  %5743 = vmatpush2.msra.mxu0 0.0
  %5744 = vmatprep.subr.mxu0 0.0
  %5745 = vmatpush2.msra.mxu0 0.0
  %5746 = vmatprep.subr.mxu0 0.0
  %5747 = vmatpush2.msra.mxu0 0.0
  %5748 = vmatprep.subr.mxu0 0.0
  %5749 = vmatpush2.msra.mxu0 0.0
  %5750 = vmatprep.subr.mxu0 0.0
  %5751 = vmatpush2.msra.mxu0 0.0
  %5752 = vmatprep.subr.mxu0 0.0
  %5753 = vmatpush2.msra.mxu0 0.0
  %5754 = vmatprep.subr.mxu0 0.0
  %5755 = vmatpush2.msra.mxu0 0.0
  %5756 = vmatprep.subr.mxu0 0.0
  %5757 = vmatpush2.msra.mxu0 0.0
  %5758 = vmatprep.subr.mxu0 0.0
  %5759 = vmatpush2.msra.mxu0 0.0
  %5760 = vmatprep.subr.mxu0 0.0
  %5761 = vmatpush2.msra.mxu0 0.0
  %5762 = vmatprep.subr.mxu0 0.0
  %5763 = vmatpush2.msra.mxu0 0.0
  %5764 = vmatprep.subr.mxu0 0.0
  %5765 = vmatpush2.msra.mxu0 0.0
  %5766 = vmatprep.mubr.f32.mxu0 0.0
  %5767 = vmatmul.mubr.f32.gmra.mxu0 %v5700
  %v5768 = vpop.f32.mrf.mxu0
  %v5769 = vadd.f32 0.0, %v5768
  %v5770 = vpop.f32.mrf.mxu0
  %5771 = vdwg.mxu0
  %v5772 = vadd.f32 %v5695, %v5769
  %v5773 = vld [vmem:[#allocation3 + $0x78] sm:$0xff]
  %v5774 = vld [vmem:[%s6 + $0xf0] sm:$0xff]
  %v5775 = vld [vmem:[%s6 + $0xf8] sm:$0xff]
  %v5777 = vsel %vm69, %v5773, 0
  %5779 = vmatprep.subr.mxu0 0.0
  %5780 = vmatpush1.msra.mxu0 0.0
  %5781 = vmatprep.subr.mxu0 0.0
  %5782 = vmatpush1.msra.mxu0 0.0
  %5783 = vmatprep.subr.mxu0 0.0
  %5784 = vmatpush1.msra.mxu0 0.0
  %5785 = vmatprep.subr.mxu0 0.0
  %5786 = vmatpush1.msra.mxu0 0.0
  %5787 = vmatprep.subr.mxu0 0.0
  %5788 = vmatpush1.msra.mxu0 0.0
  %5789 = vmatprep.subr.mxu0 0.0
  %5790 = vmatpush1.msra.mxu0 0.0
  %5791 = vmatprep.subr.mxu0 0.0
  %5792 = vmatpush1.msra.mxu0 0.0
  %5793 = vmatprep.subr.mxu0 0.0
  %5794 = vmatpush1.msra.mxu0 0.0
  %5795 = vmatprep.subr.mxu0 0.0
  %5796 = vmatpush1.msra.mxu0 0.0
  %5797 = vmatprep.subr.mxu0 0.0
  %5798 = vmatpush1.msra.mxu0 0.0
  %5799 = vmatprep.subr.mxu0 0.0
  %5800 = vmatpush1.msra.mxu0 0.0
  %5801 = vmatprep.subr.mxu0 0.0
  %5802 = vmatpush1.msra.mxu0 0.0
  %5803 = vmatprep.subr.mxu0 0.0
  %5804 = vmatpush1.msra.mxu0 0.0
  %5805 = vmatprep.subr.mxu0 0.0
  %5806 = vmatpush1.msra.mxu0 0.0
  %5807 = vmatprep.subr.mxu0 0.0
  %5808 = vmatpush1.msra.mxu0 %v5775
  %5809 = vmatprep.subr.mxu0 0.0
  %5810 = vmatpush1.msra.mxu0 %v5774
  %5811 = vmatprep.subr.mxu0 0.0
  %5812 = vmatpush2.msra.mxu0 0.0
  %5813 = vmatprep.subr.mxu0 0.0
  %5814 = vmatpush2.msra.mxu0 0.0
  %5815 = vmatprep.subr.mxu0 0.0
  %5816 = vmatpush2.msra.mxu0 0.0
  %5817 = vmatprep.subr.mxu0 0.0
  %5818 = vmatpush2.msra.mxu0 0.0
  %5819 = vmatprep.subr.mxu0 0.0
  %5820 = vmatpush2.msra.mxu0 0.0
  %5821 = vmatprep.subr.mxu0 0.0
  %5822 = vmatpush2.msra.mxu0 0.0
  %5823 = vmatprep.subr.mxu0 0.0
  %5824 = vmatpush2.msra.mxu0 0.0
  %5825 = vmatprep.subr.mxu0 0.0
  %5826 = vmatpush2.msra.mxu0 0.0
  %5827 = vmatprep.subr.mxu0 0.0
  %5828 = vmatpush2.msra.mxu0 0.0
  %5829 = vmatprep.subr.mxu0 0.0
  %5830 = vmatpush2.msra.mxu0 0.0
  %5831 = vmatprep.subr.mxu0 0.0
  %5832 = vmatpush2.msra.mxu0 0.0
  %5833 = vmatprep.subr.mxu0 0.0
  %5834 = vmatpush2.msra.mxu0 0.0
  %5835 = vmatprep.subr.mxu0 0.0
  %5836 = vmatpush2.msra.mxu0 0.0
  %5837 = vmatprep.subr.mxu0 0.0
  %5838 = vmatpush2.msra.mxu0 0.0
  %5839 = vmatprep.subr.mxu0 0.0
  %5840 = vmatpush2.msra.mxu0 0.0
  %5841 = vmatprep.subr.mxu0 0.0
  %5842 = vmatpush2.msra.mxu0 0.0
  %5843 = vmatprep.mubr.f32.mxu0 0.0
  %5844 = vmatmul.mubr.f32.gmra.mxu0 %v5777
  %v5845 = vpop.f32.mrf.mxu0
  %v5846 = vadd.f32 0.0, %v5845
  %v5847 = vpop.f32.mrf.mxu0
  %5848 = vdwg.mxu0
  %v5849 = vadd.f32 %v5772, %v5846
  %v5850 = vld [vmem:[#allocation3 + $0x80] sm:$0xff]
  %v5851 = vld [vmem:[%s6 + $0x100] sm:$0xff]
  %v5852 = vld [vmem:[%s6 + $0x108] sm:$0xff]
  %v5854 = vsel %vm69, %v5850, 0
  %5856 = vmatprep.subr.mxu0 0.0
  %5857 = vmatpush1.msra.mxu0 0.0
  %5858 = vmatprep.subr.mxu0 0.0
  %5859 = vmatpush1.msra.mxu0 0.0
  %5860 = vmatprep.subr.mxu0 0.0
  %5861 = vmatpush1.msra.mxu0 0.0
  %5862 = vmatprep.subr.mxu0 0.0
  %5863 = vmatpush1.msra.mxu0 0.0
  %5864 = vmatprep.subr.mxu0 0.0
  %5865 = vmatpush1.msra.mxu0 0.0
  %5866 = vmatprep.subr.mxu0 0.0
  %5867 = vmatpush1.msra.mxu0 0.0
  %5868 = vmatprep.subr.mxu0 0.0
  %5869 = vmatpush1.msra.mxu0 0.0
  %5870 = vmatprep.subr.mxu0 0.0
  %5871 = vmatpush1.msra.mxu0 0.0
  %5872 = vmatprep.subr.mxu0 0.0
  %5873 = vmatpush1.msra.mxu0 0.0
  %5874 = vmatprep.subr.mxu0 0.0
  %5875 = vmatpush1.msra.mxu0 0.0
  %5876 = vmatprep.subr.mxu0 0.0
  %5877 = vmatpush1.msra.mxu0 0.0
  %5878 = vmatprep.subr.mxu0 0.0
  %5879 = vmatpush1.msra.mxu0 0.0
  %5880 = vmatprep.subr.mxu0 0.0
  %5881 = vmatpush1.msra.mxu0 0.0
  %5882 = vmatprep.subr.mxu0 0.0
  %5883 = vmatpush1.msra.mxu0 0.0
  %5884 = vmatprep.subr.mxu0 0.0
  %5885 = vmatpush1.msra.mxu0 %v5852
  %5886 = vmatprep.subr.mxu0 0.0
  %5887 = vmatpush1.msra.mxu0 %v5851
  %5888 = vmatprep.subr.mxu0 0.0
  %5889 = vmatpush2.msra.mxu0 0.0
  %5890 = vmatprep.subr.mxu0 0.0
  %5891 = vmatpush2.msra.mxu0 0.0
  %5892 = vmatprep.subr.mxu0 0.0
  %5893 = vmatpush2.msra.mxu0 0.0
  %5894 = vmatprep.subr.mxu0 0.0
  %5895 = vmatpush2.msra.mxu0 0.0
  %5896 = vmatprep.subr.mxu0 0.0
  %5897 = vmatpush2.msra.mxu0 0.0
  %5898 = vmatprep.subr.mxu0 0.0
  %5899 = vmatpush2.msra.mxu0 0.0
  %5900 = vmatprep.subr.mxu0 0.0
  %5901 = vmatpush2.msra.mxu0 0.0
  %5902 = vmatprep.subr.mxu0 0.0
  %5903 = vmatpush2.msra.mxu0 0.0
  %5904 = vmatprep.subr.mxu0 0.0
  %5905 = vmatpush2.msra.mxu0 0.0
  %5906 = vmatprep.subr.mxu0 0.0
  %5907 = vmatpush2.msra.mxu0 0.0
  %5908 = vmatprep.subr.mxu0 0.0
  %5909 = vmatpush2.msra.mxu0 0.0
  %5910 = vmatprep.subr.mxu0 0.0
  %5911 = vmatpush2.msra.mxu0 0.0
  %5912 = vmatprep.subr.mxu0 0.0
  %5913 = vmatpush2.msra.mxu0 0.0
  %5914 = vmatprep.subr.mxu0 0.0
  %5915 = vmatpush2.msra.mxu0 0.0
  %5916 = vmatprep.subr.mxu0 0.0
  %5917 = vmatpush2.msra.mxu0 0.0
  %5918 = vmatprep.subr.mxu0 0.0
  %5919 = vmatpush2.msra.mxu0 0.0
  %5920 = vmatprep.mubr.f32.mxu0 0.0
  %5921 = vmatmul.mubr.f32.gmra.mxu0 %v5854
  %v5922 = vpop.f32.mrf.mxu0
  %v5923 = vadd.f32 0.0, %v5922
  %v5924 = vpop.f32.mrf.mxu0
  %5925 = vdwg.mxu0
  %v5926 = vadd.f32 %v5849, %v5923
  %v5927 = vld [vmem:[#allocation3 + $0x88] sm:$0xff]
  %v5928 = vld [vmem:[%s6 + $0x110] sm:$0xff]
  %v5929 = vld [vmem:[%s6 + $0x118] sm:$0xff]
  %v5931 = vsel %vm69, %v5927, 0
  %5933 = vmatprep.subr.mxu0 0.0
  %5934 = vmatpush1.msra.mxu0 0.0
  %5935 = vmatprep.subr.mxu0 0.0
  %5936 = vmatpush1.msra.mxu0 0.0
  %5937 = vmatprep.subr.mxu0 0.0
  %5938 = vmatpush1.msra.mxu0 0.0
  %5939 = vmatprep.subr.mxu0 0.0
  %5940 = vmatpush1.msra.mxu0 0.0
  %5941 = vmatprep.subr.mxu0 0.0
  %5942 = vmatpush1.msra.mxu0 0.0
  %5943 = vmatprep.subr.mxu0 0.0
  %5944 = vmatpush1.msra.mxu0 0.0
  %5945 = vmatprep.subr.mxu0 0.0
  %5946 = vmatpush1.msra.mxu0 0.0
  %5947 = vmatprep.subr.mxu0 0.0
  %5948 = vmatpush1.msra.mxu0 0.0
  %5949 = vmatprep.subr.mxu0 0.0
  %5950 = vmatpush1.msra.mxu0 0.0
  %5951 = vmatprep.subr.mxu0 0.0
  %5952 = vmatpush1.msra.mxu0 0.0
  %5953 = vmatprep.subr.mxu0 0.0
  %5954 = vmatpush1.msra.mxu0 0.0
  %5955 = vmatprep.subr.mxu0 0.0
  %5956 = vmatpush1.msra.mxu0 0.0
  %5957 = vmatprep.subr.mxu0 0.0
  %5958 = vmatpush1.msra.mxu0 0.0
  %5959 = vmatprep.subr.mxu0 0.0
  %5960 = vmatpush1.msra.mxu0 0.0
  %5961 = vmatprep.subr.mxu0 0.0
  %5962 = vmatpush1.msra.mxu0 %v5929
  %5963 = vmatprep.subr.mxu0 0.0
  %5964 = vmatpush1.msra.mxu0 %v5928
  %5965 = vmatprep.subr.mxu0 0.0
  %5966 = vmatpush2.msra.mxu0 0.0
  %5967 = vmatprep.subr.mxu0 0.0
  %5968 = vmatpush2.msra.mxu0 0.0
  %5969 = vmatprep.subr.mxu0 0.0
  %5970 = vmatpush2.msra.mxu0 0.0
  %5971 = vmatprep.subr.mxu0 0.0
  %5972 = vmatpush2.msra.mxu0 0.0
  %5973 = vmatprep.subr.mxu0 0.0
  %5974 = vmatpush2.msra.mxu0 0.0
  %5975 = vmatprep.subr.mxu0 0.0
  %5976 = vmatpush2.msra.mxu0 0.0
  %5977 = vmatprep.subr.mxu0 0.0
  %5978 = vmatpush2.msra.mxu0 0.0
  %5979 = vmatprep.subr.mxu0 0.0
  %5980 = vmatpush2.msra.mxu0 0.0
  %5981 = vmatprep.subr.mxu0 0.0
  %5982 = vmatpush2.msra.mxu0 0.0
  %5983 = vmatprep.subr.mxu0 0.0
  %5984 = vmatpush2.msra.mxu0 0.0
  %5985 = vmatprep.subr.mxu0 0.0
  %5986 = vmatpush2.msra.mxu0 0.0
  %5987 = vmatprep.subr.mxu0 0.0
  %5988 = vmatpush2.msra.mxu0 0.0
  %5989 = vmatprep.subr.mxu0 0.0
  %5990 = vmatpush2.msra.mxu0 0.0
  %5991 = vmatprep.subr.mxu0 0.0
  %5992 = vmatpush2.msra.mxu0 0.0
  %5993 = vmatprep.subr.mxu0 0.0
  %5994 = vmatpush2.msra.mxu0 0.0
  %5995 = vmatprep.subr.mxu0 0.0
  %5996 = vmatpush2.msra.mxu0 0.0
  %5997 = vmatprep.mubr.f32.mxu0 0.0
  %5998 = vmatmul.mubr.f32.gmra.mxu0 %v5931
  %v5999 = vpop.f32.mrf.mxu0
  %v6000 = vadd.f32 0.0, %v5999
  %v6001 = vpop.f32.mrf.mxu0
  %6002 = vdwg.mxu0
  %v6003 = vadd.f32 %v5926, %v6000
  %v6004 = vld [vmem:[#allocation3 + $0x90] sm:$0xff]
  %v6005 = vld [vmem:[%s6 + $0x120] sm:$0xff]
  %v6006 = vld [vmem:[%s6 + $0x128] sm:$0xff]
  %v6008 = vsel %vm69, %v6004, 0
  %6010 = vmatprep.subr.mxu0 0.0
  %6011 = vmatpush1.msra.mxu0 0.0
  %6012 = vmatprep.subr.mxu0 0.0
  %6013 = vmatpush1.msra.mxu0 0.0
  %6014 = vmatprep.subr.mxu0 0.0
  %6015 = vmatpush1.msra.mxu0 0.0
  %6016 = vmatprep.subr.mxu0 0.0
  %6017 = vmatpush1.msra.mxu0 0.0
  %6018 = vmatprep.subr.mxu0 0.0
  %6019 = vmatpush1.msra.mxu0 0.0
  %6020 = vmatprep.subr.mxu0 0.0
  %6021 = vmatpush1.msra.mxu0 0.0
  %6022 = vmatprep.subr.mxu0 0.0
  %6023 = vmatpush1.msra.mxu0 0.0
  %6024 = vmatprep.subr.mxu0 0.0
  %6025 = vmatpush1.msra.mxu0 0.0
  %6026 = vmatprep.subr.mxu0 0.0
  %6027 = vmatpush1.msra.mxu0 0.0
  %6028 = vmatprep.subr.mxu0 0.0
  %6029 = vmatpush1.msra.mxu0 0.0
  %6030 = vmatprep.subr.mxu0 0.0
  %6031 = vmatpush1.msra.mxu0 0.0
  %6032 = vmatprep.subr.mxu0 0.0
  %6033 = vmatpush1.msra.mxu0 0.0
  %6034 = vmatprep.subr.mxu0 0.0
  %6035 = vmatpush1.msra.mxu0 0.0
  %6036 = vmatprep.subr.mxu0 0.0
  %6037 = vmatpush1.msra.mxu0 0.0
  %6038 = vmatprep.subr.mxu0 0.0
  %6039 = vmatpush1.msra.mxu0 %v6006
  %6040 = vmatprep.subr.mxu0 0.0
  %6041 = vmatpush1.msra.mxu0 %v6005
  %6042 = vmatprep.subr.mxu0 0.0
  %6043 = vmatpush2.msra.mxu0 0.0
  %6044 = vmatprep.subr.mxu0 0.0
  %6045 = vmatpush2.msra.mxu0 0.0
  %6046 = vmatprep.subr.mxu0 0.0
  %6047 = vmatpush2.msra.mxu0 0.0
  %6048 = vmatprep.subr.mxu0 0.0
  %6049 = vmatpush2.msra.mxu0 0.0
  %6050 = vmatprep.subr.mxu0 0.0
  %6051 = vmatpush2.msra.mxu0 0.0
  %6052 = vmatprep.subr.mxu0 0.0
  %6053 = vmatpush2.msra.mxu0 0.0
  %6054 = vmatprep.subr.mxu0 0.0
  %6055 = vmatpush2.msra.mxu0 0.0
  %6056 = vmatprep.subr.mxu0 0.0
  %6057 = vmatpush2.msra.mxu0 0.0
  %6058 = vmatprep.subr.mxu0 0.0
  %6059 = vmatpush2.msra.mxu0 0.0
  %6060 = vmatprep.subr.mxu0 0.0
  %6061 = vmatpush2.msra.mxu0 0.0
  %6062 = vmatprep.subr.mxu0 0.0
  %6063 = vmatpush2.msra.mxu0 0.0
  %6064 = vmatprep.subr.mxu0 0.0
  %6065 = vmatpush2.msra.mxu0 0.0
  %6066 = vmatprep.subr.mxu0 0.0
  %6067 = vmatpush2.msra.mxu0 0.0
  %6068 = vmatprep.subr.mxu0 0.0
  %6069 = vmatpush2.msra.mxu0 0.0
  %6070 = vmatprep.subr.mxu0 0.0
  %6071 = vmatpush2.msra.mxu0 0.0
  %6072 = vmatprep.subr.mxu0 0.0
  %6073 = vmatpush2.msra.mxu0 0.0
  %6074 = vmatprep.mubr.f32.mxu0 0.0
  %6075 = vmatmul.mubr.f32.gmra.mxu0 %v6008
  %v6076 = vpop.f32.mrf.mxu0
  %v6077 = vadd.f32 0.0, %v6076
  %v6078 = vpop.f32.mrf.mxu0
  %6079 = vdwg.mxu0
  %v6080 = vadd.f32 %v6003, %v6077
  %v6081 = vld [vmem:[#allocation3 + $0x98] sm:$0xff]
  %v6082 = vld [vmem:[%s6 + $0x130] sm:$0xff]
  %v6083 = vld [vmem:[%s6 + $0x138] sm:$0xff]
  %v6085 = vsel %vm69, %v6081, 0
  %6087 = vmatprep.subr.mxu0 0.0
  %6088 = vmatpush1.msra.mxu0 0.0
  %6089 = vmatprep.subr.mxu0 0.0
  %6090 = vmatpush1.msra.mxu0 0.0
  %6091 = vmatprep.subr.mxu0 0.0
  %6092 = vmatpush1.msra.mxu0 0.0
  %6093 = vmatprep.subr.mxu0 0.0
  %6094 = vmatpush1.msra.mxu0 0.0
  %6095 = vmatprep.subr.mxu0 0.0
  %6096 = vmatpush1.msra.mxu0 0.0
  %6097 = vmatprep.subr.mxu0 0.0
  %6098 = vmatpush1.msra.mxu0 0.0
  %6099 = vmatprep.subr.mxu0 0.0
  %6100 = vmatpush1.msra.mxu0 0.0
  %6101 = vmatprep.subr.mxu0 0.0
  %6102 = vmatpush1.msra.mxu0 0.0
  %6103 = vmatprep.subr.mxu0 0.0
  %6104 = vmatpush1.msra.mxu0 0.0
  %6105 = vmatprep.subr.mxu0 0.0
  %6106 = vmatpush1.msra.mxu0 0.0
  %6107 = vmatprep.subr.mxu0 0.0
  %6108 = vmatpush1.msra.mxu0 0.0
  %6109 = vmatprep.subr.mxu0 0.0
  %6110 = vmatpush1.msra.mxu0 0.0
  %6111 = vmatprep.subr.mxu0 0.0
  %6112 = vmatpush1.msra.mxu0 0.0
  %6113 = vmatprep.subr.mxu0 0.0
  %6114 = vmatpush1.msra.mxu0 0.0
  %6115 = vmatprep.subr.mxu0 0.0
  %6116 = vmatpush1.msra.mxu0 %v6083
  %6117 = vmatprep.subr.mxu0 0.0
  %6118 = vmatpush1.msra.mxu0 %v6082
  %6119 = vmatprep.subr.mxu0 0.0
  %6120 = vmatpush2.msra.mxu0 0.0
  %6121 = vmatprep.subr.mxu0 0.0
  %6122 = vmatpush2.msra.mxu0 0.0
  %6123 = vmatprep.subr.mxu0 0.0
  %6124 = vmatpush2.msra.mxu0 0.0
  %6125 = vmatprep.subr.mxu0 0.0
  %6126 = vmatpush2.msra.mxu0 0.0
  %6127 = vmatprep.subr.mxu0 0.0
  %6128 = vmatpush2.msra.mxu0 0.0
  %6129 = vmatprep.subr.mxu0 0.0
  %6130 = vmatpush2.msra.mxu0 0.0
  %6131 = vmatprep.subr.mxu0 0.0
  %6132 = vmatpush2.msra.mxu0 0.0
  %6133 = vmatprep.subr.mxu0 0.0
  %6134 = vmatpush2.msra.mxu0 0.0
  %6135 = vmatprep.subr.mxu0 0.0
  %6136 = vmatpush2.msra.mxu0 0.0
  %6137 = vmatprep.subr.mxu0 0.0
  %6138 = vmatpush2.msra.mxu0 0.0
  %6139 = vmatprep.subr.mxu0 0.0
  %6140 = vmatpush2.msra.mxu0 0.0
  %6141 = vmatprep.subr.mxu0 0.0
  %6142 = vmatpush2.msra.mxu0 0.0
  %6143 = vmatprep.subr.mxu0 0.0
  %6144 = vmatpush2.msra.mxu0 0.0
  %6145 = vmatprep.subr.mxu0 0.0
  %6146 = vmatpush2.msra.mxu0 0.0
  %6147 = vmatprep.subr.mxu0 0.0
  %6148 = vmatpush2.msra.mxu0 0.0
  %6149 = vmatprep.subr.mxu0 0.0
  %6150 = vmatpush2.msra.mxu0 0.0
  %6151 = vmatprep.mubr.f32.mxu0 0.0
  %6152 = vmatmul.mubr.f32.gmra.mxu0 %v6085
  %v6153 = vpop.f32.mrf.mxu0
  %v6154 = vadd.f32 0.0, %v6153
  %v6155 = vpop.f32.mrf.mxu0
  %6156 = vdwg.mxu0
  %v6157 = vadd.f32 %v6080, %v6154
  %v6158 = vld [vmem:[#allocation3 + $0xa0] sm:$0xff]
  %v6159 = vld [vmem:[%s6 + $0x140] sm:$0xff]
  %v6160 = vld [vmem:[%s6 + $0x148] sm:$0xff]
  %v6162 = vsel %vm69, %v6158, 0
  %6164 = vmatprep.subr.mxu0 0.0
  %6165 = vmatpush1.msra.mxu0 0.0
  %6166 = vmatprep.subr.mxu0 0.0
  %6167 = vmatpush1.msra.mxu0 0.0
  %6168 = vmatprep.subr.mxu0 0.0
  %6169 = vmatpush1.msra.mxu0 0.0
  %6170 = vmatprep.subr.mxu0 0.0
  %6171 = vmatpush1.msra.mxu0 0.0
  %6172 = vmatprep.subr.mxu0 0.0
  %6173 = vmatpush1.msra.mxu0 0.0
  %6174 = vmatprep.subr.mxu0 0.0
  %6175 = vmatpush1.msra.mxu0 0.0
  %6176 = vmatprep.subr.mxu0 0.0
  %6177 = vmatpush1.msra.mxu0 0.0
  %6178 = vmatprep.subr.mxu0 0.0
  %6179 = vmatpush1.msra.mxu0 0.0
  %6180 = vmatprep.subr.mxu0 0.0
  %6181 = vmatpush1.msra.mxu0 0.0
  %6182 = vmatprep.subr.mxu0 0.0
  %6183 = vmatpush1.msra.mxu0 0.0
  %6184 = vmatprep.subr.mxu0 0.0
  %6185 = vmatpush1.msra.mxu0 0.0
  %6186 = vmatprep.subr.mxu0 0.0
  %6187 = vmatpush1.msra.mxu0 0.0
  %6188 = vmatprep.subr.mxu0 0.0
  %6189 = vmatpush1.msra.mxu0 0.0
  %6190 = vmatprep.subr.mxu0 0.0
  %6191 = vmatpush1.msra.mxu0 0.0
  %6192 = vmatprep.subr.mxu0 0.0
  %6193 = vmatpush1.msra.mxu0 %v6160
  %6194 = vmatprep.subr.mxu0 0.0
  %6195 = vmatpush1.msra.mxu0 %v6159
  %6196 = vmatprep.subr.mxu0 0.0
  %6197 = vmatpush2.msra.mxu0 0.0
  %6198 = vmatprep.subr.mxu0 0.0
  %6199 = vmatpush2.msra.mxu0 0.0
  %6200 = vmatprep.subr.mxu0 0.0
  %6201 = vmatpush2.msra.mxu0 0.0
  %6202 = vmatprep.subr.mxu0 0.0
  %6203 = vmatpush2.msra.mxu0 0.0
  %6204 = vmatprep.subr.mxu0 0.0
  %6205 = vmatpush2.msra.mxu0 0.0
  %6206 = vmatprep.subr.mxu0 0.0
  %6207 = vmatpush2.msra.mxu0 0.0
  %6208 = vmatprep.subr.mxu0 0.0
  %6209 = vmatpush2.msra.mxu0 0.0
  %6210 = vmatprep.subr.mxu0 0.0
  %6211 = vmatpush2.msra.mxu0 0.0
  %6212 = vmatprep.subr.mxu0 0.0
  %6213 = vmatpush2.msra.mxu0 0.0
  %6214 = vmatprep.subr.mxu0 0.0
  %6215 = vmatpush2.msra.mxu0 0.0
  %6216 = vmatprep.subr.mxu0 0.0
  %6217 = vmatpush2.msra.mxu0 0.0
  %6218 = vmatprep.subr.mxu0 0.0
  %6219 = vmatpush2.msra.mxu0 0.0
  %6220 = vmatprep.subr.mxu0 0.0
  %6221 = vmatpush2.msra.mxu0 0.0
  %6222 = vmatprep.subr.mxu0 0.0
  %6223 = vmatpush2.msra.mxu0 0.0
  %6224 = vmatprep.subr.mxu0 0.0
  %6225 = vmatpush2.msra.mxu0 0.0
  %6226 = vmatprep.subr.mxu0 0.0
  %6227 = vmatpush2.msra.mxu0 0.0
  %6228 = vmatprep.mubr.f32.mxu0 0.0
  %6229 = vmatmul.mubr.f32.gmra.mxu0 %v6162
  %v6230 = vpop.f32.mrf.mxu0
  %v6231 = vadd.f32 0.0, %v6230
  %v6232 = vpop.f32.mrf.mxu0
  %6233 = vdwg.mxu0
  %v6234 = vadd.f32 %v6157, %v6231
  %v6235 = vld [vmem:[#allocation3 + $0xa8] sm:$0xff]
  %v6236 = vld [vmem:[%s6 + $0x150] sm:$0xff]
  %v6237 = vld [vmem:[%s6 + $0x158] sm:$0xff]
  %v6239 = vsel %vm69, %v6235, 0
  %6241 = vmatprep.subr.mxu0 0.0
  %6242 = vmatpush1.msra.mxu0 0.0
  %6243 = vmatprep.subr.mxu0 0.0
  %6244 = vmatpush1.msra.mxu0 0.0
  %6245 = vmatprep.subr.mxu0 0.0
  %6246 = vmatpush1.msra.mxu0 0.0
  %6247 = vmatprep.subr.mxu0 0.0
  %6248 = vmatpush1.msra.mxu0 0.0
  %6249 = vmatprep.subr.mxu0 0.0
  %6250 = vmatpush1.msra.mxu0 0.0
  %6251 = vmatprep.subr.mxu0 0.0
  %6252 = vmatpush1.msra.mxu0 0.0
  %6253 = vmatprep.subr.mxu0 0.0
  %6254 = vmatpush1.msra.mxu0 0.0
  %6255 = vmatprep.subr.mxu0 0.0
  %6256 = vmatpush1.msra.mxu0 0.0
  %6257 = vmatprep.subr.mxu0 0.0
  %6258 = vmatpush1.msra.mxu0 0.0
  %6259 = vmatprep.subr.mxu0 0.0
  %6260 = vmatpush1.msra.mxu0 0.0
  %6261 = vmatprep.subr.mxu0 0.0
  %6262 = vmatpush1.msra.mxu0 0.0
  %6263 = vmatprep.subr.mxu0 0.0
  %6264 = vmatpush1.msra.mxu0 0.0
  %6265 = vmatprep.subr.mxu0 0.0
  %6266 = vmatpush1.msra.mxu0 0.0
  %6267 = vmatprep.subr.mxu0 0.0
  %6268 = vmatpush1.msra.mxu0 0.0
  %6269 = vmatprep.subr.mxu0 0.0
  %6270 = vmatpush1.msra.mxu0 %v6237
  %6271 = vmatprep.subr.mxu0 0.0
  %6272 = vmatpush1.msra.mxu0 %v6236
  %6273 = vmatprep.subr.mxu0 0.0
  %6274 = vmatpush2.msra.mxu0 0.0
  %6275 = vmatprep.subr.mxu0 0.0
  %6276 = vmatpush2.msra.mxu0 0.0
  %6277 = vmatprep.subr.mxu0 0.0
  %6278 = vmatpush2.msra.mxu0 0.0
  %6279 = vmatprep.subr.mxu0 0.0
  %6280 = vmatpush2.msra.mxu0 0.0
  %6281 = vmatprep.subr.mxu0 0.0
  %6282 = vmatpush2.msra.mxu0 0.0
  %6283 = vmatprep.subr.mxu0 0.0
  %6284 = vmatpush2.msra.mxu0 0.0
  %6285 = vmatprep.subr.mxu0 0.0
  %6286 = vmatpush2.msra.mxu0 0.0
  %6287 = vmatprep.subr.mxu0 0.0
  %6288 = vmatpush2.msra.mxu0 0.0
  %6289 = vmatprep.subr.mxu0 0.0
  %6290 = vmatpush2.msra.mxu0 0.0
  %6291 = vmatprep.subr.mxu0 0.0
  %6292 = vmatpush2.msra.mxu0 0.0
  %6293 = vmatprep.subr.mxu0 0.0
  %6294 = vmatpush2.msra.mxu0 0.0
  %6295 = vmatprep.subr.mxu0 0.0
  %6296 = vmatpush2.msra.mxu0 0.0
  %6297 = vmatprep.subr.mxu0 0.0
  %6298 = vmatpush2.msra.mxu0 0.0
  %6299 = vmatprep.subr.mxu0 0.0
  %6300 = vmatpush2.msra.mxu0 0.0
  %6301 = vmatprep.subr.mxu0 0.0
  %6302 = vmatpush2.msra.mxu0 0.0
  %6303 = vmatprep.subr.mxu0 0.0
  %6304 = vmatpush2.msra.mxu0 0.0
  %6305 = vmatprep.mubr.f32.mxu0 0.0
  %6306 = vmatmul.mubr.f32.gmra.mxu0 %v6239
  %v6307 = vpop.f32.mrf.mxu0
  %v6308 = vadd.f32 0.0, %v6307
  %v6309 = vpop.f32.mrf.mxu0
  %6310 = vdwg.mxu0
  %v6311 = vadd.f32 %v6234, %v6308
  %v6312 = vld [vmem:[#allocation3 + $0xb0] sm:$0xff]
  %v6313 = vld [vmem:[%s6 + $0x160] sm:$0xff]
  %v6314 = vld [vmem:[%s6 + $0x168] sm:$0xff]
  %v6316 = vsel %vm69, %v6312, 0
  %6318 = vmatprep.subr.mxu0 0.0
  %6319 = vmatpush1.msra.mxu0 0.0
  %6320 = vmatprep.subr.mxu0 0.0
  %6321 = vmatpush1.msra.mxu0 0.0
  %6322 = vmatprep.subr.mxu0 0.0
  %6323 = vmatpush1.msra.mxu0 0.0
  %6324 = vmatprep.subr.mxu0 0.0
  %6325 = vmatpush1.msra.mxu0 0.0
  %6326 = vmatprep.subr.mxu0 0.0
  %6327 = vmatpush1.msra.mxu0 0.0
  %6328 = vmatprep.subr.mxu0 0.0
  %6329 = vmatpush1.msra.mxu0 0.0
  %6330 = vmatprep.subr.mxu0 0.0
  %6331 = vmatpush1.msra.mxu0 0.0
  %6332 = vmatprep.subr.mxu0 0.0
  %6333 = vmatpush1.msra.mxu0 0.0
  %6334 = vmatprep.subr.mxu0 0.0
  %6335 = vmatpush1.msra.mxu0 0.0
  %6336 = vmatprep.subr.mxu0 0.0
  %6337 = vmatpush1.msra.mxu0 0.0
  %6338 = vmatprep.subr.mxu0 0.0
  %6339 = vmatpush1.msra.mxu0 0.0
  %6340 = vmatprep.subr.mxu0 0.0
  %6341 = vmatpush1.msra.mxu0 0.0
  %6342 = vmatprep.subr.mxu0 0.0
  %6343 = vmatpush1.msra.mxu0 0.0
  %6344 = vmatprep.subr.mxu0 0.0
  %6345 = vmatpush1.msra.mxu0 0.0
  %6346 = vmatprep.subr.mxu0 0.0
  %6347 = vmatpush1.msra.mxu0 %v6314
  %6348 = vmatprep.subr.mxu0 0.0
  %6349 = vmatpush1.msra.mxu0 %v6313
  %6350 = vmatprep.subr.mxu0 0.0
  %6351 = vmatpush2.msra.mxu0 0.0
  %6352 = vmatprep.subr.mxu0 0.0
  %6353 = vmatpush2.msra.mxu0 0.0
  %6354 = vmatprep.subr.mxu0 0.0
  %6355 = vmatpush2.msra.mxu0 0.0
  %6356 = vmatprep.subr.mxu0 0.0
  %6357 = vmatpush2.msra.mxu0 0.0
  %6358 = vmatprep.subr.mxu0 0.0
  %6359 = vmatpush2.msra.mxu0 0.0
  %6360 = vmatprep.subr.mxu0 0.0
  %6361 = vmatpush2.msra.mxu0 0.0
  %6362 = vmatprep.subr.mxu0 0.0
  %6363 = vmatpush2.msra.mxu0 0.0
  %6364 = vmatprep.subr.mxu0 0.0
  %6365 = vmatpush2.msra.mxu0 0.0
  %6366 = vmatprep.subr.mxu0 0.0
  %6367 = vmatpush2.msra.mxu0 0.0
  %6368 = vmatprep.subr.mxu0 0.0
  %6369 = vmatpush2.msra.mxu0 0.0
  %6370 = vmatprep.subr.mxu0 0.0
  %6371 = vmatpush2.msra.mxu0 0.0
  %6372 = vmatprep.subr.mxu0 0.0
  %6373 = vmatpush2.msra.mxu0 0.0
  %6374 = vmatprep.subr.mxu0 0.0
  %6375 = vmatpush2.msra.mxu0 0.0
  %6376 = vmatprep.subr.mxu0 0.0
  %6377 = vmatpush2.msra.mxu0 0.0
  %6378 = vmatprep.subr.mxu0 0.0
  %6379 = vmatpush2.msra.mxu0 0.0
  %6380 = vmatprep.subr.mxu0 0.0
  %6381 = vmatpush2.msra.mxu0 0.0
  %6382 = vmatprep.mubr.f32.mxu0 0.0
  %6383 = vmatmul.mubr.f32.gmra.mxu0 %v6316
  %v6384 = vpop.f32.mrf.mxu0
  %v6385 = vadd.f32 0.0, %v6384
  %v6386 = vpop.f32.mrf.mxu0
  %6387 = vdwg.mxu0
  %v6388 = vadd.f32 %v6311, %v6385
  %v6389 = vld [vmem:[#allocation3 + $0xb8] sm:$0xff]
  %v6390 = vld [vmem:[%s6 + $0x170] sm:$0xff]
  %v6391 = vld [vmem:[%s6 + $0x178] sm:$0xff]
  %v6393 = vsel %vm69, %v6389, 0
  %6395 = vmatprep.subr.mxu0 0.0
  %6396 = vmatpush1.msra.mxu0 0.0
  %6397 = vmatprep.subr.mxu0 0.0
  %6398 = vmatpush1.msra.mxu0 0.0
  %6399 = vmatprep.subr.mxu0 0.0
  %6400 = vmatpush1.msra.mxu0 0.0
  %6401 = vmatprep.subr.mxu0 0.0
  %6402 = vmatpush1.msra.mxu0 0.0
  %6403 = vmatprep.subr.mxu0 0.0
  %6404 = vmatpush1.msra.mxu0 0.0
  %6405 = vmatprep.subr.mxu0 0.0
  %6406 = vmatpush1.msra.mxu0 0.0
  %6407 = vmatprep.subr.mxu0 0.0
  %6408 = vmatpush1.msra.mxu0 0.0
  %6409 = vmatprep.subr.mxu0 0.0
  %6410 = vmatpush1.msra.mxu0 0.0
  %6411 = vmatprep.subr.mxu0 0.0
  %6412 = vmatpush1.msra.mxu0 0.0
  %6413 = vmatprep.subr.mxu0 0.0
  %6414 = vmatpush1.msra.mxu0 0.0
  %6415 = vmatprep.subr.mxu0 0.0
  %6416 = vmatpush1.msra.mxu0 0.0
  %6417 = vmatprep.subr.mxu0 0.0
  %6418 = vmatpush1.msra.mxu0 0.0
  %6419 = vmatprep.subr.mxu0 0.0
  %6420 = vmatpush1.msra.mxu0 0.0
  %6421 = vmatprep.subr.mxu0 0.0
  %6422 = vmatpush1.msra.mxu0 0.0
  %6423 = vmatprep.subr.mxu0 0.0
  %6424 = vmatpush1.msra.mxu0 %v6391
  %6425 = vmatprep.subr.mxu0 0.0
  %6426 = vmatpush1.msra.mxu0 %v6390
  %6427 = vmatprep.subr.mxu0 0.0
  %6428 = vmatpush2.msra.mxu0 0.0
  %6429 = vmatprep.subr.mxu0 0.0
  %6430 = vmatpush2.msra.mxu0 0.0
  %6431 = vmatprep.subr.mxu0 0.0
  %6432 = vmatpush2.msra.mxu0 0.0
  %6433 = vmatprep.subr.mxu0 0.0
  %6434 = vmatpush2.msra.mxu0 0.0
  %6435 = vmatprep.subr.mxu0 0.0
  %6436 = vmatpush2.msra.mxu0 0.0
  %6437 = vmatprep.subr.mxu0 0.0
  %6438 = vmatpush2.msra.mxu0 0.0
  %6439 = vmatprep.subr.mxu0 0.0
  %6440 = vmatpush2.msra.mxu0 0.0
  %6441 = vmatprep.subr.mxu0 0.0
  %6442 = vmatpush2.msra.mxu0 0.0
  %6443 = vmatprep.subr.mxu0 0.0
  %6444 = vmatpush2.msra.mxu0 0.0
  %6445 = vmatprep.subr.mxu0 0.0
  %6446 = vmatpush2.msra.mxu0 0.0
  %6447 = vmatprep.subr.mxu0 0.0
  %6448 = vmatpush2.msra.mxu0 0.0
  %6449 = vmatprep.subr.mxu0 0.0
  %6450 = vmatpush2.msra.mxu0 0.0
  %6451 = vmatprep.subr.mxu0 0.0
  %6452 = vmatpush2.msra.mxu0 0.0
  %6453 = vmatprep.subr.mxu0 0.0
  %6454 = vmatpush2.msra.mxu0 0.0
  %6455 = vmatprep.subr.mxu0 0.0
  %6456 = vmatpush2.msra.mxu0 0.0
  %6457 = vmatprep.subr.mxu0 0.0
  %6458 = vmatpush2.msra.mxu0 0.0
  %6459 = vmatprep.mubr.f32.mxu0 0.0
  %6460 = vmatmul.mubr.f32.gmra.mxu0 %v6393
  %v6461 = vpop.f32.mrf.mxu0
  %v6462 = vadd.f32 0.0, %v6461
  %v6463 = vpop.f32.mrf.mxu0
  %6464 = vdwg.mxu0
  %v6465 = vadd.f32 %v6388, %v6462
  %v6466 = vld [vmem:[#allocation3 + $0xc0] sm:$0xff]
  %v6467 = vld [vmem:[%s6 + $0x180] sm:$0xff]
  %v6468 = vld [vmem:[%s6 + $0x188] sm:$0xff]
  %v6470 = vsel %vm69, %v6466, 0
  %6472 = vmatprep.subr.mxu0 0.0
  %6473 = vmatpush1.msra.mxu0 0.0
  %6474 = vmatprep.subr.mxu0 0.0
  %6475 = vmatpush1.msra.mxu0 0.0
  %6476 = vmatprep.subr.mxu0 0.0
  %6477 = vmatpush1.msra.mxu0 0.0
  %6478 = vmatprep.subr.mxu0 0.0
  %6479 = vmatpush1.msra.mxu0 0.0
  %6480 = vmatprep.subr.mxu0 0.0
  %6481 = vmatpush1.msra.mxu0 0.0
  %6482 = vmatprep.subr.mxu0 0.0
  %6483 = vmatpush1.msra.mxu0 0.0
  %6484 = vmatprep.subr.mxu0 0.0
  %6485 = vmatpush1.msra.mxu0 0.0
  %6486 = vmatprep.subr.mxu0 0.0
  %6487 = vmatpush1.msra.mxu0 0.0
  %6488 = vmatprep.subr.mxu0 0.0
  %6489 = vmatpush1.msra.mxu0 0.0
  %6490 = vmatprep.subr.mxu0 0.0
  %6491 = vmatpush1.msra.mxu0 0.0
  %6492 = vmatprep.subr.mxu0 0.0
  %6493 = vmatpush1.msra.mxu0 0.0
  %6494 = vmatprep.subr.mxu0 0.0
  %6495 = vmatpush1.msra.mxu0 0.0
  %6496 = vmatprep.subr.mxu0 0.0
  %6497 = vmatpush1.msra.mxu0 0.0
  %6498 = vmatprep.subr.mxu0 0.0
  %6499 = vmatpush1.msra.mxu0 0.0
  %6500 = vmatprep.subr.mxu0 0.0
  %6501 = vmatpush1.msra.mxu0 %v6468
  %6502 = vmatprep.subr.mxu0 0.0
  %6503 = vmatpush1.msra.mxu0 %v6467
  %6504 = vmatprep.subr.mxu0 0.0
  %6505 = vmatpush2.msra.mxu0 0.0
  %6506 = vmatprep.subr.mxu0 0.0
  %6507 = vmatpush2.msra.mxu0 0.0
  %6508 = vmatprep.subr.mxu0 0.0
  %6509 = vmatpush2.msra.mxu0 0.0
  %6510 = vmatprep.subr.mxu0 0.0
  %6511 = vmatpush2.msra.mxu0 0.0
  %6512 = vmatprep.subr.mxu0 0.0
  %6513 = vmatpush2.msra.mxu0 0.0
  %6514 = vmatprep.subr.mxu0 0.0
  %6515 = vmatpush2.msra.mxu0 0.0
  %6516 = vmatprep.subr.mxu0 0.0
  %6517 = vmatpush2.msra.mxu0 0.0
  %6518 = vmatprep.subr.mxu0 0.0
  %6519 = vmatpush2.msra.mxu0 0.0
  %6520 = vmatprep.subr.mxu0 0.0
  %6521 = vmatpush2.msra.mxu0 0.0
  %6522 = vmatprep.subr.mxu0 0.0
  %6523 = vmatpush2.msra.mxu0 0.0
  %6524 = vmatprep.subr.mxu0 0.0
  %6525 = vmatpush2.msra.mxu0 0.0
  %6526 = vmatprep.subr.mxu0 0.0
  %6527 = vmatpush2.msra.mxu0 0.0
  %6528 = vmatprep.subr.mxu0 0.0
  %6529 = vmatpush2.msra.mxu0 0.0
  %6530 = vmatprep.subr.mxu0 0.0
  %6531 = vmatpush2.msra.mxu0 0.0
  %6532 = vmatprep.subr.mxu0 0.0
  %6533 = vmatpush2.msra.mxu0 0.0
  %6534 = vmatprep.subr.mxu0 0.0
  %6535 = vmatpush2.msra.mxu0 0.0
  %6536 = vmatprep.mubr.f32.mxu0 0.0
  %6537 = vmatmul.mubr.f32.gmra.mxu0 %v6470
  %v6538 = vpop.f32.mrf.mxu0
  %v6539 = vadd.f32 0.0, %v6538
  %v6540 = vpop.f32.mrf.mxu0
  %6541 = vdwg.mxu0
  %v6542 = vadd.f32 %v6465, %v6539
  %v6543 = vld [vmem:[#allocation3 + $0xc8] sm:$0xff]
  %v6544 = vld [vmem:[%s6 + $0x190] sm:$0xff]
  %v6545 = vld [vmem:[%s6 + $0x198] sm:$0xff]
  %v6547 = vsel %vm69, %v6543, 0
  %6549 = vmatprep.subr.mxu0 0.0
  %6550 = vmatpush1.msra.mxu0 0.0
  %6551 = vmatprep.subr.mxu0 0.0
  %6552 = vmatpush1.msra.mxu0 0.0
  %6553 = vmatprep.subr.mxu0 0.0
  %6554 = vmatpush1.msra.mxu0 0.0
  %6555 = vmatprep.subr.mxu0 0.0
  %6556 = vmatpush1.msra.mxu0 0.0
  %6557 = vmatprep.subr.mxu0 0.0
  %6558 = vmatpush1.msra.mxu0 0.0
  %6559 = vmatprep.subr.mxu0 0.0
  %6560 = vmatpush1.msra.mxu0 0.0
  %6561 = vmatprep.subr.mxu0 0.0
  %6562 = vmatpush1.msra.mxu0 0.0
  %6563 = vmatprep.subr.mxu0 0.0
  %6564 = vmatpush1.msra.mxu0 0.0
  %6565 = vmatprep.subr.mxu0 0.0
  %6566 = vmatpush1.msra.mxu0 0.0
  %6567 = vmatprep.subr.mxu0 0.0
  %6568 = vmatpush1.msra.mxu0 0.0
  %6569 = vmatprep.subr.mxu0 0.0
  %6570 = vmatpush1.msra.mxu0 0.0
  %6571 = vmatprep.subr.mxu0 0.0
  %6572 = vmatpush1.msra.mxu0 0.0
  %6573 = vmatprep.subr.mxu0 0.0
  %6574 = vmatpush1.msra.mxu0 0.0
  %6575 = vmatprep.subr.mxu0 0.0
  %6576 = vmatpush1.msra.mxu0 0.0
  %6577 = vmatprep.subr.mxu0 0.0
  %6578 = vmatpush1.msra.mxu0 %v6545
  %6579 = vmatprep.subr.mxu0 0.0
  %6580 = vmatpush1.msra.mxu0 %v6544
  %6581 = vmatprep.subr.mxu0 0.0
  %6582 = vmatpush2.msra.mxu0 0.0
  %6583 = vmatprep.subr.mxu0 0.0
  %6584 = vmatpush2.msra.mxu0 0.0
  %6585 = vmatprep.subr.mxu0 0.0
  %6586 = vmatpush2.msra.mxu0 0.0
  %6587 = vmatprep.subr.mxu0 0.0
  %6588 = vmatpush2.msra.mxu0 0.0
  %6589 = vmatprep.subr.mxu0 0.0
  %6590 = vmatpush2.msra.mxu0 0.0
  %6591 = vmatprep.subr.mxu0 0.0
  %6592 = vmatpush2.msra.mxu0 0.0
  %6593 = vmatprep.subr.mxu0 0.0
  %6594 = vmatpush2.msra.mxu0 0.0
  %6595 = vmatprep.subr.mxu0 0.0
  %6596 = vmatpush2.msra.mxu0 0.0
  %6597 = vmatprep.subr.mxu0 0.0
  %6598 = vmatpush2.msra.mxu0 0.0
  %6599 = vmatprep.subr.mxu0 0.0
  %6600 = vmatpush2.msra.mxu0 0.0
  %6601 = vmatprep.subr.mxu0 0.0
  %6602 = vmatpush2.msra.mxu0 0.0
  %6603 = vmatprep.subr.mxu0 0.0
  %6604 = vmatpush2.msra.mxu0 0.0
  %6605 = vmatprep.subr.mxu0 0.0
  %6606 = vmatpush2.msra.mxu0 0.0
  %6607 = vmatprep.subr.mxu0 0.0
  %6608 = vmatpush2.msra.mxu0 0.0
  %6609 = vmatprep.subr.mxu0 0.0
  %6610 = vmatpush2.msra.mxu0 0.0
  %6611 = vmatprep.subr.mxu0 0.0
  %6612 = vmatpush2.msra.mxu0 0.0
  %6613 = vmatprep.mubr.f32.mxu0 0.0
  %6614 = vmatmul.mubr.f32.gmra.mxu0 %v6547
  %v6615 = vpop.f32.mrf.mxu0
  %v6616 = vadd.f32 0.0, %v6615
  %v6617 = vpop.f32.mrf.mxu0
  %6618 = vdwg.mxu0
  %v6619 = vadd.f32 %v6542, %v6616
  %v6620 = vld [vmem:[#allocation3 + $0xd0] sm:$0xff]
  %v6621 = vld [vmem:[%s6 + $0x1a0] sm:$0xff]
  %v6622 = vld [vmem:[%s6 + $0x1a8] sm:$0xff]
  %v6624 = vsel %vm69, %v6620, 0
  %6626 = vmatprep.subr.mxu0 0.0
  %6627 = vmatpush1.msra.mxu0 0.0
  %6628 = vmatprep.subr.mxu0 0.0
  %6629 = vmatpush1.msra.mxu0 0.0
  %6630 = vmatprep.subr.mxu0 0.0
  %6631 = vmatpush1.msra.mxu0 0.0
  %6632 = vmatprep.subr.mxu0 0.0
  %6633 = vmatpush1.msra.mxu0 0.0
  %6634 = vmatprep.subr.mxu0 0.0
  %6635 = vmatpush1.msra.mxu0 0.0
  %6636 = vmatprep.subr.mxu0 0.0
  %6637 = vmatpush1.msra.mxu0 0.0
  %6638 = vmatprep.subr.mxu0 0.0
  %6639 = vmatpush1.msra.mxu0 0.0
  %6640 = vmatprep.subr.mxu0 0.0
  %6641 = vmatpush1.msra.mxu0 0.0
  %6642 = vmatprep.subr.mxu0 0.0
  %6643 = vmatpush1.msra.mxu0 0.0
  %6644 = vmatprep.subr.mxu0 0.0
  %6645 = vmatpush1.msra.mxu0 0.0
  %6646 = vmatprep.subr.mxu0 0.0
  %6647 = vmatpush1.msra.mxu0 0.0
  %6648 = vmatprep.subr.mxu0 0.0
  %6649 = vmatpush1.msra.mxu0 0.0
  %6650 = vmatprep.subr.mxu0 0.0
  %6651 = vmatpush1.msra.mxu0 0.0
  %6652 = vmatprep.subr.mxu0 0.0
  %6653 = vmatpush1.msra.mxu0 0.0
  %6654 = vmatprep.subr.mxu0 0.0
  %6655 = vmatpush1.msra.mxu0 %v6622
  %6656 = vmatprep.subr.mxu0 0.0
  %6657 = vmatpush1.msra.mxu0 %v6621
  %6658 = vmatprep.subr.mxu0 0.0
  %6659 = vmatpush2.msra.mxu0 0.0
  %6660 = vmatprep.subr.mxu0 0.0
  %6661 = vmatpush2.msra.mxu0 0.0
  %6662 = vmatprep.subr.mxu0 0.0
  %6663 = vmatpush2.msra.mxu0 0.0
  %6664 = vmatprep.subr.mxu0 0.0
  %6665 = vmatpush2.msra.mxu0 0.0
  %6666 = vmatprep.subr.mxu0 0.0
  %6667 = vmatpush2.msra.mxu0 0.0
  %6668 = vmatprep.subr.mxu0 0.0
  %6669 = vmatpush2.msra.mxu0 0.0
  %6670 = vmatprep.subr.mxu0 0.0
  %6671 = vmatpush2.msra.mxu0 0.0
  %6672 = vmatprep.subr.mxu0 0.0
  %6673 = vmatpush2.msra.mxu0 0.0
  %6674 = vmatprep.subr.mxu0 0.0
  %6675 = vmatpush2.msra.mxu0 0.0
  %6676 = vmatprep.subr.mxu0 0.0
  %6677 = vmatpush2.msra.mxu0 0.0
  %6678 = vmatprep.subr.mxu0 0.0
  %6679 = vmatpush2.msra.mxu0 0.0
  %6680 = vmatprep.subr.mxu0 0.0
  %6681 = vmatpush2.msra.mxu0 0.0
  %6682 = vmatprep.subr.mxu0 0.0
  %6683 = vmatpush2.msra.mxu0 0.0
  %6684 = vmatprep.subr.mxu0 0.0
  %6685 = vmatpush2.msra.mxu0 0.0
  %6686 = vmatprep.subr.mxu0 0.0
  %6687 = vmatpush2.msra.mxu0 0.0
  %6688 = vmatprep.subr.mxu0 0.0
  %6689 = vmatpush2.msra.mxu0 0.0
  %6690 = vmatprep.mubr.f32.mxu0 0.0
  %6691 = vmatmul.mubr.f32.gmra.mxu0 %v6624
  %v6692 = vpop.f32.mrf.mxu0
  %v6693 = vadd.f32 0.0, %v6692
  %v6694 = vpop.f32.mrf.mxu0
  %6695 = vdwg.mxu0
  %v6696 = vadd.f32 %v6619, %v6693
  %v6697 = vld [vmem:[#allocation3 + $0xd8] sm:$0xff]
  %v6698 = vld [vmem:[%s6 + $0x1b0] sm:$0xff]
  %v6699 = vld [vmem:[%s6 + $0x1b8] sm:$0xff]
  %v6701 = vsel %vm69, %v6697, 0
  %6703 = vmatprep.subr.mxu0 0.0
  %6704 = vmatpush1.msra.mxu0 0.0
  %6705 = vmatprep.subr.mxu0 0.0
  %6706 = vmatpush1.msra.mxu0 0.0
  %6707 = vmatprep.subr.mxu0 0.0
  %6708 = vmatpush1.msra.mxu0 0.0
  %6709 = vmatprep.subr.mxu0 0.0
  %6710 = vmatpush1.msra.mxu0 0.0
  %6711 = vmatprep.subr.mxu0 0.0
  %6712 = vmatpush1.msra.mxu0 0.0
  %6713 = vmatprep.subr.mxu0 0.0
  %6714 = vmatpush1.msra.mxu0 0.0
  %6715 = vmatprep.subr.mxu0 0.0
  %6716 = vmatpush1.msra.mxu0 0.0
  %6717 = vmatprep.subr.mxu0 0.0
  %6718 = vmatpush1.msra.mxu0 0.0
  %6719 = vmatprep.subr.mxu0 0.0
  %6720 = vmatpush1.msra.mxu0 0.0
  %6721 = vmatprep.subr.mxu0 0.0
  %6722 = vmatpush1.msra.mxu0 0.0
  %6723 = vmatprep.subr.mxu0 0.0
  %6724 = vmatpush1.msra.mxu0 0.0
  %6725 = vmatprep.subr.mxu0 0.0
  %6726 = vmatpush1.msra.mxu0 0.0
  %6727 = vmatprep.subr.mxu0 0.0
  %6728 = vmatpush1.msra.mxu0 0.0
  %6729 = vmatprep.subr.mxu0 0.0
  %6730 = vmatpush1.msra.mxu0 0.0
  %6731 = vmatprep.subr.mxu0 0.0
  %6732 = vmatpush1.msra.mxu0 %v6699
  %6733 = vmatprep.subr.mxu0 0.0
  %6734 = vmatpush1.msra.mxu0 %v6698
  %6735 = vmatprep.subr.mxu0 0.0
  %6736 = vmatpush2.msra.mxu0 0.0
  %6737 = vmatprep.subr.mxu0 0.0
  %6738 = vmatpush2.msra.mxu0 0.0
  %6739 = vmatprep.subr.mxu0 0.0
  %6740 = vmatpush2.msra.mxu0 0.0
  %6741 = vmatprep.subr.mxu0 0.0
  %6742 = vmatpush2.msra.mxu0 0.0
  %6743 = vmatprep.subr.mxu0 0.0
  %6744 = vmatpush2.msra.mxu0 0.0
  %6745 = vmatprep.subr.mxu0 0.0
  %6746 = vmatpush2.msra.mxu0 0.0
  %6747 = vmatprep.subr.mxu0 0.0
  %6748 = vmatpush2.msra.mxu0 0.0
  %6749 = vmatprep.subr.mxu0 0.0
  %6750 = vmatpush2.msra.mxu0 0.0
  %6751 = vmatprep.subr.mxu0 0.0
  %6752 = vmatpush2.msra.mxu0 0.0
  %6753 = vmatprep.subr.mxu0 0.0
  %6754 = vmatpush2.msra.mxu0 0.0
  %6755 = vmatprep.subr.mxu0 0.0
  %6756 = vmatpush2.msra.mxu0 0.0
  %6757 = vmatprep.subr.mxu0 0.0
  %6758 = vmatpush2.msra.mxu0 0.0
  %6759 = vmatprep.subr.mxu0 0.0
  %6760 = vmatpush2.msra.mxu0 0.0
  %6761 = vmatprep.subr.mxu0 0.0
  %6762 = vmatpush2.msra.mxu0 0.0
  %6763 = vmatprep.subr.mxu0 0.0
  %6764 = vmatpush2.msra.mxu0 0.0
  %6765 = vmatprep.subr.mxu0 0.0
  %6766 = vmatpush2.msra.mxu0 0.0
  %6767 = vmatprep.mubr.f32.mxu0 0.0
  %6768 = vmatmul.mubr.f32.gmra.mxu0 %v6701
  %v6769 = vpop.f32.mrf.mxu0
  %v6770 = vadd.f32 0.0, %v6769
  %v6771 = vpop.f32.mrf.mxu0
  %6772 = vdwg.mxu0
  %v6773 = vadd.f32 %v6696, %v6770
  %v6774 = vld [vmem:[#allocation3 + $0xe0] sm:$0xff]
  %v6775 = vld [vmem:[%s6 + $0x1c0] sm:$0xff]
  %v6776 = vld [vmem:[%s6 + $0x1c8] sm:$0xff]
  %v6778 = vsel %vm69, %v6774, 0
  %6780 = vmatprep.subr.mxu0 0.0
  %6781 = vmatpush1.msra.mxu0 0.0
  %6782 = vmatprep.subr.mxu0 0.0
  %6783 = vmatpush1.msra.mxu0 0.0
  %6784 = vmatprep.subr.mxu0 0.0
  %6785 = vmatpush1.msra.mxu0 0.0
  %6786 = vmatprep.subr.mxu0 0.0
  %6787 = vmatpush1.msra.mxu0 0.0
  %6788 = vmatprep.subr.mxu0 0.0
  %6789 = vmatpush1.msra.mxu0 0.0
  %6790 = vmatprep.subr.mxu0 0.0
  %6791 = vmatpush1.msra.mxu0 0.0
  %6792 = vmatprep.subr.mxu0 0.0
  %6793 = vmatpush1.msra.mxu0 0.0
  %6794 = vmatprep.subr.mxu0 0.0
  %6795 = vmatpush1.msra.mxu0 0.0
  %6796 = vmatprep.subr.mxu0 0.0
  %6797 = vmatpush1.msra.mxu0 0.0
  %6798 = vmatprep.subr.mxu0 0.0
  %6799 = vmatpush1.msra.mxu0 0.0
  %6800 = vmatprep.subr.mxu0 0.0
  %6801 = vmatpush1.msra.mxu0 0.0
  %6802 = vmatprep.subr.mxu0 0.0
  %6803 = vmatpush1.msra.mxu0 0.0
  %6804 = vmatprep.subr.mxu0 0.0
  %6805 = vmatpush1.msra.mxu0 0.0
  %6806 = vmatprep.subr.mxu0 0.0
  %6807 = vmatpush1.msra.mxu0 0.0
  %6808 = vmatprep.subr.mxu0 0.0
  %6809 = vmatpush1.msra.mxu0 %v6776
  %6810 = vmatprep.subr.mxu0 0.0
  %6811 = vmatpush1.msra.mxu0 %v6775
  %6812 = vmatprep.subr.mxu0 0.0
  %6813 = vmatpush2.msra.mxu0 0.0
  %6814 = vmatprep.subr.mxu0 0.0
  %6815 = vmatpush2.msra.mxu0 0.0
  %6816 = vmatprep.subr.mxu0 0.0
  %6817 = vmatpush2.msra.mxu0 0.0
  %6818 = vmatprep.subr.mxu0 0.0
  %6819 = vmatpush2.msra.mxu0 0.0
  %6820 = vmatprep.subr.mxu0 0.0
  %6821 = vmatpush2.msra.mxu0 0.0
  %6822 = vmatprep.subr.mxu0 0.0
  %6823 = vmatpush2.msra.mxu0 0.0
  %6824 = vmatprep.subr.mxu0 0.0
  %6825 = vmatpush2.msra.mxu0 0.0
  %6826 = vmatprep.subr.mxu0 0.0
  %6827 = vmatpush2.msra.mxu0 0.0
  %6828 = vmatprep.subr.mxu0 0.0
  %6829 = vmatpush2.msra.mxu0 0.0
  %6830 = vmatprep.subr.mxu0 0.0
  %6831 = vmatpush2.msra.mxu0 0.0
  %6832 = vmatprep.subr.mxu0 0.0
  %6833 = vmatpush2.msra.mxu0 0.0
  %6834 = vmatprep.subr.mxu0 0.0
  %6835 = vmatpush2.msra.mxu0 0.0
  %6836 = vmatprep.subr.mxu0 0.0
  %6837 = vmatpush2.msra.mxu0 0.0
  %6838 = vmatprep.subr.mxu0 0.0
  %6839 = vmatpush2.msra.mxu0 0.0
  %6840 = vmatprep.subr.mxu0 0.0
  %6841 = vmatpush2.msra.mxu0 0.0
  %6842 = vmatprep.subr.mxu0 0.0
  %6843 = vmatpush2.msra.mxu0 0.0
  %6844 = vmatprep.mubr.f32.mxu0 0.0
  %6845 = vmatmul.mubr.f32.gmra.mxu0 %v6778
  %v6846 = vpop.f32.mrf.mxu0
  %v6847 = vadd.f32 0.0, %v6846
  %v6848 = vpop.f32.mrf.mxu0
  %6849 = vdwg.mxu0
  %v6850 = vadd.f32 %v6773, %v6847
  %v6851 = vld [vmem:[#allocation3 + $0xe8] sm:$0xff]
  %v6852 = vld [vmem:[%s6 + $0x1d0] sm:$0xff]
  %v6853 = vld [vmem:[%s6 + $0x1d8] sm:$0xff]
  %v6855 = vsel %vm69, %v6851, 0
  %6857 = vmatprep.subr.mxu0 0.0
  %6858 = vmatpush1.msra.mxu0 0.0
  %6859 = vmatprep.subr.mxu0 0.0
  %6860 = vmatpush1.msra.mxu0 0.0
  %6861 = vmatprep.subr.mxu0 0.0
  %6862 = vmatpush1.msra.mxu0 0.0
  %6863 = vmatprep.subr.mxu0 0.0
  %6864 = vmatpush1.msra.mxu0 0.0
  %6865 = vmatprep.subr.mxu0 0.0
  %6866 = vmatpush1.msra.mxu0 0.0
  %6867 = vmatprep.subr.mxu0 0.0
  %6868 = vmatpush1.msra.mxu0 0.0
  %6869 = vmatprep.subr.mxu0 0.0
  %6870 = vmatpush1.msra.mxu0 0.0
  %6871 = vmatprep.subr.mxu0 0.0
  %6872 = vmatpush1.msra.mxu0 0.0
  %6873 = vmatprep.subr.mxu0 0.0
  %6874 = vmatpush1.msra.mxu0 0.0
  %6875 = vmatprep.subr.mxu0 0.0
  %6876 = vmatpush1.msra.mxu0 0.0
  %6877 = vmatprep.subr.mxu0 0.0
  %6878 = vmatpush1.msra.mxu0 0.0
  %6879 = vmatprep.subr.mxu0 0.0
  %6880 = vmatpush1.msra.mxu0 0.0
  %6881 = vmatprep.subr.mxu0 0.0
  %6882 = vmatpush1.msra.mxu0 0.0
  %6883 = vmatprep.subr.mxu0 0.0
  %6884 = vmatpush1.msra.mxu0 0.0
  %6885 = vmatprep.subr.mxu0 0.0
  %6886 = vmatpush1.msra.mxu0 %v6853
  %6887 = vmatprep.subr.mxu0 0.0
  %6888 = vmatpush1.msra.mxu0 %v6852
  %6889 = vmatprep.subr.mxu0 0.0
  %6890 = vmatpush2.msra.mxu0 0.0
  %6891 = vmatprep.subr.mxu0 0.0
  %6892 = vmatpush2.msra.mxu0 0.0
  %6893 = vmatprep.subr.mxu0 0.0
  %6894 = vmatpush2.msra.mxu0 0.0
  %6895 = vmatprep.subr.mxu0 0.0
  %6896 = vmatpush2.msra.mxu0 0.0
  %6897 = vmatprep.subr.mxu0 0.0
  %6898 = vmatpush2.msra.mxu0 0.0
  %6899 = vmatprep.subr.mxu0 0.0
  %6900 = vmatpush2.msra.mxu0 0.0
  %6901 = vmatprep.subr.mxu0 0.0
  %6902 = vmatpush2.msra.mxu0 0.0
  %6903 = vmatprep.subr.mxu0 0.0
  %6904 = vmatpush2.msra.mxu0 0.0
  %6905 = vmatprep.subr.mxu0 0.0
  %6906 = vmatpush2.msra.mxu0 0.0
  %6907 = vmatprep.subr.mxu0 0.0
  %6908 = vmatpush2.msra.mxu0 0.0
  %6909 = vmatprep.subr.mxu0 0.0
  %6910 = vmatpush2.msra.mxu0 0.0
  %6911 = vmatprep.subr.mxu0 0.0
  %6912 = vmatpush2.msra.mxu0 0.0
  %6913 = vmatprep.subr.mxu0 0.0
  %6914 = vmatpush2.msra.mxu0 0.0
  %6915 = vmatprep.subr.mxu0 0.0
  %6916 = vmatpush2.msra.mxu0 0.0
  %6917 = vmatprep.subr.mxu0 0.0
  %6918 = vmatpush2.msra.mxu0 0.0
  %6919 = vmatprep.subr.mxu0 0.0
  %6920 = vmatpush2.msra.mxu0 0.0
  %6921 = vmatprep.mubr.f32.mxu0 0.0
  %6922 = vmatmul.mubr.f32.gmra.mxu0 %v6855
  %v6923 = vpop.f32.mrf.mxu0
  %v6924 = vadd.f32 0.0, %v6923
  %v6925 = vpop.f32.mrf.mxu0
  %6926 = vdwg.mxu0
  %v6927 = vadd.f32 %v6850, %v6924
  %v6928 = vld [vmem:[#allocation3 + $0xf0] sm:$0xff]
  %v6929 = vld [vmem:[%s6 + $0x1e0] sm:$0xff]
  %v6930 = vld [vmem:[%s6 + $0x1e8] sm:$0xff]
  %v6932 = vsel %vm69, %v6928, 0
  %6934 = vmatprep.subr.mxu0 0.0
  %6935 = vmatpush1.msra.mxu0 0.0
  %6936 = vmatprep.subr.mxu0 0.0
  %6937 = vmatpush1.msra.mxu0 0.0
  %6938 = vmatprep.subr.mxu0 0.0
  %6939 = vmatpush1.msra.mxu0 0.0
  %6940 = vmatprep.subr.mxu0 0.0
  %6941 = vmatpush1.msra.mxu0 0.0
  %6942 = vmatprep.subr.mxu0 0.0
  %6943 = vmatpush1.msra.mxu0 0.0
  %6944 = vmatprep.subr.mxu0 0.0
  %6945 = vmatpush1.msra.mxu0 0.0
  %6946 = vmatprep.subr.mxu0 0.0
  %6947 = vmatpush1.msra.mxu0 0.0
  %6948 = vmatprep.subr.mxu0 0.0
  %6949 = vmatpush1.msra.mxu0 0.0
  %6950 = vmatprep.subr.mxu0 0.0
  %6951 = vmatpush1.msra.mxu0 0.0
  %6952 = vmatprep.subr.mxu0 0.0
  %6953 = vmatpush1.msra.mxu0 0.0
  %6954 = vmatprep.subr.mxu0 0.0
  %6955 = vmatpush1.msra.mxu0 0.0
  %6956 = vmatprep.subr.mxu0 0.0
  %6957 = vmatpush1.msra.mxu0 0.0
  %6958 = vmatprep.subr.mxu0 0.0
  %6959 = vmatpush1.msra.mxu0 0.0
  %6960 = vmatprep.subr.mxu0 0.0
  %6961 = vmatpush1.msra.mxu0 0.0
  %6962 = vmatprep.subr.mxu0 0.0
  %6963 = vmatpush1.msra.mxu0 %v6930
  %6964 = vmatprep.subr.mxu0 0.0
  %6965 = vmatpush1.msra.mxu0 %v6929
  %6966 = vmatprep.subr.mxu0 0.0
  %6967 = vmatpush2.msra.mxu0 0.0
  %6968 = vmatprep.subr.mxu0 0.0
  %6969 = vmatpush2.msra.mxu0 0.0
  %6970 = vmatprep.subr.mxu0 0.0
  %6971 = vmatpush2.msra.mxu0 0.0
  %6972 = vmatprep.subr.mxu0 0.0
  %6973 = vmatpush2.msra.mxu0 0.0
  %6974 = vmatprep.subr.mxu0 0.0
  %6975 = vmatpush2.msra.mxu0 0.0
  %6976 = vmatprep.subr.mxu0 0.0
  %6977 = vmatpush2.msra.mxu0 0.0
  %6978 = vmatprep.subr.mxu0 0.0
  %6979 = vmatpush2.msra.mxu0 0.0
  %6980 = vmatprep.subr.mxu0 0.0
  %6981 = vmatpush2.msra.mxu0 0.0
  %6982 = vmatprep.subr.mxu0 0.0
  %6983 = vmatpush2.msra.mxu0 0.0
  %6984 = vmatprep.subr.mxu0 0.0
  %6985 = vmatpush2.msra.mxu0 0.0
  %6986 = vmatprep.subr.mxu0 0.0
  %6987 = vmatpush2.msra.mxu0 0.0
  %6988 = vmatprep.subr.mxu0 0.0
  %6989 = vmatpush2.msra.mxu0 0.0
  %6990 = vmatprep.subr.mxu0 0.0
  %6991 = vmatpush2.msra.mxu0 0.0
  %6992 = vmatprep.subr.mxu0 0.0
  %6993 = vmatpush2.msra.mxu0 0.0
  %6994 = vmatprep.subr.mxu0 0.0
  %6995 = vmatpush2.msra.mxu0 0.0
  %6996 = vmatprep.subr.mxu0 0.0
  %6997 = vmatpush2.msra.mxu0 0.0
  %6998 = vmatprep.mubr.f32.mxu0 0.0
  %6999 = vmatmul.mubr.f32.gmra.mxu0 %v6932
  %v7000 = vpop.f32.mrf.mxu0
  %v7001 = vadd.f32 0.0, %v7000
  %v7002 = vpop.f32.mrf.mxu0
  %7003 = vdwg.mxu0
  %v7004 = vadd.f32 %v6927, %v7001
  %v7005 = vld [vmem:[#allocation3 + $0xf8] sm:$0xff]
  %v7006 = vld [vmem:[%s6 + $0x1f0] sm:$0xff]
  %v7007 = vld [vmem:[%s6 + $0x1f8] sm:$0xff]
  %v7009 = vsel %vm69, %v7005, 0
  %7011 = vmatprep.subr.mxu0 0.0
  %7012 = vmatpush1.msra.mxu0 0.0
  %7013 = vmatprep.subr.mxu0 0.0
  %7014 = vmatpush1.msra.mxu0 0.0
  %7015 = vmatprep.subr.mxu0 0.0
  %7016 = vmatpush1.msra.mxu0 0.0
  %7017 = vmatprep.subr.mxu0 0.0
  %7018 = vmatpush1.msra.mxu0 0.0
  %7019 = vmatprep.subr.mxu0 0.0
  %7020 = vmatpush1.msra.mxu0 0.0
  %7021 = vmatprep.subr.mxu0 0.0
  %7022 = vmatpush1.msra.mxu0 0.0
  %7023 = vmatprep.subr.mxu0 0.0
  %7024 = vmatpush1.msra.mxu0 0.0
  %7025 = vmatprep.subr.mxu0 0.0
  %7026 = vmatpush1.msra.mxu0 0.0
  %7027 = vmatprep.subr.mxu0 0.0
  %7028 = vmatpush1.msra.mxu0 0.0
  %7029 = vmatprep.subr.mxu0 0.0
  %7030 = vmatpush1.msra.mxu0 0.0
  %7031 = vmatprep.subr.mxu0 0.0
  %7032 = vmatpush1.msra.mxu0 0.0
  %7033 = vmatprep.subr.mxu0 0.0
  %7034 = vmatpush1.msra.mxu0 0.0
  %7035 = vmatprep.subr.mxu0 0.0
  %7036 = vmatpush1.msra.mxu0 0.0
  %7037 = vmatprep.subr.mxu0 0.0
  %7038 = vmatpush1.msra.mxu0 0.0
  %7039 = vmatprep.subr.mxu0 0.0
  %7040 = vmatpush1.msra.mxu0 %v7007
  %7041 = vmatprep.subr.mxu0 0.0
  %7042 = vmatpush1.msra.mxu0 %v7006
  %7043 = vmatprep.subr.mxu0 0.0
  %7044 = vmatpush2.msra.mxu0 0.0
  %7045 = vmatprep.subr.mxu0 0.0
  %7046 = vmatpush2.msra.mxu0 0.0
  %7047 = vmatprep.subr.mxu0 0.0
  %7048 = vmatpush2.msra.mxu0 0.0
  %7049 = vmatprep.subr.mxu0 0.0
  %7050 = vmatpush2.msra.mxu0 0.0
  %7051 = vmatprep.subr.mxu0 0.0
  %7052 = vmatpush2.msra.mxu0 0.0
  %7053 = vmatprep.subr.mxu0 0.0
  %7054 = vmatpush2.msra.mxu0 0.0
  %7055 = vmatprep.subr.mxu0 0.0
  %7056 = vmatpush2.msra.mxu0 0.0
  %7057 = vmatprep.subr.mxu0 0.0
  %7058 = vmatpush2.msra.mxu0 0.0
  %7059 = vmatprep.subr.mxu0 0.0
  %7060 = vmatpush2.msra.mxu0 0.0
  %7061 = vmatprep.subr.mxu0 0.0
  %7062 = vmatpush2.msra.mxu0 0.0
  %7063 = vmatprep.subr.mxu0 0.0
  %7064 = vmatpush2.msra.mxu0 0.0
  %7065 = vmatprep.subr.mxu0 0.0
  %7066 = vmatpush2.msra.mxu0 0.0
  %7067 = vmatprep.subr.mxu0 0.0
  %7068 = vmatpush2.msra.mxu0 0.0
  %7069 = vmatprep.subr.mxu0 0.0
  %7070 = vmatpush2.msra.mxu0 0.0
  %7071 = vmatprep.subr.mxu0 0.0
  %7072 = vmatpush2.msra.mxu0 0.0
  %7073 = vmatprep.subr.mxu0 0.0
  %7074 = vmatpush2.msra.mxu0 0.0
  %7075 = vmatprep.mubr.f32.mxu0 0.0
  %7076 = vmatmul.mubr.f32.gmra.mxu0 %v7009
  %v7077 = vpop.f32.mrf.mxu0
  %v7078 = vadd.f32 0.0, %v7077
  %v7079 = vpop.f32.mrf.mxu0
  %7080 = vdwg.mxu0
  %v7081 = vadd.f32 %v7004, %v7078
  %v7082 = vld [vmem:[#allocation3 + $0x100] sm:$0xff]
  %v7083 = vld [vmem:[%s6 + $0x200] sm:$0xff]
  %v7084 = vld [vmem:[%s6 + $0x208] sm:$0xff]
  %v7086 = vsel %vm69, %v7082, 0
  %7088 = vmatprep.subr.mxu0 0.0
  %7089 = vmatpush1.msra.mxu0 0.0
  %7090 = vmatprep.subr.mxu0 0.0
  %7091 = vmatpush1.msra.mxu0 0.0
  %7092 = vmatprep.subr.mxu0 0.0
  %7093 = vmatpush1.msra.mxu0 0.0
  %7094 = vmatprep.subr.mxu0 0.0
  %7095 = vmatpush1.msra.mxu0 0.0
  %7096 = vmatprep.subr.mxu0 0.0
  %7097 = vmatpush1.msra.mxu0 0.0
  %7098 = vmatprep.subr.mxu0 0.0
  %7099 = vmatpush1.msra.mxu0 0.0
  %7100 = vmatprep.subr.mxu0 0.0
  %7101 = vmatpush1.msra.mxu0 0.0
  %7102 = vmatprep.subr.mxu0 0.0
  %7103 = vmatpush1.msra.mxu0 0.0
  %7104 = vmatprep.subr.mxu0 0.0
  %7105 = vmatpush1.msra.mxu0 0.0
  %7106 = vmatprep.subr.mxu0 0.0
  %7107 = vmatpush1.msra.mxu0 0.0
  %7108 = vmatprep.subr.mxu0 0.0
  %7109 = vmatpush1.msra.mxu0 0.0
  %7110 = vmatprep.subr.mxu0 0.0
  %7111 = vmatpush1.msra.mxu0 0.0
  %7112 = vmatprep.subr.mxu0 0.0
  %7113 = vmatpush1.msra.mxu0 0.0
  %7114 = vmatprep.subr.mxu0 0.0
  %7115 = vmatpush1.msra.mxu0 0.0
  %7116 = vmatprep.subr.mxu0 0.0
  %7117 = vmatpush1.msra.mxu0 %v7084
  %7118 = vmatprep.subr.mxu0 0.0
  %7119 = vmatpush1.msra.mxu0 %v7083
  %7120 = vmatprep.subr.mxu0 0.0
  %7121 = vmatpush2.msra.mxu0 0.0
  %7122 = vmatprep.subr.mxu0 0.0
  %7123 = vmatpush2.msra.mxu0 0.0
  %7124 = vmatprep.subr.mxu0 0.0
  %7125 = vmatpush2.msra.mxu0 0.0
  %7126 = vmatprep.subr.mxu0 0.0
  %7127 = vmatpush2.msra.mxu0 0.0
  %7128 = vmatprep.subr.mxu0 0.0
  %7129 = vmatpush2.msra.mxu0 0.0
  %7130 = vmatprep.subr.mxu0 0.0
  %7131 = vmatpush2.msra.mxu0 0.0
  %7132 = vmatprep.subr.mxu0 0.0
  %7133 = vmatpush2.msra.mxu0 0.0
  %7134 = vmatprep.subr.mxu0 0.0
  %7135 = vmatpush2.msra.mxu0 0.0
  %7136 = vmatprep.subr.mxu0 0.0
  %7137 = vmatpush2.msra.mxu0 0.0
  %7138 = vmatprep.subr.mxu0 0.0
  %7139 = vmatpush2.msra.mxu0 0.0
  %7140 = vmatprep.subr.mxu0 0.0
  %7141 = vmatpush2.msra.mxu0 0.0
  %7142 = vmatprep.subr.mxu0 0.0
  %7143 = vmatpush2.msra.mxu0 0.0
  %7144 = vmatprep.subr.mxu0 0.0
  %7145 = vmatpush2.msra.mxu0 0.0
  %7146 = vmatprep.subr.mxu0 0.0
  %7147 = vmatpush2.msra.mxu0 0.0
  %7148 = vmatprep.subr.mxu0 0.0
  %7149 = vmatpush2.msra.mxu0 0.0
  %7150 = vmatprep.subr.mxu0 0.0
  %7151 = vmatpush2.msra.mxu0 0.0
  %7152 = vmatprep.mubr.f32.mxu0 0.0
  %7153 = vmatmul.mubr.f32.gmra.mxu0 %v7086
  %v7154 = vpop.f32.mrf.mxu0
  %v7155 = vadd.f32 0.0, %v7154
  %v7156 = vpop.f32.mrf.mxu0
  %7157 = vdwg.mxu0
  %v7158 = vadd.f32 %v7081, %v7155
  %v7159 = vld [vmem:[#allocation3 + $0x108] sm:$0xff]
  %v7160 = vld [vmem:[%s6 + $0x210] sm:$0xff]
  %v7161 = vld [vmem:[%s6 + $0x218] sm:$0xff]
  %v7163 = vsel %vm69, %v7159, 0
  %7165 = vmatprep.subr.mxu0 0.0
  %7166 = vmatpush1.msra.mxu0 0.0
  %7167 = vmatprep.subr.mxu0 0.0
  %7168 = vmatpush1.msra.mxu0 0.0
  %7169 = vmatprep.subr.mxu0 0.0
  %7170 = vmatpush1.msra.mxu0 0.0
  %7171 = vmatprep.subr.mxu0 0.0
  %7172 = vmatpush1.msra.mxu0 0.0
  %7173 = vmatprep.subr.mxu0 0.0
  %7174 = vmatpush1.msra.mxu0 0.0
  %7175 = vmatprep.subr.mxu0 0.0
  %7176 = vmatpush1.msra.mxu0 0.0
  %7177 = vmatprep.subr.mxu0 0.0
  %7178 = vmatpush1.msra.mxu0 0.0
  %7179 = vmatprep.subr.mxu0 0.0
  %7180 = vmatpush1.msra.mxu0 0.0
  %7181 = vmatprep.subr.mxu0 0.0
  %7182 = vmatpush1.msra.mxu0 0.0
  %7183 = vmatprep.subr.mxu0 0.0
  %7184 = vmatpush1.msra.mxu0 0.0
  %7185 = vmatprep.subr.mxu0 0.0
  %7186 = vmatpush1.msra.mxu0 0.0
  %7187 = vmatprep.subr.mxu0 0.0
  %7188 = vmatpush1.msra.mxu0 0.0
  %7189 = vmatprep.subr.mxu0 0.0
  %7190 = vmatpush1.msra.mxu0 0.0
  %7191 = vmatprep.subr.mxu0 0.0
  %7192 = vmatpush1.msra.mxu0 0.0
  %7193 = vmatprep.subr.mxu0 0.0
  %7194 = vmatpush1.msra.mxu0 %v7161
  %7195 = vmatprep.subr.mxu0 0.0
  %7196 = vmatpush1.msra.mxu0 %v7160
  %7197 = vmatprep.subr.mxu0 0.0
  %7198 = vmatpush2.msra.mxu0 0.0
  %7199 = vmatprep.subr.mxu0 0.0
  %7200 = vmatpush2.msra.mxu0 0.0
  %7201 = vmatprep.subr.mxu0 0.0
  %7202 = vmatpush2.msra.mxu0 0.0
  %7203 = vmatprep.subr.mxu0 0.0
  %7204 = vmatpush2.msra.mxu0 0.0
  %7205 = vmatprep.subr.mxu0 0.0
  %7206 = vmatpush2.msra.mxu0 0.0
  %7207 = vmatprep.subr.mxu0 0.0
  %7208 = vmatpush2.msra.mxu0 0.0
  %7209 = vmatprep.subr.mxu0 0.0
  %7210 = vmatpush2.msra.mxu0 0.0
  %7211 = vmatprep.subr.mxu0 0.0
  %7212 = vmatpush2.msra.mxu0 0.0
  %7213 = vmatprep.subr.mxu0 0.0
  %7214 = vmatpush2.msra.mxu0 0.0
  %7215 = vmatprep.subr.mxu0 0.0
  %7216 = vmatpush2.msra.mxu0 0.0
  %7217 = vmatprep.subr.mxu0 0.0
  %7218 = vmatpush2.msra.mxu0 0.0
  %7219 = vmatprep.subr.mxu0 0.0
  %7220 = vmatpush2.msra.mxu0 0.0
  %7221 = vmatprep.subr.mxu0 0.0
  %7222 = vmatpush2.msra.mxu0 0.0
  %7223 = vmatprep.subr.mxu0 0.0
  %7224 = vmatpush2.msra.mxu0 0.0
  %7225 = vmatprep.subr.mxu0 0.0
  %7226 = vmatpush2.msra.mxu0 0.0
  %7227 = vmatprep.subr.mxu0 0.0
  %7228 = vmatpush2.msra.mxu0 0.0
  %7229 = vmatprep.mubr.f32.mxu0 0.0
  %7230 = vmatmul.mubr.f32.gmra.mxu0 %v7163
  %v7231 = vpop.f32.mrf.mxu0
  %v7232 = vadd.f32 0.0, %v7231
  %v7233 = vpop.f32.mrf.mxu0
  %7234 = vdwg.mxu0
  %v7235 = vadd.f32 %v7158, %v7232
  %v7236 = vld [vmem:[#allocation3 + $0x110] sm:$0xff]
  %v7237 = vld [vmem:[%s6 + $0x220] sm:$0xff]
  %v7238 = vld [vmem:[%s6 + $0x228] sm:$0xff]
  %v7240 = vsel %vm69, %v7236, 0
  %7242 = vmatprep.subr.mxu0 0.0
  %7243 = vmatpush1.msra.mxu0 0.0
  %7244 = vmatprep.subr.mxu0 0.0
  %7245 = vmatpush1.msra.mxu0 0.0
  %7246 = vmatprep.subr.mxu0 0.0
  %7247 = vmatpush1.msra.mxu0 0.0
  %7248 = vmatprep.subr.mxu0 0.0
  %7249 = vmatpush1.msra.mxu0 0.0
  %7250 = vmatprep.subr.mxu0 0.0
  %7251 = vmatpush1.msra.mxu0 0.0
  %7252 = vmatprep.subr.mxu0 0.0
  %7253 = vmatpush1.msra.mxu0 0.0
  %7254 = vmatprep.subr.mxu0 0.0
  %7255 = vmatpush1.msra.mxu0 0.0
  %7256 = vmatprep.subr.mxu0 0.0
  %7257 = vmatpush1.msra.mxu0 0.0
  %7258 = vmatprep.subr.mxu0 0.0
  %7259 = vmatpush1.msra.mxu0 0.0
  %7260 = vmatprep.subr.mxu0 0.0
  %7261 = vmatpush1.msra.mxu0 0.0
  %7262 = vmatprep.subr.mxu0 0.0
  %7263 = vmatpush1.msra.mxu0 0.0
  %7264 = vmatprep.subr.mxu0 0.0
  %7265 = vmatpush1.msra.mxu0 0.0
  %7266 = vmatprep.subr.mxu0 0.0
  %7267 = vmatpush1.msra.mxu0 0.0
  %7268 = vmatprep.subr.mxu0 0.0
  %7269 = vmatpush1.msra.mxu0 0.0
  %7270 = vmatprep.subr.mxu0 0.0
  %7271 = vmatpush1.msra.mxu0 %v7238
  %7272 = vmatprep.subr.mxu0 0.0
  %7273 = vmatpush1.msra.mxu0 %v7237
  %7274 = vmatprep.subr.mxu0 0.0
  %7275 = vmatpush2.msra.mxu0 0.0
  %7276 = vmatprep.subr.mxu0 0.0
  %7277 = vmatpush2.msra.mxu0 0.0
  %7278 = vmatprep.subr.mxu0 0.0
  %7279 = vmatpush2.msra.mxu0 0.0
  %7280 = vmatprep.subr.mxu0 0.0
  %7281 = vmatpush2.msra.mxu0 0.0
  %7282 = vmatprep.subr.mxu0 0.0
  %7283 = vmatpush2.msra.mxu0 0.0
  %7284 = vmatprep.subr.mxu0 0.0
  %7285 = vmatpush2.msra.mxu0 0.0
  %7286 = vmatprep.subr.mxu0 0.0
  %7287 = vmatpush2.msra.mxu0 0.0
  %7288 = vmatprep.subr.mxu0 0.0
  %7289 = vmatpush2.msra.mxu0 0.0
  %7290 = vmatprep.subr.mxu0 0.0
  %7291 = vmatpush2.msra.mxu0 0.0
  %7292 = vmatprep.subr.mxu0 0.0
  %7293 = vmatpush2.msra.mxu0 0.0
  %7294 = vmatprep.subr.mxu0 0.0
  %7295 = vmatpush2.msra.mxu0 0.0
  %7296 = vmatprep.subr.mxu0 0.0
  %7297 = vmatpush2.msra.mxu0 0.0
  %7298 = vmatprep.subr.mxu0 0.0
  %7299 = vmatpush2.msra.mxu0 0.0
  %7300 = vmatprep.subr.mxu0 0.0
  %7301 = vmatpush2.msra.mxu0 0.0
  %7302 = vmatprep.subr.mxu0 0.0
  %7303 = vmatpush2.msra.mxu0 0.0
  %7304 = vmatprep.subr.mxu0 0.0
  %7305 = vmatpush2.msra.mxu0 0.0
  %7306 = vmatprep.mubr.f32.mxu0 0.0
  %7307 = vmatmul.mubr.f32.gmra.mxu0 %v7240
  %v7308 = vpop.f32.mrf.mxu0
  %v7309 = vadd.f32 0.0, %v7308
  %v7310 = vpop.f32.mrf.mxu0
  %7311 = vdwg.mxu0
  %v7312 = vadd.f32 %v7235, %v7309
  %v7313 = vld [vmem:[#allocation3 + $0x118] sm:$0xff]
  %v7314 = vld [vmem:[%s6 + $0x230] sm:$0xff]
  %v7315 = vld [vmem:[%s6 + $0x238] sm:$0xff]
  %v7317 = vsel %vm69, %v7313, 0
  %7319 = vmatprep.subr.mxu0 0.0
  %7320 = vmatpush1.msra.mxu0 0.0
  %7321 = vmatprep.subr.mxu0 0.0
  %7322 = vmatpush1.msra.mxu0 0.0
  %7323 = vmatprep.subr.mxu0 0.0
  %7324 = vmatpush1.msra.mxu0 0.0
  %7325 = vmatprep.subr.mxu0 0.0
  %7326 = vmatpush1.msra.mxu0 0.0
  %7327 = vmatprep.subr.mxu0 0.0
  %7328 = vmatpush1.msra.mxu0 0.0
  %7329 = vmatprep.subr.mxu0 0.0
  %7330 = vmatpush1.msra.mxu0 0.0
  %7331 = vmatprep.subr.mxu0 0.0
  %7332 = vmatpush1.msra.mxu0 0.0
  %7333 = vmatprep.subr.mxu0 0.0
  %7334 = vmatpush1.msra.mxu0 0.0
  %7335 = vmatprep.subr.mxu0 0.0
  %7336 = vmatpush1.msra.mxu0 0.0
  %7337 = vmatprep.subr.mxu0 0.0
  %7338 = vmatpush1.msra.mxu0 0.0
  %7339 = vmatprep.subr.mxu0 0.0
  %7340 = vmatpush1.msra.mxu0 0.0
  %7341 = vmatprep.subr.mxu0 0.0
  %7342 = vmatpush1.msra.mxu0 0.0
  %7343 = vmatprep.subr.mxu0 0.0
  %7344 = vmatpush1.msra.mxu0 0.0
  %7345 = vmatprep.subr.mxu0 0.0
  %7346 = vmatpush1.msra.mxu0 0.0
  %7347 = vmatprep.subr.mxu0 0.0
  %7348 = vmatpush1.msra.mxu0 %v7315
  %7349 = vmatprep.subr.mxu0 0.0
  %7350 = vmatpush1.msra.mxu0 %v7314
  %7351 = vmatprep.subr.mxu0 0.0
  %7352 = vmatpush2.msra.mxu0 0.0
  %7353 = vmatprep.subr.mxu0 0.0
  %7354 = vmatpush2.msra.mxu0 0.0
  %7355 = vmatprep.subr.mxu0 0.0
  %7356 = vmatpush2.msra.mxu0 0.0
  %7357 = vmatprep.subr.mxu0 0.0
  %7358 = vmatpush2.msra.mxu0 0.0
  %7359 = vmatprep.subr.mxu0 0.0
  %7360 = vmatpush2.msra.mxu0 0.0
  %7361 = vmatprep.subr.mxu0 0.0
  %7362 = vmatpush2.msra.mxu0 0.0
  %7363 = vmatprep.subr.mxu0 0.0
  %7364 = vmatpush2.msra.mxu0 0.0
  %7365 = vmatprep.subr.mxu0 0.0
  %7366 = vmatpush2.msra.mxu0 0.0
  %7367 = vmatprep.subr.mxu0 0.0
  %7368 = vmatpush2.msra.mxu0 0.0
  %7369 = vmatprep.subr.mxu0 0.0
  %7370 = vmatpush2.msra.mxu0 0.0
  %7371 = vmatprep.subr.mxu0 0.0
  %7372 = vmatpush2.msra.mxu0 0.0
  %7373 = vmatprep.subr.mxu0 0.0
  %7374 = vmatpush2.msra.mxu0 0.0
  %7375 = vmatprep.subr.mxu0 0.0
  %7376 = vmatpush2.msra.mxu0 0.0
  %7377 = vmatprep.subr.mxu0 0.0
  %7378 = vmatpush2.msra.mxu0 0.0
  %7379 = vmatprep.subr.mxu0 0.0
  %7380 = vmatpush2.msra.mxu0 0.0
  %7381 = vmatprep.subr.mxu0 0.0
  %7382 = vmatpush2.msra.mxu0 0.0
  %7383 = vmatprep.mubr.f32.mxu0 0.0
  %7384 = vmatmul.mubr.f32.gmra.mxu0 %v7317
  %v7385 = vpop.f32.mrf.mxu0
  %v7386 = vadd.f32 0.0, %v7385
  %v7387 = vpop.f32.mrf.mxu0
  %7388 = vdwg.mxu0
  %v7389 = vadd.f32 %v7312, %v7386
  %v7390 = vld [vmem:[#allocation3 + $0x120] sm:$0xff]
  %v7391 = vld [vmem:[%s6 + $0x240] sm:$0xff]
  %v7392 = vld [vmem:[%s6 + $0x248] sm:$0xff]
  %v7394 = vsel %vm69, %v7390, 0
  %7396 = vmatprep.subr.mxu0 0.0
  %7397 = vmatpush1.msra.mxu0 0.0
  %7398 = vmatprep.subr.mxu0 0.0
  %7399 = vmatpush1.msra.mxu0 0.0
  %7400 = vmatprep.subr.mxu0 0.0
  %7401 = vmatpush1.msra.mxu0 0.0
  %7402 = vmatprep.subr.mxu0 0.0
  %7403 = vmatpush1.msra.mxu0 0.0
  %7404 = vmatprep.subr.mxu0 0.0
  %7405 = vmatpush1.msra.mxu0 0.0
  %7406 = vmatprep.subr.mxu0 0.0
  %7407 = vmatpush1.msra.mxu0 0.0
  %7408 = vmatprep.subr.mxu0 0.0
  %7409 = vmatpush1.msra.mxu0 0.0
  %7410 = vmatprep.subr.mxu0 0.0
  %7411 = vmatpush1.msra.mxu0 0.0
  %7412 = vmatprep.subr.mxu0 0.0
  %7413 = vmatpush1.msra.mxu0 0.0
  %7414 = vmatprep.subr.mxu0 0.0
  %7415 = vmatpush1.msra.mxu0 0.0
  %7416 = vmatprep.subr.mxu0 0.0
  %7417 = vmatpush1.msra.mxu0 0.0
  %7418 = vmatprep.subr.mxu0 0.0
  %7419 = vmatpush1.msra.mxu0 0.0
  %7420 = vmatprep.subr.mxu0 0.0
  %7421 = vmatpush1.msra.mxu0 0.0
  %7422 = vmatprep.subr.mxu0 0.0
  %7423 = vmatpush1.msra.mxu0 0.0
  %7424 = vmatprep.subr.mxu0 0.0
  %7425 = vmatpush1.msra.mxu0 %v7392
  %7426 = vmatprep.subr.mxu0 0.0
  %7427 = vmatpush1.msra.mxu0 %v7391
  %7428 = vmatprep.subr.mxu0 0.0
  %7429 = vmatpush2.msra.mxu0 0.0
  %7430 = vmatprep.subr.mxu0 0.0
  %7431 = vmatpush2.msra.mxu0 0.0
  %7432 = vmatprep.subr.mxu0 0.0
  %7433 = vmatpush2.msra.mxu0 0.0
  %7434 = vmatprep.subr.mxu0 0.0
  %7435 = vmatpush2.msra.mxu0 0.0
  %7436 = vmatprep.subr.mxu0 0.0
  %7437 = vmatpush2.msra.mxu0 0.0
  %7438 = vmatprep.subr.mxu0 0.0
  %7439 = vmatpush2.msra.mxu0 0.0
  %7440 = vmatprep.subr.mxu0 0.0
  %7441 = vmatpush2.msra.mxu0 0.0
  %7442 = vmatprep.subr.mxu0 0.0
  %7443 = vmatpush2.msra.mxu0 0.0
  %7444 = vmatprep.subr.mxu0 0.0
  %7445 = vmatpush2.msra.mxu0 0.0
  %7446 = vmatprep.subr.mxu0 0.0
  %7447 = vmatpush2.msra.mxu0 0.0
  %7448 = vmatprep.subr.mxu0 0.0
  %7449 = vmatpush2.msra.mxu0 0.0
  %7450 = vmatprep.subr.mxu0 0.0
  %7451 = vmatpush2.msra.mxu0 0.0
  %7452 = vmatprep.subr.mxu0 0.0
  %7453 = vmatpush2.msra.mxu0 0.0
  %7454 = vmatprep.subr.mxu0 0.0
  %7455 = vmatpush2.msra.mxu0 0.0
  %7456 = vmatprep.subr.mxu0 0.0
  %7457 = vmatpush2.msra.mxu0 0.0
  %7458 = vmatprep.subr.mxu0 0.0
  %7459 = vmatpush2.msra.mxu0 0.0
  %7460 = vmatprep.mubr.f32.mxu0 0.0
  %7461 = vmatmul.mubr.f32.gmra.mxu0 %v7394
  %v7462 = vpop.f32.mrf.mxu0
  %v7463 = vadd.f32 0.0, %v7462
  %v7464 = vpop.f32.mrf.mxu0
  %7465 = vdwg.mxu0
  %v7466 = vadd.f32 %v7389, %v7463
  %v7467 = vld [vmem:[#allocation3 + $0x128] sm:$0xff]
  %v7468 = vld [vmem:[%s6 + $0x250] sm:$0xff]
  %v7469 = vld [vmem:[%s6 + $0x258] sm:$0xff]
  %v7471 = vsel %vm69, %v7467, 0
  %7473 = vmatprep.subr.mxu0 0.0
  %7474 = vmatpush1.msra.mxu0 0.0
  %7475 = vmatprep.subr.mxu0 0.0
  %7476 = vmatpush1.msra.mxu0 0.0
  %7477 = vmatprep.subr.mxu0 0.0
  %7478 = vmatpush1.msra.mxu0 0.0
  %7479 = vmatprep.subr.mxu0 0.0
  %7480 = vmatpush1.msra.mxu0 0.0
  %7481 = vmatprep.subr.mxu0 0.0
  %7482 = vmatpush1.msra.mxu0 0.0
  %7483 = vmatprep.subr.mxu0 0.0
  %7484 = vmatpush1.msra.mxu0 0.0
  %7485 = vmatprep.subr.mxu0 0.0
  %7486 = vmatpush1.msra.mxu0 0.0
  %7487 = vmatprep.subr.mxu0 0.0
  %7488 = vmatpush1.msra.mxu0 0.0
  %7489 = vmatprep.subr.mxu0 0.0
  %7490 = vmatpush1.msra.mxu0 0.0
  %7491 = vmatprep.subr.mxu0 0.0
  %7492 = vmatpush1.msra.mxu0 0.0
  %7493 = vmatprep.subr.mxu0 0.0
  %7494 = vmatpush1.msra.mxu0 0.0
  %7495 = vmatprep.subr.mxu0 0.0
  %7496 = vmatpush1.msra.mxu0 0.0
  %7497 = vmatprep.subr.mxu0 0.0
  %7498 = vmatpush1.msra.mxu0 0.0
  %7499 = vmatprep.subr.mxu0 0.0
  %7500 = vmatpush1.msra.mxu0 0.0
  %7501 = vmatprep.subr.mxu0 0.0
  %7502 = vmatpush1.msra.mxu0 %v7469
  %7503 = vmatprep.subr.mxu0 0.0
  %7504 = vmatpush1.msra.mxu0 %v7468
  %7505 = vmatprep.subr.mxu0 0.0
  %7506 = vmatpush2.msra.mxu0 0.0
  %7507 = vmatprep.subr.mxu0 0.0
  %7508 = vmatpush2.msra.mxu0 0.0
  %7509 = vmatprep.subr.mxu0 0.0
  %7510 = vmatpush2.msra.mxu0 0.0
  %7511 = vmatprep.subr.mxu0 0.0
  %7512 = vmatpush2.msra.mxu0 0.0
  %7513 = vmatprep.subr.mxu0 0.0
  %7514 = vmatpush2.msra.mxu0 0.0
  %7515 = vmatprep.subr.mxu0 0.0
  %7516 = vmatpush2.msra.mxu0 0.0
  %7517 = vmatprep.subr.mxu0 0.0
  %7518 = vmatpush2.msra.mxu0 0.0
  %7519 = vmatprep.subr.mxu0 0.0
  %7520 = vmatpush2.msra.mxu0 0.0
  %7521 = vmatprep.subr.mxu0 0.0
  %7522 = vmatpush2.msra.mxu0 0.0
  %7523 = vmatprep.subr.mxu0 0.0
  %7524 = vmatpush2.msra.mxu0 0.0
  %7525 = vmatprep.subr.mxu0 0.0
  %7526 = vmatpush2.msra.mxu0 0.0
  %7527 = vmatprep.subr.mxu0 0.0
  %7528 = vmatpush2.msra.mxu0 0.0
  %7529 = vmatprep.subr.mxu0 0.0
  %7530 = vmatpush2.msra.mxu0 0.0
  %7531 = vmatprep.subr.mxu0 0.0
  %7532 = vmatpush2.msra.mxu0 0.0
  %7533 = vmatprep.subr.mxu0 0.0
  %7534 = vmatpush2.msra.mxu0 0.0
  %7535 = vmatprep.subr.mxu0 0.0
  %7536 = vmatpush2.msra.mxu0 0.0
  %7537 = vmatprep.mubr.f32.mxu0 0.0
  %7538 = vmatmul.mubr.f32.gmra.mxu0 %v7471
  %v7539 = vpop.f32.mrf.mxu0
  %v7540 = vadd.f32 0.0, %v7539
  %v7541 = vpop.f32.mrf.mxu0
  %7542 = vdwg.mxu0
  %v7543 = vadd.f32 %v7466, %v7540
  %v7544 = vld [vmem:[#allocation3 + $0x130] sm:$0xff]
  %v7545 = vld [vmem:[%s6 + $0x260] sm:$0xff]
  %v7546 = vld [vmem:[%s6 + $0x268] sm:$0xff]
  %v7548 = vsel %vm69, %v7544, 0
  %7550 = vmatprep.subr.mxu0 0.0
  %7551 = vmatpush1.msra.mxu0 0.0
  %7552 = vmatprep.subr.mxu0 0.0
  %7553 = vmatpush1.msra.mxu0 0.0
  %7554 = vmatprep.subr.mxu0 0.0
  %7555 = vmatpush1.msra.mxu0 0.0
  %7556 = vmatprep.subr.mxu0 0.0
  %7557 = vmatpush1.msra.mxu0 0.0
  %7558 = vmatprep.subr.mxu0 0.0
  %7559 = vmatpush1.msra.mxu0 0.0
  %7560 = vmatprep.subr.mxu0 0.0
  %7561 = vmatpush1.msra.mxu0 0.0
  %7562 = vmatprep.subr.mxu0 0.0
  %7563 = vmatpush1.msra.mxu0 0.0
  %7564 = vmatprep.subr.mxu0 0.0
  %7565 = vmatpush1.msra.mxu0 0.0
  %7566 = vmatprep.subr.mxu0 0.0
  %7567 = vmatpush1.msra.mxu0 0.0
  %7568 = vmatprep.subr.mxu0 0.0
  %7569 = vmatpush1.msra.mxu0 0.0
  %7570 = vmatprep.subr.mxu0 0.0
  %7571 = vmatpush1.msra.mxu0 0.0
  %7572 = vmatprep.subr.mxu0 0.0
  %7573 = vmatpush1.msra.mxu0 0.0
  %7574 = vmatprep.subr.mxu0 0.0
  %7575 = vmatpush1.msra.mxu0 0.0
  %7576 = vmatprep.subr.mxu0 0.0
  %7577 = vmatpush1.msra.mxu0 0.0
  %7578 = vmatprep.subr.mxu0 0.0
  %7579 = vmatpush1.msra.mxu0 %v7546
  %7580 = vmatprep.subr.mxu0 0.0
  %7581 = vmatpush1.msra.mxu0 %v7545
  %7582 = vmatprep.subr.mxu0 0.0
  %7583 = vmatpush2.msra.mxu0 0.0
  %7584 = vmatprep.subr.mxu0 0.0
  %7585 = vmatpush2.msra.mxu0 0.0
  %7586 = vmatprep.subr.mxu0 0.0
  %7587 = vmatpush2.msra.mxu0 0.0
  %7588 = vmatprep.subr.mxu0 0.0
  %7589 = vmatpush2.msra.mxu0 0.0
  %7590 = vmatprep.subr.mxu0 0.0
  %7591 = vmatpush2.msra.mxu0 0.0
  %7592 = vmatprep.subr.mxu0 0.0
  %7593 = vmatpush2.msra.mxu0 0.0
  %7594 = vmatprep.subr.mxu0 0.0
  %7595 = vmatpush2.msra.mxu0 0.0
  %7596 = vmatprep.subr.mxu0 0.0
  %7597 = vmatpush2.msra.mxu0 0.0
  %7598 = vmatprep.subr.mxu0 0.0
  %7599 = vmatpush2.msra.mxu0 0.0
  %7600 = vmatprep.subr.mxu0 0.0
  %7601 = vmatpush2.msra.mxu0 0.0
  %7602 = vmatprep.subr.mxu0 0.0
  %7603 = vmatpush2.msra.mxu0 0.0
  %7604 = vmatprep.subr.mxu0 0.0
  %7605 = vmatpush2.msra.mxu0 0.0
  %7606 = vmatprep.subr.mxu0 0.0
  %7607 = vmatpush2.msra.mxu0 0.0
  %7608 = vmatprep.subr.mxu0 0.0
  %7609 = vmatpush2.msra.mxu0 0.0
  %7610 = vmatprep.subr.mxu0 0.0
  %7611 = vmatpush2.msra.mxu0 0.0
  %7612 = vmatprep.subr.mxu0 0.0
  %7613 = vmatpush2.msra.mxu0 0.0
  %7614 = vmatprep.mubr.f32.mxu0 0.0
  %7615 = vmatmul.mubr.f32.gmra.mxu0 %v7548
  %v7616 = vpop.f32.mrf.mxu0
  %v7617 = vadd.f32 0.0, %v7616
  %v7618 = vpop.f32.mrf.mxu0
  %7619 = vdwg.mxu0
  %v7620 = vadd.f32 %v7543, %v7617
  %v7621 = vld [vmem:[#allocation3 + $0x138] sm:$0xff]
  %v7622 = vld [vmem:[%s6 + $0x270] sm:$0xff]
  %v7623 = vld [vmem:[%s6 + $0x278] sm:$0xff]
  %v7625 = vsel %vm69, %v7621, 0
  %7627 = vmatprep.subr.mxu0 0.0
  %7628 = vmatpush1.msra.mxu0 0.0
  %7629 = vmatprep.subr.mxu0 0.0
  %7630 = vmatpush1.msra.mxu0 0.0
  %7631 = vmatprep.subr.mxu0 0.0
  %7632 = vmatpush1.msra.mxu0 0.0
  %7633 = vmatprep.subr.mxu0 0.0
  %7634 = vmatpush1.msra.mxu0 0.0
  %7635 = vmatprep.subr.mxu0 0.0
  %7636 = vmatpush1.msra.mxu0 0.0
  %7637 = vmatprep.subr.mxu0 0.0
  %7638 = vmatpush1.msra.mxu0 0.0
  %7639 = vmatprep.subr.mxu0 0.0
  %7640 = vmatpush1.msra.mxu0 0.0
  %7641 = vmatprep.subr.mxu0 0.0
  %7642 = vmatpush1.msra.mxu0 0.0
  %7643 = vmatprep.subr.mxu0 0.0
  %7644 = vmatpush1.msra.mxu0 0.0
  %7645 = vmatprep.subr.mxu0 0.0
  %7646 = vmatpush1.msra.mxu0 0.0
  %7647 = vmatprep.subr.mxu0 0.0
  %7648 = vmatpush1.msra.mxu0 0.0
  %7649 = vmatprep.subr.mxu0 0.0
  %7650 = vmatpush1.msra.mxu0 0.0
  %7651 = vmatprep.subr.mxu0 0.0
  %7652 = vmatpush1.msra.mxu0 0.0
  %7653 = vmatprep.subr.mxu0 0.0
  %7654 = vmatpush1.msra.mxu0 0.0
  %7655 = vmatprep.subr.mxu0 0.0
  %7656 = vmatpush1.msra.mxu0 %v7623
  %7657 = vmatprep.subr.mxu0 0.0
  %7658 = vmatpush1.msra.mxu0 %v7622
  %7659 = vmatprep.subr.mxu0 0.0
  %7660 = vmatpush2.msra.mxu0 0.0
  %7661 = vmatprep.subr.mxu0 0.0
  %7662 = vmatpush2.msra.mxu0 0.0
  %7663 = vmatprep.subr.mxu0 0.0
  %7664 = vmatpush2.msra.mxu0 0.0
  %7665 = vmatprep.subr.mxu0 0.0
  %7666 = vmatpush2.msra.mxu0 0.0
  %7667 = vmatprep.subr.mxu0 0.0
  %7668 = vmatpush2.msra.mxu0 0.0
  %7669 = vmatprep.subr.mxu0 0.0
  %7670 = vmatpush2.msra.mxu0 0.0
  %7671 = vmatprep.subr.mxu0 0.0
  %7672 = vmatpush2.msra.mxu0 0.0
  %7673 = vmatprep.subr.mxu0 0.0
  %7674 = vmatpush2.msra.mxu0 0.0
  %7675 = vmatprep.subr.mxu0 0.0
  %7676 = vmatpush2.msra.mxu0 0.0
  %7677 = vmatprep.subr.mxu0 0.0
  %7678 = vmatpush2.msra.mxu0 0.0
  %7679 = vmatprep.subr.mxu0 0.0
  %7680 = vmatpush2.msra.mxu0 0.0
  %7681 = vmatprep.subr.mxu0 0.0
  %7682 = vmatpush2.msra.mxu0 0.0
  %7683 = vmatprep.subr.mxu0 0.0
  %7684 = vmatpush2.msra.mxu0 0.0
  %7685 = vmatprep.subr.mxu0 0.0
  %7686 = vmatpush2.msra.mxu0 0.0
  %7687 = vmatprep.subr.mxu0 0.0
  %7688 = vmatpush2.msra.mxu0 0.0
  %7689 = vmatprep.subr.mxu0 0.0
  %7690 = vmatpush2.msra.mxu0 0.0
  %7691 = vmatprep.mubr.f32.mxu0 0.0
  %7692 = vmatmul.mubr.f32.gmra.mxu0 %v7625
  %v7693 = vpop.f32.mrf.mxu0
  %v7694 = vadd.f32 0.0, %v7693
  %v7695 = vpop.f32.mrf.mxu0
  %7696 = vdwg.mxu0
  %v7697 = vadd.f32 %v7620, %v7694
  %v7698 = vld [vmem:[#allocation3 + $0x140] sm:$0xff]
  %v7699 = vld [vmem:[%s6 + $0x280] sm:$0xff]
  %v7700 = vld [vmem:[%s6 + $0x288] sm:$0xff]
  %v7702 = vsel %vm69, %v7698, 0
  %7704 = vmatprep.subr.mxu0 0.0
  %7705 = vmatpush1.msra.mxu0 0.0
  %7706 = vmatprep.subr.mxu0 0.0
  %7707 = vmatpush1.msra.mxu0 0.0
  %7708 = vmatprep.subr.mxu0 0.0
  %7709 = vmatpush1.msra.mxu0 0.0
  %7710 = vmatprep.subr.mxu0 0.0
  %7711 = vmatpush1.msra.mxu0 0.0
  %7712 = vmatprep.subr.mxu0 0.0
  %7713 = vmatpush1.msra.mxu0 0.0
  %7714 = vmatprep.subr.mxu0 0.0
  %7715 = vmatpush1.msra.mxu0 0.0
  %7716 = vmatprep.subr.mxu0 0.0
  %7717 = vmatpush1.msra.mxu0 0.0
  %7718 = vmatprep.subr.mxu0 0.0
  %7719 = vmatpush1.msra.mxu0 0.0
  %7720 = vmatprep.subr.mxu0 0.0
  %7721 = vmatpush1.msra.mxu0 0.0
  %7722 = vmatprep.subr.mxu0 0.0
  %7723 = vmatpush1.msra.mxu0 0.0
  %7724 = vmatprep.subr.mxu0 0.0
  %7725 = vmatpush1.msra.mxu0 0.0
  %7726 = vmatprep.subr.mxu0 0.0
  %7727 = vmatpush1.msra.mxu0 0.0
  %7728 = vmatprep.subr.mxu0 0.0
  %7729 = vmatpush1.msra.mxu0 0.0
  %7730 = vmatprep.subr.mxu0 0.0
  %7731 = vmatpush1.msra.mxu0 0.0
  %7732 = vmatprep.subr.mxu0 0.0
  %7733 = vmatpush1.msra.mxu0 %v7700
  %7734 = vmatprep.subr.mxu0 0.0
  %7735 = vmatpush1.msra.mxu0 %v7699
  %7736 = vmatprep.subr.mxu0 0.0
  %7737 = vmatpush2.msra.mxu0 0.0
  %7738 = vmatprep.subr.mxu0 0.0
  %7739 = vmatpush2.msra.mxu0 0.0
  %7740 = vmatprep.subr.mxu0 0.0
  %7741 = vmatpush2.msra.mxu0 0.0
  %7742 = vmatprep.subr.mxu0 0.0
  %7743 = vmatpush2.msra.mxu0 0.0
  %7744 = vmatprep.subr.mxu0 0.0
  %7745 = vmatpush2.msra.mxu0 0.0
  %7746 = vmatprep.subr.mxu0 0.0
  %7747 = vmatpush2.msra.mxu0 0.0
  %7748 = vmatprep.subr.mxu0 0.0
  %7749 = vmatpush2.msra.mxu0 0.0
  %7750 = vmatprep.subr.mxu0 0.0
  %7751 = vmatpush2.msra.mxu0 0.0
  %7752 = vmatprep.subr.mxu0 0.0
  %7753 = vmatpush2.msra.mxu0 0.0
  %7754 = vmatprep.subr.mxu0 0.0
  %7755 = vmatpush2.msra.mxu0 0.0
  %7756 = vmatprep.subr.mxu0 0.0
  %7757 = vmatpush2.msra.mxu0 0.0
  %7758 = vmatprep.subr.mxu0 0.0
  %7759 = vmatpush2.msra.mxu0 0.0
  %7760 = vmatprep.subr.mxu0 0.0
  %7761 = vmatpush2.msra.mxu0 0.0
  %7762 = vmatprep.subr.mxu0 0.0
  %7763 = vmatpush2.msra.mxu0 0.0
  %7764 = vmatprep.subr.mxu0 0.0
  %7765 = vmatpush2.msra.mxu0 0.0
  %7766 = vmatprep.subr.mxu0 0.0
  %7767 = vmatpush2.msra.mxu0 0.0
  %7768 = vmatprep.mubr.f32.mxu0 0.0
  %7769 = vmatmul.mubr.f32.gmra.mxu0 %v7702
  %v7770 = vpop.f32.mrf.mxu0
  %v7771 = vadd.f32 0.0, %v7770
  %v7772 = vpop.f32.mrf.mxu0
  %7773 = vdwg.mxu0
  %v7774 = vadd.f32 %v7697, %v7771
  %v7775 = vld [vmem:[#allocation3 + $0x148] sm:$0xff]
  %v7776 = vld [vmem:[%s6 + $0x290] sm:$0xff]
  %v7777 = vld [vmem:[%s6 + $0x298] sm:$0xff]
  %v7779 = vsel %vm69, %v7775, 0
  %7781 = vmatprep.subr.mxu0 0.0
  %7782 = vmatpush1.msra.mxu0 0.0
  %7783 = vmatprep.subr.mxu0 0.0
  %7784 = vmatpush1.msra.mxu0 0.0
  %7785 = vmatprep.subr.mxu0 0.0
  %7786 = vmatpush1.msra.mxu0 0.0
  %7787 = vmatprep.subr.mxu0 0.0
  %7788 = vmatpush1.msra.mxu0 0.0
  %7789 = vmatprep.subr.mxu0 0.0
  %7790 = vmatpush1.msra.mxu0 0.0
  %7791 = vmatprep.subr.mxu0 0.0
  %7792 = vmatpush1.msra.mxu0 0.0
  %7793 = vmatprep.subr.mxu0 0.0
  %7794 = vmatpush1.msra.mxu0 0.0
  %7795 = vmatprep.subr.mxu0 0.0
  %7796 = vmatpush1.msra.mxu0 0.0
  %7797 = vmatprep.subr.mxu0 0.0
  %7798 = vmatpush1.msra.mxu0 0.0
  %7799 = vmatprep.subr.mxu0 0.0
  %7800 = vmatpush1.msra.mxu0 0.0
  %7801 = vmatprep.subr.mxu0 0.0
  %7802 = vmatpush1.msra.mxu0 0.0
  %7803 = vmatprep.subr.mxu0 0.0
  %7804 = vmatpush1.msra.mxu0 0.0
  %7805 = vmatprep.subr.mxu0 0.0
  %7806 = vmatpush1.msra.mxu0 0.0
  %7807 = vmatprep.subr.mxu0 0.0
  %7808 = vmatpush1.msra.mxu0 0.0
  %7809 = vmatprep.subr.mxu0 0.0
  %7810 = vmatpush1.msra.mxu0 %v7777
  %7811 = vmatprep.subr.mxu0 0.0
  %7812 = vmatpush1.msra.mxu0 %v7776
  %7813 = vmatprep.subr.mxu0 0.0
  %7814 = vmatpush2.msra.mxu0 0.0
  %7815 = vmatprep.subr.mxu0 0.0
  %7816 = vmatpush2.msra.mxu0 0.0
  %7817 = vmatprep.subr.mxu0 0.0
  %7818 = vmatpush2.msra.mxu0 0.0
  %7819 = vmatprep.subr.mxu0 0.0
  %7820 = vmatpush2.msra.mxu0 0.0
  %7821 = vmatprep.subr.mxu0 0.0
  %7822 = vmatpush2.msra.mxu0 0.0
  %7823 = vmatprep.subr.mxu0 0.0
  %7824 = vmatpush2.msra.mxu0 0.0
  %7825 = vmatprep.subr.mxu0 0.0
  %7826 = vmatpush2.msra.mxu0 0.0
  %7827 = vmatprep.subr.mxu0 0.0
  %7828 = vmatpush2.msra.mxu0 0.0
  %7829 = vmatprep.subr.mxu0 0.0
  %7830 = vmatpush2.msra.mxu0 0.0
  %7831 = vmatprep.subr.mxu0 0.0
  %7832 = vmatpush2.msra.mxu0 0.0
  %7833 = vmatprep.subr.mxu0 0.0
  %7834 = vmatpush2.msra.mxu0 0.0
  %7835 = vmatprep.subr.mxu0 0.0
  %7836 = vmatpush2.msra.mxu0 0.0
  %7837 = vmatprep.subr.mxu0 0.0
  %7838 = vmatpush2.msra.mxu0 0.0
  %7839 = vmatprep.subr.mxu0 0.0
  %7840 = vmatpush2.msra.mxu0 0.0
  %7841 = vmatprep.subr.mxu0 0.0
  %7842 = vmatpush2.msra.mxu0 0.0
  %7843 = vmatprep.subr.mxu0 0.0
  %7844 = vmatpush2.msra.mxu0 0.0
  %7845 = vmatprep.mubr.f32.mxu0 0.0
  %7846 = vmatmul.mubr.f32.gmra.mxu0 %v7779
  %v7847 = vpop.f32.mrf.mxu0
  %v7848 = vadd.f32 0.0, %v7847
  %v7849 = vpop.f32.mrf.mxu0
  %7850 = vdwg.mxu0
  %v7851 = vadd.f32 %v7774, %v7848
  %v7852 = vld [vmem:[#allocation3 + $0x150] sm:$0xff]
  %v7853 = vld [vmem:[%s6 + $0x2a0] sm:$0xff]
  %v7854 = vld [vmem:[%s6 + $0x2a8] sm:$0xff]
  %v7856 = vsel %vm69, %v7852, 0
  %7858 = vmatprep.subr.mxu0 0.0
  %7859 = vmatpush1.msra.mxu0 0.0
  %7860 = vmatprep.subr.mxu0 0.0
  %7861 = vmatpush1.msra.mxu0 0.0
  %7862 = vmatprep.subr.mxu0 0.0
  %7863 = vmatpush1.msra.mxu0 0.0
  %7864 = vmatprep.subr.mxu0 0.0
  %7865 = vmatpush1.msra.mxu0 0.0
  %7866 = vmatprep.subr.mxu0 0.0
  %7867 = vmatpush1.msra.mxu0 0.0
  %7868 = vmatprep.subr.mxu0 0.0
  %7869 = vmatpush1.msra.mxu0 0.0
  %7870 = vmatprep.subr.mxu0 0.0
  %7871 = vmatpush1.msra.mxu0 0.0
  %7872 = vmatprep.subr.mxu0 0.0
  %7873 = vmatpush1.msra.mxu0 0.0
  %7874 = vmatprep.subr.mxu0 0.0
  %7875 = vmatpush1.msra.mxu0 0.0
  %7876 = vmatprep.subr.mxu0 0.0
  %7877 = vmatpush1.msra.mxu0 0.0
  %7878 = vmatprep.subr.mxu0 0.0
  %7879 = vmatpush1.msra.mxu0 0.0
  %7880 = vmatprep.subr.mxu0 0.0
  %7881 = vmatpush1.msra.mxu0 0.0
  %7882 = vmatprep.subr.mxu0 0.0
  %7883 = vmatpush1.msra.mxu0 0.0
  %7884 = vmatprep.subr.mxu0 0.0
  %7885 = vmatpush1.msra.mxu0 0.0
  %7886 = vmatprep.subr.mxu0 0.0
  %7887 = vmatpush1.msra.mxu0 %v7854
  %7888 = vmatprep.subr.mxu0 0.0
  %7889 = vmatpush1.msra.mxu0 %v7853
  %7890 = vmatprep.subr.mxu0 0.0
  %7891 = vmatpush2.msra.mxu0 0.0
  %7892 = vmatprep.subr.mxu0 0.0
  %7893 = vmatpush2.msra.mxu0 0.0
  %7894 = vmatprep.subr.mxu0 0.0
  %7895 = vmatpush2.msra.mxu0 0.0
  %7896 = vmatprep.subr.mxu0 0.0
  %7897 = vmatpush2.msra.mxu0 0.0
  %7898 = vmatprep.subr.mxu0 0.0
  %7899 = vmatpush2.msra.mxu0 0.0
  %7900 = vmatprep.subr.mxu0 0.0
  %7901 = vmatpush2.msra.mxu0 0.0
  %7902 = vmatprep.subr.mxu0 0.0
  %7903 = vmatpush2.msra.mxu0 0.0
  %7904 = vmatprep.subr.mxu0 0.0
  %7905 = vmatpush2.msra.mxu0 0.0
  %7906 = vmatprep.subr.mxu0 0.0
  %7907 = vmatpush2.msra.mxu0 0.0
  %7908 = vmatprep.subr.mxu0 0.0
  %7909 = vmatpush2.msra.mxu0 0.0
  %7910 = vmatprep.subr.mxu0 0.0
  %7911 = vmatpush2.msra.mxu0 0.0
  %7912 = vmatprep.subr.mxu0 0.0
  %7913 = vmatpush2.msra.mxu0 0.0
  %7914 = vmatprep.subr.mxu0 0.0
  %7915 = vmatpush2.msra.mxu0 0.0
  %7916 = vmatprep.subr.mxu0 0.0
  %7917 = vmatpush2.msra.mxu0 0.0
  %7918 = vmatprep.subr.mxu0 0.0
  %7919 = vmatpush2.msra.mxu0 0.0
  %7920 = vmatprep.subr.mxu0 0.0
  %7921 = vmatpush2.msra.mxu0 0.0
  %7922 = vmatprep.mubr.f32.mxu0 0.0
  %7923 = vmatmul.mubr.f32.gmra.mxu0 %v7856
  %v7924 = vpop.f32.mrf.mxu0
  %v7925 = vadd.f32 0.0, %v7924
  %v7926 = vpop.f32.mrf.mxu0
  %7927 = vdwg.mxu0
  %v7928 = vadd.f32 %v7851, %v7925
  %v7929 = vld [vmem:[#allocation3 + $0x158] sm:$0xff]
  %v7930 = vld [vmem:[%s6 + $0x2b0] sm:$0xff]
  %v7931 = vld [vmem:[%s6 + $0x2b8] sm:$0xff]
  %v7933 = vsel %vm69, %v7929, 0
  %7935 = vmatprep.subr.mxu0 0.0
  %7936 = vmatpush1.msra.mxu0 0.0
  %7937 = vmatprep.subr.mxu0 0.0
  %7938 = vmatpush1.msra.mxu0 0.0
  %7939 = vmatprep.subr.mxu0 0.0
  %7940 = vmatpush1.msra.mxu0 0.0
  %7941 = vmatprep.subr.mxu0 0.0
  %7942 = vmatpush1.msra.mxu0 0.0
  %7943 = vmatprep.subr.mxu0 0.0
  %7944 = vmatpush1.msra.mxu0 0.0
  %7945 = vmatprep.subr.mxu0 0.0
  %7946 = vmatpush1.msra.mxu0 0.0
  %7947 = vmatprep.subr.mxu0 0.0
  %7948 = vmatpush1.msra.mxu0 0.0
  %7949 = vmatprep.subr.mxu0 0.0
  %7950 = vmatpush1.msra.mxu0 0.0
  %7951 = vmatprep.subr.mxu0 0.0
  %7952 = vmatpush1.msra.mxu0 0.0
  %7953 = vmatprep.subr.mxu0 0.0
  %7954 = vmatpush1.msra.mxu0 0.0
  %7955 = vmatprep.subr.mxu0 0.0
  %7956 = vmatpush1.msra.mxu0 0.0
  %7957 = vmatprep.subr.mxu0 0.0
  %7958 = vmatpush1.msra.mxu0 0.0
  %7959 = vmatprep.subr.mxu0 0.0
  %7960 = vmatpush1.msra.mxu0 0.0
  %7961 = vmatprep.subr.mxu0 0.0
  %7962 = vmatpush1.msra.mxu0 0.0
  %7963 = vmatprep.subr.mxu0 0.0
  %7964 = vmatpush1.msra.mxu0 %v7931
  %7965 = vmatprep.subr.mxu0 0.0
  %7966 = vmatpush1.msra.mxu0 %v7930
  %7967 = vmatprep.subr.mxu0 0.0
  %7968 = vmatpush2.msra.mxu0 0.0
  %7969 = vmatprep.subr.mxu0 0.0
  %7970 = vmatpush2.msra.mxu0 0.0
  %7971 = vmatprep.subr.mxu0 0.0
  %7972 = vmatpush2.msra.mxu0 0.0
  %7973 = vmatprep.subr.mxu0 0.0
  %7974 = vmatpush2.msra.mxu0 0.0
  %7975 = vmatprep.subr.mxu0 0.0
  %7976 = vmatpush2.msra.mxu0 0.0
  %7977 = vmatprep.subr.mxu0 0.0
  %7978 = vmatpush2.msra.mxu0 0.0
  %7979 = vmatprep.subr.mxu0 0.0
  %7980 = vmatpush2.msra.mxu0 0.0
  %7981 = vmatprep.subr.mxu0 0.0
  %7982 = vmatpush2.msra.mxu0 0.0
  %7983 = vmatprep.subr.mxu0 0.0
  %7984 = vmatpush2.msra.mxu0 0.0
  %7985 = vmatprep.subr.mxu0 0.0
  %7986 = vmatpush2.msra.mxu0 0.0
  %7987 = vmatprep.subr.mxu0 0.0
  %7988 = vmatpush2.msra.mxu0 0.0
  %7989 = vmatprep.subr.mxu0 0.0
  %7990 = vmatpush2.msra.mxu0 0.0
  %7991 = vmatprep.subr.mxu0 0.0
  %7992 = vmatpush2.msra.mxu0 0.0
  %7993 = vmatprep.subr.mxu0 0.0
  %7994 = vmatpush2.msra.mxu0 0.0
  %7995 = vmatprep.subr.mxu0 0.0
  %7996 = vmatpush2.msra.mxu0 0.0
  %7997 = vmatprep.subr.mxu0 0.0
  %7998 = vmatpush2.msra.mxu0 0.0
  %7999 = vmatprep.mubr.f32.mxu0 0.0
  %8000 = vmatmul.mubr.f32.gmra.mxu0 %v7933
  %v8001 = vpop.f32.mrf.mxu0
  %v8002 = vadd.f32 0.0, %v8001
  %v8003 = vpop.f32.mrf.mxu0
  %8004 = vdwg.mxu0
  %v8005 = vadd.f32 %v7928, %v8002
  %v8006 = vld [vmem:[#allocation3 + $0x160] sm:$0xff]
  %v8007 = vld [vmem:[%s6 + $0x2c0] sm:$0xff]
  %v8008 = vld [vmem:[%s6 + $0x2c8] sm:$0xff]
  %v8010 = vsel %vm69, %v8006, 0
  %8012 = vmatprep.subr.mxu0 0.0
  %8013 = vmatpush1.msra.mxu0 0.0
  %8014 = vmatprep.subr.mxu0 0.0
  %8015 = vmatpush1.msra.mxu0 0.0
  %8016 = vmatprep.subr.mxu0 0.0
  %8017 = vmatpush1.msra.mxu0 0.0
  %8018 = vmatprep.subr.mxu0 0.0
  %8019 = vmatpush1.msra.mxu0 0.0
  %8020 = vmatprep.subr.mxu0 0.0
  %8021 = vmatpush1.msra.mxu0 0.0
  %8022 = vmatprep.subr.mxu0 0.0
  %8023 = vmatpush1.msra.mxu0 0.0
  %8024 = vmatprep.subr.mxu0 0.0
  %8025 = vmatpush1.msra.mxu0 0.0
  %8026 = vmatprep.subr.mxu0 0.0
  %8027 = vmatpush1.msra.mxu0 0.0
  %8028 = vmatprep.subr.mxu0 0.0
  %8029 = vmatpush1.msra.mxu0 0.0
  %8030 = vmatprep.subr.mxu0 0.0
  %8031 = vmatpush1.msra.mxu0 0.0
  %8032 = vmatprep.subr.mxu0 0.0
  %8033 = vmatpush1.msra.mxu0 0.0
  %8034 = vmatprep.subr.mxu0 0.0
  %8035 = vmatpush1.msra.mxu0 0.0
  %8036 = vmatprep.subr.mxu0 0.0
  %8037 = vmatpush1.msra.mxu0 0.0
  %8038 = vmatprep.subr.mxu0 0.0
  %8039 = vmatpush1.msra.mxu0 0.0
  %8040 = vmatprep.subr.mxu0 0.0
  %8041 = vmatpush1.msra.mxu0 %v8008
  %8042 = vmatprep.subr.mxu0 0.0
  %8043 = vmatpush1.msra.mxu0 %v8007
  %8044 = vmatprep.subr.mxu0 0.0
  %8045 = vmatpush2.msra.mxu0 0.0
  %8046 = vmatprep.subr.mxu0 0.0
  %8047 = vmatpush2.msra.mxu0 0.0
  %8048 = vmatprep.subr.mxu0 0.0
  %8049 = vmatpush2.msra.mxu0 0.0
  %8050 = vmatprep.subr.mxu0 0.0
  %8051 = vmatpush2.msra.mxu0 0.0
  %8052 = vmatprep.subr.mxu0 0.0
  %8053 = vmatpush2.msra.mxu0 0.0
  %8054 = vmatprep.subr.mxu0 0.0
  %8055 = vmatpush2.msra.mxu0 0.0
  %8056 = vmatprep.subr.mxu0 0.0
  %8057 = vmatpush2.msra.mxu0 0.0
  %8058 = vmatprep.subr.mxu0 0.0
  %8059 = vmatpush2.msra.mxu0 0.0
  %8060 = vmatprep.subr.mxu0 0.0
  %8061 = vmatpush2.msra.mxu0 0.0
  %8062 = vmatprep.subr.mxu0 0.0
  %8063 = vmatpush2.msra.mxu0 0.0
  %8064 = vmatprep.subr.mxu0 0.0
  %8065 = vmatpush2.msra.mxu0 0.0
  %8066 = vmatprep.subr.mxu0 0.0
  %8067 = vmatpush2.msra.mxu0 0.0
  %8068 = vmatprep.subr.mxu0 0.0
  %8069 = vmatpush2.msra.mxu0 0.0
  %8070 = vmatprep.subr.mxu0 0.0
  %8071 = vmatpush2.msra.mxu0 0.0
  %8072 = vmatprep.subr.mxu0 0.0
  %8073 = vmatpush2.msra.mxu0 0.0
  %8074 = vmatprep.subr.mxu0 0.0
  %8075 = vmatpush2.msra.mxu0 0.0
  %8076 = vmatprep.mubr.f32.mxu0 0.0
  %8077 = vmatmul.mubr.f32.gmra.mxu0 %v8010
  %v8078 = vpop.f32.mrf.mxu0
  %v8079 = vadd.f32 0.0, %v8078
  %v8080 = vpop.f32.mrf.mxu0
  %8081 = vdwg.mxu0
  %v8082 = vadd.f32 %v8005, %v8079
  %v8083 = vld [vmem:[#allocation3 + $0x168] sm:$0xff]
  %v8084 = vld [vmem:[%s6 + $0x2d0] sm:$0xff]
  %v8085 = vld [vmem:[%s6 + $0x2d8] sm:$0xff]
  %v8087 = vsel %vm69, %v8083, 0
  %8089 = vmatprep.subr.mxu0 0.0
  %8090 = vmatpush1.msra.mxu0 0.0
  %8091 = vmatprep.subr.mxu0 0.0
  %8092 = vmatpush1.msra.mxu0 0.0
  %8093 = vmatprep.subr.mxu0 0.0
  %8094 = vmatpush1.msra.mxu0 0.0
  %8095 = vmatprep.subr.mxu0 0.0
  %8096 = vmatpush1.msra.mxu0 0.0
  %8097 = vmatprep.subr.mxu0 0.0
  %8098 = vmatpush1.msra.mxu0 0.0
  %8099 = vmatprep.subr.mxu0 0.0
  %8100 = vmatpush1.msra.mxu0 0.0
  %8101 = vmatprep.subr.mxu0 0.0
  %8102 = vmatpush1.msra.mxu0 0.0
  %8103 = vmatprep.subr.mxu0 0.0
  %8104 = vmatpush1.msra.mxu0 0.0
  %8105 = vmatprep.subr.mxu0 0.0
  %8106 = vmatpush1.msra.mxu0 0.0
  %8107 = vmatprep.subr.mxu0 0.0
  %8108 = vmatpush1.msra.mxu0 0.0
  %8109 = vmatprep.subr.mxu0 0.0
  %8110 = vmatpush1.msra.mxu0 0.0
  %8111 = vmatprep.subr.mxu0 0.0
  %8112 = vmatpush1.msra.mxu0 0.0
  %8113 = vmatprep.subr.mxu0 0.0
  %8114 = vmatpush1.msra.mxu0 0.0
  %8115 = vmatprep.subr.mxu0 0.0
  %8116 = vmatpush1.msra.mxu0 0.0
  %8117 = vmatprep.subr.mxu0 0.0
  %8118 = vmatpush1.msra.mxu0 %v8085
  %8119 = vmatprep.subr.mxu0 0.0
  %8120 = vmatpush1.msra.mxu0 %v8084
  %8121 = vmatprep.subr.mxu0 0.0
  %8122 = vmatpush2.msra.mxu0 0.0
  %8123 = vmatprep.subr.mxu0 0.0
  %8124 = vmatpush2.msra.mxu0 0.0
  %8125 = vmatprep.subr.mxu0 0.0
  %8126 = vmatpush2.msra.mxu0 0.0
  %8127 = vmatprep.subr.mxu0 0.0
  %8128 = vmatpush2.msra.mxu0 0.0
  %8129 = vmatprep.subr.mxu0 0.0
  %8130 = vmatpush2.msra.mxu0 0.0
  %8131 = vmatprep.subr.mxu0 0.0
  %8132 = vmatpush2.msra.mxu0 0.0
  %8133 = vmatprep.subr.mxu0 0.0
  %8134 = vmatpush2.msra.mxu0 0.0
  %8135 = vmatprep.subr.mxu0 0.0
  %8136 = vmatpush2.msra.mxu0 0.0
  %8137 = vmatprep.subr.mxu0 0.0
  %8138 = vmatpush2.msra.mxu0 0.0
  %8139 = vmatprep.subr.mxu0 0.0
  %8140 = vmatpush2.msra.mxu0 0.0
  %8141 = vmatprep.subr.mxu0 0.0
  %8142 = vmatpush2.msra.mxu0 0.0
  %8143 = vmatprep.subr.mxu0 0.0
  %8144 = vmatpush2.msra.mxu0 0.0
  %8145 = vmatprep.subr.mxu0 0.0
  %8146 = vmatpush2.msra.mxu0 0.0
  %8147 = vmatprep.subr.mxu0 0.0
  %8148 = vmatpush2.msra.mxu0 0.0
  %8149 = vmatprep.subr.mxu0 0.0
  %8150 = vmatpush2.msra.mxu0 0.0
  %8151 = vmatprep.subr.mxu0 0.0
  %8152 = vmatpush2.msra.mxu0 0.0
  %8153 = vmatprep.mubr.f32.mxu0 0.0
  %8154 = vmatmul.mubr.f32.gmra.mxu0 %v8087
  %v8155 = vpop.f32.mrf.mxu0
  %v8156 = vadd.f32 0.0, %v8155
  %v8157 = vpop.f32.mrf.mxu0
  %8158 = vdwg.mxu0
  %v8159 = vadd.f32 %v8082, %v8156
  %v8160 = vld [vmem:[#allocation3 + $0x170] sm:$0xff]
  %v8161 = vld [vmem:[%s6 + $0x2e0] sm:$0xff]
  %v8162 = vld [vmem:[%s6 + $0x2e8] sm:$0xff]
  %v8164 = vsel %vm69, %v8160, 0
  %8166 = vmatprep.subr.mxu0 0.0
  %8167 = vmatpush1.msra.mxu0 0.0
  %8168 = vmatprep.subr.mxu0 0.0
  %8169 = vmatpush1.msra.mxu0 0.0
  %8170 = vmatprep.subr.mxu0 0.0
  %8171 = vmatpush1.msra.mxu0 0.0
  %8172 = vmatprep.subr.mxu0 0.0
  %8173 = vmatpush1.msra.mxu0 0.0
  %8174 = vmatprep.subr.mxu0 0.0
  %8175 = vmatpush1.msra.mxu0 0.0
  %8176 = vmatprep.subr.mxu0 0.0
  %8177 = vmatpush1.msra.mxu0 0.0
  %8178 = vmatprep.subr.mxu0 0.0
  %8179 = vmatpush1.msra.mxu0 0.0
  %8180 = vmatprep.subr.mxu0 0.0
  %8181 = vmatpush1.msra.mxu0 0.0
  %8182 = vmatprep.subr.mxu0 0.0
  %8183 = vmatpush1.msra.mxu0 0.0
  %8184 = vmatprep.subr.mxu0 0.0
  %8185 = vmatpush1.msra.mxu0 0.0
  %8186 = vmatprep.subr.mxu0 0.0
  %8187 = vmatpush1.msra.mxu0 0.0
  %8188 = vmatprep.subr.mxu0 0.0
  %8189 = vmatpush1.msra.mxu0 0.0
  %8190 = vmatprep.subr.mxu0 0.0
  %8191 = vmatpush1.msra.mxu0 0.0
  %8192 = vmatprep.subr.mxu0 0.0
  %8193 = vmatpush1.msra.mxu0 0.0
  %8194 = vmatprep.subr.mxu0 0.0
  %8195 = vmatpush1.msra.mxu0 %v8162
  %8196 = vmatprep.subr.mxu0 0.0
  %8197 = vmatpush1.msra.mxu0 %v8161
  %8198 = vmatprep.subr.mxu0 0.0
  %8199 = vmatpush2.msra.mxu0 0.0
  %8200 = vmatprep.subr.mxu0 0.0
  %8201 = vmatpush2.msra.mxu0 0.0
  %8202 = vmatprep.subr.mxu0 0.0
  %8203 = vmatpush2.msra.mxu0 0.0
  %8204 = vmatprep.subr.mxu0 0.0
  %8205 = vmatpush2.msra.mxu0 0.0
  %8206 = vmatprep.subr.mxu0 0.0
  %8207 = vmatpush2.msra.mxu0 0.0
  %8208 = vmatprep.subr.mxu0 0.0
  %8209 = vmatpush2.msra.mxu0 0.0
  %8210 = vmatprep.subr.mxu0 0.0
  %8211 = vmatpush2.msra.mxu0 0.0
  %8212 = vmatprep.subr.mxu0 0.0
  %8213 = vmatpush2.msra.mxu0 0.0
  %8214 = vmatprep.subr.mxu0 0.0
  %8215 = vmatpush2.msra.mxu0 0.0
  %8216 = vmatprep.subr.mxu0 0.0
  %8217 = vmatpush2.msra.mxu0 0.0
  %8218 = vmatprep.subr.mxu0 0.0
  %8219 = vmatpush2.msra.mxu0 0.0
  %8220 = vmatprep.subr.mxu0 0.0
  %8221 = vmatpush2.msra.mxu0 0.0
  %8222 = vmatprep.subr.mxu0 0.0
  %8223 = vmatpush2.msra.mxu0 0.0
  %8224 = vmatprep.subr.mxu0 0.0
  %8225 = vmatpush2.msra.mxu0 0.0
  %8226 = vmatprep.subr.mxu0 0.0
  %8227 = vmatpush2.msra.mxu0 0.0
  %8228 = vmatprep.subr.mxu0 0.0
  %8229 = vmatpush2.msra.mxu0 0.0
  %8230 = vmatprep.mubr.f32.mxu0 0.0
  %8231 = vmatmul.mubr.f32.gmra.mxu0 %v8164
  %v8232 = vpop.f32.mrf.mxu0
  %v8233 = vadd.f32 0.0, %v8232
  %v8234 = vpop.f32.mrf.mxu0
  %8235 = vdwg.mxu0
  %v8236 = vadd.f32 %v8159, %v8233
  %v8237 = vld [vmem:[#allocation3 + $0x178] sm:$0xff]
  %v8238 = vld [vmem:[%s6 + $0x2f0] sm:$0xff]
  %v8239 = vld [vmem:[%s6 + $0x2f8] sm:$0xff]
  %v8241 = vsel %vm69, %v8237, 0
  %8243 = vmatprep.subr.mxu0 0.0
  %8244 = vmatpush1.msra.mxu0 0.0
  %8245 = vmatprep.subr.mxu0 0.0
  %8246 = vmatpush1.msra.mxu0 0.0
  %8247 = vmatprep.subr.mxu0 0.0
  %8248 = vmatpush1.msra.mxu0 0.0
  %8249 = vmatprep.subr.mxu0 0.0
  %8250 = vmatpush1.msra.mxu0 0.0
  %8251 = vmatprep.subr.mxu0 0.0
  %8252 = vmatpush1.msra.mxu0 0.0
  %8253 = vmatprep.subr.mxu0 0.0
  %8254 = vmatpush1.msra.mxu0 0.0
  %8255 = vmatprep.subr.mxu0 0.0
  %8256 = vmatpush1.msra.mxu0 0.0
  %8257 = vmatprep.subr.mxu0 0.0
  %8258 = vmatpush1.msra.mxu0 0.0
  %8259 = vmatprep.subr.mxu0 0.0
  %8260 = vmatpush1.msra.mxu0 0.0
  %8261 = vmatprep.subr.mxu0 0.0
  %8262 = vmatpush1.msra.mxu0 0.0
  %8263 = vmatprep.subr.mxu0 0.0
  %8264 = vmatpush1.msra.mxu0 0.0
  %8265 = vmatprep.subr.mxu0 0.0
  %8266 = vmatpush1.msra.mxu0 0.0
  %8267 = vmatprep.subr.mxu0 0.0
  %8268 = vmatpush1.msra.mxu0 0.0
  %8269 = vmatprep.subr.mxu0 0.0
  %8270 = vmatpush1.msra.mxu0 0.0
  %8271 = vmatprep.subr.mxu0 0.0
  %8272 = vmatpush1.msra.mxu0 %v8239
  %8273 = vmatprep.subr.mxu0 0.0
  %8274 = vmatpush1.msra.mxu0 %v8238
  %8275 = vmatprep.subr.mxu0 0.0
  %8276 = vmatpush2.msra.mxu0 0.0
  %8277 = vmatprep.subr.mxu0 0.0
  %8278 = vmatpush2.msra.mxu0 0.0
  %8279 = vmatprep.subr.mxu0 0.0
  %8280 = vmatpush2.msra.mxu0 0.0
  %8281 = vmatprep.subr.mxu0 0.0
  %8282 = vmatpush2.msra.mxu0 0.0
  %8283 = vmatprep.subr.mxu0 0.0
  %8284 = vmatpush2.msra.mxu0 0.0
  %8285 = vmatprep.subr.mxu0 0.0
  %8286 = vmatpush2.msra.mxu0 0.0
  %8287 = vmatprep.subr.mxu0 0.0
  %8288 = vmatpush2.msra.mxu0 0.0
  %8289 = vmatprep.subr.mxu0 0.0
  %8290 = vmatpush2.msra.mxu0 0.0
  %8291 = vmatprep.subr.mxu0 0.0
  %8292 = vmatpush2.msra.mxu0 0.0
  %8293 = vmatprep.subr.mxu0 0.0
  %8294 = vmatpush2.msra.mxu0 0.0
  %8295 = vmatprep.subr.mxu0 0.0
  %8296 = vmatpush2.msra.mxu0 0.0
  %8297 = vmatprep.subr.mxu0 0.0
  %8298 = vmatpush2.msra.mxu0 0.0
  %8299 = vmatprep.subr.mxu0 0.0
  %8300 = vmatpush2.msra.mxu0 0.0
  %8301 = vmatprep.subr.mxu0 0.0
  %8302 = vmatpush2.msra.mxu0 0.0
  %8303 = vmatprep.subr.mxu0 0.0
  %8304 = vmatpush2.msra.mxu0 0.0
  %8305 = vmatprep.subr.mxu0 0.0
  %8306 = vmatpush2.msra.mxu0 0.0
  %8307 = vmatprep.mubr.f32.mxu0 0.0
  %8308 = vmatmul.mubr.f32.gmra.mxu0 %v8241
  %v8309 = vpop.f32.mrf.mxu0
  %v8310 = vadd.f32 0.0, %v8309
  %v8311 = vpop.f32.mrf.mxu0
  %8312 = vdwg.mxu0
  %v8313 = vadd.f32 %v8236, %v8310
  %v8314 = vld [vmem:[#allocation3 + $0x180] sm:$0xff]
  %v8315 = vld [vmem:[%s6 + $0x300] sm:$0xff]
  %v8316 = vld [vmem:[%s6 + $0x308] sm:$0xff]
  %v8318 = vsel %vm69, %v8314, 0
  %8320 = vmatprep.subr.mxu0 0.0
  %8321 = vmatpush1.msra.mxu0 0.0
  %8322 = vmatprep.subr.mxu0 0.0
  %8323 = vmatpush1.msra.mxu0 0.0
  %8324 = vmatprep.subr.mxu0 0.0
  %8325 = vmatpush1.msra.mxu0 0.0
  %8326 = vmatprep.subr.mxu0 0.0
  %8327 = vmatpush1.msra.mxu0 0.0
  %8328 = vmatprep.subr.mxu0 0.0
  %8329 = vmatpush1.msra.mxu0 0.0
  %8330 = vmatprep.subr.mxu0 0.0
  %8331 = vmatpush1.msra.mxu0 0.0
  %8332 = vmatprep.subr.mxu0 0.0
  %8333 = vmatpush1.msra.mxu0 0.0
  %8334 = vmatprep.subr.mxu0 0.0
  %8335 = vmatpush1.msra.mxu0 0.0
  %8336 = vmatprep.subr.mxu0 0.0
  %8337 = vmatpush1.msra.mxu0 0.0
  %8338 = vmatprep.subr.mxu0 0.0
  %8339 = vmatpush1.msra.mxu0 0.0
  %8340 = vmatprep.subr.mxu0 0.0
  %8341 = vmatpush1.msra.mxu0 0.0
  %8342 = vmatprep.subr.mxu0 0.0
  %8343 = vmatpush1.msra.mxu0 0.0
  %8344 = vmatprep.subr.mxu0 0.0
  %8345 = vmatpush1.msra.mxu0 0.0
  %8346 = vmatprep.subr.mxu0 0.0
  %8347 = vmatpush1.msra.mxu0 0.0
  %8348 = vmatprep.subr.mxu0 0.0
  %8349 = vmatpush1.msra.mxu0 %v8316
  %8350 = vmatprep.subr.mxu0 0.0
  %8351 = vmatpush1.msra.mxu0 %v8315
  %8352 = vmatprep.subr.mxu0 0.0
  %8353 = vmatpush2.msra.mxu0 0.0
  %8354 = vmatprep.subr.mxu0 0.0
  %8355 = vmatpush2.msra.mxu0 0.0
  %8356 = vmatprep.subr.mxu0 0.0
  %8357 = vmatpush2.msra.mxu0 0.0
  %8358 = vmatprep.subr.mxu0 0.0
  %8359 = vmatpush2.msra.mxu0 0.0
  %8360 = vmatprep.subr.mxu0 0.0
  %8361 = vmatpush2.msra.mxu0 0.0
  %8362 = vmatprep.subr.mxu0 0.0
  %8363 = vmatpush2.msra.mxu0 0.0
  %8364 = vmatprep.subr.mxu0 0.0
  %8365 = vmatpush2.msra.mxu0 0.0
  %8366 = vmatprep.subr.mxu0 0.0
  %8367 = vmatpush2.msra.mxu0 0.0
  %8368 = vmatprep.subr.mxu0 0.0
  %8369 = vmatpush2.msra.mxu0 0.0
  %8370 = vmatprep.subr.mxu0 0.0
  %8371 = vmatpush2.msra.mxu0 0.0
  %8372 = vmatprep.subr.mxu0 0.0
  %8373 = vmatpush2.msra.mxu0 0.0
  %8374 = vmatprep.subr.mxu0 0.0
  %8375 = vmatpush2.msra.mxu0 0.0
  %8376 = vmatprep.subr.mxu0 0.0
  %8377 = vmatpush2.msra.mxu0 0.0
  %8378 = vmatprep.subr.mxu0 0.0
  %8379 = vmatpush2.msra.mxu0 0.0
  %8380 = vmatprep.subr.mxu0 0.0
  %8381 = vmatpush2.msra.mxu0 0.0
  %8382 = vmatprep.subr.mxu0 0.0
  %8383 = vmatpush2.msra.mxu0 0.0
  %8384 = vmatprep.mubr.f32.mxu0 0.0
  %8385 = vmatmul.mubr.f32.gmra.mxu0 %v8318
  %v8386 = vpop.f32.mrf.mxu0
  %v8387 = vadd.f32 0.0, %v8386
  %v8388 = vpop.f32.mrf.mxu0
  %8389 = vdwg.mxu0
  %v8390 = vadd.f32 %v8313, %v8387
  %v8391 = vld [vmem:[%s7] sm:$0x1]
  %v8393 = vlaneseq
  %v8394 = vshrl.u32 %v8393, 7
  %v8395 = vsub.s32 0, %v8394
  %v8396 = vrot.slane %v8391, %v8395
  %v8398 = vadd.f32 %v8390, %v8396
  %v8399 = vmax.f32 %v8398, 0.0
  %v8400 = vld [vmem:[%s8] sm:$0xff]
  %v8401 = vld [vmem:[%s8 + $0x8] sm:$0xff]
  %v8402 = vld [vmem:[%s9] sm:$0x1]
  %v8404 = vlaneseq
  %v8405 = vshrl.u32 %v8404, 7
  %v8406 = vsub.s32 0, %v8405
  %v8407 = vrot.slane %v8402, %v8406
  %v8410 = vsel %vm69, %v8399, 0
  %8412 = vmatprep.subr.mxu0 0.0
  %8413 = vmatpush1.msra.mxu0 0.0
  %8414 = vmatprep.subr.mxu0 0.0
  %8415 = vmatpush1.msra.mxu0 0.0
  %8416 = vmatprep.subr.mxu0 0.0
  %8417 = vmatpush1.msra.mxu0 0.0
  %8418 = vmatprep.subr.mxu0 0.0
  %8419 = vmatpush1.msra.mxu0 0.0
  %8420 = vmatprep.subr.mxu0 0.0
  %8421 = vmatpush1.msra.mxu0 0.0
  %8422 = vmatprep.subr.mxu0 0.0
  %8423 = vmatpush1.msra.mxu0 0.0
  %8424 = vmatprep.subr.mxu0 0.0
  %8425 = vmatpush1.msra.mxu0 0.0
  %8426 = vmatprep.subr.mxu0 0.0
  %8427 = vmatpush1.msra.mxu0 0.0
  %8428 = vmatprep.subr.mxu0 0.0
  %8429 = vmatpush1.msra.mxu0 0.0
  %8430 = vmatprep.subr.mxu0 0.0
  %8431 = vmatpush1.msra.mxu0 0.0
  %8432 = vmatprep.subr.mxu0 0.0
  %8433 = vmatpush1.msra.mxu0 0.0
  %8434 = vmatprep.subr.mxu0 0.0
  %8435 = vmatpush1.msra.mxu0 0.0
  %8436 = vmatprep.subr.mxu0 0.0
  %8437 = vmatpush1.msra.mxu0 0.0
  %8438 = vmatprep.subr.mxu0 0.0
  %8439 = vmatpush1.msra.mxu0 0.0
  %8440 = vmatprep.subr.mxu0 0.0
  %8441 = vmatpush1.msra.mxu0 %v8401
  %8442 = vmatprep.subr.mxu0 0.0
  %8443 = vmatpush1.msra.mxu0 %v8400
  %8444 = vmatprep.subr.mxu0 0.0
  %8445 = vmatpush2.msra.mxu0 0.0
  %8446 = vmatprep.subr.mxu0 0.0
  %8447 = vmatpush2.msra.mxu0 0.0
  %8448 = vmatprep.subr.mxu0 0.0
  %8449 = vmatpush2.msra.mxu0 0.0
  %8450 = vmatprep.subr.mxu0 0.0
  %8451 = vmatpush2.msra.mxu0 0.0
  %8452 = vmatprep.subr.mxu0 0.0
  %8453 = vmatpush2.msra.mxu0 0.0
  %8454 = vmatprep.subr.mxu0 0.0
  %8455 = vmatpush2.msra.mxu0 0.0
  %8456 = vmatprep.subr.mxu0 0.0
  %8457 = vmatpush2.msra.mxu0 0.0
  %8458 = vmatprep.subr.mxu0 0.0
  %8459 = vmatpush2.msra.mxu0 0.0
  %8460 = vmatprep.subr.mxu0 0.0
  %8461 = vmatpush2.msra.mxu0 0.0
  %8462 = vmatprep.subr.mxu0 0.0
  %8463 = vmatpush2.msra.mxu0 0.0
  %8464 = vmatprep.subr.mxu0 0.0
  %8465 = vmatpush2.msra.mxu0 0.0
  %8466 = vmatprep.subr.mxu0 0.0
  %8467 = vmatpush2.msra.mxu0 0.0
  %8468 = vmatprep.subr.mxu0 0.0
  %8469 = vmatpush2.msra.mxu0 0.0
  %8470 = vmatprep.subr.mxu0 0.0
  %8471 = vmatpush2.msra.mxu0 0.0
  %8472 = vmatprep.subr.mxu0 0.0
  %8473 = vmatpush2.msra.mxu0 0.0
  %8474 = vmatprep.subr.mxu0 0.0
  %8475 = vmatpush2.msra.mxu0 0.0
  %8476 = vmatprep.mubr.f32.mxu0 0.0
  %8477 = vmatmul.mubr.f32.gmra.mxu0 %v8410
  %v8478 = vpop.f32.mrf.mxu0
  %v8479 = vadd.f32 %v8407, %v8478
  %v8480 = vpop.f32.mrf.mxu0
  %8481 = vdwg.mxu0
  %v8482 = vtanh.pop %v8479
  %vm8483 = vcmask 31744
  %8484 = vst.msk [vmem:[%s10] sm:$0xff] %vm8483, %v8482
  // Predicated region
  $region42: #{actor_forward.1} parent=0 // pred_check
    _
  $region43: #{actor_forward.1} parent=0 // pred_check_branch
    %8486 = sbr.rel (0) target = $region45
  $region44: #{actor_forward.1} parent=0 // pred_region
    _
  $region45: #{actor_forward.1} parent=0 // pred_fallthru
    _
  // Predicated region
  $region46: #{actor_forward.1} parent=0 // pred_check
    _
  $region47: #{actor_forward.1} parent=0 // pred_check_branch
    %8488 = sbr.rel (0) target = $region49
  $region48: #{actor_forward.1} parent=0 // pred_region
    _
  $region49: #{actor_forward.1} parent=0 // pred_fallthru
    _

</llo_original>
